<compile_context>
chip_gen: v7x
topology: tpu7x:2x2x1
jax: 0.10.0
libtpu: 0.0.40
codegen_flags: <defaults>
</compile_context>

<pallas_src>
import jax
import jax.numpy as jnp
import numpy as np
from jax.experimental import pallas as pl
from jax.experimental.pallas import tpu as pltpu

# ----------------------------- eKAN spline config ---------------------------------
GRID_SIZE = 3
SPLINE_ORDER = 2
K_BASIS = GRID_SIZE + SPLINE_ORDER                      # number of B-spline basis fns
GRID_RANGE = (-1.0, 1.0)
_H = (GRID_RANGE[1] - GRID_RANGE[0]) / GRID_SIZE
KNOTS = [GRID_RANGE[0] + (i - SPLINE_ORDER) * _H
         for i in range(GRID_SIZE + 2 * SPLINE_ORDER + 1)]


def _cox_de_boor(u, dtype):
    """Unrolled Cox-de-Boor recursion in `dtype`. u: (..., D) -> list of K_BASIS arrays."""
    n_int = len(KNOTS) - 1
    bases = [((u >= KNOTS[i]) & (u < KNOTS[i + 1])).astype(dtype)
             for i in range(n_int)]
    for k in range(1, SPLINE_ORDER + 1):
        nxt = []
        for i in range(n_int - k):
            inv_l = 1.0 / (KNOTS[i + k] - KNOTS[i])      # compile-time constants
            inv_r = 1.0 / (KNOTS[i + k + 1] - KNOTS[i + 1])
            left = (u - KNOTS[i]) * inv_l * bases[i]
            right = (KNOTS[i + k + 1] - u) * inv_r * bases[i + 1]
            nxt.append(left + right)
        bases = nxt
    return bases                                         # K_BASIS arrays


# ----------------------------------- kernel ---------------------------------------
def node_embed_kernel(x_ref, ctx_ref, invc_ref,
                      wnc_ref, bnc_ref, wu_ref, bu_ref, wkan_ref,
                      out_ref):
    cd = wnc_ref.dtype                                   # MXU / basis compute dtype
    x = x_ref[...]                                       # (TN, F) in compute dtype
    inv_cnt = invc_ref[...]                              # (TN, 1) f32, exact 1/cnt, 0 if no ctx
    C = ctx_ref.shape[0]

    # ---- context mean: slots are zero-padded, so a plain sum scaled by exact 1/cnt ----
    ctx_sum = ctx_ref[0].astype(jnp.float32)
    for c in range(1, C):                                # small static unroll
        ctx_sum = ctx_sum + ctx_ref[c].astype(jnp.float32)
    ctx_mean = ctx_sum * inv_cnt                         # (TN, F) f32

    # ---- fused node+context transform: [x, mean(ctx)] @ [wn.T ; wc.T] + (bn+bc) -------
    xm = jnp.concatenate([x.astype(cd), ctx_mean.astype(cd)], axis=-1)      # (TN, 2F)
    h = jnp.dot(xm, wnc_ref[...], preferred_element_type=jnp.float32) + bnc_ref[...]

    # ---- update_transform --------------------------------------------------------------
    u = jnp.dot(h.astype(cd), wu_ref[...],
                preferred_element_type=jnp.float32) + bu_ref[...]           # (TN, D) f32

    # ---- eKAN([D, D]) single KANLinear: fused [silu(u), basis] @ [wbase.T ; wspline_f] --
    silu = (u * jax.nn.sigmoid(u)).astype(cd)            # SiLU via EUP sigmoid
    bases = _cox_de_boor(u.astype(cd), cd)               # K_BASIS x (TN, D) in compute dtype
    slab = jnp.concatenate([silu] + bases, axis=-1)      # (TN, (K+1)*D) lane concat
    kan_out = jnp.dot(slab, wkan_ref[...], preferred_element_type=jnp.float32)  # (TN, D)

    # nodes with no contexts keep their raw features (requires F == D_out)
    out_ref[...] = jnp.where(inv_cnt > 0.0,
                             kan_out.astype(out_ref.dtype),
                             x.astype(out_ref.dtype))


# ---------------------------------- wrapper ---------------------------------------
def node_embedding_layer(x, contexts_slot_major, counts, params, *,
                         tile_n=512, compute_dtype=jnp.bfloat16, out_dtype=None):
    """x: (N, F); contexts_slot_major: (C, N, F) zero-padded; counts: (N,) int -> (N, D)."""
    N, F = x.shape
    C = contexts_slot_major.shape[0]
    H = params["wn"].shape[0]
    D = params["wu"].shape[0]
    K = params["wspline"].shape[-1]
    assert F == D, "no-context fallback stacks x[node] with KAN outputs => F must equal D"

    tile_n = min(tile_n, N)
    assert N % tile_n == 0 and tile_n % 8 == 0

    cd = compute_dtype
    od = cd if out_dtype is None else out_dtype

    # exact per-node reciprocal count (0 where no contexts) -- precomputed in the wrapper
    cnt = counts.astype(jnp.float32).reshape(N, 1)
    inv_cnt = jnp.where(cnt > 0.0, 1.0 / jnp.maximum(cnt, 1.0), 0.0)        # (N, 1) f32

    x_cd = x.astype(cd)                                  # bf16 x halves that HBM stream
    ctx = contexts_slot_major.astype(cd)                 # bf16 contexts: dominant stream

    # ---- stacked / fused weights, pre-transposed to (in, out) --------------------------
    wnc = jnp.concatenate([params["wn"].T, params["wc"].T], axis=0).astype(cd)   # (2F, H)
    bnc = (params["bn"] + params["bc"]).reshape(1, H).astype(jnp.float32)
    wu_t = params["wu"].T.astype(cd)                                             # (H, D)
    bu = params["bu"].reshape(1, D).astype(jnp.float32)
    # spline fusion: (D_out, D_in, K) -> (K, D_in, D_out) -> (K*D_in, D_out)
    wspline_f = jnp.transpose(params["wspline"], (2, 1, 0)).reshape(K * D, D)
    wkan = jnp.concatenate([params["wbase"].T, wspline_f], axis=0).astype(cd)    # ((K+1)*D, D)

    grid = (N // tile_n,)
    full = lambda shape: pl.BlockSpec(shape, lambda i, _n=len(shape): (0,) * _n)

    return pl.pallas_call(
        node_embed_kernel,
        out_shape=jax.ShapeDtypeStruct((N, D), od),
        grid=grid,
        in_specs=[
            pl.BlockSpec((tile_n, F), lambda i: (i, 0)),            # x
            pl.BlockSpec((C, tile_n, F), lambda i: (0, i, 0)),      # contexts, slot-major
            pl.BlockSpec((tile_n, 1), lambda i: (i, 0)),            # exact 1/cnt (lane-pads)
            full((2 * F, H)), full((1, H)),                         # fused node+context linear
            full((H, D)), full((1, D)),                             # update_transform
            full(((K + 1) * D, D)),                                 # fused KAN base+spline weight
        ],
        out_specs=pl.BlockSpec((tile_n, D), lambda i: (i, 0)),
        compiler_params=pltpu.CompilerParams(dimension_semantics=("parallel",)),
    )(x_cd, ctx, inv_cnt, wnc, bnc, wu_t, bu, wkan)


# ----------------------------- pure-JAX reference ----------------------------------
def reference(x, contexts, counts, p):
    """contexts: (N, C, F) node-major, zero-padded past counts[n]. Mirrors the torch forward."""
    hi = jax.lax.Precision.HIGHEST
    cnt = counts.astype(jnp.float32)[:, None]
    slot = jnp.arange(contexts.shape[1], dtype=jnp.float32)[None, :, None]
    valid = (slot < cnt[:, :, None]).astype(jnp.float32)
    x_t = jnp.dot(x, p["wn"].T, precision=hi) + p["bn"]
    ctx_t = jnp.einsum("ncf,hf->nch", contexts, p["wc"], precision=hi) + p["bc"]
    ctx_mean = (ctx_t * valid).sum(1) / jnp.maximum(cnt, 1.0)        # transform THEN mean
    u = jnp.dot(x_t + ctx_mean, p["wu"].T, precision=hi) + p["bu"]
    base = jnp.dot(u * jax.nn.sigmoid(u), p["wbase"].T, precision=hi)
    B = jnp.stack(_cox_de_boor(u, jnp.float32), axis=-1)             # (N, D, K)
    spline = jnp.einsum("ndk,odk->no", B, p["wspline"], precision=hi)
    return jnp.where(cnt > 0.0, base + spline, x)


# ------------------------------------- main ----------------------------------------
if __name__ == "__main__":
    # F == H == D == 128 -> lane-dense vregs and unmasked output stores; F == D so the
    # "no-context" branch type-checks, as in the torch module.
    N, C, F, H, D = 1024, 4, 128, 128, 128

    key = jax.random.PRNGKey(0)
    ks = jax.random.split(key, 11)
    params = {
        "wn": 0.1 * jax.random.normal(ks[0], (H, F), jnp.float32),
        "bn": 0.1 * jax.random.normal(ks[1], (H,), jnp.float32),
        "wc": 0.1 * jax.random.normal(ks[2], (H, F), jnp.float32),
        "bc": 0.1 * jax.random.normal(ks[3], (H,), jnp.float32),
        "wu": 0.1 * jax.random.normal(ks[4], (D, H), jnp.float32),
        "bu": 0.1 * jax.random.normal(ks[5], (D,), jnp.float32),
        "wbase": 0.1 * jax.random.normal(ks[6], (D, D), jnp.float32),
        "wspline": 0.1 * jax.random.normal(ks[7], (D, D, K_BASIS), jnp.float32),
    }

    x = jax.random.normal(ks[8], (N, F), jnp.float32)
    contexts = jax.random.normal(ks[9], (N, C, F), jnp.float32)         # node-major slots
    counts = jax.random.randint(ks[10], (N,), 0, C + 1).astype(jnp.int32)
    # producer contract: unused slots are zero-padded (the kernel sums slots unmasked)
    slot_mask = (jnp.arange(C)[None, :, None] < counts[:, None, None]).astype(jnp.float32)
    contexts = contexts * slot_mask

    # slot-major layout for the kernel (in production, densify the dict in this layout directly)
    ctx_slot_major = jnp.transpose(contexts, (1, 0, 2))                  # (C, N, F)

    ref = reference(x, contexts, counts, params)

    # f32 run: exercises the fused-matmul / aggregate-first logic with exact 1/cnt.
    # Tolerance covers MXU f32-pass vs HIGHEST-precision XLA reassociation only.
    out_f32 = node_embedding_layer(x, ctx_slot_major, counts, params,
                                   tile_n=256, compute_dtype=jnp.float32,
                                   out_dtype=jnp.float32)
    out_f32 = jax.block_until_ready(out_f32)
    np.testing.assert_allclose(np.asarray(out_f32), np.asarray(ref), rtol=2e-2, atol=2e-2)

    # bf16 default path: bf16 x / contexts / weights / output and bf16 Cox-de-Boor;
    # compared against the f32 reference, so tolerance reflects bf16 rounding end to end.
    out_bf16 = node_embedding_layer(x, ctx_slot_major, counts, params, tile_n=512)
    out_bf16 = jax.block_until_ready(out_bf16)
    np.testing.assert_allclose(np.asarray(out_bf16).astype(np.float32),
                               np.asarray(ref), rtol=1e-1, atol=1e-1)

    print("KERNEL_OK")
</pallas_src>

<mosaic_0001>
module attributes {stable_mosaic.version = 11 : i64} {
  func.func @node_embed_kernel(%arg0: i32, %arg1: memref<256x128xf32, #tpu.memory_space<vmem>>, %arg2: memref<4x256x128xf32, #tpu.memory_space<vmem>>, %arg3: memref<256x1xf32, #tpu.memory_space<vmem>>, %arg4: memref<256x128xf32, #tpu.memory_space<vmem>>, %arg5: memref<1x128xf32, #tpu.memory_space<vmem>>, %arg6: memref<128x128xf32, #tpu.memory_space<vmem>>, %arg7: memref<1x128xf32, #tpu.memory_space<vmem>>, %arg8: memref<768x128xf32, #tpu.memory_space<vmem>>, %arg9: memref<256x128xf32, #tpu.memory_space<vmem>>) attributes {dimension_semantics = [#tpu.dimension_semantics<parallel>], iteration_bounds = array<i64: 4>, scalar_prefetch = 0 : i64, scratch_operands = 0 : i64, tpu.core_type = #tpu.core_type<tc>, window_params = [{transform_indices = @transform_0, window_bounds = array<i64: 256, 128>}, {transform_indices = @transform_1, window_bounds = array<i64: 4, 256, 128>}, {transform_indices = @transform_2, window_bounds = array<i64: 256, 1>}, {pipeline_mode = #tpu.pipeline_mode<synchronous>, transform_indices = @transform_3, window_bounds = array<i64: 256, 128>}, {pipeline_mode = #tpu.pipeline_mode<synchronous>, transform_indices = @transform_4, window_bounds = array<i64: 1, 128>}, {pipeline_mode = #tpu.pipeline_mode<synchronous>, transform_indices = @transform_5, window_bounds = array<i64: 128, 128>}, {pipeline_mode = #tpu.pipeline_mode<synchronous>, transform_indices = @transform_6, window_bounds = array<i64: 1, 128>}, {pipeline_mode = #tpu.pipeline_mode<synchronous>, transform_indices = @transform_7, window_bounds = array<i64: 768, 128>}, {transform_indices = @transform_8, window_bounds = array<i64: 256, 128>}]} {
    %c0 = arith.constant 0 : index
    %c0_0 = arith.constant 0 : index
    %0 = vector.load %arg1[%c0, %c0_0] : memref<256x128xf32, #tpu.memory_space<vmem>>, vector<256x128xf32>
    %c0_1 = arith.constant 0 : index
    %c0_2 = arith.constant 0 : index
    %1 = vector.load %arg3[%c0_1, %c0_2] : memref<256x1xf32, #tpu.memory_space<vmem>>, vector<256x1xf32>
    %c0_3 = arith.constant 0 : index
    %c0_4 = arith.constant 0 : index
    %c0_5 = arith.constant 0 : index
    %2 = vector.load %arg2[%c0_3, %c0_4, %c0_5] : memref<4x256x128xf32, #tpu.memory_space<vmem>>, vector<1x256x128xf32>
    %3 = vector.shape_cast %2 : vector<1x256x128xf32> to vector<256x128xf32>
    %c1 = arith.constant 1 : index
    %c0_6 = arith.constant 0 : index
    %c0_7 = arith.constant 0 : index
    %4 = vector.load %arg2[%c1, %c0_6, %c0_7] : memref<4x256x128xf32, #tpu.memory_space<vmem>>, vector<1x256x128xf32>
    %5 = vector.shape_cast %4 : vector<1x256x128xf32> to vector<256x128xf32>
    %6 = arith.addf %3, %5 : vector<256x128xf32>
    %c2 = arith.constant 2 : index
    %c0_8 = arith.constant 0 : index
    %c0_9 = arith.constant 0 : index
    %7 = vector.load %arg2[%c2, %c0_8, %c0_9] : memref<4x256x128xf32, #tpu.memory_space<vmem>>, vector<1x256x128xf32>
    %8 = vector.shape_cast %7 : vector<1x256x128xf32> to vector<256x128xf32>
    %9 = arith.addf %6, %8 : vector<256x128xf32>
    %c3 = arith.constant 3 : index
    %c0_10 = arith.constant 0 : index
    %c0_11 = arith.constant 0 : index
    %10 = vector.load %arg2[%c3, %c0_10, %c0_11] : memref<4x256x128xf32, #tpu.memory_space<vmem>>, vector<1x256x128xf32>
    %11 = vector.shape_cast %10 : vector<1x256x128xf32> to vector<256x128xf32>
    %12 = arith.addf %9, %11 : vector<256x128xf32>
    %13 = vector.broadcast %1 : vector<256x1xf32> to vector<256x128xf32>
    %14 = arith.mulf %12, %13 : vector<256x128xf32>
    %15 = tpu.concatenate %0, %14 in 1 : vector<256x128xf32>, vector<256x128xf32> -> vector<256x256xf32>
    %c0_12 = arith.constant 0 : index
    %c0_13 = arith.constant 0 : index
    %16 = vector.load %arg4[%c0_12, %c0_13] : memref<256x128xf32, #tpu.memory_space<vmem>>, vector<256x128xf32>
    %cst = arith.constant dense<0.000000e+00> : vector<256x128xf32>
    %17 = tpu.matmul %15, %16, %cst {dimension_numbers = #tpu.dot_dimension_numbers<[1], [0], [0], [1], [0, 0, 1, 1], [], []>} : vector<256x256xf32>, vector<256x128xf32>, vector<256x128xf32> -> vector<256x128xf32>
    %c0_14 = arith.constant 0 : index
    %c0_15 = arith.constant 0 : index
    %18 = vector.load %arg5[%c0_14, %c0_15] : memref<1x128xf32, #tpu.memory_space<vmem>>, vector<1x128xf32>
    %19 = vector.broadcast %18 : vector<1x128xf32> to vector<256x128xf32>
    %20 = arith.addf %17, %19 : vector<256x128xf32>
    %c0_16 = arith.constant 0 : index
    %c0_17 = arith.constant 0 : index
    %21 = vector.load %arg6[%c0_16, %c0_17] : memref<128x128xf32, #tpu.memory_space<vmem>>, vector<128x128xf32>
    %cst_18 = arith.constant dense<0.000000e+00> : vector<256x128xf32>
    %22 = tpu.matmul %20, %21, %cst_18 {dimension_numbers = #tpu.dot_dimension_numbers<[1], [0], [0], [1], [0, 0, 1, 1], [], []>} : vector<256x128xf32>, vector<128x128xf32>, vector<256x128xf32> -> vector<256x128xf32>
    %c0_19 = arith.constant 0 : index
    %c0_20 = arith.constant 0 : index
    %23 = vector.load %arg7[%c0_19, %c0_20] : memref<1x128xf32, #tpu.memory_space<vmem>>, vector<1x128xf32>
    %24 = vector.broadcast %23 : vector<1x128xf32> to vector<256x128xf32>
    %25 = arith.addf %22, %24 : vector<256x128xf32>
    %26 = arith.negf %25 : vector<256x128xf32>
    %27 = math.exp %26 : vector<256x128xf32>
    %cst_21 = arith.constant 1.000000e+00 : f32
    %28 = vector.broadcast %cst_21 : f32 to vector<256x128xf32>
    %29 = arith.addf %28, %27 : vector<256x128xf32>
    %30 = arith.divf %28, %29 : vector<256x128xf32>
    %31 = arith.mulf %25, %30 : vector<256x128xf32>
    %cst_22 = arith.constant -2.33333325 : f32
    %32 = vector.broadcast %cst_22 : f32 to vector<256x128xf32>
    %33 = arith.cmpf oge, %25, %32 : vector<256x128xf32>
    %cst_23 = arith.constant -1.66666663 : f32
    %34 = vector.broadcast %cst_23 : f32 to vector<256x128xf32>
    %35 = arith.cmpf olt, %25, %34 : vector<256x128xf32>
    %36 = arith.andi %33, %35 : vector<256x128xi1>
    %37 = arith.extui %36 : vector<256x128xi1> to vector<256x128xi32>
    %38 = arith.sitofp %37 : vector<256x128xi32> to vector<256x128xf32>
    %cst_24 = arith.constant -1.66666663 : f32
    %39 = vector.broadcast %cst_24 : f32 to vector<256x128xf32>
    %40 = arith.cmpf oge, %25, %39 : vector<256x128xf32>
    %cst_25 = arith.constant -1.000000e+00 : f32
    %41 = vector.broadcast %cst_25 : f32 to vector<256x128xf32>
    %42 = arith.cmpf olt, %25, %41 : vector<256x128xf32>
    %43 = arith.andi %40, %42 : vector<256x128xi1>
    %44 = arith.extui %43 : vector<256x128xi1> to vector<256x128xi32>
    %45 = arith.sitofp %44 : vector<256x128xi32> to vector<256x128xf32>
    %cst_26 = arith.constant -1.000000e+00 : f32
    %46 = vector.broadcast %cst_26 : f32 to vector<256x128xf32>
    %47 = arith.cmpf oge, %25, %46 : vector<256x128xf32>
    %cst_27 = arith.constant -0.333333343 : f32
    %48 = vector.broadcast %cst_27 : f32 to vector<256x128xf32>
    %49 = arith.cmpf olt, %25, %48 : vector<256x128xf32>
    %50 = arith.andi %47, %49 : vector<256x128xi1>
    %51 = arith.extui %50 : vector<256x128xi1> to vector<256x128xi32>
    %52 = arith.sitofp %51 : vector<256x128xi32> to vector<256x128xf32>
    %cst_28 = arith.constant -0.333333343 : f32
    %53 = vector.broadcast %cst_28 : f32 to vector<256x128xf32>
    %54 = arith.cmpf oge, %25, %53 : vector<256x128xf32>
    %cst_29 = arith.constant 0.333333343 : f32
    %55 = vector.broadcast %cst_29 : f32 to vector<256x128xf32>
    %56 = arith.cmpf olt, %25, %55 : vector<256x128xf32>
    %57 = arith.andi %54, %56 : vector<256x128xi1>
    %58 = arith.extui %57 : vector<256x128xi1> to vector<256x128xi32>
    %59 = arith.sitofp %58 : vector<256x128xi32> to vector<256x128xf32>
    %cst_30 = arith.constant 0.333333343 : f32
    %60 = vector.broadcast %cst_30 : f32 to vector<256x128xf32>
    %61 = arith.cmpf oge, %25, %60 : vector<256x128xf32>
    %cst_31 = arith.constant 1.000000e+00 : f32
    %62 = vector.broadcast %cst_31 : f32 to vector<256x128xf32>
    %63 = arith.cmpf olt, %25, %62 : vector<256x128xf32>
    %64 = arith.andi %61, %63 : vector<256x128xi1>
    %65 = arith.extui %64 : vector<256x128xi1> to vector<256x128xi32>
    %66 = arith.sitofp %65 : vector<256x128xi32> to vector<256x128xf32>
    %cst_32 = arith.constant 1.000000e+00 : f32
    %67 = vector.broadcast %cst_32 : f32 to vector<256x128xf32>
    %68 = arith.cmpf oge, %25, %67 : vector<256x128xf32>
    %cst_33 = arith.constant 1.66666663 : f32
    %69 = vector.broadcast %cst_33 : f32 to vector<256x128xf32>
    %70 = arith.cmpf olt, %25, %69 : vector<256x128xf32>
    %71 = arith.andi %68, %70 : vector<256x128xi1>
    %72 = arith.extui %71 : vector<256x128xi1> to vector<256x128xi32>
    %73 = arith.sitofp %72 : vector<256x128xi32> to vector<256x128xf32>
    %cst_34 = arith.constant 1.66666663 : f32
    %74 = vector.broadcast %cst_34 : f32 to vector<256x128xf32>
    %75 = arith.cmpf oge, %25, %74 : vector<256x128xf32>
    %cst_35 = arith.constant 2.33333325 : f32
    %76 = vector.broadcast %cst_35 : f32 to vector<256x128xf32>
    %77 = arith.cmpf olt, %25, %76 : vector<256x128xf32>
    %78 = arith.andi %75, %77 : vector<256x128xi1>
    %79 = arith.extui %78 : vector<256x128xi1> to vector<256x128xi32>
    %80 = arith.sitofp %79 : vector<256x128xi32> to vector<256x128xf32>
    %cst_36 = arith.constant -2.33333325 : f32
    %81 = vector.broadcast %cst_36 : f32 to vector<256x128xf32>
    %82 = arith.subf %25, %81 : vector<256x128xf32>
    %cst_37 = arith.constant 1.500000e+00 : f32
    %83 = vector.broadcast %cst_37 : f32 to vector<256x128xf32>
    %84 = arith.mulf %82, %83 : vector<256x128xf32>
    %85 = arith.mulf %84, %38 : vector<256x128xf32>
    %cst_38 = arith.constant -1.000000e+00 : f32
    %86 = vector.broadcast %cst_38 : f32 to vector<256x128xf32>
    %87 = arith.subf %86, %25 : vector<256x128xf32>
    %cst_39 = arith.constant 1.500000e+00 : f32
    %88 = vector.broadcast %cst_39 : f32 to vector<256x128xf32>
    %89 = arith.mulf %87, %88 : vector<256x128xf32>
    %90 = arith.mulf %89, %45 : vector<256x128xf32>
    %91 = arith.addf %85, %90 : vector<256x128xf32>
    %cst_40 = arith.constant -1.66666663 : f32
    %92 = vector.broadcast %cst_40 : f32 to vector<256x128xf32>
    %93 = arith.subf %25, %92 : vector<256x128xf32>
    %cst_41 = arith.constant 1.500000e+00 : f32
    %94 = vector.broadcast %cst_41 : f32 to vector<256x128xf32>
    %95 = arith.mulf %93, %94 : vector<256x128xf32>
    %96 = arith.mulf %95, %45 : vector<256x128xf32>
    %cst_42 = arith.constant -0.333333343 : f32
    %97 = vector.broadcast %cst_42 : f32 to vector<256x128xf32>
    %98 = arith.subf %97, %25 : vector<256x128xf32>
    %cst_43 = arith.constant 1.500000e+00 : f32
    %99 = vector.broadcast %cst_43 : f32 to vector<256x128xf32>
    %100 = arith.mulf %98, %99 : vector<256x128xf32>
    %101 = arith.mulf %100, %52 : vector<256x128xf32>
    %102 = arith.addf %96, %101 : vector<256x128xf32>
    %cst_44 = arith.constant -1.000000e+00 : f32
    %103 = vector.broadcast %cst_44 : f32 to vector<256x128xf32>
    %104 = arith.subf %25, %103 : vector<256x128xf32>
    %cst_45 = arith.constant 1.500000e+00 : f32
    %105 = vector.broadcast %cst_45 : f32 to vector<256x128xf32>
    %106 = arith.mulf %104, %105 : vector<256x128xf32>
    %107 = arith.mulf %106, %52 : vector<256x128xf32>
    %cst_46 = arith.constant 0.333333343 : f32
    %108 = vector.broadcast %cst_46 : f32 to vector<256x128xf32>
    %109 = arith.subf %108, %25 : vector<256x128xf32>
    %cst_47 = arith.constant 1.500000e+00 : f32
    %110 = vector.broadcast %cst_47 : f32 to vector<256x128xf32>
    %111 = arith.mulf %109, %110 : vector<256x128xf32>
    %112 = arith.mulf %111, %59 : vector<256x128xf32>
    %113 = arith.addf %107, %112 : vector<256x128xf32>
    %cst_48 = arith.constant -0.333333343 : f32
    %114 = vector.broadcast %cst_48 : f32 to vector<256x128xf32>
    %115 = arith.subf %25, %114 : vector<256x128xf32>
    %cst_49 = arith.constant 1.500000e+00 : f32
    %116 = vector.broadcast %cst_49 : f32 to vector<256x128xf32>
    %117 = arith.mulf %115, %116 : vector<256x128xf32>
    %118 = arith.mulf %117, %59 : vector<256x128xf32>
    %cst_50 = arith.constant 1.000000e+00 : f32
    %119 = vector.broadcast %cst_50 : f32 to vector<256x128xf32>
    %120 = arith.subf %119, %25 : vector<256x128xf32>
    %cst_51 = arith.constant 1.500000e+00 : f32
    %121 = vector.broadcast %cst_51 : f32 to vector<256x128xf32>
    %122 = arith.mulf %120, %121 : vector<256x128xf32>
    %123 = arith.mulf %122, %66 : vector<256x128xf32>
    %124 = arith.addf %118, %123 : vector<256x128xf32>
    %cst_52 = arith.constant 0.333333343 : f32
    %125 = vector.broadcast %cst_52 : f32 to vector<256x128xf32>
    %126 = arith.subf %25, %125 : vector<256x128xf32>
    %cst_53 = arith.constant 1.500000e+00 : f32
    %127 = vector.broadcast %cst_53 : f32 to vector<256x128xf32>
    %128 = arith.mulf %126, %127 : vector<256x128xf32>
    %129 = arith.mulf %128, %66 : vector<256x128xf32>
    %cst_54 = arith.constant 1.66666663 : f32
    %130 = vector.broadcast %cst_54 : f32 to vector<256x128xf32>
    %131 = arith.subf %130, %25 : vector<256x128xf32>
    %cst_55 = arith.constant 1.500000e+00 : f32
    %132 = vector.broadcast %cst_55 : f32 to vector<256x128xf32>
    %133 = arith.mulf %131, %132 : vector<256x128xf32>
    %134 = arith.mulf %133, %73 : vector<256x128xf32>
    %135 = arith.addf %129, %134 : vector<256x128xf32>
    %cst_56 = arith.constant 1.000000e+00 : f32
    %136 = vector.broadcast %cst_56 : f32 to vector<256x128xf32>
    %137 = arith.subf %25, %136 : vector<256x128xf32>
    %cst_57 = arith.constant 1.500000e+00 : f32
    %138 = vector.broadcast %cst_57 : f32 to vector<256x128xf32>
    %139 = arith.mulf %137, %138 : vector<256x128xf32>
    %140 = arith.mulf %139, %73 : vector<256x128xf32>
    %cst_58 = arith.constant 2.33333325 : f32
    %141 = vector.broadcast %cst_58 : f32 to vector<256x128xf32>
    %142 = arith.subf %141, %25 : vector<256x128xf32>
    %cst_59 = arith.constant 1.500000e+00 : f32
    %143 = vector.broadcast %cst_59 : f32 to vector<256x128xf32>
    %144 = arith.mulf %142, %143 : vector<256x128xf32>
    %145 = arith.mulf %144, %80 : vector<256x128xf32>
    %146 = arith.addf %140, %145 : vector<256x128xf32>
    %cst_60 = arith.constant -2.33333325 : f32
    %147 = vector.broadcast %cst_60 : f32 to vector<256x128xf32>
    %148 = arith.subf %25, %147 : vector<256x128xf32>
    %cst_61 = arith.constant 7.500000e-01 : f32
    %149 = vector.broadcast %cst_61 : f32 to vector<256x128xf32>
    %150 = arith.mulf %148, %149 : vector<256x128xf32>
    %151 = arith.mulf %150, %91 : vector<256x128xf32>
    %cst_62 = arith.constant -0.333333343 : f32
    %152 = vector.broadcast %cst_62 : f32 to vector<256x128xf32>
    %153 = arith.subf %152, %25 : vector<256x128xf32>
    %cst_63 = arith.constant 7.500000e-01 : f32
    %154 = vector.broadcast %cst_63 : f32 to vector<256x128xf32>
    %155 = arith.mulf %153, %154 : vector<256x128xf32>
    %156 = arith.mulf %155, %102 : vector<256x128xf32>
    %157 = arith.addf %151, %156 : vector<256x128xf32>
    %cst_64 = arith.constant -1.66666663 : f32
    %158 = vector.broadcast %cst_64 : f32 to vector<256x128xf32>
    %159 = arith.subf %25, %158 : vector<256x128xf32>
    %cst_65 = arith.constant 7.500000e-01 : f32
    %160 = vector.broadcast %cst_65 : f32 to vector<256x128xf32>
    %161 = arith.mulf %159, %160 : vector<256x128xf32>
    %162 = arith.mulf %161, %102 : vector<256x128xf32>
    %cst_66 = arith.constant 0.333333343 : f32
    %163 = vector.broadcast %cst_66 : f32 to vector<256x128xf32>
    %164 = arith.subf %163, %25 : vector<256x128xf32>
    %cst_67 = arith.constant 7.500000e-01 : f32
    %165 = vector.broadcast %cst_67 : f32 to vector<256x128xf32>
    %166 = arith.mulf %164, %165 : vector<256x128xf32>
    %167 = arith.mulf %166, %113 : vector<256x128xf32>
    %168 = arith.addf %162, %167 : vector<256x128xf32>
    %cst_68 = arith.constant -1.000000e+00 : f32
    %169 = vector.broadcast %cst_68 : f32 to vector<256x128xf32>
    %170 = arith.subf %25, %169 : vector<256x128xf32>
    %cst_69 = arith.constant 7.500000e-01 : f32
    %171 = vector.broadcast %cst_69 : f32 to vector<256x128xf32>
    %172 = arith.mulf %170, %171 : vector<256x128xf32>
    %173 = arith.mulf %172, %113 : vector<256x128xf32>
    %cst_70 = arith.constant 1.000000e+00 : f32
    %174 = vector.broadcast %cst_70 : f32 to vector<256x128xf32>
    %175 = arith.subf %174, %25 : vector<256x128xf32>
    %cst_71 = arith.constant 7.500000e-01 : f32
    %176 = vector.broadcast %cst_71 : f32 to vector<256x128xf32>
    %177 = arith.mulf %175, %176 : vector<256x128xf32>
    %178 = arith.mulf %177, %124 : vector<256x128xf32>
    %179 = arith.addf %173, %178 : vector<256x128xf32>
    %cst_72 = arith.constant -0.333333343 : f32
    %180 = vector.broadcast %cst_72 : f32 to vector<256x128xf32>
    %181 = arith.subf %25, %180 : vector<256x128xf32>
    %cst_73 = arith.constant 7.500000e-01 : f32
    %182 = vector.broadcast %cst_73 : f32 to vector<256x128xf32>
    %183 = arith.mulf %181, %182 : vector<256x128xf32>
    %184 = arith.mulf %183, %124 : vector<256x128xf32>
    %cst_74 = arith.constant 1.66666663 : f32
    %185 = vector.broadcast %cst_74 : f32 to vector<256x128xf32>
    %186 = arith.subf %185, %25 : vector<256x128xf32>
    %cst_75 = arith.constant 7.500000e-01 : f32
    %187 = vector.broadcast %cst_75 : f32 to vector<256x128xf32>
    %188 = arith.mulf %186, %187 : vector<256x128xf32>
    %189 = arith.mulf %188, %135 : vector<256x128xf32>
    %190 = arith.addf %184, %189 : vector<256x128xf32>
    %cst_76 = arith.constant 0.333333343 : f32
    %191 = vector.broadcast %cst_76 : f32 to vector<256x128xf32>
    %192 = arith.subf %25, %191 : vector<256x128xf32>
    %cst_77 = arith.constant 7.500000e-01 : f32
    %193 = vector.broadcast %cst_77 : f32 to vector<256x128xf32>
    %194 = arith.mulf %192, %193 : vector<256x128xf32>
    %195 = arith.mulf %194, %135 : vector<256x128xf32>
    %cst_78 = arith.constant 2.33333325 : f32
    %196 = vector.broadcast %cst_78 : f32 to vector<256x128xf32>
    %197 = arith.subf %196, %25 : vector<256x128xf32>
    %cst_79 = arith.constant 7.500000e-01 : f32
    %198 = vector.broadcast %cst_79 : f32 to vector<256x128xf32>
    %199 = arith.mulf %197, %198 : vector<256x128xf32>
    %200 = arith.mulf %199, %146 : vector<256x128xf32>
    %201 = arith.addf %195, %200 : vector<256x128xf32>
    %202 = tpu.concatenate %31, %157, %168, %179, %190, %201 in 1 : vector<256x128xf32>, vector<256x128xf32>, vector<256x128xf32>, vector<256x128xf32>, vector<256x128xf32>, vector<256x128xf32> -> vector<256x768xf32>
    %c0_80 = arith.constant 0 : index
    %c0_81 = arith.constant 0 : index
    %203 = vector.load %arg8[%c0_80, %c0_81] : memref<768x128xf32, #tpu.memory_space<vmem>>, vector<768x128xf32>
    %cst_82 = arith.constant dense<0.000000e+00> : vector<256x128xf32>
    %204 = tpu.matmul %202, %203, %cst_82 {dimension_numbers = #tpu.dot_dimension_numbers<[1], [0], [0], [1], [0, 0, 1, 1], [], []>} : vector<256x768xf32>, vector<768x128xf32>, vector<256x128xf32> -> vector<256x128xf32>
    %cst_83 = arith.constant 0.000000e+00 : f32
    %205 = vector.broadcast %cst_83 : f32 to vector<256x1xf32>
    %206 = arith.cmpf ogt, %1, %205 : vector<256x1xf32>
    %207 = vector.shape_cast %206 : vector<256x1xi1> to vector<256x1xi1>
    %208 = vector.broadcast %207 : vector<256x1xi1> to vector<256x128xi1>
    %209 = arith.select %208, %204, %0 : vector<256x128xi1>, vector<256x128xf32>
    %c0_84 = arith.constant 0 : index
    %c0_85 = arith.constant 0 : index
    %210 = vector.load %arg9[%c0_84, %c0_85] : memref<256x128xf32, #tpu.memory_space<vmem>>, vector<256x128xf32>
    tpu.vector_store %arg9[%c0_84, %c0_85], %209 {strides = array<i32>} : memref<256x128xf32, #tpu.memory_space<vmem>>, vector<256x128xf32>,
    return
  }
  func.func @transform_0(%arg0: i32) -> (i32, i32) {
    %c0_i32 = arith.constant 0 : i32
    %c0_i32_0 = arith.constant 0 : i32
    return %arg0, %c0_i32 : i32, i32
  }
  func.func @transform_1(%arg0: i32) -> (i32, i32, i32) {
    %c0_i32 = arith.constant 0 : i32
    %c0_i32_0 = arith.constant 0 : i32
    %c0_i32_1 = arith.constant 0 : i32
    return %c0_i32, %arg0, %c0_i32_0 : i32, i32, i32
  }
  func.func @transform_2(%arg0: i32) -> (i32, i32) {
    %c0_i32 = arith.constant 0 : i32
    %c0_i32_0 = arith.constant 0 : i32
    return %arg0, %c0_i32 : i32, i32
  }
  func.func @transform_3(%arg0: i32) -> (i32, i32) {
    %c0_i32 = arith.constant 0 : i32
    %c0_i32_0 = arith.constant 0 : i32
    %c0_i32_1 = arith.constant 0 : i32
    return %c0_i32, %c0_i32_0 : i32, i32
  }
  func.func @transform_4(%arg0: i32) -> (i32, i32) {
    %c0_i32 = arith.constant 0 : i32
    %c0_i32_0 = arith.constant 0 : i32
    %c0_i32_1 = arith.constant 0 : i32
    return %c0_i32, %c0_i32_0 : i32, i32
  }
  func.func @transform_5(%arg0: i32) -> (i32, i32) {
    %c0_i32 = arith.constant 0 : i32
    %c0_i32_0 = arith.constant 0 : i32
    %c0_i32_1 = arith.constant 0 : i32
    return %c0_i32, %c0_i32_0 : i32, i32
  }
  func.func @transform_6(%arg0: i32) -> (i32, i32) {
    %c0_i32 = arith.constant 0 : i32
    %c0_i32_0 = arith.constant 0 : i32
    %c0_i32_1 = arith.constant 0 : i32
    return %c0_i32, %c0_i32_0 : i32, i32
  }
  func.func @transform_7(%arg0: i32) -> (i32, i32) {
    %c0_i32 = arith.constant 0 : i32
    %c0_i32_0 = arith.constant 0 : i32
    %c0_i32_1 = arith.constant 0 : i32
    return %c0_i32, %c0_i32_0 : i32, i32
  }
  func.func @transform_8(%arg0: i32) -> (i32, i32) {
    %c0_i32 = arith.constant 0 : i32
    %c0_i32_0 = arith.constant 0 : i32
    return %arg0, %c0_i32 : i32, i32
  }
}

</mosaic_0001>

<llo_original>
// kernel: tpu_custom_call.1
$region0: #{tpu_custom_call.1}
  #allocation0 [shape = 'u32[]', space=smem, size = 0x4, offset = 0x4, fixed_abs, tag = 'smem constant byte address 0x4 - core index']
  #allocation1 [shape = 'u32[144,128]{1,0:T(1,128)}', space=vmem, size = 0x12000, scoped, tag = 'internal scratch']
  #allocation15 [shape = 's32[]', space=sflag, size = 0x4, offset = 0, fixed_abs, tag = 'sflag constant byte address 0x0 - dummy sync flag']
  %s0 = inlined_call_operand.hbm [shape: f32[1024,128], index: 0, kind: input, shape index: {}]
  %s1 = inlined_call_operand.hbm [shape: f32[4,1024,128], index: 1, kind: input, shape index: {}]
  %s2 = inlined_call_operand.vmem [shape: f32[1024,1], index: 2, kind: input, shape index: {}]
  %s3 = inlined_call_operand.hbm [shape: f32[256,128], index: 3, kind: input, shape index: {}]
  %s4 = inlined_call_operand.hbm [shape: f32[1,128], index: 4, kind: input, shape index: {}]
  %s5 = inlined_call_operand.hbm [shape: f32[128,128], index: 5, kind: input, shape index: {}]
  %s6 = inlined_call_operand.hbm [shape: f32[1,128], index: 6, kind: input, shape index: {}]
  %s7 = inlined_call_operand.hbm [shape: f32[768,128], index: 7, kind: input, shape index: {}]
  %s8 = inlined_call_operand.hbm [shape: f32[1024,128], index: 8, kind: output, shape index: {}]
  %s9 = sld [smem:[#allocation0]]
  $region93: #{tpu_custom_call.1} parent=0
    _
  %s11 = ssub.s32 1, %s9
  %s12 = scalar_select 0, %s11, %s9
  $region1: #{tpu_custom_call.1} parent=0
    #allocation2 [shape = 'u8[262144]{0}', space=vmem, size = 0x40000, scoped, tag = 'input window, operand 0']
    #allocation3 [shape = 's32[2]{0}', space=sflag, size = 0x8, scoped, tag = 'scoped memory for tpu_custom_call.1']
    #allocation4 [shape = 's32[2]{0}', space=sflag, size = 0x8, scoped, tag = 'scoped memory for tpu_custom_call.1']
    #allocation5 [shape = 'u8[1048576]{0}', space=vmem, size = 0x100000, scoped, tag = 'input window, operand 1']
    #allocation6 [shape = 's32[2]{0}', space=sflag, size = 0x8, scoped, tag = 'scoped memory for tpu_custom_call.1']
    #allocation7 [shape = 'u8[131072]{0}', space=vmem, size = 0x20000, scoped, tag = 'input window, operand 3, single buffered']
    #allocation8 [shape = 'u8[512]{0}', space=vmem, size = 0x400, scoped, tag = 'input window, operand 4, single buffered']
    #allocation9 [shape = 's32[1]{0}', space=sflag, size = 0x4, scoped, tag = 'scoped memory for tpu_custom_call.1']
    #allocation10 [shape = 'u8[65536]{0}', space=vmem, size = 0x10000, scoped, tag = 'input window, operand 5, single buffered']
    #allocation11 [shape = 'u8[512]{0}', space=vmem, size = 0x400, scoped, tag = 'input window, operand 6, single buffered']
    #allocation12 [shape = 's32[1]{0}', space=sflag, size = 0x4, scoped, tag = 'scoped memory for tpu_custom_call.1']
    #allocation13 [shape = 'u8[393216]{0}', space=vmem, size = 0x60000, scoped, tag = 'input window, operand 7, single buffered']
    #allocation14 [shape = 'u8[262144]{0}', space=vmem, size = 0x40000, scoped, tag = 'output window, operand 0']
    %13 = vsyncpa [#allocation3], 0
    %s14 = scalar_lea.sflag [#allocation3], 1
    %15 = vsyncpa %s14, 0
    %16 = vsyncpa [#allocation6], 0
    %s17 = scalar_lea.sflag [#allocation6], 1
    %18 = vsyncpa %s17, 0
    %19 = vsyncpa [#allocation9], 0
    %20 = vsyncpa [#allocation12], 0
    %21 = vsyncpa [#allocation4], 0
    %s22 = scalar_lea.sflag [#allocation4], 1
    %23 = vsyncpa %s22, 0
    loop: start=0, step=1, limit=6
    $region2: #{tpu_custom_call.1} parent=1 // loop_pre_header
      _
    $region3: #{tpu_custom_call.1} parent=1 // loop_header
      %s25 = sphi 0, %s29
      %p26 = scmp.ge.s32.totalorder %s25, 6
      %s35 = sphi 0, %s37
      %s38 = sphi 0, %s35
      %s39 = sphi 0, %s38
      %s55 = sphi 0, %s39
      %s61 = sphi 0, %s63
      %s64 = sphi 0, %s61
      %s65 = sphi 0, %s64
      %s81 = sphi 0, %s65
      %s87 = sphi 0, %s89
      %s90 = sphi 0, %s87
      %s91 = sphi 0, %s90
      %s107 = sphi 0, %s91
      %s111 = sphi 0, %s111
      %s113 = sphi 0, %s111
      %s114 = sphi 0, %s113
      %s128 = sphi 0, %s114
      %s132 = sphi 0, %s132
      %s134 = sphi 0, %s132
      %s135 = sphi 0, %s134
      %s149 = sphi 0, %s135
      %s153 = sphi 0, %s153
      %s155 = sphi 0, %s153
      %s156 = sphi 0, %s155
      %s170 = sphi 0, %s156
      %s174 = sphi 0, %s174
      %s176 = sphi 0, %s174
      %s177 = sphi 0, %s176
      %s191 = sphi 0, %s177
      %s195 = sphi 0, %s195
      %s197 = sphi 0, %s195
      %s198 = sphi 0, %s197
      %s212 = sphi 0, %s198
      %s218 = sphi 0, %s220
      %s221 = sphi 0, %s218
      %s222 = sphi 0, %s221
      %s238 = sphi 0, %s222
    $region4: #{tpu_custom_call.1} parent=1 // loop_header_branch
      %28 = sbr.rel (%p26) target = $region8
    $region5: #{tpu_custom_call.1} parent=1 // loop_body
      %s30 = ssub.s32 %s25, 1
      %s31 = ssub.s32 %s25, 2
      %s32 = sadd.s32 %s25, 1
      %s33 = ssub.s32 %s25, %s32
      %p34 = scmp.eq.s32.totalorder %s33, 0
      %s36 = sadd.s32 %s35, 1
      %s37 = scalar_select %p34, %s35, %s36
      %p40 = pneg %p34
      %p41 = scmp.eq.s32.totalorder %s25, 3
      %p42 = por %p40, %p41
      %p43 = scmp.ne.s32.totalorder %s35, %s38
      %p44 = scmp.eq.s32.totalorder %s25, 0
      %p45 = por %p43, %p44
      %p46 = scmp.ne.s32.totalorder %s35, %s38
      %p47 = scmp.eq.s32.totalorder %s30, 3
      %p48 = por %p46, %p47
      %p49 = scmp.ne.s32.totalorder %s38, %s39
      %p50 = scmp.eq.s32.totalorder %s30, 0
      %p51 = por %p49, %p50
      %p52 = scmp.ne.s32.totalorder %s38, %s39
      %p53 = scmp.eq.s32.totalorder %s31, 3
      %p54 = por %p52, %p53
      %p56 = scmp.ne.s32.totalorder %s39, %s55
      %p57 = scmp.eq.s32.totalorder %s31, 0
      %p58 = por %p56, %p57
      %s59 = ssub.s32 %s25, %s32
      %p60 = scmp.eq.s32.totalorder %s59, 0
      %s62 = sadd.s32 %s61, 1
      %s63 = scalar_select %p60, %s61, %s62
      %p66 = pneg %p60
      %p67 = scmp.eq.s32.totalorder %s25, 3
      %p68 = por %p66, %p67
      %p69 = scmp.ne.s32.totalorder %s61, %s64
      %p70 = scmp.eq.s32.totalorder %s25, 0
      %p71 = por %p69, %p70
      %p72 = scmp.ne.s32.totalorder %s61, %s64
      %p73 = scmp.eq.s32.totalorder %s30, 3
      %p74 = por %p72, %p73
      %p75 = scmp.ne.s32.totalorder %s64, %s65
      %p76 = scmp.eq.s32.totalorder %s30, 0
      %p77 = por %p75, %p76
      %p78 = scmp.ne.s32.totalorder %s64, %s65
      %p79 = scmp.eq.s32.totalorder %s31, 3
      %p80 = por %p78, %p79
      %p82 = scmp.ne.s32.totalorder %s65, %s81
      %p83 = scmp.eq.s32.totalorder %s31, 0
      %p84 = por %p82, %p83
      %s85 = ssub.s32 %s25, %s32
      %p86 = scmp.eq.s32.totalorder %s85, 0
      %s88 = sadd.s32 %s87, 1
      %s89 = scalar_select %p86, %s87, %s88
      %p92 = pneg %p86
      %p93 = scmp.eq.s32.totalorder %s25, 3
      %p94 = por %p92, %p93
      %p95 = scmp.ne.s32.totalorder %s87, %s90
      %p96 = scmp.eq.s32.totalorder %s25, 0
      %p97 = por %p95, %p96
      %p98 = scmp.ne.s32.totalorder %s87, %s90
      %p99 = scmp.eq.s32.totalorder %s30, 3
      %p100 = por %p98, %p99
      %p101 = scmp.ne.s32.totalorder %s90, %s91
      %p102 = scmp.eq.s32.totalorder %s30, 0
      %p103 = por %p101, %p102
      %p104 = scmp.ne.s32.totalorder %s90, %s91
      %p105 = scmp.eq.s32.totalorder %s31, 3
      %p106 = por %p104, %p105
      %p108 = scmp.ne.s32.totalorder %s91, %s107
      %p109 = scmp.eq.s32.totalorder %s31, 0
      %p110 = por %p108, %p109
      %s112 = sadd.s32 %s111, 1
      %p115 = scmp.eq.s32.totalorder %s25, 3
      %p116 = scmp.ne.s32.totalorder %s111, %s113
      %p117 = scmp.eq.s32.totalorder %s25, 0
      %p118 = por %p116, %p117
      %p119 = scmp.ne.s32.totalorder %s111, %s113
      %p120 = scmp.eq.s32.totalorder %s30, 3
      %p121 = por %p119, %p120
      %p122 = scmp.ne.s32.totalorder %s113, %s114
      %p123 = scmp.eq.s32.totalorder %s30, 0
      %p124 = por %p122, %p123
      %p125 = scmp.ne.s32.totalorder %s113, %s114
      %p126 = scmp.eq.s32.totalorder %s31, 3
      %p127 = por %p125, %p126
      %p129 = scmp.ne.s32.totalorder %s114, %s128
      %p130 = scmp.eq.s32.totalorder %s31, 0
      %p131 = por %p129, %p130
      %s133 = sadd.s32 %s132, 1
      %p136 = scmp.eq.s32.totalorder %s25, 3
      %p137 = scmp.ne.s32.totalorder %s132, %s134
      %p138 = scmp.eq.s32.totalorder %s25, 0
      %p139 = por %p137, %p138
      %p140 = scmp.ne.s32.totalorder %s132, %s134
      %p141 = scmp.eq.s32.totalorder %s30, 3
      %p142 = por %p140, %p141
      %p143 = scmp.ne.s32.totalorder %s134, %s135
      %p144 = scmp.eq.s32.totalorder %s30, 0
      %p145 = por %p143, %p144
      %p146 = scmp.ne.s32.totalorder %s134, %s135
      %p147 = scmp.eq.s32.totalorder %s31, 3
      %p148 = por %p146, %p147
      %p150 = scmp.ne.s32.totalorder %s135, %s149
      %p151 = scmp.eq.s32.totalorder %s31, 0
      %p152 = por %p150, %p151
      %s154 = sadd.s32 %s153, 1
      %p157 = scmp.eq.s32.totalorder %s25, 3
      %p158 = scmp.ne.s32.totalorder %s153, %s155
      %p159 = scmp.eq.s32.totalorder %s25, 0
      %p160 = por %p158, %p159
      %p161 = scmp.ne.s32.totalorder %s153, %s155
      %p162 = scmp.eq.s32.totalorder %s30, 3
      %p163 = por %p161, %p162
      %p164 = scmp.ne.s32.totalorder %s155, %s156
      %p165 = scmp.eq.s32.totalorder %s30, 0
      %p166 = por %p164, %p165
      %p167 = scmp.ne.s32.totalorder %s155, %s156
      %p168 = scmp.eq.s32.totalorder %s31, 3
      %p169 = por %p167, %p168
      %p171 = scmp.ne.s32.totalorder %s156, %s170
      %p172 = scmp.eq.s32.totalorder %s31, 0
      %p173 = por %p171, %p172
      %s175 = sadd.s32 %s174, 1
      %p178 = scmp.eq.s32.totalorder %s25, 3
      %p179 = scmp.ne.s32.totalorder %s174, %s176
      %p180 = scmp.eq.s32.totalorder %s25, 0
      %p181 = por %p179, %p180
      %p182 = scmp.ne.s32.totalorder %s174, %s176
      %p183 = scmp.eq.s32.totalorder %s30, 3
      %p184 = por %p182, %p183
      %p185 = scmp.ne.s32.totalorder %s176, %s177
      %p186 = scmp.eq.s32.totalorder %s30, 0
      %p187 = por %p185, %p186
      %p188 = scmp.ne.s32.totalorder %s176, %s177
      %p189 = scmp.eq.s32.totalorder %s31, 3
      %p190 = por %p188, %p189
      %p192 = scmp.ne.s32.totalorder %s177, %s191
      %p193 = scmp.eq.s32.totalorder %s31, 0
      %p194 = por %p192, %p193
      %s196 = sadd.s32 %s195, 1
      %p199 = scmp.eq.s32.totalorder %s25, 3
      %p200 = scmp.ne.s32.totalorder %s195, %s197
      %p201 = scmp.eq.s32.totalorder %s25, 0
      %p202 = por %p200, %p201
      %p203 = scmp.ne.s32.totalorder %s195, %s197
      %p204 = scmp.eq.s32.totalorder %s30, 3
      %p205 = por %p203, %p204
      %p206 = scmp.ne.s32.totalorder %s197, %s198
      %p207 = scmp.eq.s32.totalorder %s30, 0
      %p208 = por %p206, %p207
      %p209 = scmp.ne.s32.totalorder %s197, %s198
      %p210 = scmp.eq.s32.totalorder %s31, 3
      %p211 = por %p209, %p210
      %p213 = scmp.ne.s32.totalorder %s198, %s212
      %p214 = scmp.eq.s32.totalorder %s31, 0
      %p215 = por %p213, %p214
      %s216 = ssub.s32 %s25, %s32
      %p217 = scmp.eq.s32.totalorder %s216, 0
      %s219 = sadd.s32 %s218, 1
      %s220 = scalar_select %p217, %s218, %s219
      %p223 = pneg %p217
      %p224 = scmp.eq.s32.totalorder %s25, 3
      %p225 = por %p223, %p224
      %p226 = scmp.ne.s32.totalorder %s218, %s221
      %p227 = scmp.eq.s32.totalorder %s25, 0
      %p228 = por %p226, %p227
      %p229 = scmp.ne.s32.totalorder %s218, %s221
      %p230 = scmp.eq.s32.totalorder %s30, 3
      %p231 = por %p229, %p230
      %p232 = scmp.ne.s32.totalorder %s221, %s222
      %p233 = scmp.eq.s32.totalorder %s30, 0
      %p234 = por %p232, %p233
      %p235 = scmp.ne.s32.totalorder %s221, %s222
      %p236 = scmp.eq.s32.totalorder %s31, 3
      %p237 = por %p235, %p236
      %p239 = scmp.ne.s32.totalorder %s222, %s238
      %p240 = scmp.eq.s32.totalorder %s31, 0
      %p241 = por %p239, %p240
      %p242 = scmp.le.s32.totalorder 1, %s25
      %p243 = scmp.lt.s32.totalorder %s25, 5
      %p244 = pnand %p242, %p243
      %p245 = pneg %p244
      // Predicated region
      $region9: #{tpu_custom_call.1} parent=5 // pred_check
        _
      $region10: #{tpu_custom_call.1} parent=5 // pred_check_branch
        %247 = sbr.rel (%p244) target = $region12
      $region11: #{tpu_custom_call.1} parent=5 // pred_region
        %s248 = ssub.s32 %s25, 1
        // Predicated region
        $region13: #{tpu_custom_call.1} parent=11 // pred_check
          %p249 = pneg %p124
        $region14: #{tpu_custom_call.1} parent=11 // pred_check_branch
          %251 = sbr.rel (%p249) target = $region16
        $region15: #{tpu_custom_call.1} parent=11 // pred_region
          %s253 = ssub.s32 4096, 4096
          %254 = vsyncadd [#allocation6], %s253
          %s255 = sshll.u32 [#allocation7], 4
          %s256 = int_to_ptr.vmem [resolvable:$true] %s255
          %261 = dma.hbm_to_vmem [thread:$0]  %s3, 4096, %s256, [#allocation6], 128, 128, 8
        $region16: #{tpu_custom_call.1} parent=11 // pred_fallthru
          _
        // Predicated region
        $region17: #{tpu_custom_call.1} parent=11 // pred_check
          %p262 = pneg %p145
        $region18: #{tpu_custom_call.1} parent=11 // pred_check_branch
          %264 = sbr.rel (%p262) target = $region20
        $region19: #{tpu_custom_call.1} parent=11 // pred_region
          %s266 = ssub.s32 16, 16
          %267 = vsyncadd [#allocation9], %s266
          %s269 = sshll.u32 [#allocation8], 4
          %s270 = int_to_ptr.vmem [resolvable:$true] %s269
          %272 = dma.hbm_to_vmem [thread:$0]  %s4, 16, %s270, [#allocation9]
        $region20: #{tpu_custom_call.1} parent=11 // pred_fallthru
          _
        // Predicated region
        $region21: #{tpu_custom_call.1} parent=11 // pred_check
          %p273 = pneg %p166
        $region22: #{tpu_custom_call.1} parent=11 // pred_check_branch
          %275 = sbr.rel (%p273) target = $region24
        $region23: #{tpu_custom_call.1} parent=11 // pred_region
          %s277 = ssub.s32 2048, 2048
          %278 = vsyncadd [#allocation9], %s277
          %s279 = sshll.u32 [#allocation10], 4
          %s280 = int_to_ptr.vmem [resolvable:$true] %s279
          %285 = dma.hbm_to_vmem [thread:$0]  %s5, 2048, %s280, [#allocation9], 128, 128, 8
        $region24: #{tpu_custom_call.1} parent=11 // pred_fallthru
          _
        // Predicated region
        $region25: #{tpu_custom_call.1} parent=11 // pred_check
          %p286 = pneg %p187
        $region26: #{tpu_custom_call.1} parent=11 // pred_check_branch
          %288 = sbr.rel (%p286) target = $region28
        $region27: #{tpu_custom_call.1} parent=11 // pred_region
          %s290 = ssub.s32 16, 16
          %291 = vsyncadd [#allocation12], %s290
          %s293 = sshll.u32 [#allocation11], 4
          %s294 = int_to_ptr.vmem [resolvable:$true] %s293
          %296 = dma.hbm_to_vmem [thread:$0]  %s6, 16, %s294, [#allocation12]
        $region28: #{tpu_custom_call.1} parent=11 // pred_fallthru
          _
        // Predicated region
        $region29: #{tpu_custom_call.1} parent=11 // pred_check
          %p297 = pneg %p208
        $region30: #{tpu_custom_call.1} parent=11 // pred_check_branch
          %299 = sbr.rel (%p297) target = $region32
        $region31: #{tpu_custom_call.1} parent=11 // pred_region
          %s301 = ssub.s32 12288, 12288
          %302 = vsyncadd [#allocation12], %s301
          %s303 = sshll.u32 [#allocation13], 4
          %s304 = int_to_ptr.vmem [resolvable:$true] %s303
          %309 = dma.hbm_to_vmem [thread:$0]  %s7, 12288, %s304, [#allocation12], 128, 128, 8
        $region32: #{tpu_custom_call.1} parent=11 // pred_fallthru
          _
      $region12: #{tpu_custom_call.1} parent=5 // pred_fallthru
        _
      %p310 = scmp.lt.s32.totalorder %s25, 4
      // Predicated region
      $region33: #{tpu_custom_call.1} parent=5 // pred_check
        %p311 = pneg %p310
      $region34: #{tpu_custom_call.1} parent=5 // pred_check_branch
        %313 = sbr.rel (%p311) target = $region36
      $region35: #{tpu_custom_call.1} parent=5 // pred_region
        // Predicated region
        $region37: #{tpu_custom_call.1} parent=35 // pred_check
          %p314 = pneg %p45
        $region38: #{tpu_custom_call.1} parent=35 // pred_check_branch
          %316 = sbr.rel (%p314) target = $region40
        $region39: #{tpu_custom_call.1} parent=35 // pred_region
          %s317 = sand.u32 %s35, 1
          %s318 = scalar_lea.sflag [#allocation3], %s317
          %s319 = sand.u32 %s35, 1
          %s320 = smul.addr %s319, 256
          %s321 = scalar_lea.vmem [#allocation2], %s320
          %s322 = smul.u32 32, %s25
          %s324 = ssub.s32 4096, 4096
          %325 = vsyncadd %s318, %s324
          %s326 = smul.addr %s322, 128
          %s327 = scalar_lea.hbm %s0, %s326
          %s328 = sshll.u32 %s321, 4
          %s329 = int_to_ptr.vmem [resolvable:$true] %s328
          %334 = dma.hbm_to_vmem [thread:$0]  %s327, 4096, %s329, %s318, 128, 128, 8
        $region40: #{tpu_custom_call.1} parent=35 // pred_fallthru
          _
        // Predicated region
        $region41: #{tpu_custom_call.1} parent=35 // pred_check
          %p335 = pneg %p71
        $region42: #{tpu_custom_call.1} parent=35 // pred_check_branch
          %337 = sbr.rel (%p335) target = $region44
        $region43: #{tpu_custom_call.1} parent=35 // pred_region
          #allocation16 [shape = 'u32[6]{0}', space=smem, size = 0x18, scoped, tag = 'DMA stride descriptor']
          %s338 = sand.u32 %s25, 1
          %s339 = scalar_lea.sflag [#allocation6], %s338
          %s340 = sand.u32 %s61, 1
          %s341 = smul.addr %s340, 1024
          %s342 = scalar_lea.vmem [#allocation5], %s341
          %s343 = smul.u32 32, %s25
          %s345 = ssub.s32 16384, 16384
          %346 = vsyncadd %s339, %s345
          %s347 = smul.addr %s343, 128
          %s348 = scalar_lea.hbm %s1, %s347
          %s350 = sshll.u32 1, 14
          %s351 = sxor.u32 4294967295, %s350
          %s353 = sld [smem:[#allocation0]]
          %s354 = sadd.s32 2, %s353
          %s356 = sshll.u32 7, 26
          %s357 = sxor.u32 4294967295, %s356
          %s358 = sand.u32 0, %s357
          %s359 = sshll.u32 %s354, 26
          %s360 = sor.u32 %s358, %s359
          %s361 = sshll.u32 %s342, 4
          %s362 = int_to_ptr.vmem [resolvable:$true] %s361
          %368 = sst [smem:[#allocation16]] 16384
          %s369 = scalar_lea.smem [#allocation16], 1
          %370 = sst [smem:[%s369]] 4096
          %s371 = scalar_lea.smem [#allocation16], 2
          %372 = sst [smem:[%s371]] 32
          %s373 = scalar_lea.smem [#allocation16], 3
          %374 = sst [smem:[%s373]] 128
          %s375 = scalar_lea.smem [#allocation16], 4
          %376 = sst [smem:[%s375]] 128
          %s377 = scalar_lea.smem [#allocation16], 5
          %378 = sst [smem:[%s377]] 8
          %380 = dma.general %s348, 16384, %s362, %s339, [#allocation15], [#allocation16], %s360, 0
        $region44: #{tpu_custom_call.1} parent=35 // pred_fallthru
          _
        // Predicated region
        $region45: #{tpu_custom_call.1} parent=35 // pred_check
          %p381 = pneg %p97
        $region46: #{tpu_custom_call.1} parent=35 // pred_check_branch
          %383 = sbr.rel (%p381) target = $region48
        $region47: #{tpu_custom_call.1} parent=35 // pred_region
          %s384 = smul.u32 32, %s25
          %p385 = scmp.lt.s32.totalorder %s384, 127
          %s386 = scalar_select %p385, %s384, 127
          %s387 = smul.addr %s386, 8
          %s388 = scalar_lea.vmem %s2, %s387
          %s389 = smul.u32 32, %s25
        $region48: #{tpu_custom_call.1} parent=35 // pred_fallthru
          _
      $region36: #{tpu_custom_call.1} parent=5 // pred_fallthru
        _
      %p390 = scmp.le.s32.totalorder 1, %s25
      %p391 = scmp.lt.s32.totalorder %s25, 5
      %p392 = pnand %p390, %p391
      %p393 = pneg %p392
      // Predicated region
      $region49: #{tpu_custom_call.1} parent=5 // pred_check
        _
      $region50: #{tpu_custom_call.1} parent=5 // pred_check_branch
        %395 = sbr.rel (%p392) target = $region52
      $region51: #{tpu_custom_call.1} parent=5 // pred_region
        %s396 = ssub.s32 %s25, 1
        %s397 = sand.u32 %s38, 1
        %s398 = scalar_lea.sflag [#allocation3], %s397
        %s399 = sand.u32 %s38, 1
        %s400 = smul.addr %s399, 256
        %s401 = scalar_lea.vmem [#allocation2], %s400
        // Predicated region
        $region53: #{tpu_custom_call.1} parent=51 // pred_check
          %p402 = pneg %p51
        $region54: #{tpu_custom_call.1} parent=51 // pred_check_branch
          %404 = sbr.rel (%p402) target = $region56
        $region55: #{tpu_custom_call.1} parent=51 // pred_region
          %405 = dma.done %s398, 4096
        $region56: #{tpu_custom_call.1} parent=51 // pred_fallthru
          _
        %s406 = sand.u32 %s30, 1
        %s407 = scalar_lea.sflag [#allocation6], %s406
        %s408 = sand.u32 %s64, 1
        %s409 = smul.addr %s408, 1024
        %s410 = scalar_lea.vmem [#allocation5], %s409
        // Predicated region
        $region57: #{tpu_custom_call.1} parent=51 // pred_check
          %p411 = pneg %p77
        $region58: #{tpu_custom_call.1} parent=51 // pred_check_branch
          %413 = sbr.rel (%p411) target = $region60
        $region59: #{tpu_custom_call.1} parent=51 // pred_region
          %414 = dma.done %s407, 16384
        $region60: #{tpu_custom_call.1} parent=51 // pred_fallthru
          _
        // Predicated region
        $region61: #{tpu_custom_call.1} parent=51 // pred_check
          %p415 = pneg %p124
        $region62: #{tpu_custom_call.1} parent=51 // pred_check_branch
          %417 = sbr.rel (%p415) target = $region64
        $region63: #{tpu_custom_call.1} parent=51 // pred_region
          %418 = dma.done [#allocation6], 4096
        $region64: #{tpu_custom_call.1} parent=51 // pred_fallthru
          _
        // Predicated region
        $region65: #{tpu_custom_call.1} parent=51 // pred_check
          %p419 = pneg %p145
        $region66: #{tpu_custom_call.1} parent=51 // pred_check_branch
          %421 = sbr.rel (%p419) target = $region68
        $region67: #{tpu_custom_call.1} parent=51 // pred_region
          %422 = dma.done [#allocation9], 16
        $region68: #{tpu_custom_call.1} parent=51 // pred_fallthru
          _
        // Predicated region
        $region69: #{tpu_custom_call.1} parent=51 // pred_check
          %p423 = pneg %p166
        $region70: #{tpu_custom_call.1} parent=51 // pred_check_branch
          %425 = sbr.rel (%p423) target = $region72
        $region71: #{tpu_custom_call.1} parent=51 // pred_region
          %426 = dma.done [#allocation9], 2048
        $region72: #{tpu_custom_call.1} parent=51 // pred_fallthru
          _
        // Predicated region
        $region73: #{tpu_custom_call.1} parent=51 // pred_check
          %p427 = pneg %p187
        $region74: #{tpu_custom_call.1} parent=51 // pred_check_branch
          %429 = sbr.rel (%p427) target = $region76
        $region75: #{tpu_custom_call.1} parent=51 // pred_region
          %430 = dma.done [#allocation12], 16
        $region76: #{tpu_custom_call.1} parent=51 // pred_fallthru
          _
        // Predicated region
        $region77: #{tpu_custom_call.1} parent=51 // pred_check
          %p431 = pneg %p208
        $region78: #{tpu_custom_call.1} parent=51 // pred_check_branch
          %433 = sbr.rel (%p431) target = $region80
        $region79: #{tpu_custom_call.1} parent=51 // pred_region
          %434 = dma.done [#allocation12], 12288
        $region80: #{tpu_custom_call.1} parent=51 // pred_fallthru
          _
        %s435 = sand.u32 %s38, 1
        %s436 = scalar_lea.sflag [#allocation3], %s435
        %s437 = sand.u32 %s38, 1
        %s438 = smul.addr %s437, 256
        %s439 = scalar_lea.vmem [#allocation2], %s438
        %p440 = pneg %p51
        %p441 = pneg %p48
        %s442 = sand.u32 %s30, 1
        %s443 = scalar_lea.sflag [#allocation6], %s442
        %s444 = sand.u32 %s64, 1
        %s445 = smul.addr %s444, 1024
        %s446 = scalar_lea.vmem [#allocation5], %s445
        %p447 = pneg %p77
        %p448 = pneg %p74
        %s449 = smul.u32 32, %s30
        %p450 = scmp.lt.s32.totalorder %s449, 127
        %s451 = scalar_select %p450, %s449, 127
        %s452 = smul.addr %s451, 8
        %s453 = scalar_lea.vmem %s2, %s452
        %p454 = pneg %p103
        %p455 = pneg %p100
        %p456 = pneg %p124
        %p457 = pneg %p121
        %p458 = pneg %p145
        %p459 = pneg %p142
        %p460 = pneg %p166
        %p461 = pneg %p163
        %p462 = pneg %p187
        %p463 = pneg %p184
        %p464 = pneg %p208
        %p465 = pneg %p205
        %p466 = pneg %p234
        %p467 = pneg %p231
        %s468 = sand.u32 %s221, 1
        %s469 = scalar_lea.sflag [#allocation4], %s468
        %s470 = sand.u32 %s221, 1
        %s471 = smul.addr %s470, 256
        %s472 = scalar_lea.vmem [#allocation14], %s471
        %s473 = smul.u32 32, %s30
        %s474 = smul.u32 32, %s30
        %s475 = smul.u32 32, %s30
        %p476 = scmp.lt.s32.totalorder %s475, 127
        %s477 = scalar_select %p476, %s475, 127
        %s478 = smul.addr %s477, 8
        %s479 = scalar_lea.vmem %s2, %s478
        %s480 = smul.u32 32, %s30
        %s481 = smul.u32 32, %s30
        %v482 = vld [vmem:[%s401] sm:$0xff]
        %v483 = vld [vmem:[%s401 + $0x8] sm:$0xff]
        %v484 = vld [vmem:[%s401 + $0x10] sm:$0xff]
        %v485 = vld [vmem:[%s401 + $0x18] sm:$0xff]
        %v486 = vld [vmem:[%s401 + $0x20] sm:$0xff]
        %v487 = vld [vmem:[%s401 + $0x28] sm:$0xff]
        %v488 = vld [vmem:[%s401 + $0x30] sm:$0xff]
        %v489 = vld [vmem:[%s401 + $0x38] sm:$0xff]
        %v490 = vld [vmem:[%s401 + $0x40] sm:$0xff]
        %v491 = vld [vmem:[%s401 + $0x48] sm:$0xff]
        %v492 = vld [vmem:[%s401 + $0x50] sm:$0xff]
        %v493 = vld [vmem:[%s401 + $0x58] sm:$0xff]
        %v494 = vld [vmem:[%s401 + $0x60] sm:$0xff]
        %v495 = vld [vmem:[%s401 + $0x68] sm:$0xff]
        %v496 = vld [vmem:[%s401 + $0x70] sm:$0xff]
        %v497 = vld [vmem:[%s401 + $0x78] sm:$0xff]
        %v498 = vld [vmem:[%s401 + $0x80] sm:$0xff]
        %v499 = vld [vmem:[%s401 + $0x88] sm:$0xff]
        %v500 = vld [vmem:[%s401 + $0x90] sm:$0xff]
        %v501 = vld [vmem:[%s401 + $0x98] sm:$0xff]
        %v502 = vld [vmem:[%s401 + $0xa0] sm:$0xff]
        %v503 = vld [vmem:[%s401 + $0xa8] sm:$0xff]
        %v504 = vld [vmem:[%s401 + $0xb0] sm:$0xff]
        %v505 = vld [vmem:[%s401 + $0xb8] sm:$0xff]
        %v506 = vld [vmem:[%s401 + $0xc0] sm:$0xff]
        %v507 = vld [vmem:[%s401 + $0xc8] sm:$0xff]
        %v508 = vld [vmem:[%s401 + $0xd0] sm:$0xff]
        %v509 = vld [vmem:[%s401 + $0xd8] sm:$0xff]
        %v510 = vld [vmem:[%s401 + $0xe0] sm:$0xff]
        %v511 = vld [vmem:[%s401 + $0xe8] sm:$0xff]
        %v512 = vld [vmem:[%s401 + $0xf0] sm:$0xff]
        %v513 = vld [vmem:[%s401 + $0xf8] sm:$0xff]
        %v514 = vld [vmem:[%s479] sm:$0xff]
        %v515 = vld [vmem:[%s479 + $0x8] sm:$0xff]
        %v516 = vld [vmem:[%s479 + $0x10] sm:$0xff]
        %v517 = vld [vmem:[%s479 + $0x18] sm:$0xff]
        %v518 = vld [vmem:[%s479 + $0x20] sm:$0xff]
        %v519 = vld [vmem:[%s479 + $0x28] sm:$0xff]
        %v520 = vld [vmem:[%s479 + $0x30] sm:$0xff]
        %v521 = vld [vmem:[%s479 + $0x38] sm:$0xff]
        %v522 = vld [vmem:[%s479 + $0x40] sm:$0xff]
        %v523 = vld [vmem:[%s479 + $0x48] sm:$0xff]
        %v524 = vld [vmem:[%s479 + $0x50] sm:$0xff]
        %v525 = vld [vmem:[%s479 + $0x58] sm:$0xff]
        %v526 = vld [vmem:[%s479 + $0x60] sm:$0xff]
        %v527 = vld [vmem:[%s479 + $0x68] sm:$0xff]
        %v528 = vld [vmem:[%s479 + $0x70] sm:$0xff]
        %v529 = vld [vmem:[%s479 + $0x78] sm:$0xff]
        %v530 = vld [vmem:[%s479 + $0x80] sm:$0xff]
        %v531 = vld [vmem:[%s479 + $0x88] sm:$0xff]
        %v532 = vld [vmem:[%s479 + $0x90] sm:$0xff]
        %v533 = vld [vmem:[%s479 + $0x98] sm:$0xff]
        %v534 = vld [vmem:[%s479 + $0xa0] sm:$0xff]
        %v535 = vld [vmem:[%s479 + $0xa8] sm:$0xff]
        %v536 = vld [vmem:[%s479 + $0xb0] sm:$0xff]
        %v537 = vld [vmem:[%s479 + $0xb8] sm:$0xff]
        %v538 = vld [vmem:[%s479 + $0xc0] sm:$0xff]
        %v539 = vld [vmem:[%s479 + $0xc8] sm:$0xff]
        %v540 = vld [vmem:[%s479 + $0xd0] sm:$0xff]
        %v541 = vld [vmem:[%s479 + $0xd8] sm:$0xff]
        %v542 = vld [vmem:[%s479 + $0xe0] sm:$0xff]
        %v543 = vld [vmem:[%s479 + $0xe8] sm:$0xff]
        %v544 = vld [vmem:[%s479 + $0xf0] sm:$0xff]
        %v545 = vld [vmem:[%s479 + $0xf8] sm:$0xff]
        %v546 = vld [vmem:[%s410] sm:$0xff]
        %v547 = vld [vmem:[%s410 + $0x8] sm:$0xff]
        %v548 = vld [vmem:[%s410 + $0x10] sm:$0xff]
        %v549 = vld [vmem:[%s410 + $0x18] sm:$0xff]
        %v550 = vld [vmem:[%s410 + $0x20] sm:$0xff]
        %v551 = vld [vmem:[%s410 + $0x28] sm:$0xff]
        %v552 = vld [vmem:[%s410 + $0x30] sm:$0xff]
        %v553 = vld [vmem:[%s410 + $0x38] sm:$0xff]
        %v554 = vld [vmem:[%s410 + $0x40] sm:$0xff]
        %v555 = vld [vmem:[%s410 + $0x48] sm:$0xff]
        %v556 = vld [vmem:[%s410 + $0x50] sm:$0xff]
        %v557 = vld [vmem:[%s410 + $0x58] sm:$0xff]
        %v558 = vld [vmem:[%s410 + $0x60] sm:$0xff]
        %v559 = vld [vmem:[%s410 + $0x68] sm:$0xff]
        %v560 = vld [vmem:[%s410 + $0x70] sm:$0xff]
        %v561 = vld [vmem:[%s410 + $0x78] sm:$0xff]
        %v562 = vld [vmem:[%s410 + $0x80] sm:$0xff]
        %v563 = vld [vmem:[%s410 + $0x88] sm:$0xff]
        %v564 = vld [vmem:[%s410 + $0x90] sm:$0xff]
        %v565 = vld [vmem:[%s410 + $0x98] sm:$0xff]
        %v566 = vld [vmem:[%s410 + $0xa0] sm:$0xff]
        %v567 = vld [vmem:[%s410 + $0xa8] sm:$0xff]
        %v568 = vld [vmem:[%s410 + $0xb0] sm:$0xff]
        %v569 = vld [vmem:[%s410 + $0xb8] sm:$0xff]
        %v570 = vld [vmem:[%s410 + $0xc0] sm:$0xff]
        %v571 = vld [vmem:[%s410 + $0xc8] sm:$0xff]
        %v572 = vld [vmem:[%s410 + $0xd0] sm:$0xff]
        %v573 = vld [vmem:[%s410 + $0xd8] sm:$0xff]
        %v574 = vld [vmem:[%s410 + $0xe0] sm:$0xff]
        %v575 = vld [vmem:[%s410 + $0xe8] sm:$0xff]
        %v576 = vld [vmem:[%s410 + $0xf0] sm:$0xff]
        %v577 = vld [vmem:[%s410 + $0xf8] sm:$0xff]
        %s578 = scalar_lea.vmem %s410, 256 [#allocation5]
        %v579 = vld [vmem:[%s578] sm:$0xff]
        %v580 = vld [vmem:[%s578 + $0x8] sm:$0xff]
        %v581 = vld [vmem:[%s578 + $0x10] sm:$0xff]
        %v582 = vld [vmem:[%s578 + $0x18] sm:$0xff]
        %v583 = vld [vmem:[%s578 + $0x20] sm:$0xff]
        %v584 = vld [vmem:[%s578 + $0x28] sm:$0xff]
        %v585 = vld [vmem:[%s578 + $0x30] sm:$0xff]
        %v586 = vld [vmem:[%s578 + $0x38] sm:$0xff]
        %v587 = vld [vmem:[%s578 + $0x40] sm:$0xff]
        %v588 = vld [vmem:[%s578 + $0x48] sm:$0xff]
        %v589 = vld [vmem:[%s578 + $0x50] sm:$0xff]
        %v590 = vld [vmem:[%s578 + $0x58] sm:$0xff]
        %v591 = vld [vmem:[%s578 + $0x60] sm:$0xff]
        %v592 = vld [vmem:[%s578 + $0x68] sm:$0xff]
        %v593 = vld [vmem:[%s578 + $0x70] sm:$0xff]
        %v594 = vld [vmem:[%s578 + $0x78] sm:$0xff]
        %v595 = vld [vmem:[%s578 + $0x80] sm:$0xff]
        %v596 = vld [vmem:[%s578 + $0x88] sm:$0xff]
        %v597 = vld [vmem:[%s578 + $0x90] sm:$0xff]
        %v598 = vld [vmem:[%s578 + $0x98] sm:$0xff]
        %v599 = vld [vmem:[%s578 + $0xa0] sm:$0xff]
        %v600 = vld [vmem:[%s578 + $0xa8] sm:$0xff]
        %v601 = vld [vmem:[%s578 + $0xb0] sm:$0xff]
        %v602 = vld [vmem:[%s578 + $0xb8] sm:$0xff]
        %v603 = vld [vmem:[%s578 + $0xc0] sm:$0xff]
        %v604 = vld [vmem:[%s578 + $0xc8] sm:$0xff]
        %v605 = vld [vmem:[%s578 + $0xd0] sm:$0xff]
        %v606 = vld [vmem:[%s578 + $0xd8] sm:$0xff]
        %v607 = vld [vmem:[%s578 + $0xe0] sm:$0xff]
        %v608 = vld [vmem:[%s578 + $0xe8] sm:$0xff]
        %v609 = vld [vmem:[%s578 + $0xf0] sm:$0xff]
        %v610 = vld [vmem:[%s578 + $0xf8] sm:$0xff]
        %v611 = vadd.f32 %v546, %v579
        %v612 = vadd.f32 %v547, %v580
        %v613 = vadd.f32 %v548, %v581
        %v614 = vadd.f32 %v549, %v582
        %v615 = vadd.f32 %v550, %v583
        %v616 = vadd.f32 %v551, %v584
        %v617 = vadd.f32 %v552, %v585
        %v618 = vadd.f32 %v553, %v586
        %v619 = vadd.f32 %v554, %v587
        %v620 = vadd.f32 %v555, %v588
        %v621 = vadd.f32 %v556, %v589
        %v622 = vadd.f32 %v557, %v590
        %v623 = vadd.f32 %v558, %v591
        %v624 = vadd.f32 %v559, %v592
        %v625 = vadd.f32 %v560, %v593
        %v626 = vadd.f32 %v561, %v594
        %v627 = vadd.f32 %v562, %v595
        %v628 = vadd.f32 %v563, %v596
        %v629 = vadd.f32 %v564, %v597
        %v630 = vadd.f32 %v565, %v598
        %v631 = vadd.f32 %v566, %v599
        %v632 = vadd.f32 %v567, %v600
        %v633 = vadd.f32 %v568, %v601
        %v634 = vadd.f32 %v569, %v602
        %v635 = vadd.f32 %v570, %v603
        %v636 = vadd.f32 %v571, %v604
        %v637 = vadd.f32 %v572, %v605
        %v638 = vadd.f32 %v573, %v606
        %v639 = vadd.f32 %v574, %v607
        %v640 = vadd.f32 %v575, %v608
        %v641 = vadd.f32 %v576, %v609
        %v642 = vadd.f32 %v577, %v610
        %s643 = scalar_lea.vmem %s410, 512 [#allocation5]
        %v644 = vld [vmem:[%s643] sm:$0xff]
        %v645 = vld [vmem:[%s643 + $0x8] sm:$0xff]
        %v646 = vld [vmem:[%s643 + $0x10] sm:$0xff]
        %v647 = vld [vmem:[%s643 + $0x18] sm:$0xff]
        %v648 = vld [vmem:[%s643 + $0x20] sm:$0xff]
        %v649 = vld [vmem:[%s643 + $0x28] sm:$0xff]
        %v650 = vld [vmem:[%s643 + $0x30] sm:$0xff]
        %v651 = vld [vmem:[%s643 + $0x38] sm:$0xff]
        %v652 = vld [vmem:[%s643 + $0x40] sm:$0xff]
        %v653 = vld [vmem:[%s643 + $0x48] sm:$0xff]
        %v654 = vld [vmem:[%s643 + $0x50] sm:$0xff]
        %v655 = vld [vmem:[%s643 + $0x58] sm:$0xff]
        %v656 = vld [vmem:[%s643 + $0x60] sm:$0xff]
        %v657 = vld [vmem:[%s643 + $0x68] sm:$0xff]
        %v658 = vld [vmem:[%s643 + $0x70] sm:$0xff]
        %v659 = vld [vmem:[%s643 + $0x78] sm:$0xff]
        %v660 = vld [vmem:[%s643 + $0x80] sm:$0xff]
        %v661 = vld [vmem:[%s643 + $0x88] sm:$0xff]
        %v662 = vld [vmem:[%s643 + $0x90] sm:$0xff]
        %v663 = vld [vmem:[%s643 + $0x98] sm:$0xff]
        %v664 = vld [vmem:[%s643 + $0xa0] sm:$0xff]
        %v665 = vld [vmem:[%s643 + $0xa8] sm:$0xff]
        %v666 = vld [vmem:[%s643 + $0xb0] sm:$0xff]
        %v667 = vld [vmem:[%s643 + $0xb8] sm:$0xff]
        %v668 = vld [vmem:[%s643 + $0xc0] sm:$0xff]
        %v669 = vld [vmem:[%s643 + $0xc8] sm:$0xff]
        %v670 = vld [vmem:[%s643 + $0xd0] sm:$0xff]
        %v671 = vld [vmem:[%s643 + $0xd8] sm:$0xff]
        %v672 = vld [vmem:[%s643 + $0xe0] sm:$0xff]
        %v673 = vld [vmem:[%s643 + $0xe8] sm:$0xff]
        %v674 = vld [vmem:[%s643 + $0xf0] sm:$0xff]
        %v675 = vld [vmem:[%s643 + $0xf8] sm:$0xff]
        %v676 = vadd.f32 %v611, %v644
        %v677 = vadd.f32 %v612, %v645
        %v678 = vadd.f32 %v613, %v646
        %v679 = vadd.f32 %v614, %v647
        %v680 = vadd.f32 %v615, %v648
        %v681 = vadd.f32 %v616, %v649
        %v682 = vadd.f32 %v617, %v650
        %v683 = vadd.f32 %v618, %v651
        %v684 = vadd.f32 %v619, %v652
        %v685 = vadd.f32 %v620, %v653
        %v686 = vadd.f32 %v621, %v654
        %v687 = vadd.f32 %v622, %v655
        %v688 = vadd.f32 %v623, %v656
        %v689 = vadd.f32 %v624, %v657
        %v690 = vadd.f32 %v625, %v658
        %v691 = vadd.f32 %v626, %v659
        %v692 = vadd.f32 %v627, %v660
        %v693 = vadd.f32 %v628, %v661
        %v694 = vadd.f32 %v629, %v662
        %v695 = vadd.f32 %v630, %v663
        %v696 = vadd.f32 %v631, %v664
        %v697 = vadd.f32 %v632, %v665
        %v698 = vadd.f32 %v633, %v666
        %v699 = vadd.f32 %v634, %v667
        %v700 = vadd.f32 %v635, %v668
        %v701 = vadd.f32 %v636, %v669
        %v702 = vadd.f32 %v637, %v670
        %v703 = vadd.f32 %v638, %v671
        %v704 = vadd.f32 %v639, %v672
        %v705 = vadd.f32 %v640, %v673
        %v706 = vadd.f32 %v641, %v674
        %v707 = vadd.f32 %v642, %v675
        %s708 = scalar_lea.vmem %s410, 768 [#allocation5]
        %v709 = vld [vmem:[%s708] sm:$0xff]
        %v710 = vld [vmem:[%s708 + $0x8] sm:$0xff]
        %v711 = vld [vmem:[%s708 + $0x10] sm:$0xff]
        %v712 = vld [vmem:[%s708 + $0x18] sm:$0xff]
        %v713 = vld [vmem:[%s708 + $0x20] sm:$0xff]
        %v714 = vld [vmem:[%s708 + $0x28] sm:$0xff]
        %v715 = vld [vmem:[%s708 + $0x30] sm:$0xff]
        %v716 = vld [vmem:[%s708 + $0x38] sm:$0xff]
        %v717 = vld [vmem:[%s708 + $0x40] sm:$0xff]
        %v718 = vld [vmem:[%s708 + $0x48] sm:$0xff]
        %v719 = vld [vmem:[%s708 + $0x50] sm:$0xff]
        %v720 = vld [vmem:[%s708 + $0x58] sm:$0xff]
        %v721 = vld [vmem:[%s708 + $0x60] sm:$0xff]
        %v722 = vld [vmem:[%s708 + $0x68] sm:$0xff]
        %v723 = vld [vmem:[%s708 + $0x70] sm:$0xff]
        %v724 = vld [vmem:[%s708 + $0x78] sm:$0xff]
        %v725 = vld [vmem:[%s708 + $0x80] sm:$0xff]
        %v726 = vld [vmem:[%s708 + $0x88] sm:$0xff]
        %v727 = vld [vmem:[%s708 + $0x90] sm:$0xff]
        %v728 = vld [vmem:[%s708 + $0x98] sm:$0xff]
        %v729 = vld [vmem:[%s708 + $0xa0] sm:$0xff]
        %v730 = vld [vmem:[%s708 + $0xa8] sm:$0xff]
        %v731 = vld [vmem:[%s708 + $0xb0] sm:$0xff]
        %v732 = vld [vmem:[%s708 + $0xb8] sm:$0xff]
        %v733 = vld [vmem:[%s708 + $0xc0] sm:$0xff]
        %v734 = vld [vmem:[%s708 + $0xc8] sm:$0xff]
        %v735 = vld [vmem:[%s708 + $0xd0] sm:$0xff]
        %v736 = vld [vmem:[%s708 + $0xd8] sm:$0xff]
        %v737 = vld [vmem:[%s708 + $0xe0] sm:$0xff]
        %v738 = vld [vmem:[%s708 + $0xe8] sm:$0xff]
        %v739 = vld [vmem:[%s708 + $0xf0] sm:$0xff]
        %v740 = vld [vmem:[%s708 + $0xf8] sm:$0xff]
        %v741 = vadd.f32 %v676, %v709
        %v742 = vadd.f32 %v677, %v710
        %v743 = vadd.f32 %v678, %v711
        %v744 = vadd.f32 %v679, %v712
        %v745 = vadd.f32 %v680, %v713
        %v746 = vadd.f32 %v681, %v714
        %v747 = vadd.f32 %v682, %v715
        %v748 = vadd.f32 %v683, %v716
        %v749 = vadd.f32 %v684, %v717
        %v750 = vadd.f32 %v685, %v718
        %v751 = vadd.f32 %v686, %v719
        %v752 = vadd.f32 %v687, %v720
        %v753 = vadd.f32 %v688, %v721
        %v754 = vadd.f32 %v689, %v722
        %v755 = vadd.f32 %v690, %v723
        %v756 = vadd.f32 %v691, %v724
        %v757 = vadd.f32 %v692, %v725
        %v758 = vadd.f32 %v693, %v726
        %v759 = vadd.f32 %v694, %v727
        %v760 = vadd.f32 %v695, %v728
        %v761 = vadd.f32 %v696, %v729
        %v762 = vadd.f32 %v697, %v730
        %v763 = vadd.f32 %v698, %v731
        %v764 = vadd.f32 %v699, %v732
        %v765 = vadd.f32 %v700, %v733
        %v766 = vadd.f32 %v701, %v734
        %v767 = vadd.f32 %v702, %v735
        %v768 = vadd.f32 %v703, %v736
        %v769 = vadd.f32 %v704, %v737
        %v770 = vadd.f32 %v705, %v738
        %v771 = vadd.f32 %v706, %v739
        %v772 = vadd.f32 %v707, %v740
        %774 = vset.pattern.permute.xlu0 0
        %775 = vperm.xlu0 %774, %v514
        %v776 = vpop.permute.xlu0 %775
        %779 = vset.pattern.permute.xlu0 0
        %780 = vperm.xlu0 %779, %v515
        %v781 = vpop.permute.xlu0 %780
        %784 = vset.pattern.permute.xlu0 0
        %785 = vperm.xlu0 %784, %v516
        %v786 = vpop.permute.xlu0 %785
        %789 = vset.pattern.permute.xlu0 0
        %790 = vperm.xlu0 %789, %v517
        %v791 = vpop.permute.xlu0 %790
        %794 = vset.pattern.permute.xlu0 0
        %795 = vperm.xlu0 %794, %v518
        %v796 = vpop.permute.xlu0 %795
        %799 = vset.pattern.permute.xlu0 0
        %800 = vperm.xlu0 %799, %v519
        %v801 = vpop.permute.xlu0 %800
        %804 = vset.pattern.permute.xlu0 0
        %805 = vperm.xlu0 %804, %v520
        %v806 = vpop.permute.xlu0 %805
        %809 = vset.pattern.permute.xlu0 0
        %810 = vperm.xlu0 %809, %v521
        %v811 = vpop.permute.xlu0 %810
        %814 = vset.pattern.permute.xlu0 0
        %815 = vperm.xlu0 %814, %v522
        %v816 = vpop.permute.xlu0 %815
        %819 = vset.pattern.permute.xlu0 0
        %820 = vperm.xlu0 %819, %v523
        %v821 = vpop.permute.xlu0 %820
        %824 = vset.pattern.permute.xlu0 0
        %825 = vperm.xlu0 %824, %v524
        %v826 = vpop.permute.xlu0 %825
        %829 = vset.pattern.permute.xlu0 0
        %830 = vperm.xlu0 %829, %v525
        %v831 = vpop.permute.xlu0 %830
        %834 = vset.pattern.permute.xlu0 0
        %835 = vperm.xlu0 %834, %v526
        %v836 = vpop.permute.xlu0 %835
        %839 = vset.pattern.permute.xlu0 0
        %840 = vperm.xlu0 %839, %v527
        %v841 = vpop.permute.xlu0 %840
        %844 = vset.pattern.permute.xlu0 0
        %845 = vperm.xlu0 %844, %v528
        %v846 = vpop.permute.xlu0 %845
        %849 = vset.pattern.permute.xlu0 0
        %850 = vperm.xlu0 %849, %v529
        %v851 = vpop.permute.xlu0 %850
        %854 = vset.pattern.permute.xlu0 0
        %855 = vperm.xlu0 %854, %v530
        %v856 = vpop.permute.xlu0 %855
        %859 = vset.pattern.permute.xlu0 0
        %860 = vperm.xlu0 %859, %v531
        %v861 = vpop.permute.xlu0 %860
        %864 = vset.pattern.permute.xlu0 0
        %865 = vperm.xlu0 %864, %v532
        %v866 = vpop.permute.xlu0 %865
        %869 = vset.pattern.permute.xlu0 0
        %870 = vperm.xlu0 %869, %v533
        %v871 = vpop.permute.xlu0 %870
        %874 = vset.pattern.permute.xlu0 0
        %875 = vperm.xlu0 %874, %v534
        %v876 = vpop.permute.xlu0 %875
        %879 = vset.pattern.permute.xlu0 0
        %880 = vperm.xlu0 %879, %v535
        %v881 = vpop.permute.xlu0 %880
        %884 = vset.pattern.permute.xlu0 0
        %885 = vperm.xlu0 %884, %v536
        %v886 = vpop.permute.xlu0 %885
        %889 = vset.pattern.permute.xlu0 0
        %890 = vperm.xlu0 %889, %v537
        %v891 = vpop.permute.xlu0 %890
        %894 = vset.pattern.permute.xlu0 0
        %895 = vperm.xlu0 %894, %v538
        %v896 = vpop.permute.xlu0 %895
        %899 = vset.pattern.permute.xlu0 0
        %900 = vperm.xlu0 %899, %v539
        %v901 = vpop.permute.xlu0 %900
        %904 = vset.pattern.permute.xlu0 0
        %905 = vperm.xlu0 %904, %v540
        %v906 = vpop.permute.xlu0 %905
        %909 = vset.pattern.permute.xlu0 0
        %910 = vperm.xlu0 %909, %v541
        %v911 = vpop.permute.xlu0 %910
        %914 = vset.pattern.permute.xlu0 0
        %915 = vperm.xlu0 %914, %v542
        %v916 = vpop.permute.xlu0 %915
        %919 = vset.pattern.permute.xlu0 0
        %920 = vperm.xlu0 %919, %v543
        %v921 = vpop.permute.xlu0 %920
        %924 = vset.pattern.permute.xlu0 0
        %925 = vperm.xlu0 %924, %v544
        %v926 = vpop.permute.xlu0 %925
        %929 = vset.pattern.permute.xlu0 0
        %930 = vperm.xlu0 %929, %v545
        %v931 = vpop.permute.xlu0 %930
        %v933 = vmul.f32 %v741, %v776
        %v934 = vmul.f32 %v742, %v781
        %v935 = vmul.f32 %v743, %v786
        %v936 = vmul.f32 %v744, %v791
        %v937 = vmul.f32 %v745, %v796
        %v938 = vmul.f32 %v746, %v801
        %v939 = vmul.f32 %v747, %v806
        %v940 = vmul.f32 %v748, %v811
        %v941 = vmul.f32 %v749, %v816
        %v942 = vmul.f32 %v750, %v821
        %v943 = vmul.f32 %v751, %v826
        %v944 = vmul.f32 %v752, %v831
        %v945 = vmul.f32 %v753, %v836
        %v946 = vmul.f32 %v754, %v841
        %v947 = vmul.f32 %v755, %v846
        %v948 = vmul.f32 %v756, %v851
        %v949 = vmul.f32 %v757, %v856
        %v950 = vmul.f32 %v758, %v861
        %v951 = vmul.f32 %v759, %v866
        %v952 = vmul.f32 %v760, %v871
        %v953 = vmul.f32 %v761, %v876
        %v954 = vmul.f32 %v762, %v881
        %v955 = vmul.f32 %v763, %v886
        %v956 = vmul.f32 %v764, %v891
        %v957 = vmul.f32 %v765, %v896
        %v958 = vmul.f32 %v766, %v901
        %v959 = vmul.f32 %v767, %v906
        %v960 = vmul.f32 %v768, %v911
        %v961 = vmul.f32 %v769, %v916
        %v962 = vmul.f32 %v770, %v921
        %v963 = vmul.f32 %v771, %v926
        %v964 = vmul.f32 %v772, %v931
        %v965 = vld [vmem:[#allocation7] sm:$0xff]
        %v966 = vld [vmem:[#allocation7 + $0x8] sm:$0xff]
        %v967 = vld [vmem:[#allocation7 + $0x10] sm:$0xff]
        %v968 = vld [vmem:[#allocation7 + $0x18] sm:$0xff]
        %v969 = vld [vmem:[#allocation7 + $0x20] sm:$0xff]
        %v970 = vld [vmem:[#allocation7 + $0x28] sm:$0xff]
        %v971 = vld [vmem:[#allocation7 + $0x30] sm:$0xff]
        %v972 = vld [vmem:[#allocation7 + $0x38] sm:$0xff]
        %v973 = vld [vmem:[#allocation7 + $0x40] sm:$0xff]
        %v974 = vld [vmem:[#allocation7 + $0x48] sm:$0xff]
        %v975 = vld [vmem:[#allocation7 + $0x50] sm:$0xff]
        %v976 = vld [vmem:[#allocation7 + $0x58] sm:$0xff]
        %v977 = vld [vmem:[#allocation7 + $0x60] sm:$0xff]
        %v978 = vld [vmem:[#allocation7 + $0x68] sm:$0xff]
        %v979 = vld [vmem:[#allocation7 + $0x70] sm:$0xff]
        %v980 = vld [vmem:[#allocation7 + $0x78] sm:$0xff]
        %v981 = vld [vmem:[#allocation7 + $0x80] sm:$0xff]
        %v982 = vld [vmem:[#allocation7 + $0x88] sm:$0xff]
        %v983 = vld [vmem:[#allocation7 + $0x90] sm:$0xff]
        %v984 = vld [vmem:[#allocation7 + $0x98] sm:$0xff]
        %v985 = vld [vmem:[#allocation7 + $0xa0] sm:$0xff]
        %v986 = vld [vmem:[#allocation7 + $0xa8] sm:$0xff]
        %v987 = vld [vmem:[#allocation7 + $0xb0] sm:$0xff]
        %v988 = vld [vmem:[#allocation7 + $0xb8] sm:$0xff]
        %v989 = vld [vmem:[#allocation7 + $0xc0] sm:$0xff]
        %v990 = vld [vmem:[#allocation7 + $0xc8] sm:$0xff]
        %v991 = vld [vmem:[#allocation7 + $0xd0] sm:$0xff]
        %v992 = vld [vmem:[#allocation7 + $0xd8] sm:$0xff]
        %v993 = vld [vmem:[#allocation7 + $0xe0] sm:$0xff]
        %v994 = vld [vmem:[#allocation7 + $0xe8] sm:$0xff]
        %v995 = vld [vmem:[#allocation7 + $0xf0] sm:$0xff]
        %v996 = vld [vmem:[#allocation7 + $0xf8] sm:$0xff]
        %v997 = vld [vmem:[#allocation8] sm:$0x1]
        %v999 = vlaneseq
        %v1000 = vshrl.u32 %v999, 7
        %v1001 = vsub.s32 0, %v1000
        %v1002 = vrot.slane %v997, %v1001
        %1004 = vmatprep.subr.mxu0 0.0
        %1005 = vmatpush1.msra.mxu0 %v965
        %1006 = vmatprep.subr.mxu0 0.0
        %1007 = vmatpush1.msra.mxu0 %v966
        %1008 = vmatprep.subr.mxu0 0.0
        %1009 = vmatpush1.msra.mxu0 %v967
        %1010 = vmatprep.subr.mxu0 0.0
        %1011 = vmatpush1.msra.mxu0 %v968
        %1012 = vmatprep.subr.mxu0 0.0
        %1013 = vmatpush1.msra.mxu0 %v969
        %1014 = vmatprep.subr.mxu0 0.0
        %1015 = vmatpush1.msra.mxu0 %v970
        %1016 = vmatprep.subr.mxu0 0.0
        %1017 = vmatpush1.msra.mxu0 %v971
        %1018 = vmatprep.subr.mxu0 0.0
        %1019 = vmatpush1.msra.mxu0 %v972
        %1020 = vmatprep.subr.mxu0 0.0
        %1021 = vmatpush1.msra.mxu0 %v973
        %1022 = vmatprep.subr.mxu0 0.0
        %1023 = vmatpush1.msra.mxu0 %v974
        %1024 = vmatprep.subr.mxu0 0.0
        %1025 = vmatpush1.msra.mxu0 %v975
        %1026 = vmatprep.subr.mxu0 0.0
        %1027 = vmatpush1.msra.mxu0 %v976
        %1028 = vmatprep.subr.mxu0 0.0
        %1029 = vmatpush1.msra.mxu0 %v977
        %1030 = vmatprep.subr.mxu0 0.0
        %1031 = vmatpush1.msra.mxu0 %v978
        %1032 = vmatprep.subr.mxu0 0.0
        %1033 = vmatpush1.msra.mxu0 %v979
        %1034 = vmatprep.subr.mxu0 0.0
        %1035 = vmatpush1.msra.mxu0 %v980
        %1036 = vmatprep.subr.mxu0 0.0
        %1037 = vmatpush1.msra.mxu0 %v981
        %1038 = vmatprep.subr.mxu0 0.0
        %1039 = vmatpush1.msra.mxu0 %v982
        %1040 = vmatprep.subr.mxu0 0.0
        %1041 = vmatpush1.msra.mxu0 %v983
        %1042 = vmatprep.subr.mxu0 0.0
        %1043 = vmatpush1.msra.mxu0 %v984
        %1044 = vmatprep.subr.mxu0 0.0
        %1045 = vmatpush1.msra.mxu0 %v985
        %1046 = vmatprep.subr.mxu0 0.0
        %1047 = vmatpush1.msra.mxu0 %v986
        %1048 = vmatprep.subr.mxu0 0.0
        %1049 = vmatpush1.msra.mxu0 %v987
        %1050 = vmatprep.subr.mxu0 0.0
        %1051 = vmatpush1.msra.mxu0 %v988
        %1052 = vmatprep.subr.mxu0 0.0
        %1053 = vmatpush1.msra.mxu0 %v989
        %1054 = vmatprep.subr.mxu0 0.0
        %1055 = vmatpush1.msra.mxu0 %v990
        %1056 = vmatprep.subr.mxu0 0.0
        %1057 = vmatpush1.msra.mxu0 %v991
        %1058 = vmatprep.subr.mxu0 0.0
        %1059 = vmatpush1.msra.mxu0 %v992
        %1060 = vmatprep.subr.mxu0 0.0
        %1061 = vmatpush1.msra.mxu0 %v993
        %1062 = vmatprep.subr.mxu0 0.0
        %1063 = vmatpush1.msra.mxu0 %v994
        %1064 = vmatprep.subr.mxu0 0.0
        %1065 = vmatpush1.msra.mxu0 %v995
        %1066 = vmatprep.subr.mxu0 0.0
        %1067 = vmatpush1.msra.mxu0 %v996
        %1068 = vmatprep.mubr.f32.mxu0 %v933
        %1069 = vmatmul.mubr.f32.gmra.mrb[0].mxu0 %v482
        %v1070 = vpop.f32.mrb[0].mxu0
        %v1071 = vadd.f32 %v1002, %v1070
        %v1072 = vpop.f32.mrb[0].mxu0
        %1073 = vmatprep.mubr.f32.mxu0 %v934
        %1074 = vmatmul.mubr.f32.gmra.mrb[0].mxu0 %v483
        %v1075 = vpop.f32.mrb[0].mxu0
        %v1076 = vadd.f32 %v1002, %v1075
        %v1077 = vpop.f32.mrb[0].mxu0
        %1078 = vmatprep.mubr.f32.mxu0 %v935
        %1079 = vmatmul.mubr.f32.gmra.mrb[0].mxu0 %v484
        %v1080 = vpop.f32.mrb[0].mxu0
        %v1081 = vadd.f32 %v1002, %v1080
        %v1082 = vpop.f32.mrb[0].mxu0
        %1083 = vmatprep.mubr.f32.mxu0 %v936
        %1084 = vmatmul.mubr.f32.gmra.mrb[0].mxu0 %v485
        %v1085 = vpop.f32.mrb[0].mxu0
        %v1086 = vadd.f32 %v1002, %v1085
        %v1087 = vpop.f32.mrb[0].mxu0
        %1088 = vmatprep.mubr.f32.mxu0 %v937
        %1089 = vmatmul.mubr.f32.gmra.mrb[0].mxu0 %v486
        %v1090 = vpop.f32.mrb[0].mxu0
        %v1091 = vadd.f32 %v1002, %v1090
        %v1092 = vpop.f32.mrb[0].mxu0
        %1093 = vmatprep.mubr.f32.mxu0 %v938
        %1094 = vmatmul.mubr.f32.gmra.mrb[0].mxu0 %v487
        %v1095 = vpop.f32.mrb[0].mxu0
        %v1096 = vadd.f32 %v1002, %v1095
        %v1097 = vpop.f32.mrb[0].mxu0
        %1098 = vmatprep.mubr.f32.mxu0 %v939
        %1099 = vmatmul.mubr.f32.gmra.mrb[0].mxu0 %v488
        %v1100 = vpop.f32.mrb[0].mxu0
        %v1101 = vadd.f32 %v1002, %v1100
        %v1102 = vpop.f32.mrb[0].mxu0
        %1103 = vmatprep.mubr.f32.mxu0 %v940
        %1104 = vmatmul.mubr.f32.gmra.mrb[0].mxu0 %v489
        %v1105 = vpop.f32.mrb[0].mxu0
        %v1106 = vadd.f32 %v1002, %v1105
        %v1107 = vpop.f32.mrb[0].mxu0
        %1108 = vmatprep.mubr.f32.mxu0 %v941
        %1109 = vmatmul.mubr.f32.gmra.mrb[0].mxu0 %v490
        %v1110 = vpop.f32.mrb[0].mxu0
        %v1111 = vadd.f32 %v1002, %v1110
        %v1112 = vpop.f32.mrb[0].mxu0
        %1113 = vmatprep.mubr.f32.mxu0 %v942
        %1114 = vmatmul.mubr.f32.gmra.mrb[0].mxu0 %v491
        %v1115 = vpop.f32.mrb[0].mxu0
        %v1116 = vadd.f32 %v1002, %v1115
        %v1117 = vpop.f32.mrb[0].mxu0
        %1118 = vmatprep.mubr.f32.mxu0 %v943
        %1119 = vmatmul.mubr.f32.gmra.mrb[0].mxu0 %v492
        %v1120 = vpop.f32.mrb[0].mxu0
        %v1121 = vadd.f32 %v1002, %v1120
        %v1122 = vpop.f32.mrb[0].mxu0
        %1123 = vmatprep.mubr.f32.mxu0 %v944
        %1124 = vmatmul.mubr.f32.gmra.mrb[0].mxu0 %v493
        %v1125 = vpop.f32.mrb[0].mxu0
        %v1126 = vadd.f32 %v1002, %v1125
        %v1127 = vpop.f32.mrb[0].mxu0
        %1128 = vmatprep.mubr.f32.mxu0 %v945
        %1129 = vmatmul.mubr.f32.gmra.mrb[0].mxu0 %v494
        %v1130 = vpop.f32.mrb[0].mxu0
        %v1131 = vadd.f32 %v1002, %v1130
        %v1132 = vpop.f32.mrb[0].mxu0
        %1133 = vmatprep.mubr.f32.mxu0 %v946
        %1134 = vmatmul.mubr.f32.gmra.mrb[0].mxu0 %v495
        %v1135 = vpop.f32.mrb[0].mxu0
        %v1136 = vadd.f32 %v1002, %v1135
        %v1137 = vpop.f32.mrb[0].mxu0
        %1138 = vmatprep.mubr.f32.mxu0 %v947
        %1139 = vmatmul.mubr.f32.gmra.mrb[0].mxu0 %v496
        %v1140 = vpop.f32.mrb[0].mxu0
        %v1141 = vadd.f32 %v1002, %v1140
        %v1142 = vpop.f32.mrb[0].mxu0
        %1143 = vmatprep.mubr.f32.mxu0 %v948
        %1144 = vmatmul.mubr.f32.gmra.mrb[0].mxu0 %v497
        %v1145 = vpop.f32.mrb[0].mxu0
        %v1146 = vadd.f32 %v1002, %v1145
        %v1147 = vpop.f32.mrb[0].mxu0
        %1148 = vmatprep.mubr.f32.mxu0 %v949
        %1149 = vmatmul.mubr.f32.gmra.mrb[0].mxu0 %v498
        %v1150 = vpop.f32.mrb[0].mxu0
        %v1151 = vadd.f32 %v1002, %v1150
        %v1152 = vpop.f32.mrb[0].mxu0
        %1153 = vmatprep.mubr.f32.mxu0 %v950
        %1154 = vmatmul.mubr.f32.gmra.mrb[0].mxu0 %v499
        %v1155 = vpop.f32.mrb[0].mxu0
        %v1156 = vadd.f32 %v1002, %v1155
        %v1157 = vpop.f32.mrb[0].mxu0
        %1158 = vmatprep.mubr.f32.mxu0 %v951
        %1159 = vmatmul.mubr.f32.gmra.mrb[0].mxu0 %v500
        %v1160 = vpop.f32.mrb[0].mxu0
        %v1161 = vadd.f32 %v1002, %v1160
        %v1162 = vpop.f32.mrb[0].mxu0
        %1163 = vmatprep.mubr.f32.mxu0 %v952
        %1164 = vmatmul.mubr.f32.gmra.mrb[0].mxu0 %v501
        %v1165 = vpop.f32.mrb[0].mxu0
        %v1166 = vadd.f32 %v1002, %v1165
        %v1167 = vpop.f32.mrb[0].mxu0
        %1168 = vmatprep.mubr.f32.mxu0 %v953
        %1169 = vmatmul.mubr.f32.gmra.mrb[0].mxu0 %v502
        %v1170 = vpop.f32.mrb[0].mxu0
        %v1171 = vadd.f32 %v1002, %v1170
        %v1172 = vpop.f32.mrb[0].mxu0
        %1173 = vmatprep.mubr.f32.mxu0 %v954
        %1174 = vmatmul.mubr.f32.gmra.mrb[0].mxu0 %v503
        %v1175 = vpop.f32.mrb[0].mxu0
        %v1176 = vadd.f32 %v1002, %v1175
        %v1177 = vpop.f32.mrb[0].mxu0
        %1178 = vmatprep.mubr.f32.mxu0 %v955
        %1179 = vmatmul.mubr.f32.gmra.mrb[0].mxu0 %v504
        %v1180 = vpop.f32.mrb[0].mxu0
        %v1181 = vadd.f32 %v1002, %v1180
        %v1182 = vpop.f32.mrb[0].mxu0
        %1183 = vmatprep.mubr.f32.mxu0 %v956
        %1184 = vmatmul.mubr.f32.gmra.mrb[0].mxu0 %v505
        %v1185 = vpop.f32.mrb[0].mxu0
        %v1186 = vadd.f32 %v1002, %v1185
        %v1187 = vpop.f32.mrb[0].mxu0
        %1188 = vmatprep.mubr.f32.mxu0 %v957
        %1189 = vmatmul.mubr.f32.gmra.mrb[0].mxu0 %v506
        %v1190 = vpop.f32.mrb[0].mxu0
        %v1191 = vadd.f32 %v1002, %v1190
        %v1192 = vpop.f32.mrb[0].mxu0
        %1193 = vmatprep.mubr.f32.mxu0 %v958
        %1194 = vmatmul.mubr.f32.gmra.mrb[0].mxu0 %v507
        %v1195 = vpop.f32.mrb[0].mxu0
        %v1196 = vadd.f32 %v1002, %v1195
        %v1197 = vpop.f32.mrb[0].mxu0
        %1198 = vmatprep.mubr.f32.mxu0 %v959
        %1199 = vmatmul.mubr.f32.gmra.mrb[0].mxu0 %v508
        %v1200 = vpop.f32.mrb[0].mxu0
        %v1201 = vadd.f32 %v1002, %v1200
        %v1202 = vpop.f32.mrb[0].mxu0
        %1203 = vmatprep.mubr.f32.mxu0 %v960
        %1204 = vmatmul.mubr.f32.gmra.mrb[0].mxu0 %v509
        %v1205 = vpop.f32.mrb[0].mxu0
        %v1206 = vadd.f32 %v1002, %v1205
        %v1207 = vpop.f32.mrb[0].mxu0
        %1208 = vmatprep.mubr.f32.mxu0 %v961
        %1209 = vmatmul.mubr.f32.gmra.mrb[0].mxu0 %v510
        %v1210 = vpop.f32.mrb[0].mxu0
        %v1211 = vadd.f32 %v1002, %v1210
        %v1212 = vpop.f32.mrb[0].mxu0
        %1213 = vmatprep.mubr.f32.mxu0 %v962
        %1214 = vmatmul.mubr.f32.gmra.mrb[0].mxu0 %v511
        %v1215 = vpop.f32.mrb[0].mxu0
        %v1216 = vadd.f32 %v1002, %v1215
        %v1217 = vpop.f32.mrb[0].mxu0
        %1218 = vmatprep.mubr.f32.mxu0 %v963
        %1219 = vmatmul.mubr.f32.gmra.mrb[0].mxu0 %v512
        %v1220 = vpop.f32.mrb[0].mxu0
        %v1221 = vadd.f32 %v1002, %v1220
        %v1222 = vpop.f32.mrb[0].mxu0
        %1223 = vmatprep.mubr.f32.mxu0 %v964
        %1224 = vmatmul.mubr.f32.gmra.mrb[0].mxu0 %v513
        %v1225 = vpop.f32.mrb[0].mxu0
        %v1226 = vadd.f32 %v1002, %v1225
        %v1227 = vpop.f32.mrb[0].mxu0
        %1228 = vdwg.mxu0
        %v1229 = vld [vmem:[#allocation10] sm:$0xff]
        %v1230 = vld [vmem:[#allocation10 + $0x8] sm:$0xff]
        %v1231 = vld [vmem:[#allocation10 + $0x10] sm:$0xff]
        %v1232 = vld [vmem:[#allocation10 + $0x18] sm:$0xff]
        %v1233 = vld [vmem:[#allocation10 + $0x20] sm:$0xff]
        %v1234 = vld [vmem:[#allocation10 + $0x28] sm:$0xff]
        %v1235 = vld [vmem:[#allocation10 + $0x30] sm:$0xff]
        %v1236 = vld [vmem:[#allocation10 + $0x38] sm:$0xff]
        %v1237 = vld [vmem:[#allocation10 + $0x40] sm:$0xff]
        %v1238 = vld [vmem:[#allocation10 + $0x48] sm:$0xff]
        %v1239 = vld [vmem:[#allocation10 + $0x50] sm:$0xff]
        %v1240 = vld [vmem:[#allocation10 + $0x58] sm:$0xff]
        %v1241 = vld [vmem:[#allocation10 + $0x60] sm:$0xff]
        %v1242 = vld [vmem:[#allocation10 + $0x68] sm:$0xff]
        %v1243 = vld [vmem:[#allocation10 + $0x70] sm:$0xff]
        %v1244 = vld [vmem:[#allocation10 + $0x78] sm:$0xff]
        %v1245 = vld [vmem:[#allocation11] sm:$0x1]
        %v1247 = vlaneseq
        %v1248 = vshrl.u32 %v1247, 7
        %v1249 = vsub.s32 0, %v1248
        %v1250 = vrot.slane %v1245, %v1249
        %1252 = vmatprep.subr.mxu0 0.0
        %1253 = vmatpush1.msra.mxu0 %v1229
        %1254 = vmatprep.subr.mxu0 0.0
        %1255 = vmatpush1.msra.mxu0 %v1230
        %1256 = vmatprep.subr.mxu0 0.0
        %1257 = vmatpush1.msra.mxu0 %v1231
        %1258 = vmatprep.subr.mxu0 0.0
        %1259 = vmatpush1.msra.mxu0 %v1232
        %1260 = vmatprep.subr.mxu0 0.0
        %1261 = vmatpush1.msra.mxu0 %v1233
        %1262 = vmatprep.subr.mxu0 0.0
        %1263 = vmatpush1.msra.mxu0 %v1234
        %1264 = vmatprep.subr.mxu0 0.0
        %1265 = vmatpush1.msra.mxu0 %v1235
        %1266 = vmatprep.subr.mxu0 0.0
        %1267 = vmatpush1.msra.mxu0 %v1236
        %1268 = vmatprep.subr.mxu0 0.0
        %1269 = vmatpush1.msra.mxu0 %v1237
        %1270 = vmatprep.subr.mxu0 0.0
        %1271 = vmatpush1.msra.mxu0 %v1238
        %1272 = vmatprep.subr.mxu0 0.0
        %1273 = vmatpush1.msra.mxu0 %v1239
        %1274 = vmatprep.subr.mxu0 0.0
        %1275 = vmatpush1.msra.mxu0 %v1240
        %1276 = vmatprep.subr.mxu0 0.0
        %1277 = vmatpush1.msra.mxu0 %v1241
        %1278 = vmatprep.subr.mxu0 0.0
        %1279 = vmatpush1.msra.mxu0 %v1242
        %1280 = vmatprep.subr.mxu0 0.0
        %1281 = vmatpush1.msra.mxu0 %v1243
        %1282 = vmatprep.subr.mxu0 0.0
        %1283 = vmatpush1.msra.mxu0 %v1244
        %1284 = vmatprep.subr.mxu0 0.0
        %1285 = vmatpush1.msra.mxu0 0.0
        %1286 = vmatprep.subr.mxu0 0.0
        %1287 = vmatpush1.msra.mxu0 0.0
        %1288 = vmatprep.subr.mxu0 0.0
        %1289 = vmatpush1.msra.mxu0 0.0
        %1290 = vmatprep.subr.mxu0 0.0
        %1291 = vmatpush1.msra.mxu0 0.0
        %1292 = vmatprep.subr.mxu0 0.0
        %1293 = vmatpush1.msra.mxu0 0.0
        %1294 = vmatprep.subr.mxu0 0.0
        %1295 = vmatpush1.msra.mxu0 0.0
        %1296 = vmatprep.subr.mxu0 0.0
        %1297 = vmatpush1.msra.mxu0 0.0
        %1298 = vmatprep.subr.mxu0 0.0
        %1299 = vmatpush1.msra.mxu0 0.0
        %1300 = vmatprep.subr.mxu0 0.0
        %1301 = vmatpush1.msra.mxu0 0.0
        %1302 = vmatprep.subr.mxu0 0.0
        %1303 = vmatpush1.msra.mxu0 0.0
        %1304 = vmatprep.subr.mxu0 0.0
        %1305 = vmatpush1.msra.mxu0 0.0
        %1306 = vmatprep.subr.mxu0 0.0
        %1307 = vmatpush1.msra.mxu0 0.0
        %1308 = vmatprep.subr.mxu0 0.0
        %1309 = vmatpush1.msra.mxu0 0.0
        %1310 = vmatprep.subr.mxu0 0.0
        %1311 = vmatpush1.msra.mxu0 0.0
        %1312 = vmatprep.subr.mxu0 0.0
        %1313 = vmatpush1.msra.mxu0 0.0
        %1314 = vmatprep.subr.mxu0 0.0
        %1315 = vmatpush1.msra.mxu0 0.0
        %1316 = vmatprep.mubr.f32.mxu0 0.0
        %1317 = vmatmul.mubr.f32.gmra.mrb[0].mxu0 %v1071
        %v1318 = vpop.f32.mrb[0].mxu0
        %v1319 = vadd.f32 %v1250, %v1318
        %v1320 = vpop.f32.mrb[0].mxu0
        %1321 = vmatprep.mubr.f32.mxu0 0.0
        %1322 = vmatmul.mubr.f32.gmra.mrb[0].mxu0 %v1076
        %v1323 = vpop.f32.mrb[0].mxu0
        %v1324 = vadd.f32 %v1250, %v1323
        %v1325 = vpop.f32.mrb[0].mxu0
        %1326 = vmatprep.mubr.f32.mxu0 0.0
        %1327 = vmatmul.mubr.f32.gmra.mrb[0].mxu0 %v1081
        %v1328 = vpop.f32.mrb[0].mxu0
        %v1329 = vadd.f32 %v1250, %v1328
        %v1330 = vpop.f32.mrb[0].mxu0
        %1331 = vmatprep.mubr.f32.mxu0 0.0
        %1332 = vmatmul.mubr.f32.gmra.mrb[0].mxu0 %v1086
        %v1333 = vpop.f32.mrb[0].mxu0
        %v1334 = vadd.f32 %v1250, %v1333
        %v1335 = vpop.f32.mrb[0].mxu0
        %1336 = vmatprep.mubr.f32.mxu0 0.0
        %1337 = vmatmul.mubr.f32.gmra.mrb[0].mxu0 %v1091
        %v1338 = vpop.f32.mrb[0].mxu0
        %v1339 = vadd.f32 %v1250, %v1338
        %v1340 = vpop.f32.mrb[0].mxu0
        %1341 = vmatprep.mubr.f32.mxu0 0.0
        %1342 = vmatmul.mubr.f32.gmra.mrb[0].mxu0 %v1096
        %v1343 = vpop.f32.mrb[0].mxu0
        %v1344 = vadd.f32 %v1250, %v1343
        %v1345 = vpop.f32.mrb[0].mxu0
        %1346 = vmatprep.mubr.f32.mxu0 0.0
        %1347 = vmatmul.mubr.f32.gmra.mrb[0].mxu0 %v1101
        %v1348 = vpop.f32.mrb[0].mxu0
        %v1349 = vadd.f32 %v1250, %v1348
        %v1350 = vpop.f32.mrb[0].mxu0
        %1351 = vmatprep.mubr.f32.mxu0 0.0
        %1352 = vmatmul.mubr.f32.gmra.mrb[0].mxu0 %v1106
        %v1353 = vpop.f32.mrb[0].mxu0
        %v1354 = vadd.f32 %v1250, %v1353
        %v1355 = vpop.f32.mrb[0].mxu0
        %1356 = vmatprep.mubr.f32.mxu0 0.0
        %1357 = vmatmul.mubr.f32.gmra.mrb[0].mxu0 %v1111
        %v1358 = vpop.f32.mrb[0].mxu0
        %v1359 = vadd.f32 %v1250, %v1358
        %v1360 = vpop.f32.mrb[0].mxu0
        %1361 = vmatprep.mubr.f32.mxu0 0.0
        %1362 = vmatmul.mubr.f32.gmra.mrb[0].mxu0 %v1116
        %v1363 = vpop.f32.mrb[0].mxu0
        %v1364 = vadd.f32 %v1250, %v1363
        %v1365 = vpop.f32.mrb[0].mxu0
        %1366 = vmatprep.mubr.f32.mxu0 0.0
        %1367 = vmatmul.mubr.f32.gmra.mrb[0].mxu0 %v1121
        %v1368 = vpop.f32.mrb[0].mxu0
        %v1369 = vadd.f32 %v1250, %v1368
        %v1370 = vpop.f32.mrb[0].mxu0
        %1371 = vmatprep.mubr.f32.mxu0 0.0
        %1372 = vmatmul.mubr.f32.gmra.mrb[0].mxu0 %v1126
        %v1373 = vpop.f32.mrb[0].mxu0
        %v1374 = vadd.f32 %v1250, %v1373
        %v1375 = vpop.f32.mrb[0].mxu0
        %1376 = vmatprep.mubr.f32.mxu0 0.0
        %1377 = vmatmul.mubr.f32.gmra.mrb[0].mxu0 %v1131
        %v1378 = vpop.f32.mrb[0].mxu0
        %v1379 = vadd.f32 %v1250, %v1378
        %v1380 = vpop.f32.mrb[0].mxu0
        %1381 = vmatprep.mubr.f32.mxu0 0.0
        %1382 = vmatmul.mubr.f32.gmra.mrb[0].mxu0 %v1136
        %v1383 = vpop.f32.mrb[0].mxu0
        %v1384 = vadd.f32 %v1250, %v1383
        %v1385 = vpop.f32.mrb[0].mxu0
        %1386 = vmatprep.mubr.f32.mxu0 0.0
        %1387 = vmatmul.mubr.f32.gmra.mrb[0].mxu0 %v1141
        %v1388 = vpop.f32.mrb[0].mxu0
        %v1389 = vadd.f32 %v1250, %v1388
        %v1390 = vpop.f32.mrb[0].mxu0
        %1391 = vmatprep.mubr.f32.mxu0 0.0
        %1392 = vmatmul.mubr.f32.gmra.mrb[0].mxu0 %v1146
        %v1393 = vpop.f32.mrb[0].mxu0
        %v1394 = vadd.f32 %v1250, %v1393
        %v1395 = vpop.f32.mrb[0].mxu0
        %1396 = vmatprep.mubr.f32.mxu0 0.0
        %1397 = vmatmul.mubr.f32.gmra.mrb[0].mxu0 %v1151
        %v1398 = vpop.f32.mrb[0].mxu0
        %v1399 = vadd.f32 %v1250, %v1398
        %v1400 = vpop.f32.mrb[0].mxu0
        %1401 = vmatprep.mubr.f32.mxu0 0.0
        %1402 = vmatmul.mubr.f32.gmra.mrb[0].mxu0 %v1156
        %v1403 = vpop.f32.mrb[0].mxu0
        %v1404 = vadd.f32 %v1250, %v1403
        %v1405 = vpop.f32.mrb[0].mxu0
        %1406 = vmatprep.mubr.f32.mxu0 0.0
        %1407 = vmatmul.mubr.f32.gmra.mrb[0].mxu0 %v1161
        %v1408 = vpop.f32.mrb[0].mxu0
        %v1409 = vadd.f32 %v1250, %v1408
        %v1410 = vpop.f32.mrb[0].mxu0
        %1411 = vmatprep.mubr.f32.mxu0 0.0
        %1412 = vmatmul.mubr.f32.gmra.mrb[0].mxu0 %v1166
        %v1413 = vpop.f32.mrb[0].mxu0
        %v1414 = vadd.f32 %v1250, %v1413
        %v1415 = vpop.f32.mrb[0].mxu0
        %1416 = vmatprep.mubr.f32.mxu0 0.0
        %1417 = vmatmul.mubr.f32.gmra.mrb[0].mxu0 %v1171
        %v1418 = vpop.f32.mrb[0].mxu0
        %v1419 = vadd.f32 %v1250, %v1418
        %v1420 = vpop.f32.mrb[0].mxu0
        %1421 = vmatprep.mubr.f32.mxu0 0.0
        %1422 = vmatmul.mubr.f32.gmra.mrb[0].mxu0 %v1176
        %v1423 = vpop.f32.mrb[0].mxu0
        %v1424 = vadd.f32 %v1250, %v1423
        %v1425 = vpop.f32.mrb[0].mxu0
        %1426 = vmatprep.mubr.f32.mxu0 0.0
        %1427 = vmatmul.mubr.f32.gmra.mrb[0].mxu0 %v1181
        %v1428 = vpop.f32.mrb[0].mxu0
        %v1429 = vadd.f32 %v1250, %v1428
        %v1430 = vpop.f32.mrb[0].mxu0
        %1431 = vmatprep.mubr.f32.mxu0 0.0
        %1432 = vmatmul.mubr.f32.gmra.mrb[0].mxu0 %v1186
        %v1433 = vpop.f32.mrb[0].mxu0
        %v1434 = vadd.f32 %v1250, %v1433
        %v1435 = vpop.f32.mrb[0].mxu0
        %1436 = vmatprep.mubr.f32.mxu0 0.0
        %1437 = vmatmul.mubr.f32.gmra.mrb[0].mxu0 %v1191
        %v1438 = vpop.f32.mrb[0].mxu0
        %v1439 = vadd.f32 %v1250, %v1438
        %v1440 = vpop.f32.mrb[0].mxu0
        %1441 = vmatprep.mubr.f32.mxu0 0.0
        %1442 = vmatmul.mubr.f32.gmra.mrb[0].mxu0 %v1196
        %v1443 = vpop.f32.mrb[0].mxu0
        %v1444 = vadd.f32 %v1250, %v1443
        %v1445 = vpop.f32.mrb[0].mxu0
        %1446 = vmatprep.mubr.f32.mxu0 0.0
        %1447 = vmatmul.mubr.f32.gmra.mrb[0].mxu0 %v1201
        %v1448 = vpop.f32.mrb[0].mxu0
        %v1449 = vadd.f32 %v1250, %v1448
        %v1450 = vpop.f32.mrb[0].mxu0
        %1451 = vmatprep.mubr.f32.mxu0 0.0
        %1452 = vmatmul.mubr.f32.gmra.mrb[0].mxu0 %v1206
        %v1453 = vpop.f32.mrb[0].mxu0
        %v1454 = vadd.f32 %v1250, %v1453
        %v1455 = vpop.f32.mrb[0].mxu0
        %1456 = vmatprep.mubr.f32.mxu0 0.0
        %1457 = vmatmul.mubr.f32.gmra.mrb[0].mxu0 %v1211
        %v1458 = vpop.f32.mrb[0].mxu0
        %v1459 = vadd.f32 %v1250, %v1458
        %v1460 = vpop.f32.mrb[0].mxu0
        %1461 = vmatprep.mubr.f32.mxu0 0.0
        %1462 = vmatmul.mubr.f32.gmra.mrb[0].mxu0 %v1216
        %v1463 = vpop.f32.mrb[0].mxu0
        %v1464 = vadd.f32 %v1250, %v1463
        %v1465 = vpop.f32.mrb[0].mxu0
        %1466 = vmatprep.mubr.f32.mxu0 0.0
        %1467 = vmatmul.mubr.f32.gmra.mrb[0].mxu0 %v1221
        %v1468 = vpop.f32.mrb[0].mxu0
        %v1469 = vadd.f32 %v1250, %v1468
        %v1470 = vpop.f32.mrb[0].mxu0
        %1471 = vmatprep.mubr.f32.mxu0 0.0
        %1472 = vmatmul.mubr.f32.gmra.mrb[0].mxu0 %v1226
        %v1473 = vpop.f32.mrb[0].mxu0
        %v1474 = vadd.f32 %v1250, %v1473
        %v1475 = vpop.f32.mrb[0].mxu0
        %1476 = vdwg.mxu0
        %v1477 = vxor.u32 %v1319, 2147483648
        %v1478 = vxor.u32 %v1324, 2147483648
        %v1479 = vxor.u32 %v1329, 2147483648
        %v1480 = vxor.u32 %v1334, 2147483648
        %v1481 = vxor.u32 %v1339, 2147483648
        %v1482 = vxor.u32 %v1344, 2147483648
        %v1483 = vxor.u32 %v1349, 2147483648
        %v1484 = vxor.u32 %v1354, 2147483648
        %v1485 = vxor.u32 %v1359, 2147483648
        %v1486 = vxor.u32 %v1364, 2147483648
        %v1487 = vxor.u32 %v1369, 2147483648
        %v1488 = vxor.u32 %v1374, 2147483648
        %v1489 = vxor.u32 %v1379, 2147483648
        %v1490 = vxor.u32 %v1384, 2147483648
        %v1491 = vxor.u32 %v1389, 2147483648
        %v1492 = vxor.u32 %v1394, 2147483648
        %v1493 = vxor.u32 %v1399, 2147483648
        %v1494 = vxor.u32 %v1404, 2147483648
        %v1495 = vxor.u32 %v1409, 2147483648
        %v1496 = vxor.u32 %v1414, 2147483648
        %v1497 = vxor.u32 %v1419, 2147483648
        %v1498 = vxor.u32 %v1424, 2147483648
        %v1499 = vxor.u32 %v1429, 2147483648
        %v1500 = vxor.u32 %v1434, 2147483648
        %v1501 = vxor.u32 %v1439, 2147483648
        %v1502 = vxor.u32 %v1444, 2147483648
        %v1503 = vxor.u32 %v1449, 2147483648
        %v1504 = vxor.u32 %v1454, 2147483648
        %v1505 = vxor.u32 %v1459, 2147483648
        %v1506 = vxor.u32 %v1464, 2147483648
        %v1507 = vxor.u32 %v1469, 2147483648
        %v1508 = vxor.u32 %v1474, 2147483648
        %v1509 = vmul.f32 %v1477, 1.442695
        %v1510 = vpow.pop %v1509
        %v1511 = vmul.f32 %v1478, 1.442695
        %v1512 = vpow.pop %v1511
        %v1513 = vmul.f32 %v1479, 1.442695
        %v1514 = vpow.pop %v1513
        %v1515 = vmul.f32 %v1480, 1.442695
        %v1516 = vpow.pop %v1515
        %v1517 = vmul.f32 %v1481, 1.442695
        %v1518 = vpow.pop %v1517
        %v1519 = vmul.f32 %v1482, 1.442695
        %v1520 = vpow.pop %v1519
        %v1521 = vmul.f32 %v1483, 1.442695
        %v1522 = vpow.pop %v1521
        %v1523 = vmul.f32 %v1484, 1.442695
        %v1524 = vpow.pop %v1523
        %v1525 = vmul.f32 %v1485, 1.442695
        %v1526 = vpow.pop %v1525
        %v1527 = vmul.f32 %v1486, 1.442695
        %v1528 = vpow.pop %v1527
        %v1529 = vmul.f32 %v1487, 1.442695
        %v1530 = vpow.pop %v1529
        %v1531 = vmul.f32 %v1488, 1.442695
        %v1532 = vpow.pop %v1531
        %v1533 = vmul.f32 %v1489, 1.442695
        %v1534 = vpow.pop %v1533
        %v1535 = vmul.f32 %v1490, 1.442695
        %v1536 = vpow.pop %v1535
        %v1537 = vmul.f32 %v1491, 1.442695
        %v1538 = vpow.pop %v1537
        %v1539 = vmul.f32 %v1492, 1.442695
        %v1540 = vpow.pop %v1539
        %v1541 = vmul.f32 %v1493, 1.442695
        %v1542 = vpow.pop %v1541
        %v1543 = vmul.f32 %v1494, 1.442695
        %v1544 = vpow.pop %v1543
        %v1545 = vmul.f32 %v1495, 1.442695
        %v1546 = vpow.pop %v1545
        %v1547 = vmul.f32 %v1496, 1.442695
        %v1548 = vpow.pop %v1547
        %v1549 = vmul.f32 %v1497, 1.442695
        %v1550 = vpow.pop %v1549
        %v1551 = vmul.f32 %v1498, 1.442695
        %v1552 = vpow.pop %v1551
        %v1553 = vmul.f32 %v1499, 1.442695
        %v1554 = vpow.pop %v1553
        %v1555 = vmul.f32 %v1500, 1.442695
        %v1556 = vpow.pop %v1555
        %v1557 = vmul.f32 %v1501, 1.442695
        %v1558 = vpow.pop %v1557
        %v1559 = vmul.f32 %v1502, 1.442695
        %v1560 = vpow.pop %v1559
        %v1561 = vmul.f32 %v1503, 1.442695
        %v1562 = vpow.pop %v1561
        %v1563 = vmul.f32 %v1504, 1.442695
        %v1564 = vpow.pop %v1563
        %v1565 = vmul.f32 %v1505, 1.442695
        %v1566 = vpow.pop %v1565
        %v1567 = vmul.f32 %v1506, 1.442695
        %v1568 = vpow.pop %v1567
        %v1569 = vmul.f32 %v1507, 1.442695
        %v1570 = vpow.pop %v1569
        %v1571 = vmul.f32 %v1508, 1.442695
        %v1572 = vpow.pop %v1571
        %v1573 = vadd.f32 %v1510, 1.0
        %v1574 = vadd.f32 %v1512, 1.0
        %v1575 = vadd.f32 %v1514, 1.0
        %v1576 = vadd.f32 %v1516, 1.0
        %v1577 = vadd.f32 %v1518, 1.0
        %v1578 = vadd.f32 %v1520, 1.0
        %v1579 = vadd.f32 %v1522, 1.0
        %v1580 = vadd.f32 %v1524, 1.0
        %v1581 = vadd.f32 %v1526, 1.0
        %v1582 = vadd.f32 %v1528, 1.0
        %v1583 = vadd.f32 %v1530, 1.0
        %v1584 = vadd.f32 %v1532, 1.0
        %v1585 = vadd.f32 %v1534, 1.0
        %v1586 = vadd.f32 %v1536, 1.0
        %v1587 = vadd.f32 %v1538, 1.0
        %v1588 = vadd.f32 %v1540, 1.0
        %v1589 = vadd.f32 %v1542, 1.0
        %v1590 = vadd.f32 %v1544, 1.0
        %v1591 = vadd.f32 %v1546, 1.0
        %v1592 = vadd.f32 %v1548, 1.0
        %v1593 = vadd.f32 %v1550, 1.0
        %v1594 = vadd.f32 %v1552, 1.0
        %v1595 = vadd.f32 %v1554, 1.0
        %v1596 = vadd.f32 %v1556, 1.0
        %v1597 = vadd.f32 %v1558, 1.0
        %v1598 = vadd.f32 %v1560, 1.0
        %v1599 = vadd.f32 %v1562, 1.0
        %v1600 = vadd.f32 %v1564, 1.0
        %v1601 = vadd.f32 %v1566, 1.0
        %v1602 = vadd.f32 %v1568, 1.0
        %v1603 = vadd.f32 %v1570, 1.0
        %v1604 = vadd.f32 %v1572, 1.0
        %v1605 = vrcp.pop %v1573
        %v1606 = vmul.f32 1.0, %v1605
        %v1607 = vrcp.pop %v1574
        %v1608 = vmul.f32 1.0, %v1607
        %v1609 = vrcp.pop %v1575
        %v1610 = vmul.f32 1.0, %v1609
        %v1611 = vrcp.pop %v1576
        %v1612 = vmul.f32 1.0, %v1611
        %v1613 = vrcp.pop %v1577
        %v1614 = vmul.f32 1.0, %v1613
        %v1615 = vrcp.pop %v1578
        %v1616 = vmul.f32 1.0, %v1615
        %v1617 = vrcp.pop %v1579
        %v1618 = vmul.f32 1.0, %v1617
        %v1619 = vrcp.pop %v1580
        %v1620 = vmul.f32 1.0, %v1619
        %v1621 = vrcp.pop %v1581
        %v1622 = vmul.f32 1.0, %v1621
        %v1623 = vrcp.pop %v1582
        %v1624 = vmul.f32 1.0, %v1623
        %v1625 = vrcp.pop %v1583
        %v1626 = vmul.f32 1.0, %v1625
        %v1627 = vrcp.pop %v1584
        %v1628 = vmul.f32 1.0, %v1627
        %v1629 = vrcp.pop %v1585
        %v1630 = vmul.f32 1.0, %v1629
        %v1631 = vrcp.pop %v1586
        %v1632 = vmul.f32 1.0, %v1631
        %v1633 = vrcp.pop %v1587
        %v1634 = vmul.f32 1.0, %v1633
        %v1635 = vrcp.pop %v1588
        %v1636 = vmul.f32 1.0, %v1635
        %v1637 = vrcp.pop %v1589
        %v1638 = vmul.f32 1.0, %v1637
        %v1639 = vrcp.pop %v1590
        %v1640 = vmul.f32 1.0, %v1639
        %v1641 = vrcp.pop %v1591
        %v1642 = vmul.f32 1.0, %v1641
        %v1643 = vrcp.pop %v1592
        %v1644 = vmul.f32 1.0, %v1643
        %v1645 = vrcp.pop %v1593
        %v1646 = vmul.f32 1.0, %v1645
        %v1647 = vrcp.pop %v1594
        %v1648 = vmul.f32 1.0, %v1647
        %v1649 = vrcp.pop %v1595
        %v1650 = vmul.f32 1.0, %v1649
        %v1651 = vrcp.pop %v1596
        %v1652 = vmul.f32 1.0, %v1651
        %v1653 = vrcp.pop %v1597
        %v1654 = vmul.f32 1.0, %v1653
        %v1655 = vrcp.pop %v1598
        %v1656 = vmul.f32 1.0, %v1655
        %v1657 = vrcp.pop %v1599
        %v1658 = vmul.f32 1.0, %v1657
        %v1659 = vrcp.pop %v1600
        %v1660 = vmul.f32 1.0, %v1659
        %v1661 = vrcp.pop %v1601
        %v1662 = vmul.f32 1.0, %v1661
        %v1663 = vrcp.pop %v1602
        %v1664 = vmul.f32 1.0, %v1663
        %v1665 = vrcp.pop %v1603
        %v1666 = vmul.f32 1.0, %v1665
        %v1667 = vrcp.pop %v1604
        %v1668 = vmul.f32 1.0, %v1667
        %v1669 = vmul.f32 %v1319, %v1606
        %v1670 = vmul.f32 %v1324, %v1608
        %v1671 = vmul.f32 %v1329, %v1610
        %v1672 = vmul.f32 %v1334, %v1612
        %v1673 = vmul.f32 %v1339, %v1614
        %v1674 = vmul.f32 %v1344, %v1616
        %v1675 = vmul.f32 %v1349, %v1618
        %v1676 = vmul.f32 %v1354, %v1620
        %v1677 = vmul.f32 %v1359, %v1622
        %v1678 = vmul.f32 %v1364, %v1624
        %v1679 = vmul.f32 %v1369, %v1626
        %v1680 = vmul.f32 %v1374, %v1628
        %v1681 = vmul.f32 %v1379, %v1630
        %v1682 = vmul.f32 %v1384, %v1632
        %v1683 = vmul.f32 %v1389, %v1634
        %v1684 = vmul.f32 %v1394, %v1636
        %v1685 = vmul.f32 %v1399, %v1638
        %v1686 = vmul.f32 %v1404, %v1640
        %v1687 = vmul.f32 %v1409, %v1642
        %v1688 = vmul.f32 %v1414, %v1644
        %v1689 = vmul.f32 %v1419, %v1646
        %v1690 = vmul.f32 %v1424, %v1648
        %v1691 = vmul.f32 %v1429, %v1650
        %v1692 = vmul.f32 %v1434, %v1652
        %v1693 = vmul.f32 %v1439, %v1654
        %v1694 = vmul.f32 %v1444, %v1656
        %v1695 = vmul.f32 %v1449, %v1658
        %v1696 = vmul.f32 %v1454, %v1660
        %v1697 = vmul.f32 %v1459, %v1662
        %v1698 = vmul.f32 %v1464, %v1664
        %v1699 = vmul.f32 %v1469, %v1666
        %v1700 = vmul.f32 %v1474, %v1668
        %vm1701 = vcmp.ge.f32.partialorder %v1319, -2.3333333
        %vm1702 = vcmp.ge.f32.partialorder %v1324, -2.3333333
        %vm1703 = vcmp.ge.f32.partialorder %v1329, -2.3333333
        %vm1704 = vcmp.ge.f32.partialorder %v1334, -2.3333333
        %vm1705 = vcmp.ge.f32.partialorder %v1339, -2.3333333
        %vm1706 = vcmp.ge.f32.partialorder %v1344, -2.3333333
        %vm1707 = vcmp.ge.f32.partialorder %v1349, -2.3333333
        %vm1708 = vcmp.ge.f32.partialorder %v1354, -2.3333333
        %vm1709 = vcmp.ge.f32.partialorder %v1359, -2.3333333
        %vm1710 = vcmp.ge.f32.partialorder %v1364, -2.3333333
        %vm1711 = vcmp.ge.f32.partialorder %v1369, -2.3333333
        %vm1712 = vcmp.ge.f32.partialorder %v1374, -2.3333333
        %vm1713 = vcmp.ge.f32.partialorder %v1379, -2.3333333
        %vm1714 = vcmp.ge.f32.partialorder %v1384, -2.3333333
        %vm1715 = vcmp.ge.f32.partialorder %v1389, -2.3333333
        %vm1716 = vcmp.ge.f32.partialorder %v1394, -2.3333333
        %vm1717 = vcmp.ge.f32.partialorder %v1399, -2.3333333
        %vm1718 = vcmp.ge.f32.partialorder %v1404, -2.3333333
        %vm1719 = vcmp.ge.f32.partialorder %v1409, -2.3333333
        %vm1720 = vcmp.ge.f32.partialorder %v1414, -2.3333333
        %vm1721 = vcmp.ge.f32.partialorder %v1419, -2.3333333
        %vm1722 = vcmp.ge.f32.partialorder %v1424, -2.3333333
        %vm1723 = vcmp.ge.f32.partialorder %v1429, -2.3333333
        %vm1724 = vcmp.ge.f32.partialorder %v1434, -2.3333333
        %vm1725 = vcmp.ge.f32.partialorder %v1439, -2.3333333
        %vm1726 = vcmp.ge.f32.partialorder %v1444, -2.3333333
        %vm1727 = vcmp.ge.f32.partialorder %v1449, -2.3333333
        %vm1728 = vcmp.ge.f32.partialorder %v1454, -2.3333333
        %vm1729 = vcmp.ge.f32.partialorder %v1459, -2.3333333
        %vm1730 = vcmp.ge.f32.partialorder %v1464, -2.3333333
        %vm1731 = vcmp.ge.f32.partialorder %v1469, -2.3333333
        %vm1732 = vcmp.ge.f32.partialorder %v1474, -2.3333333
        %vm1733 = vcmp.lt.f32.partialorder %v1319, -1.6666666
        %vm1734 = vcmp.lt.f32.partialorder %v1324, -1.6666666
        %vm1735 = vcmp.lt.f32.partialorder %v1329, -1.6666666
        %vm1736 = vcmp.lt.f32.partialorder %v1334, -1.6666666
        %vm1737 = vcmp.lt.f32.partialorder %v1339, -1.6666666
        %vm1738 = vcmp.lt.f32.partialorder %v1344, -1.6666666
        %vm1739 = vcmp.lt.f32.partialorder %v1349, -1.6666666
        %vm1740 = vcmp.lt.f32.partialorder %v1354, -1.6666666
        %vm1741 = vcmp.lt.f32.partialorder %v1359, -1.6666666
        %vm1742 = vcmp.lt.f32.partialorder %v1364, -1.6666666
        %vm1743 = vcmp.lt.f32.partialorder %v1369, -1.6666666
        %vm1744 = vcmp.lt.f32.partialorder %v1374, -1.6666666
        %vm1745 = vcmp.lt.f32.partialorder %v1379, -1.6666666
        %vm1746 = vcmp.lt.f32.partialorder %v1384, -1.6666666
        %vm1747 = vcmp.lt.f32.partialorder %v1389, -1.6666666
        %vm1748 = vcmp.lt.f32.partialorder %v1394, -1.6666666
        %vm1749 = vcmp.lt.f32.partialorder %v1399, -1.6666666
        %vm1750 = vcmp.lt.f32.partialorder %v1404, -1.6666666
        %vm1751 = vcmp.lt.f32.partialorder %v1409, -1.6666666
        %vm1752 = vcmp.lt.f32.partialorder %v1414, -1.6666666
        %vm1753 = vcmp.lt.f32.partialorder %v1419, -1.6666666
        %vm1754 = vcmp.lt.f32.partialorder %v1424, -1.6666666
        %vm1755 = vcmp.lt.f32.partialorder %v1429, -1.6666666
        %vm1756 = vcmp.lt.f32.partialorder %v1434, -1.6666666
        %vm1757 = vcmp.lt.f32.partialorder %v1439, -1.6666666
        %vm1758 = vcmp.lt.f32.partialorder %v1444, -1.6666666
        %vm1759 = vcmp.lt.f32.partialorder %v1449, -1.6666666
        %vm1760 = vcmp.lt.f32.partialorder %v1454, -1.6666666
        %vm1761 = vcmp.lt.f32.partialorder %v1459, -1.6666666
        %vm1762 = vcmp.lt.f32.partialorder %v1464, -1.6666666
        %vm1763 = vcmp.lt.f32.partialorder %v1469, -1.6666666
        %vm1764 = vcmp.lt.f32.partialorder %v1474, -1.6666666
        %vm1765 = vmand %vm1701, %vm1733
        %vm1766 = vmand %vm1702, %vm1734
        %vm1767 = vmand %vm1703, %vm1735
        %vm1768 = vmand %vm1704, %vm1736
        %vm1769 = vmand %vm1705, %vm1737
        %vm1770 = vmand %vm1706, %vm1738
        %vm1771 = vmand %vm1707, %vm1739
        %vm1772 = vmand %vm1708, %vm1740
        %vm1773 = vmand %vm1709, %vm1741
        %vm1774 = vmand %vm1710, %vm1742
        %vm1775 = vmand %vm1711, %vm1743
        %vm1776 = vmand %vm1712, %vm1744
        %vm1777 = vmand %vm1713, %vm1745
        %vm1778 = vmand %vm1714, %vm1746
        %vm1779 = vmand %vm1715, %vm1747
        %vm1780 = vmand %vm1716, %vm1748
        %vm1781 = vmand %vm1717, %vm1749
        %vm1782 = vmand %vm1718, %vm1750
        %vm1783 = vmand %vm1719, %vm1751
        %vm1784 = vmand %vm1720, %vm1752
        %vm1785 = vmand %vm1721, %vm1753
        %vm1786 = vmand %vm1722, %vm1754
        %vm1787 = vmand %vm1723, %vm1755
        %vm1788 = vmand %vm1724, %vm1756
        %vm1789 = vmand %vm1725, %vm1757
        %vm1790 = vmand %vm1726, %vm1758
        %vm1791 = vmand %vm1727, %vm1759
        %vm1792 = vmand %vm1728, %vm1760
        %vm1793 = vmand %vm1729, %vm1761
        %vm1794 = vmand %vm1730, %vm1762
        %vm1795 = vmand %vm1731, %vm1763
        %vm1796 = vmand %vm1732, %vm1764
        %v1797 = vsel %vm1765, 1, 0
        %v1798 = vsel %vm1766, 1, 0
        %v1799 = vsel %vm1767, 1, 0
        %v1800 = vsel %vm1768, 1, 0
        %v1801 = vsel %vm1769, 1, 0
        %v1802 = vsel %vm1770, 1, 0
        %v1803 = vsel %vm1771, 1, 0
        %v1804 = vsel %vm1772, 1, 0
        %v1805 = vsel %vm1773, 1, 0
        %v1806 = vsel %vm1774, 1, 0
        %v1807 = vsel %vm1775, 1, 0
        %v1808 = vsel %vm1776, 1, 0
        %v1809 = vsel %vm1777, 1, 0
        %v1810 = vsel %vm1778, 1, 0
        %v1811 = vsel %vm1779, 1, 0
        %v1812 = vsel %vm1780, 1, 0
        %v1813 = vsel %vm1781, 1, 0
        %v1814 = vsel %vm1782, 1, 0
        %v1815 = vsel %vm1783, 1, 0
        %v1816 = vsel %vm1784, 1, 0
        %v1817 = vsel %vm1785, 1, 0
        %v1818 = vsel %vm1786, 1, 0
        %v1819 = vsel %vm1787, 1, 0
        %v1820 = vsel %vm1788, 1, 0
        %v1821 = vsel %vm1789, 1, 0
        %v1822 = vsel %vm1790, 1, 0
        %v1823 = vsel %vm1791, 1, 0
        %v1824 = vsel %vm1792, 1, 0
        %v1825 = vsel %vm1793, 1, 0
        %v1826 = vsel %vm1794, 1, 0
        %v1827 = vsel %vm1795, 1, 0
        %v1828 = vsel %vm1796, 1, 0
        %v1829 = vcvt.s32.f32 %v1797
        %v1830 = vcvt.s32.f32 %v1798
        %v1831 = vcvt.s32.f32 %v1799
        %v1832 = vcvt.s32.f32 %v1800
        %v1833 = vcvt.s32.f32 %v1801
        %v1834 = vcvt.s32.f32 %v1802
        %v1835 = vcvt.s32.f32 %v1803
        %v1836 = vcvt.s32.f32 %v1804
        %v1837 = vcvt.s32.f32 %v1805
        %v1838 = vcvt.s32.f32 %v1806
        %v1839 = vcvt.s32.f32 %v1807
        %v1840 = vcvt.s32.f32 %v1808
        %v1841 = vcvt.s32.f32 %v1809
        %v1842 = vcvt.s32.f32 %v1810
        %v1843 = vcvt.s32.f32 %v1811
        %v1844 = vcvt.s32.f32 %v1812
        %v1845 = vcvt.s32.f32 %v1813
        %v1846 = vcvt.s32.f32 %v1814
        %v1847 = vcvt.s32.f32 %v1815
        %v1848 = vcvt.s32.f32 %v1816
        %v1849 = vcvt.s32.f32 %v1817
        %v1850 = vcvt.s32.f32 %v1818
        %v1851 = vcvt.s32.f32 %v1819
        %v1852 = vcvt.s32.f32 %v1820
        %v1853 = vcvt.s32.f32 %v1821
        %v1854 = vcvt.s32.f32 %v1822
        %v1855 = vcvt.s32.f32 %v1823
        %v1856 = vcvt.s32.f32 %v1824
        %v1857 = vcvt.s32.f32 %v1825
        %v1858 = vcvt.s32.f32 %v1826
        %v1859 = vcvt.s32.f32 %v1827
        %v1860 = vcvt.s32.f32 %v1828
        %vm1861 = vcmp.ge.f32.partialorder %v1319, -1.6666666
        %vm1862 = vcmp.ge.f32.partialorder %v1324, -1.6666666
        %vm1863 = vcmp.ge.f32.partialorder %v1329, -1.6666666
        %vm1864 = vcmp.ge.f32.partialorder %v1334, -1.6666666
        %vm1865 = vcmp.ge.f32.partialorder %v1339, -1.6666666
        %vm1866 = vcmp.ge.f32.partialorder %v1344, -1.6666666
        %vm1867 = vcmp.ge.f32.partialorder %v1349, -1.6666666
        %vm1868 = vcmp.ge.f32.partialorder %v1354, -1.6666666
        %vm1869 = vcmp.ge.f32.partialorder %v1359, -1.6666666
        %vm1870 = vcmp.ge.f32.partialorder %v1364, -1.6666666
        %vm1871 = vcmp.ge.f32.partialorder %v1369, -1.6666666
        %vm1872 = vcmp.ge.f32.partialorder %v1374, -1.6666666
        %vm1873 = vcmp.ge.f32.partialorder %v1379, -1.6666666
        %vm1874 = vcmp.ge.f32.partialorder %v1384, -1.6666666
        %vm1875 = vcmp.ge.f32.partialorder %v1389, -1.6666666
        %vm1876 = vcmp.ge.f32.partialorder %v1394, -1.6666666
        %vm1877 = vcmp.ge.f32.partialorder %v1399, -1.6666666
        %vm1878 = vcmp.ge.f32.partialorder %v1404, -1.6666666
        %vm1879 = vcmp.ge.f32.partialorder %v1409, -1.6666666
        %vm1880 = vcmp.ge.f32.partialorder %v1414, -1.6666666
        %vm1881 = vcmp.ge.f32.partialorder %v1419, -1.6666666
        %vm1882 = vcmp.ge.f32.partialorder %v1424, -1.6666666
        %vm1883 = vcmp.ge.f32.partialorder %v1429, -1.6666666
        %vm1884 = vcmp.ge.f32.partialorder %v1434, -1.6666666
        %vm1885 = vcmp.ge.f32.partialorder %v1439, -1.6666666
        %vm1886 = vcmp.ge.f32.partialorder %v1444, -1.6666666
        %vm1887 = vcmp.ge.f32.partialorder %v1449, -1.6666666
        %vm1888 = vcmp.ge.f32.partialorder %v1454, -1.6666666
        %vm1889 = vcmp.ge.f32.partialorder %v1459, -1.6666666
        %vm1890 = vcmp.ge.f32.partialorder %v1464, -1.6666666
        %vm1891 = vcmp.ge.f32.partialorder %v1469, -1.6666666
        %vm1892 = vcmp.ge.f32.partialorder %v1474, -1.6666666
        %vm1893 = vcmp.lt.f32.partialorder %v1319, -1.0
        %vm1894 = vcmp.lt.f32.partialorder %v1324, -1.0
        %vm1895 = vcmp.lt.f32.partialorder %v1329, -1.0
        %vm1896 = vcmp.lt.f32.partialorder %v1334, -1.0
        %vm1897 = vcmp.lt.f32.partialorder %v1339, -1.0
        %vm1898 = vcmp.lt.f32.partialorder %v1344, -1.0
        %vm1899 = vcmp.lt.f32.partialorder %v1349, -1.0
        %vm1900 = vcmp.lt.f32.partialorder %v1354, -1.0
        %vm1901 = vcmp.lt.f32.partialorder %v1359, -1.0
        %vm1902 = vcmp.lt.f32.partialorder %v1364, -1.0
        %vm1903 = vcmp.lt.f32.partialorder %v1369, -1.0
        %vm1904 = vcmp.lt.f32.partialorder %v1374, -1.0
        %vm1905 = vcmp.lt.f32.partialorder %v1379, -1.0
        %vm1906 = vcmp.lt.f32.partialorder %v1384, -1.0
        %vm1907 = vcmp.lt.f32.partialorder %v1389, -1.0
        %vm1908 = vcmp.lt.f32.partialorder %v1394, -1.0
        %vm1909 = vcmp.lt.f32.partialorder %v1399, -1.0
        %vm1910 = vcmp.lt.f32.partialorder %v1404, -1.0
        %vm1911 = vcmp.lt.f32.partialorder %v1409, -1.0
        %vm1912 = vcmp.lt.f32.partialorder %v1414, -1.0
        %vm1913 = vcmp.lt.f32.partialorder %v1419, -1.0
        %vm1914 = vcmp.lt.f32.partialorder %v1424, -1.0
        %vm1915 = vcmp.lt.f32.partialorder %v1429, -1.0
        %vm1916 = vcmp.lt.f32.partialorder %v1434, -1.0
        %vm1917 = vcmp.lt.f32.partialorder %v1439, -1.0
        %vm1918 = vcmp.lt.f32.partialorder %v1444, -1.0
        %vm1919 = vcmp.lt.f32.partialorder %v1449, -1.0
        %vm1920 = vcmp.lt.f32.partialorder %v1454, -1.0
        %vm1921 = vcmp.lt.f32.partialorder %v1459, -1.0
        %vm1922 = vcmp.lt.f32.partialorder %v1464, -1.0
        %vm1923 = vcmp.lt.f32.partialorder %v1469, -1.0
        %vm1924 = vcmp.lt.f32.partialorder %v1474, -1.0
        %vm1925 = vmand %vm1861, %vm1893
        %vm1926 = vmand %vm1862, %vm1894
        %vm1927 = vmand %vm1863, %vm1895
        %vm1928 = vmand %vm1864, %vm1896
        %vm1929 = vmand %vm1865, %vm1897
        %vm1930 = vmand %vm1866, %vm1898
        %vm1931 = vmand %vm1867, %vm1899
        %vm1932 = vmand %vm1868, %vm1900
        %vm1933 = vmand %vm1869, %vm1901
        %vm1934 = vmand %vm1870, %vm1902
        %vm1935 = vmand %vm1871, %vm1903
        %vm1936 = vmand %vm1872, %vm1904
        %vm1937 = vmand %vm1873, %vm1905
        %vm1938 = vmand %vm1874, %vm1906
        %vm1939 = vmand %vm1875, %vm1907
        %vm1940 = vmand %vm1876, %vm1908
        %vm1941 = vmand %vm1877, %vm1909
        %vm1942 = vmand %vm1878, %vm1910
        %vm1943 = vmand %vm1879, %vm1911
        %vm1944 = vmand %vm1880, %vm1912
        %vm1945 = vmand %vm1881, %vm1913
        %vm1946 = vmand %vm1882, %vm1914
        %vm1947 = vmand %vm1883, %vm1915
        %vm1948 = vmand %vm1884, %vm1916
        %vm1949 = vmand %vm1885, %vm1917
        %vm1950 = vmand %vm1886, %vm1918
        %vm1951 = vmand %vm1887, %vm1919
        %vm1952 = vmand %vm1888, %vm1920
        %vm1953 = vmand %vm1889, %vm1921
        %vm1954 = vmand %vm1890, %vm1922
        %vm1955 = vmand %vm1891, %vm1923
        %vm1956 = vmand %vm1892, %vm1924
        %v1957 = vsel %vm1925, 1, 0
        %v1958 = vsel %vm1926, 1, 0
        %v1959 = vsel %vm1927, 1, 0
        %v1960 = vsel %vm1928, 1, 0
        %v1961 = vsel %vm1929, 1, 0
        %v1962 = vsel %vm1930, 1, 0
        %v1963 = vsel %vm1931, 1, 0
        %v1964 = vsel %vm1932, 1, 0
        %v1965 = vsel %vm1933, 1, 0
        %v1966 = vsel %vm1934, 1, 0
        %v1967 = vsel %vm1935, 1, 0
        %v1968 = vsel %vm1936, 1, 0
        %v1969 = vsel %vm1937, 1, 0
        %v1970 = vsel %vm1938, 1, 0
        %v1971 = vsel %vm1939, 1, 0
        %v1972 = vsel %vm1940, 1, 0
        %v1973 = vsel %vm1941, 1, 0
        %v1974 = vsel %vm1942, 1, 0
        %v1975 = vsel %vm1943, 1, 0
        %v1976 = vsel %vm1944, 1, 0
        %v1977 = vsel %vm1945, 1, 0
        %v1978 = vsel %vm1946, 1, 0
        %v1979 = vsel %vm1947, 1, 0
        %v1980 = vsel %vm1948, 1, 0
        %v1981 = vsel %vm1949, 1, 0
        %v1982 = vsel %vm1950, 1, 0
        %v1983 = vsel %vm1951, 1, 0
        %v1984 = vsel %vm1952, 1, 0
        %v1985 = vsel %vm1953, 1, 0
        %v1986 = vsel %vm1954, 1, 0
        %v1987 = vsel %vm1955, 1, 0
        %v1988 = vsel %vm1956, 1, 0
        %v1989 = vcvt.s32.f32 %v1957
        %v1990 = vcvt.s32.f32 %v1958
        %v1991 = vcvt.s32.f32 %v1959
        %v1992 = vcvt.s32.f32 %v1960
        %v1993 = vcvt.s32.f32 %v1961
        %v1994 = vcvt.s32.f32 %v1962
        %v1995 = vcvt.s32.f32 %v1963
        %v1996 = vcvt.s32.f32 %v1964
        %v1997 = vcvt.s32.f32 %v1965
        %v1998 = vcvt.s32.f32 %v1966
        %v1999 = vcvt.s32.f32 %v1967
        %v2000 = vcvt.s32.f32 %v1968
        %v2001 = vcvt.s32.f32 %v1969
        %v2002 = vcvt.s32.f32 %v1970
        %v2003 = vcvt.s32.f32 %v1971
        %v2004 = vcvt.s32.f32 %v1972
        %v2005 = vcvt.s32.f32 %v1973
        %v2006 = vcvt.s32.f32 %v1974
        %v2007 = vcvt.s32.f32 %v1975
        %v2008 = vcvt.s32.f32 %v1976
        %v2009 = vcvt.s32.f32 %v1977
        %v2010 = vcvt.s32.f32 %v1978
        %v2011 = vcvt.s32.f32 %v1979
        %v2012 = vcvt.s32.f32 %v1980
        %v2013 = vcvt.s32.f32 %v1981
        %v2014 = vcvt.s32.f32 %v1982
        %v2015 = vcvt.s32.f32 %v1983
        %v2016 = vcvt.s32.f32 %v1984
        %v2017 = vcvt.s32.f32 %v1985
        %v2018 = vcvt.s32.f32 %v1986
        %v2019 = vcvt.s32.f32 %v1987
        %v2020 = vcvt.s32.f32 %v1988
        %vm2021 = vcmp.ge.f32.partialorder %v1319, -1.0
        %vm2022 = vcmp.ge.f32.partialorder %v1324, -1.0
        %vm2023 = vcmp.ge.f32.partialorder %v1329, -1.0
        %vm2024 = vcmp.ge.f32.partialorder %v1334, -1.0
        %vm2025 = vcmp.ge.f32.partialorder %v1339, -1.0
        %vm2026 = vcmp.ge.f32.partialorder %v1344, -1.0
        %vm2027 = vcmp.ge.f32.partialorder %v1349, -1.0
        %vm2028 = vcmp.ge.f32.partialorder %v1354, -1.0
        %vm2029 = vcmp.ge.f32.partialorder %v1359, -1.0
        %vm2030 = vcmp.ge.f32.partialorder %v1364, -1.0
        %vm2031 = vcmp.ge.f32.partialorder %v1369, -1.0
        %vm2032 = vcmp.ge.f32.partialorder %v1374, -1.0
        %vm2033 = vcmp.ge.f32.partialorder %v1379, -1.0
        %vm2034 = vcmp.ge.f32.partialorder %v1384, -1.0
        %vm2035 = vcmp.ge.f32.partialorder %v1389, -1.0
        %vm2036 = vcmp.ge.f32.partialorder %v1394, -1.0
        %vm2037 = vcmp.ge.f32.partialorder %v1399, -1.0
        %vm2038 = vcmp.ge.f32.partialorder %v1404, -1.0
        %vm2039 = vcmp.ge.f32.partialorder %v1409, -1.0
        %vm2040 = vcmp.ge.f32.partialorder %v1414, -1.0
        %vm2041 = vcmp.ge.f32.partialorder %v1419, -1.0
        %vm2042 = vcmp.ge.f32.partialorder %v1424, -1.0
        %vm2043 = vcmp.ge.f32.partialorder %v1429, -1.0
        %vm2044 = vcmp.ge.f32.partialorder %v1434, -1.0
        %vm2045 = vcmp.ge.f32.partialorder %v1439, -1.0
        %vm2046 = vcmp.ge.f32.partialorder %v1444, -1.0
        %vm2047 = vcmp.ge.f32.partialorder %v1449, -1.0
        %vm2048 = vcmp.ge.f32.partialorder %v1454, -1.0
        %vm2049 = vcmp.ge.f32.partialorder %v1459, -1.0
        %vm2050 = vcmp.ge.f32.partialorder %v1464, -1.0
        %vm2051 = vcmp.ge.f32.partialorder %v1469, -1.0
        %vm2052 = vcmp.ge.f32.partialorder %v1474, -1.0
        %vm2053 = vcmp.lt.f32.partialorder %v1319, -0.33333334
        %vm2054 = vcmp.lt.f32.partialorder %v1324, -0.33333334
        %vm2055 = vcmp.lt.f32.partialorder %v1329, -0.33333334
        %vm2056 = vcmp.lt.f32.partialorder %v1334, -0.33333334
        %vm2057 = vcmp.lt.f32.partialorder %v1339, -0.33333334
        %vm2058 = vcmp.lt.f32.partialorder %v1344, -0.33333334
        %vm2059 = vcmp.lt.f32.partialorder %v1349, -0.33333334
        %vm2060 = vcmp.lt.f32.partialorder %v1354, -0.33333334
        %vm2061 = vcmp.lt.f32.partialorder %v1359, -0.33333334
        %vm2062 = vcmp.lt.f32.partialorder %v1364, -0.33333334
        %vm2063 = vcmp.lt.f32.partialorder %v1369, -0.33333334
        %vm2064 = vcmp.lt.f32.partialorder %v1374, -0.33333334
        %vm2065 = vcmp.lt.f32.partialorder %v1379, -0.33333334
        %vm2066 = vcmp.lt.f32.partialorder %v1384, -0.33333334
        %vm2067 = vcmp.lt.f32.partialorder %v1389, -0.33333334
        %vm2068 = vcmp.lt.f32.partialorder %v1394, -0.33333334
        %vm2069 = vcmp.lt.f32.partialorder %v1399, -0.33333334
        %vm2070 = vcmp.lt.f32.partialorder %v1404, -0.33333334
        %vm2071 = vcmp.lt.f32.partialorder %v1409, -0.33333334
        %vm2072 = vcmp.lt.f32.partialorder %v1414, -0.33333334
        %vm2073 = vcmp.lt.f32.partialorder %v1419, -0.33333334
        %vm2074 = vcmp.lt.f32.partialorder %v1424, -0.33333334
        %vm2075 = vcmp.lt.f32.partialorder %v1429, -0.33333334
        %vm2076 = vcmp.lt.f32.partialorder %v1434, -0.33333334
        %vm2077 = vcmp.lt.f32.partialorder %v1439, -0.33333334
        %vm2078 = vcmp.lt.f32.partialorder %v1444, -0.33333334
        %vm2079 = vcmp.lt.f32.partialorder %v1449, -0.33333334
        %vm2080 = vcmp.lt.f32.partialorder %v1454, -0.33333334
        %vm2081 = vcmp.lt.f32.partialorder %v1459, -0.33333334
        %vm2082 = vcmp.lt.f32.partialorder %v1464, -0.33333334
        %vm2083 = vcmp.lt.f32.partialorder %v1469, -0.33333334
        %vm2084 = vcmp.lt.f32.partialorder %v1474, -0.33333334
        %vm2085 = vmand %vm2021, %vm2053
        %vm2086 = vmand %vm2022, %vm2054
        %vm2087 = vmand %vm2023, %vm2055
        %vm2088 = vmand %vm2024, %vm2056
        %vm2089 = vmand %vm2025, %vm2057
        %vm2090 = vmand %vm2026, %vm2058
        %vm2091 = vmand %vm2027, %vm2059
        %vm2092 = vmand %vm2028, %vm2060
        %vm2093 = vmand %vm2029, %vm2061
        %vm2094 = vmand %vm2030, %vm2062
        %vm2095 = vmand %vm2031, %vm2063
        %vm2096 = vmand %vm2032, %vm2064
        %vm2097 = vmand %vm2033, %vm2065
        %vm2098 = vmand %vm2034, %vm2066
        %vm2099 = vmand %vm2035, %vm2067
        %vm2100 = vmand %vm2036, %vm2068
        %vm2101 = vmand %vm2037, %vm2069
        %vm2102 = vmand %vm2038, %vm2070
        %vm2103 = vmand %vm2039, %vm2071
        %vm2104 = vmand %vm2040, %vm2072
        %vm2105 = vmand %vm2041, %vm2073
        %vm2106 = vmand %vm2042, %vm2074
        %vm2107 = vmand %vm2043, %vm2075
        %vm2108 = vmand %vm2044, %vm2076
        %vm2109 = vmand %vm2045, %vm2077
        %vm2110 = vmand %vm2046, %vm2078
        %vm2111 = vmand %vm2047, %vm2079
        %vm2112 = vmand %vm2048, %vm2080
        %vm2113 = vmand %vm2049, %vm2081
        %vm2114 = vmand %vm2050, %vm2082
        %vm2115 = vmand %vm2051, %vm2083
        %vm2116 = vmand %vm2052, %vm2084
        %v2117 = vsel %vm2085, 1, 0
        %v2118 = vsel %vm2086, 1, 0
        %v2119 = vsel %vm2087, 1, 0
        %v2120 = vsel %vm2088, 1, 0
        %v2121 = vsel %vm2089, 1, 0
        %v2122 = vsel %vm2090, 1, 0
        %v2123 = vsel %vm2091, 1, 0
        %v2124 = vsel %vm2092, 1, 0
        %v2125 = vsel %vm2093, 1, 0
        %v2126 = vsel %vm2094, 1, 0
        %v2127 = vsel %vm2095, 1, 0
        %v2128 = vsel %vm2096, 1, 0
        %v2129 = vsel %vm2097, 1, 0
        %v2130 = vsel %vm2098, 1, 0
        %v2131 = vsel %vm2099, 1, 0
        %v2132 = vsel %vm2100, 1, 0
        %v2133 = vsel %vm2101, 1, 0
        %v2134 = vsel %vm2102, 1, 0
        %v2135 = vsel %vm2103, 1, 0
        %v2136 = vsel %vm2104, 1, 0
        %v2137 = vsel %vm2105, 1, 0
        %v2138 = vsel %vm2106, 1, 0
        %v2139 = vsel %vm2107, 1, 0
        %v2140 = vsel %vm2108, 1, 0
        %v2141 = vsel %vm2109, 1, 0
        %v2142 = vsel %vm2110, 1, 0
        %v2143 = vsel %vm2111, 1, 0
        %v2144 = vsel %vm2112, 1, 0
        %v2145 = vsel %vm2113, 1, 0
        %v2146 = vsel %vm2114, 1, 0
        %v2147 = vsel %vm2115, 1, 0
        %v2148 = vsel %vm2116, 1, 0
        %v2149 = vcvt.s32.f32 %v2117
        %v2150 = vcvt.s32.f32 %v2118
        %v2151 = vcvt.s32.f32 %v2119
        %v2152 = vcvt.s32.f32 %v2120
        %v2153 = vcvt.s32.f32 %v2121
        %v2154 = vcvt.s32.f32 %v2122
        %v2155 = vcvt.s32.f32 %v2123
        %v2156 = vcvt.s32.f32 %v2124
        %v2157 = vcvt.s32.f32 %v2125
        %v2158 = vcvt.s32.f32 %v2126
        %v2159 = vcvt.s32.f32 %v2127
        %v2160 = vcvt.s32.f32 %v2128
        %v2161 = vcvt.s32.f32 %v2129
        %v2162 = vcvt.s32.f32 %v2130
        %v2163 = vcvt.s32.f32 %v2131
        %v2164 = vcvt.s32.f32 %v2132
        %v2165 = vcvt.s32.f32 %v2133
        %v2166 = vcvt.s32.f32 %v2134
        %v2167 = vcvt.s32.f32 %v2135
        %v2168 = vcvt.s32.f32 %v2136
        %v2169 = vcvt.s32.f32 %v2137
        %v2170 = vcvt.s32.f32 %v2138
        %v2171 = vcvt.s32.f32 %v2139
        %v2172 = vcvt.s32.f32 %v2140
        %v2173 = vcvt.s32.f32 %v2141
        %v2174 = vcvt.s32.f32 %v2142
        %v2175 = vcvt.s32.f32 %v2143
        %v2176 = vcvt.s32.f32 %v2144
        %v2177 = vcvt.s32.f32 %v2145
        %v2178 = vcvt.s32.f32 %v2146
        %v2179 = vcvt.s32.f32 %v2147
        %v2180 = vcvt.s32.f32 %v2148
        %vm2181 = vcmp.ge.f32.partialorder %v1319, -0.33333334
        %vm2182 = vcmp.ge.f32.partialorder %v1324, -0.33333334
        %vm2183 = vcmp.ge.f32.partialorder %v1329, -0.33333334
        %vm2184 = vcmp.ge.f32.partialorder %v1334, -0.33333334
        %vm2185 = vcmp.ge.f32.partialorder %v1339, -0.33333334
        %vm2186 = vcmp.ge.f32.partialorder %v1344, -0.33333334
        %vm2187 = vcmp.ge.f32.partialorder %v1349, -0.33333334
        %vm2188 = vcmp.ge.f32.partialorder %v1354, -0.33333334
        %vm2189 = vcmp.ge.f32.partialorder %v1359, -0.33333334
        %vm2190 = vcmp.ge.f32.partialorder %v1364, -0.33333334
        %vm2191 = vcmp.ge.f32.partialorder %v1369, -0.33333334
        %vm2192 = vcmp.ge.f32.partialorder %v1374, -0.33333334
        %vm2193 = vcmp.ge.f32.partialorder %v1379, -0.33333334
        %vm2194 = vcmp.ge.f32.partialorder %v1384, -0.33333334
        %vm2195 = vcmp.ge.f32.partialorder %v1389, -0.33333334
        %vm2196 = vcmp.ge.f32.partialorder %v1394, -0.33333334
        %vm2197 = vcmp.ge.f32.partialorder %v1399, -0.33333334
        %vm2198 = vcmp.ge.f32.partialorder %v1404, -0.33333334
        %vm2199 = vcmp.ge.f32.partialorder %v1409, -0.33333334
        %vm2200 = vcmp.ge.f32.partialorder %v1414, -0.33333334
        %vm2201 = vcmp.ge.f32.partialorder %v1419, -0.33333334
        %vm2202 = vcmp.ge.f32.partialorder %v1424, -0.33333334
        %vm2203 = vcmp.ge.f32.partialorder %v1429, -0.33333334
        %vm2204 = vcmp.ge.f32.partialorder %v1434, -0.33333334
        %vm2205 = vcmp.ge.f32.partialorder %v1439, -0.33333334
        %vm2206 = vcmp.ge.f32.partialorder %v1444, -0.33333334
        %vm2207 = vcmp.ge.f32.partialorder %v1449, -0.33333334
        %vm2208 = vcmp.ge.f32.partialorder %v1454, -0.33333334
        %vm2209 = vcmp.ge.f32.partialorder %v1459, -0.33333334
        %vm2210 = vcmp.ge.f32.partialorder %v1464, -0.33333334
        %vm2211 = vcmp.ge.f32.partialorder %v1469, -0.33333334
        %vm2212 = vcmp.ge.f32.partialorder %v1474, -0.33333334
        %vm2213 = vcmp.lt.f32.partialorder %v1319, 0.33333334
        %vm2214 = vcmp.lt.f32.partialorder %v1324, 0.33333334
        %vm2215 = vcmp.lt.f32.partialorder %v1329, 0.33333334
        %vm2216 = vcmp.lt.f32.partialorder %v1334, 0.33333334
        %vm2217 = vcmp.lt.f32.partialorder %v1339, 0.33333334
        %vm2218 = vcmp.lt.f32.partialorder %v1344, 0.33333334
        %vm2219 = vcmp.lt.f32.partialorder %v1349, 0.33333334
        %vm2220 = vcmp.lt.f32.partialorder %v1354, 0.33333334
        %vm2221 = vcmp.lt.f32.partialorder %v1359, 0.33333334
        %vm2222 = vcmp.lt.f32.partialorder %v1364, 0.33333334
        %vm2223 = vcmp.lt.f32.partialorder %v1369, 0.33333334
        %vm2224 = vcmp.lt.f32.partialorder %v1374, 0.33333334
        %vm2225 = vcmp.lt.f32.partialorder %v1379, 0.33333334
        %vm2226 = vcmp.lt.f32.partialorder %v1384, 0.33333334
        %vm2227 = vcmp.lt.f32.partialorder %v1389, 0.33333334
        %vm2228 = vcmp.lt.f32.partialorder %v1394, 0.33333334
        %vm2229 = vcmp.lt.f32.partialorder %v1399, 0.33333334
        %vm2230 = vcmp.lt.f32.partialorder %v1404, 0.33333334
        %vm2231 = vcmp.lt.f32.partialorder %v1409, 0.33333334
        %vm2232 = vcmp.lt.f32.partialorder %v1414, 0.33333334
        %vm2233 = vcmp.lt.f32.partialorder %v1419, 0.33333334
        %vm2234 = vcmp.lt.f32.partialorder %v1424, 0.33333334
        %vm2235 = vcmp.lt.f32.partialorder %v1429, 0.33333334
        %vm2236 = vcmp.lt.f32.partialorder %v1434, 0.33333334
        %vm2237 = vcmp.lt.f32.partialorder %v1439, 0.33333334
        %vm2238 = vcmp.lt.f32.partialorder %v1444, 0.33333334
        %vm2239 = vcmp.lt.f32.partialorder %v1449, 0.33333334
        %vm2240 = vcmp.lt.f32.partialorder %v1454, 0.33333334
        %vm2241 = vcmp.lt.f32.partialorder %v1459, 0.33333334
        %vm2242 = vcmp.lt.f32.partialorder %v1464, 0.33333334
        %vm2243 = vcmp.lt.f32.partialorder %v1469, 0.33333334
        %vm2244 = vcmp.lt.f32.partialorder %v1474, 0.33333334
        %vm2245 = vmand %vm2181, %vm2213
        %vm2246 = vmand %vm2182, %vm2214
        %vm2247 = vmand %vm2183, %vm2215
        %vm2248 = vmand %vm2184, %vm2216
        %vm2249 = vmand %vm2185, %vm2217
        %vm2250 = vmand %vm2186, %vm2218
        %vm2251 = vmand %vm2187, %vm2219
        %vm2252 = vmand %vm2188, %vm2220
        %vm2253 = vmand %vm2189, %vm2221
        %vm2254 = vmand %vm2190, %vm2222
        %vm2255 = vmand %vm2191, %vm2223
        %vm2256 = vmand %vm2192, %vm2224
        %vm2257 = vmand %vm2193, %vm2225
        %vm2258 = vmand %vm2194, %vm2226
        %vm2259 = vmand %vm2195, %vm2227
        %vm2260 = vmand %vm2196, %vm2228
        %vm2261 = vmand %vm2197, %vm2229
        %vm2262 = vmand %vm2198, %vm2230
        %vm2263 = vmand %vm2199, %vm2231
        %vm2264 = vmand %vm2200, %vm2232
        %vm2265 = vmand %vm2201, %vm2233
        %vm2266 = vmand %vm2202, %vm2234
        %vm2267 = vmand %vm2203, %vm2235
        %vm2268 = vmand %vm2204, %vm2236
        %vm2269 = vmand %vm2205, %vm2237
        %vm2270 = vmand %vm2206, %vm2238
        %vm2271 = vmand %vm2207, %vm2239
        %vm2272 = vmand %vm2208, %vm2240
        %vm2273 = vmand %vm2209, %vm2241
        %vm2274 = vmand %vm2210, %vm2242
        %vm2275 = vmand %vm2211, %vm2243
        %vm2276 = vmand %vm2212, %vm2244
        %v2277 = vsel %vm2245, 1, 0
        %v2278 = vsel %vm2246, 1, 0
        %v2279 = vsel %vm2247, 1, 0
        %v2280 = vsel %vm2248, 1, 0
        %v2281 = vsel %vm2249, 1, 0
        %v2282 = vsel %vm2250, 1, 0
        %v2283 = vsel %vm2251, 1, 0
        %v2284 = vsel %vm2252, 1, 0
        %v2285 = vsel %vm2253, 1, 0
        %v2286 = vsel %vm2254, 1, 0
        %v2287 = vsel %vm2255, 1, 0
        %v2288 = vsel %vm2256, 1, 0
        %v2289 = vsel %vm2257, 1, 0
        %v2290 = vsel %vm2258, 1, 0
        %v2291 = vsel %vm2259, 1, 0
        %v2292 = vsel %vm2260, 1, 0
        %v2293 = vsel %vm2261, 1, 0
        %v2294 = vsel %vm2262, 1, 0
        %v2295 = vsel %vm2263, 1, 0
        %v2296 = vsel %vm2264, 1, 0
        %v2297 = vsel %vm2265, 1, 0
        %v2298 = vsel %vm2266, 1, 0
        %v2299 = vsel %vm2267, 1, 0
        %v2300 = vsel %vm2268, 1, 0
        %v2301 = vsel %vm2269, 1, 0
        %v2302 = vsel %vm2270, 1, 0
        %v2303 = vsel %vm2271, 1, 0
        %v2304 = vsel %vm2272, 1, 0
        %v2305 = vsel %vm2273, 1, 0
        %v2306 = vsel %vm2274, 1, 0
        %v2307 = vsel %vm2275, 1, 0
        %v2308 = vsel %vm2276, 1, 0
        %v2309 = vcvt.s32.f32 %v2277
        %v2310 = vcvt.s32.f32 %v2278
        %v2311 = vcvt.s32.f32 %v2279
        %v2312 = vcvt.s32.f32 %v2280
        %v2313 = vcvt.s32.f32 %v2281
        %v2314 = vcvt.s32.f32 %v2282
        %v2315 = vcvt.s32.f32 %v2283
        %v2316 = vcvt.s32.f32 %v2284
        %v2317 = vcvt.s32.f32 %v2285
        %v2318 = vcvt.s32.f32 %v2286
        %v2319 = vcvt.s32.f32 %v2287
        %v2320 = vcvt.s32.f32 %v2288
        %v2321 = vcvt.s32.f32 %v2289
        %v2322 = vcvt.s32.f32 %v2290
        %v2323 = vcvt.s32.f32 %v2291
        %v2324 = vcvt.s32.f32 %v2292
        %v2325 = vcvt.s32.f32 %v2293
        %v2326 = vcvt.s32.f32 %v2294
        %v2327 = vcvt.s32.f32 %v2295
        %v2328 = vcvt.s32.f32 %v2296
        %v2329 = vcvt.s32.f32 %v2297
        %v2330 = vcvt.s32.f32 %v2298
        %v2331 = vcvt.s32.f32 %v2299
        %v2332 = vcvt.s32.f32 %v2300
        %v2333 = vcvt.s32.f32 %v2301
        %v2334 = vcvt.s32.f32 %v2302
        %v2335 = vcvt.s32.f32 %v2303
        %v2336 = vcvt.s32.f32 %v2304
        %v2337 = vcvt.s32.f32 %v2305
        %v2338 = vcvt.s32.f32 %v2306
        %v2339 = vcvt.s32.f32 %v2307
        %v2340 = vcvt.s32.f32 %v2308
        %vm2341 = vcmp.ge.f32.partialorder %v1319, 0.33333334
        %vm2342 = vcmp.ge.f32.partialorder %v1324, 0.33333334
        %vm2343 = vcmp.ge.f32.partialorder %v1329, 0.33333334
        %vm2344 = vcmp.ge.f32.partialorder %v1334, 0.33333334
        %vm2345 = vcmp.ge.f32.partialorder %v1339, 0.33333334
        %vm2346 = vcmp.ge.f32.partialorder %v1344, 0.33333334
        %vm2347 = vcmp.ge.f32.partialorder %v1349, 0.33333334
        %vm2348 = vcmp.ge.f32.partialorder %v1354, 0.33333334
        %vm2349 = vcmp.ge.f32.partialorder %v1359, 0.33333334
        %vm2350 = vcmp.ge.f32.partialorder %v1364, 0.33333334
        %vm2351 = vcmp.ge.f32.partialorder %v1369, 0.33333334
        %vm2352 = vcmp.ge.f32.partialorder %v1374, 0.33333334
        %vm2353 = vcmp.ge.f32.partialorder %v1379, 0.33333334
        %vm2354 = vcmp.ge.f32.partialorder %v1384, 0.33333334
        %vm2355 = vcmp.ge.f32.partialorder %v1389, 0.33333334
        %vm2356 = vcmp.ge.f32.partialorder %v1394, 0.33333334
        %vm2357 = vcmp.ge.f32.partialorder %v1399, 0.33333334
        %vm2358 = vcmp.ge.f32.partialorder %v1404, 0.33333334
        %vm2359 = vcmp.ge.f32.partialorder %v1409, 0.33333334
        %vm2360 = vcmp.ge.f32.partialorder %v1414, 0.33333334
        %vm2361 = vcmp.ge.f32.partialorder %v1419, 0.33333334
        %vm2362 = vcmp.ge.f32.partialorder %v1424, 0.33333334
        %vm2363 = vcmp.ge.f32.partialorder %v1429, 0.33333334
        %vm2364 = vcmp.ge.f32.partialorder %v1434, 0.33333334
        %vm2365 = vcmp.ge.f32.partialorder %v1439, 0.33333334
        %vm2366 = vcmp.ge.f32.partialorder %v1444, 0.33333334
        %vm2367 = vcmp.ge.f32.partialorder %v1449, 0.33333334
        %vm2368 = vcmp.ge.f32.partialorder %v1454, 0.33333334
        %vm2369 = vcmp.ge.f32.partialorder %v1459, 0.33333334
        %vm2370 = vcmp.ge.f32.partialorder %v1464, 0.33333334
        %vm2371 = vcmp.ge.f32.partialorder %v1469, 0.33333334
        %vm2372 = vcmp.ge.f32.partialorder %v1474, 0.33333334
        %vm2373 = vcmp.lt.f32.partialorder %v1319, 1.0
        %vm2374 = vcmp.lt.f32.partialorder %v1324, 1.0
        %vm2375 = vcmp.lt.f32.partialorder %v1329, 1.0
        %vm2376 = vcmp.lt.f32.partialorder %v1334, 1.0
        %vm2377 = vcmp.lt.f32.partialorder %v1339, 1.0
        %vm2378 = vcmp.lt.f32.partialorder %v1344, 1.0
        %vm2379 = vcmp.lt.f32.partialorder %v1349, 1.0
        %vm2380 = vcmp.lt.f32.partialorder %v1354, 1.0
        %vm2381 = vcmp.lt.f32.partialorder %v1359, 1.0
        %vm2382 = vcmp.lt.f32.partialorder %v1364, 1.0
        %vm2383 = vcmp.lt.f32.partialorder %v1369, 1.0
        %vm2384 = vcmp.lt.f32.partialorder %v1374, 1.0
        %vm2385 = vcmp.lt.f32.partialorder %v1379, 1.0
        %vm2386 = vcmp.lt.f32.partialorder %v1384, 1.0
        %vm2387 = vcmp.lt.f32.partialorder %v1389, 1.0
        %vm2388 = vcmp.lt.f32.partialorder %v1394, 1.0
        %vm2389 = vcmp.lt.f32.partialorder %v1399, 1.0
        %vm2390 = vcmp.lt.f32.partialorder %v1404, 1.0
        %vm2391 = vcmp.lt.f32.partialorder %v1409, 1.0
        %vm2392 = vcmp.lt.f32.partialorder %v1414, 1.0
        %vm2393 = vcmp.lt.f32.partialorder %v1419, 1.0
        %vm2394 = vcmp.lt.f32.partialorder %v1424, 1.0
        %vm2395 = vcmp.lt.f32.partialorder %v1429, 1.0
        %vm2396 = vcmp.lt.f32.partialorder %v1434, 1.0
        %vm2397 = vcmp.lt.f32.partialorder %v1439, 1.0
        %vm2398 = vcmp.lt.f32.partialorder %v1444, 1.0
        %vm2399 = vcmp.lt.f32.partialorder %v1449, 1.0
        %vm2400 = vcmp.lt.f32.partialorder %v1454, 1.0
        %vm2401 = vcmp.lt.f32.partialorder %v1459, 1.0
        %vm2402 = vcmp.lt.f32.partialorder %v1464, 1.0
        %vm2403 = vcmp.lt.f32.partialorder %v1469, 1.0
        %vm2404 = vcmp.lt.f32.partialorder %v1474, 1.0
        %vm2405 = vmand %vm2341, %vm2373
        %vm2406 = vmand %vm2342, %vm2374
        %vm2407 = vmand %vm2343, %vm2375
        %vm2408 = vmand %vm2344, %vm2376
        %vm2409 = vmand %vm2345, %vm2377
        %vm2410 = vmand %vm2346, %vm2378
        %vm2411 = vmand %vm2347, %vm2379
        %vm2412 = vmand %vm2348, %vm2380
        %vm2413 = vmand %vm2349, %vm2381
        %vm2414 = vmand %vm2350, %vm2382
        %vm2415 = vmand %vm2351, %vm2383
        %vm2416 = vmand %vm2352, %vm2384
        %vm2417 = vmand %vm2353, %vm2385
        %vm2418 = vmand %vm2354, %vm2386
        %vm2419 = vmand %vm2355, %vm2387
        %vm2420 = vmand %vm2356, %vm2388
        %vm2421 = vmand %vm2357, %vm2389
        %vm2422 = vmand %vm2358, %vm2390
        %vm2423 = vmand %vm2359, %vm2391
        %vm2424 = vmand %vm2360, %vm2392
        %vm2425 = vmand %vm2361, %vm2393
        %vm2426 = vmand %vm2362, %vm2394
        %vm2427 = vmand %vm2363, %vm2395
        %vm2428 = vmand %vm2364, %vm2396
        %vm2429 = vmand %vm2365, %vm2397
        %vm2430 = vmand %vm2366, %vm2398
        %vm2431 = vmand %vm2367, %vm2399
        %vm2432 = vmand %vm2368, %vm2400
        %vm2433 = vmand %vm2369, %vm2401
        %vm2434 = vmand %vm2370, %vm2402
        %vm2435 = vmand %vm2371, %vm2403
        %vm2436 = vmand %vm2372, %vm2404
        %v2437 = vsel %vm2405, 1, 0
        %v2438 = vsel %vm2406, 1, 0
        %v2439 = vsel %vm2407, 1, 0
        %v2440 = vsel %vm2408, 1, 0
        %v2441 = vsel %vm2409, 1, 0
        %v2442 = vsel %vm2410, 1, 0
        %v2443 = vsel %vm2411, 1, 0
        %v2444 = vsel %vm2412, 1, 0
        %v2445 = vsel %vm2413, 1, 0
        %v2446 = vsel %vm2414, 1, 0
        %v2447 = vsel %vm2415, 1, 0
        %v2448 = vsel %vm2416, 1, 0
        %v2449 = vsel %vm2417, 1, 0
        %v2450 = vsel %vm2418, 1, 0
        %v2451 = vsel %vm2419, 1, 0
        %v2452 = vsel %vm2420, 1, 0
        %v2453 = vsel %vm2421, 1, 0
        %v2454 = vsel %vm2422, 1, 0
        %v2455 = vsel %vm2423, 1, 0
        %v2456 = vsel %vm2424, 1, 0
        %v2457 = vsel %vm2425, 1, 0
        %v2458 = vsel %vm2426, 1, 0
        %v2459 = vsel %vm2427, 1, 0
        %v2460 = vsel %vm2428, 1, 0
        %v2461 = vsel %vm2429, 1, 0
        %v2462 = vsel %vm2430, 1, 0
        %v2463 = vsel %vm2431, 1, 0
        %v2464 = vsel %vm2432, 1, 0
        %v2465 = vsel %vm2433, 1, 0
        %v2466 = vsel %vm2434, 1, 0
        %v2467 = vsel %vm2435, 1, 0
        %v2468 = vsel %vm2436, 1, 0
        %v2469 = vcvt.s32.f32 %v2437
        %v2470 = vcvt.s32.f32 %v2438
        %v2471 = vcvt.s32.f32 %v2439
        %v2472 = vcvt.s32.f32 %v2440
        %v2473 = vcvt.s32.f32 %v2441
        %v2474 = vcvt.s32.f32 %v2442
        %v2475 = vcvt.s32.f32 %v2443
        %v2476 = vcvt.s32.f32 %v2444
        %v2477 = vcvt.s32.f32 %v2445
        %v2478 = vcvt.s32.f32 %v2446
        %v2479 = vcvt.s32.f32 %v2447
        %v2480 = vcvt.s32.f32 %v2448
        %v2481 = vcvt.s32.f32 %v2449
        %v2482 = vcvt.s32.f32 %v2450
        %v2483 = vcvt.s32.f32 %v2451
        %v2484 = vcvt.s32.f32 %v2452
        %v2485 = vcvt.s32.f32 %v2453
        %v2486 = vcvt.s32.f32 %v2454
        %v2487 = vcvt.s32.f32 %v2455
        %v2488 = vcvt.s32.f32 %v2456
        %v2489 = vcvt.s32.f32 %v2457
        %v2490 = vcvt.s32.f32 %v2458
        %v2491 = vcvt.s32.f32 %v2459
        %v2492 = vcvt.s32.f32 %v2460
        %v2493 = vcvt.s32.f32 %v2461
        %v2494 = vcvt.s32.f32 %v2462
        %v2495 = vcvt.s32.f32 %v2463
        %v2496 = vcvt.s32.f32 %v2464
        %v2497 = vcvt.s32.f32 %v2465
        %v2498 = vcvt.s32.f32 %v2466
        %v2499 = vcvt.s32.f32 %v2467
        %v2500 = vcvt.s32.f32 %v2468
        %vm2501 = vcmp.ge.f32.partialorder %v1319, 1.0
        %vm2502 = vcmp.ge.f32.partialorder %v1324, 1.0
        %vm2503 = vcmp.ge.f32.partialorder %v1329, 1.0
        %vm2504 = vcmp.ge.f32.partialorder %v1334, 1.0
        %vm2505 = vcmp.ge.f32.partialorder %v1339, 1.0
        %vm2506 = vcmp.ge.f32.partialorder %v1344, 1.0
        %vm2507 = vcmp.ge.f32.partialorder %v1349, 1.0
        %vm2508 = vcmp.ge.f32.partialorder %v1354, 1.0
        %vm2509 = vcmp.ge.f32.partialorder %v1359, 1.0
        %vm2510 = vcmp.ge.f32.partialorder %v1364, 1.0
        %vm2511 = vcmp.ge.f32.partialorder %v1369, 1.0
        %vm2512 = vcmp.ge.f32.partialorder %v1374, 1.0
        %vm2513 = vcmp.ge.f32.partialorder %v1379, 1.0
        %vm2514 = vcmp.ge.f32.partialorder %v1384, 1.0
        %vm2515 = vcmp.ge.f32.partialorder %v1389, 1.0
        %vm2516 = vcmp.ge.f32.partialorder %v1394, 1.0
        %vm2517 = vcmp.ge.f32.partialorder %v1399, 1.0
        %vm2518 = vcmp.ge.f32.partialorder %v1404, 1.0
        %vm2519 = vcmp.ge.f32.partialorder %v1409, 1.0
        %vm2520 = vcmp.ge.f32.partialorder %v1414, 1.0
        %vm2521 = vcmp.ge.f32.partialorder %v1419, 1.0
        %vm2522 = vcmp.ge.f32.partialorder %v1424, 1.0
        %vm2523 = vcmp.ge.f32.partialorder %v1429, 1.0
        %vm2524 = vcmp.ge.f32.partialorder %v1434, 1.0
        %vm2525 = vcmp.ge.f32.partialorder %v1439, 1.0
        %vm2526 = vcmp.ge.f32.partialorder %v1444, 1.0
        %vm2527 = vcmp.ge.f32.partialorder %v1449, 1.0
        %vm2528 = vcmp.ge.f32.partialorder %v1454, 1.0
        %vm2529 = vcmp.ge.f32.partialorder %v1459, 1.0
        %vm2530 = vcmp.ge.f32.partialorder %v1464, 1.0
        %vm2531 = vcmp.ge.f32.partialorder %v1469, 1.0
        %vm2532 = vcmp.ge.f32.partialorder %v1474, 1.0
        %vm2533 = vcmp.lt.f32.partialorder %v1319, 1.6666666
        %vm2534 = vcmp.lt.f32.partialorder %v1324, 1.6666666
        %vm2535 = vcmp.lt.f32.partialorder %v1329, 1.6666666
        %vm2536 = vcmp.lt.f32.partialorder %v1334, 1.6666666
        %vm2537 = vcmp.lt.f32.partialorder %v1339, 1.6666666
        %vm2538 = vcmp.lt.f32.partialorder %v1344, 1.6666666
        %vm2539 = vcmp.lt.f32.partialorder %v1349, 1.6666666
        %vm2540 = vcmp.lt.f32.partialorder %v1354, 1.6666666
        %vm2541 = vcmp.lt.f32.partialorder %v1359, 1.6666666
        %vm2542 = vcmp.lt.f32.partialorder %v1364, 1.6666666
        %vm2543 = vcmp.lt.f32.partialorder %v1369, 1.6666666
        %vm2544 = vcmp.lt.f32.partialorder %v1374, 1.6666666
        %vm2545 = vcmp.lt.f32.partialorder %v1379, 1.6666666
        %vm2546 = vcmp.lt.f32.partialorder %v1384, 1.6666666
        %vm2547 = vcmp.lt.f32.partialorder %v1389, 1.6666666
        %vm2548 = vcmp.lt.f32.partialorder %v1394, 1.6666666
        %vm2549 = vcmp.lt.f32.partialorder %v1399, 1.6666666
        %vm2550 = vcmp.lt.f32.partialorder %v1404, 1.6666666
        %vm2551 = vcmp.lt.f32.partialorder %v1409, 1.6666666
        %vm2552 = vcmp.lt.f32.partialorder %v1414, 1.6666666
        %vm2553 = vcmp.lt.f32.partialorder %v1419, 1.6666666
        %vm2554 = vcmp.lt.f32.partialorder %v1424, 1.6666666
        %vm2555 = vcmp.lt.f32.partialorder %v1429, 1.6666666
        %vm2556 = vcmp.lt.f32.partialorder %v1434, 1.6666666
        %vm2557 = vcmp.lt.f32.partialorder %v1439, 1.6666666
        %vm2558 = vcmp.lt.f32.partialorder %v1444, 1.6666666
        %vm2559 = vcmp.lt.f32.partialorder %v1449, 1.6666666
        %vm2560 = vcmp.lt.f32.partialorder %v1454, 1.6666666
        %vm2561 = vcmp.lt.f32.partialorder %v1459, 1.6666666
        %vm2562 = vcmp.lt.f32.partialorder %v1464, 1.6666666
        %vm2563 = vcmp.lt.f32.partialorder %v1469, 1.6666666
        %vm2564 = vcmp.lt.f32.partialorder %v1474, 1.6666666
        %vm2565 = vmand %vm2501, %vm2533
        %vm2566 = vmand %vm2502, %vm2534
        %vm2567 = vmand %vm2503, %vm2535
        %vm2568 = vmand %vm2504, %vm2536
        %vm2569 = vmand %vm2505, %vm2537
        %vm2570 = vmand %vm2506, %vm2538
        %vm2571 = vmand %vm2507, %vm2539
        %vm2572 = vmand %vm2508, %vm2540
        %vm2573 = vmand %vm2509, %vm2541
        %vm2574 = vmand %vm2510, %vm2542
        %vm2575 = vmand %vm2511, %vm2543
        %vm2576 = vmand %vm2512, %vm2544
        %vm2577 = vmand %vm2513, %vm2545
        %vm2578 = vmand %vm2514, %vm2546
        %vm2579 = vmand %vm2515, %vm2547
        %vm2580 = vmand %vm2516, %vm2548
        %vm2581 = vmand %vm2517, %vm2549
        %vm2582 = vmand %vm2518, %vm2550
        %vm2583 = vmand %vm2519, %vm2551
        %vm2584 = vmand %vm2520, %vm2552
        %vm2585 = vmand %vm2521, %vm2553
        %vm2586 = vmand %vm2522, %vm2554
        %vm2587 = vmand %vm2523, %vm2555
        %vm2588 = vmand %vm2524, %vm2556
        %vm2589 = vmand %vm2525, %vm2557
        %vm2590 = vmand %vm2526, %vm2558
        %vm2591 = vmand %vm2527, %vm2559
        %vm2592 = vmand %vm2528, %vm2560
        %vm2593 = vmand %vm2529, %vm2561
        %vm2594 = vmand %vm2530, %vm2562
        %vm2595 = vmand %vm2531, %vm2563
        %vm2596 = vmand %vm2532, %vm2564
        %v2597 = vsel %vm2565, 1, 0
        %v2598 = vsel %vm2566, 1, 0
        %v2599 = vsel %vm2567, 1, 0
        %v2600 = vsel %vm2568, 1, 0
        %v2601 = vsel %vm2569, 1, 0
        %v2602 = vsel %vm2570, 1, 0
        %v2603 = vsel %vm2571, 1, 0
        %v2604 = vsel %vm2572, 1, 0
        %v2605 = vsel %vm2573, 1, 0
        %v2606 = vsel %vm2574, 1, 0
        %v2607 = vsel %vm2575, 1, 0
        %v2608 = vsel %vm2576, 1, 0
        %v2609 = vsel %vm2577, 1, 0
        %v2610 = vsel %vm2578, 1, 0
        %v2611 = vsel %vm2579, 1, 0
        %v2612 = vsel %vm2580, 1, 0
        %v2613 = vsel %vm2581, 1, 0
        %v2614 = vsel %vm2582, 1, 0
        %v2615 = vsel %vm2583, 1, 0
        %v2616 = vsel %vm2584, 1, 0
        %v2617 = vsel %vm2585, 1, 0
        %v2618 = vsel %vm2586, 1, 0
        %v2619 = vsel %vm2587, 1, 0
        %v2620 = vsel %vm2588, 1, 0
        %v2621 = vsel %vm2589, 1, 0
        %v2622 = vsel %vm2590, 1, 0
        %v2623 = vsel %vm2591, 1, 0
        %v2624 = vsel %vm2592, 1, 0
        %v2625 = vsel %vm2593, 1, 0
        %v2626 = vsel %vm2594, 1, 0
        %v2627 = vsel %vm2595, 1, 0
        %v2628 = vsel %vm2596, 1, 0
        %v2629 = vcvt.s32.f32 %v2597
        %v2630 = vcvt.s32.f32 %v2598
        %v2631 = vcvt.s32.f32 %v2599
        %v2632 = vcvt.s32.f32 %v2600
        %v2633 = vcvt.s32.f32 %v2601
        %v2634 = vcvt.s32.f32 %v2602
        %v2635 = vcvt.s32.f32 %v2603
        %v2636 = vcvt.s32.f32 %v2604
        %v2637 = vcvt.s32.f32 %v2605
        %v2638 = vcvt.s32.f32 %v2606
        %v2639 = vcvt.s32.f32 %v2607
        %v2640 = vcvt.s32.f32 %v2608
        %v2641 = vcvt.s32.f32 %v2609
        %v2642 = vcvt.s32.f32 %v2610
        %v2643 = vcvt.s32.f32 %v2611
        %v2644 = vcvt.s32.f32 %v2612
        %v2645 = vcvt.s32.f32 %v2613
        %v2646 = vcvt.s32.f32 %v2614
        %v2647 = vcvt.s32.f32 %v2615
        %v2648 = vcvt.s32.f32 %v2616
        %v2649 = vcvt.s32.f32 %v2617
        %v2650 = vcvt.s32.f32 %v2618
        %v2651 = vcvt.s32.f32 %v2619
        %v2652 = vcvt.s32.f32 %v2620
        %v2653 = vcvt.s32.f32 %v2621
        %v2654 = vcvt.s32.f32 %v2622
        %v2655 = vcvt.s32.f32 %v2623
        %v2656 = vcvt.s32.f32 %v2624
        %v2657 = vcvt.s32.f32 %v2625
        %v2658 = vcvt.s32.f32 %v2626
        %v2659 = vcvt.s32.f32 %v2627
        %v2660 = vcvt.s32.f32 %v2628
        %vm2661 = vcmp.ge.f32.partialorder %v1319, 1.6666666
        %vm2662 = vcmp.ge.f32.partialorder %v1324, 1.6666666
        %vm2663 = vcmp.ge.f32.partialorder %v1329, 1.6666666
        %vm2664 = vcmp.ge.f32.partialorder %v1334, 1.6666666
        %vm2665 = vcmp.ge.f32.partialorder %v1339, 1.6666666
        %vm2666 = vcmp.ge.f32.partialorder %v1344, 1.6666666
        %vm2667 = vcmp.ge.f32.partialorder %v1349, 1.6666666
        %vm2668 = vcmp.ge.f32.partialorder %v1354, 1.6666666
        %vm2669 = vcmp.ge.f32.partialorder %v1359, 1.6666666
        %vm2670 = vcmp.ge.f32.partialorder %v1364, 1.6666666
        %vm2671 = vcmp.ge.f32.partialorder %v1369, 1.6666666
        %vm2672 = vcmp.ge.f32.partialorder %v1374, 1.6666666
        %vm2673 = vcmp.ge.f32.partialorder %v1379, 1.6666666
        %vm2674 = vcmp.ge.f32.partialorder %v1384, 1.6666666
        %vm2675 = vcmp.ge.f32.partialorder %v1389, 1.6666666
        %vm2676 = vcmp.ge.f32.partialorder %v1394, 1.6666666
        %vm2677 = vcmp.ge.f32.partialorder %v1399, 1.6666666
        %vm2678 = vcmp.ge.f32.partialorder %v1404, 1.6666666
        %vm2679 = vcmp.ge.f32.partialorder %v1409, 1.6666666
        %vm2680 = vcmp.ge.f32.partialorder %v1414, 1.6666666
        %vm2681 = vcmp.ge.f32.partialorder %v1419, 1.6666666
        %vm2682 = vcmp.ge.f32.partialorder %v1424, 1.6666666
        %vm2683 = vcmp.ge.f32.partialorder %v1429, 1.6666666
        %vm2684 = vcmp.ge.f32.partialorder %v1434, 1.6666666
        %vm2685 = vcmp.ge.f32.partialorder %v1439, 1.6666666
        %vm2686 = vcmp.ge.f32.partialorder %v1444, 1.6666666
        %vm2687 = vcmp.ge.f32.partialorder %v1449, 1.6666666
        %vm2688 = vcmp.ge.f32.partialorder %v1454, 1.6666666
        %vm2689 = vcmp.ge.f32.partialorder %v1459, 1.6666666
        %vm2690 = vcmp.ge.f32.partialorder %v1464, 1.6666666
        %vm2691 = vcmp.ge.f32.partialorder %v1469, 1.6666666
        %vm2692 = vcmp.ge.f32.partialorder %v1474, 1.6666666
        %vm2693 = vcmp.lt.f32.partialorder %v1319, 2.3333333
        %vm2694 = vcmp.lt.f32.partialorder %v1324, 2.3333333
        %vm2695 = vcmp.lt.f32.partialorder %v1329, 2.3333333
        %vm2696 = vcmp.lt.f32.partialorder %v1334, 2.3333333
        %vm2697 = vcmp.lt.f32.partialorder %v1339, 2.3333333
        %vm2698 = vcmp.lt.f32.partialorder %v1344, 2.3333333
        %vm2699 = vcmp.lt.f32.partialorder %v1349, 2.3333333
        %vm2700 = vcmp.lt.f32.partialorder %v1354, 2.3333333
        %vm2701 = vcmp.lt.f32.partialorder %v1359, 2.3333333
        %vm2702 = vcmp.lt.f32.partialorder %v1364, 2.3333333
        %vm2703 = vcmp.lt.f32.partialorder %v1369, 2.3333333
        %vm2704 = vcmp.lt.f32.partialorder %v1374, 2.3333333
        %vm2705 = vcmp.lt.f32.partialorder %v1379, 2.3333333
        %vm2706 = vcmp.lt.f32.partialorder %v1384, 2.3333333
        %vm2707 = vcmp.lt.f32.partialorder %v1389, 2.3333333
        %vm2708 = vcmp.lt.f32.partialorder %v1394, 2.3333333
        %vm2709 = vcmp.lt.f32.partialorder %v1399, 2.3333333
        %vm2710 = vcmp.lt.f32.partialorder %v1404, 2.3333333
        %vm2711 = vcmp.lt.f32.partialorder %v1409, 2.3333333
        %vm2712 = vcmp.lt.f32.partialorder %v1414, 2.3333333
        %vm2713 = vcmp.lt.f32.partialorder %v1419, 2.3333333
        %vm2714 = vcmp.lt.f32.partialorder %v1424, 2.3333333
        %vm2715 = vcmp.lt.f32.partialorder %v1429, 2.3333333
        %vm2716 = vcmp.lt.f32.partialorder %v1434, 2.3333333
        %vm2717 = vcmp.lt.f32.partialorder %v1439, 2.3333333
        %vm2718 = vcmp.lt.f32.partialorder %v1444, 2.3333333
        %vm2719 = vcmp.lt.f32.partialorder %v1449, 2.3333333
        %vm2720 = vcmp.lt.f32.partialorder %v1454, 2.3333333
        %vm2721 = vcmp.lt.f32.partialorder %v1459, 2.3333333
        %vm2722 = vcmp.lt.f32.partialorder %v1464, 2.3333333
        %vm2723 = vcmp.lt.f32.partialorder %v1469, 2.3333333
        %vm2724 = vcmp.lt.f32.partialorder %v1474, 2.3333333
        %vm2725 = vmand %vm2661, %vm2693
        %vm2726 = vmand %vm2662, %vm2694
        %vm2727 = vmand %vm2663, %vm2695
        %vm2728 = vmand %vm2664, %vm2696
        %vm2729 = vmand %vm2665, %vm2697
        %vm2730 = vmand %vm2666, %vm2698
        %vm2731 = vmand %vm2667, %vm2699
        %vm2732 = vmand %vm2668, %vm2700
        %vm2733 = vmand %vm2669, %vm2701
        %vm2734 = vmand %vm2670, %vm2702
        %vm2735 = vmand %vm2671, %vm2703
        %vm2736 = vmand %vm2672, %vm2704
        %vm2737 = vmand %vm2673, %vm2705
        %vm2738 = vmand %vm2674, %vm2706
        %vm2739 = vmand %vm2675, %vm2707
        %vm2740 = vmand %vm2676, %vm2708
        %vm2741 = vmand %vm2677, %vm2709
        %vm2742 = vmand %vm2678, %vm2710
        %vm2743 = vmand %vm2679, %vm2711
        %vm2744 = vmand %vm2680, %vm2712
        %vm2745 = vmand %vm2681, %vm2713
        %vm2746 = vmand %vm2682, %vm2714
        %vm2747 = vmand %vm2683, %vm2715
        %vm2748 = vmand %vm2684, %vm2716
        %vm2749 = vmand %vm2685, %vm2717
        %vm2750 = vmand %vm2686, %vm2718
        %vm2751 = vmand %vm2687, %vm2719
        %vm2752 = vmand %vm2688, %vm2720
        %vm2753 = vmand %vm2689, %vm2721
        %vm2754 = vmand %vm2690, %vm2722
        %vm2755 = vmand %vm2691, %vm2723
        %vm2756 = vmand %vm2692, %vm2724
        %v2757 = vsel %vm2725, 1, 0
        %v2758 = vsel %vm2726, 1, 0
        %v2759 = vsel %vm2727, 1, 0
        %v2760 = vsel %vm2728, 1, 0
        %v2761 = vsel %vm2729, 1, 0
        %v2762 = vsel %vm2730, 1, 0
        %v2763 = vsel %vm2731, 1, 0
        %v2764 = vsel %vm2732, 1, 0
        %v2765 = vsel %vm2733, 1, 0
        %v2766 = vsel %vm2734, 1, 0
        %v2767 = vsel %vm2735, 1, 0
        %v2768 = vsel %vm2736, 1, 0
        %v2769 = vsel %vm2737, 1, 0
        %v2770 = vsel %vm2738, 1, 0
        %v2771 = vsel %vm2739, 1, 0
        %v2772 = vsel %vm2740, 1, 0
        %v2773 = vsel %vm2741, 1, 0
        %v2774 = vsel %vm2742, 1, 0
        %v2775 = vsel %vm2743, 1, 0
        %v2776 = vsel %vm2744, 1, 0
        %v2777 = vsel %vm2745, 1, 0
        %v2778 = vsel %vm2746, 1, 0
        %v2779 = vsel %vm2747, 1, 0
        %v2780 = vsel %vm2748, 1, 0
        %v2781 = vsel %vm2749, 1, 0
        %v2782 = vsel %vm2750, 1, 0
        %v2783 = vsel %vm2751, 1, 0
        %v2784 = vsel %vm2752, 1, 0
        %v2785 = vsel %vm2753, 1, 0
        %v2786 = vsel %vm2754, 1, 0
        %v2787 = vsel %vm2755, 1, 0
        %v2788 = vsel %vm2756, 1, 0
        %v2789 = vcvt.s32.f32 %v2757
        %v2790 = vcvt.s32.f32 %v2758
        %v2791 = vcvt.s32.f32 %v2759
        %v2792 = vcvt.s32.f32 %v2760
        %v2793 = vcvt.s32.f32 %v2761
        %v2794 = vcvt.s32.f32 %v2762
        %v2795 = vcvt.s32.f32 %v2763
        %v2796 = vcvt.s32.f32 %v2764
        %v2797 = vcvt.s32.f32 %v2765
        %v2798 = vcvt.s32.f32 %v2766
        %v2799 = vcvt.s32.f32 %v2767
        %v2800 = vcvt.s32.f32 %v2768
        %v2801 = vcvt.s32.f32 %v2769
        %v2802 = vcvt.s32.f32 %v2770
        %v2803 = vcvt.s32.f32 %v2771
        %v2804 = vcvt.s32.f32 %v2772
        %v2805 = vcvt.s32.f32 %v2773
        %v2806 = vcvt.s32.f32 %v2774
        %v2807 = vcvt.s32.f32 %v2775
        %v2808 = vcvt.s32.f32 %v2776
        %v2809 = vcvt.s32.f32 %v2777
        %v2810 = vcvt.s32.f32 %v2778
        %v2811 = vcvt.s32.f32 %v2779
        %v2812 = vcvt.s32.f32 %v2780
        %v2813 = vcvt.s32.f32 %v2781
        %v2814 = vcvt.s32.f32 %v2782
        %v2815 = vcvt.s32.f32 %v2783
        %v2816 = vcvt.s32.f32 %v2784
        %v2817 = vcvt.s32.f32 %v2785
        %v2818 = vcvt.s32.f32 %v2786
        %v2819 = vcvt.s32.f32 %v2787
        %v2820 = vcvt.s32.f32 %v2788
        %v2821 = vsub.f32 %v1319, -2.3333333
        %v2822 = vsub.f32 %v1324, -2.3333333
        %v2823 = vsub.f32 %v1329, -2.3333333
        %v2824 = vsub.f32 %v1334, -2.3333333
        %v2825 = vsub.f32 %v1339, -2.3333333
        %v2826 = vsub.f32 %v1344, -2.3333333
        %v2827 = vsub.f32 %v1349, -2.3333333
        %v2828 = vsub.f32 %v1354, -2.3333333
        %v2829 = vsub.f32 %v1359, -2.3333333
        %v2830 = vsub.f32 %v1364, -2.3333333
        %v2831 = vsub.f32 %v1369, -2.3333333
        %v2832 = vsub.f32 %v1374, -2.3333333
        %v2833 = vsub.f32 %v1379, -2.3333333
        %v2834 = vsub.f32 %v1384, -2.3333333
        %v2835 = vsub.f32 %v1389, -2.3333333
        %v2836 = vsub.f32 %v1394, -2.3333333
        %v2837 = vsub.f32 %v1399, -2.3333333
        %v2838 = vsub.f32 %v1404, -2.3333333
        %v2839 = vsub.f32 %v1409, -2.3333333
        %v2840 = vsub.f32 %v1414, -2.3333333
        %v2841 = vsub.f32 %v1419, -2.3333333
        %v2842 = vsub.f32 %v1424, -2.3333333
        %v2843 = vsub.f32 %v1429, -2.3333333
        %v2844 = vsub.f32 %v1434, -2.3333333
        %v2845 = vsub.f32 %v1439, -2.3333333
        %v2846 = vsub.f32 %v1444, -2.3333333
        %v2847 = vsub.f32 %v1449, -2.3333333
        %v2848 = vsub.f32 %v1454, -2.3333333
        %v2849 = vsub.f32 %v1459, -2.3333333
        %v2850 = vsub.f32 %v1464, -2.3333333
        %v2851 = vsub.f32 %v1469, -2.3333333
        %v2852 = vsub.f32 %v1474, -2.3333333
        %v2853 = vmul.f32 %v2821, 1.5
        %v2854 = vmul.f32 %v2822, 1.5
        %v2855 = vmul.f32 %v2823, 1.5
        %v2856 = vmul.f32 %v2824, 1.5
        %v2857 = vmul.f32 %v2825, 1.5
        %v2858 = vmul.f32 %v2826, 1.5
        %v2859 = vmul.f32 %v2827, 1.5
        %v2860 = vmul.f32 %v2828, 1.5
        %v2861 = vmul.f32 %v2829, 1.5
        %v2862 = vmul.f32 %v2830, 1.5
        %v2863 = vmul.f32 %v2831, 1.5
        %v2864 = vmul.f32 %v2832, 1.5
        %v2865 = vmul.f32 %v2833, 1.5
        %v2866 = vmul.f32 %v2834, 1.5
        %v2867 = vmul.f32 %v2835, 1.5
        %v2868 = vmul.f32 %v2836, 1.5
        %v2869 = vmul.f32 %v2837, 1.5
        %v2870 = vmul.f32 %v2838, 1.5
        %v2871 = vmul.f32 %v2839, 1.5
        %v2872 = vmul.f32 %v2840, 1.5
        %v2873 = vmul.f32 %v2841, 1.5
        %v2874 = vmul.f32 %v2842, 1.5
        %v2875 = vmul.f32 %v2843, 1.5
        %v2876 = vmul.f32 %v2844, 1.5
        %v2877 = vmul.f32 %v2845, 1.5
        %v2878 = vmul.f32 %v2846, 1.5
        %v2879 = vmul.f32 %v2847, 1.5
        %v2880 = vmul.f32 %v2848, 1.5
        %v2881 = vmul.f32 %v2849, 1.5
        %v2882 = vmul.f32 %v2850, 1.5
        %v2883 = vmul.f32 %v2851, 1.5
        %v2884 = vmul.f32 %v2852, 1.5
        %v2885 = vmul.f32 %v2853, %v1829
        %v2886 = vmul.f32 %v2854, %v1830
        %v2887 = vmul.f32 %v2855, %v1831
        %v2888 = vmul.f32 %v2856, %v1832
        %v2889 = vmul.f32 %v2857, %v1833
        %v2890 = vmul.f32 %v2858, %v1834
        %v2891 = vmul.f32 %v2859, %v1835
        %v2892 = vmul.f32 %v2860, %v1836
        %v2893 = vmul.f32 %v2861, %v1837
        %v2894 = vmul.f32 %v2862, %v1838
        %v2895 = vmul.f32 %v2863, %v1839
        %v2896 = vmul.f32 %v2864, %v1840
        %v2897 = vmul.f32 %v2865, %v1841
        %v2898 = vmul.f32 %v2866, %v1842
        %v2899 = vmul.f32 %v2867, %v1843
        %v2900 = vmul.f32 %v2868, %v1844
        %v2901 = vmul.f32 %v2869, %v1845
        %v2902 = vmul.f32 %v2870, %v1846
        %v2903 = vmul.f32 %v2871, %v1847
        %v2904 = vmul.f32 %v2872, %v1848
        %v2905 = vmul.f32 %v2873, %v1849
        %v2906 = vmul.f32 %v2874, %v1850
        %v2907 = vmul.f32 %v2875, %v1851
        %v2908 = vmul.f32 %v2876, %v1852
        %v2909 = vmul.f32 %v2877, %v1853
        %v2910 = vmul.f32 %v2878, %v1854
        %v2911 = vmul.f32 %v2879, %v1855
        %v2912 = vmul.f32 %v2880, %v1856
        %v2913 = vmul.f32 %v2881, %v1857
        %v2914 = vmul.f32 %v2882, %v1858
        %v2915 = vmul.f32 %v2883, %v1859
        %v2916 = vmul.f32 %v2884, %v1860
        %v2917 = vsub.f32 -1.0, %v1319
        %v2918 = vsub.f32 -1.0, %v1324
        %v2919 = vsub.f32 -1.0, %v1329
        %v2920 = vsub.f32 -1.0, %v1334
        %v2921 = vsub.f32 -1.0, %v1339
        %v2922 = vsub.f32 -1.0, %v1344
        %v2923 = vsub.f32 -1.0, %v1349
        %v2924 = vsub.f32 -1.0, %v1354
        %v2925 = vsub.f32 -1.0, %v1359
        %v2926 = vsub.f32 -1.0, %v1364
        %v2927 = vsub.f32 -1.0, %v1369
        %v2928 = vsub.f32 -1.0, %v1374
        %v2929 = vsub.f32 -1.0, %v1379
        %v2930 = vsub.f32 -1.0, %v1384
        %v2931 = vsub.f32 -1.0, %v1389
        %v2932 = vsub.f32 -1.0, %v1394
        %v2933 = vsub.f32 -1.0, %v1399
        %v2934 = vsub.f32 -1.0, %v1404
        %v2935 = vsub.f32 -1.0, %v1409
        %v2936 = vsub.f32 -1.0, %v1414
        %v2937 = vsub.f32 -1.0, %v1419
        %v2938 = vsub.f32 -1.0, %v1424
        %v2939 = vsub.f32 -1.0, %v1429
        %v2940 = vsub.f32 -1.0, %v1434
        %v2941 = vsub.f32 -1.0, %v1439
        %v2942 = vsub.f32 -1.0, %v1444
        %v2943 = vsub.f32 -1.0, %v1449
        %v2944 = vsub.f32 -1.0, %v1454
        %v2945 = vsub.f32 -1.0, %v1459
        %v2946 = vsub.f32 -1.0, %v1464
        %v2947 = vsub.f32 -1.0, %v1469
        %v2948 = vsub.f32 -1.0, %v1474
        %v2949 = vmul.f32 %v2917, 1.5
        %v2950 = vmul.f32 %v2918, 1.5
        %v2951 = vmul.f32 %v2919, 1.5
        %v2952 = vmul.f32 %v2920, 1.5
        %v2953 = vmul.f32 %v2921, 1.5
        %v2954 = vmul.f32 %v2922, 1.5
        %v2955 = vmul.f32 %v2923, 1.5
        %v2956 = vmul.f32 %v2924, 1.5
        %v2957 = vmul.f32 %v2925, 1.5
        %v2958 = vmul.f32 %v2926, 1.5
        %v2959 = vmul.f32 %v2927, 1.5
        %v2960 = vmul.f32 %v2928, 1.5
        %v2961 = vmul.f32 %v2929, 1.5
        %v2962 = vmul.f32 %v2930, 1.5
        %v2963 = vmul.f32 %v2931, 1.5
        %v2964 = vmul.f32 %v2932, 1.5
        %v2965 = vmul.f32 %v2933, 1.5
        %v2966 = vmul.f32 %v2934, 1.5
        %v2967 = vmul.f32 %v2935, 1.5
        %v2968 = vmul.f32 %v2936, 1.5
        %v2969 = vmul.f32 %v2937, 1.5
        %v2970 = vmul.f32 %v2938, 1.5
        %v2971 = vmul.f32 %v2939, 1.5
        %v2972 = vmul.f32 %v2940, 1.5
        %v2973 = vmul.f32 %v2941, 1.5
        %v2974 = vmul.f32 %v2942, 1.5
        %v2975 = vmul.f32 %v2943, 1.5
        %v2976 = vmul.f32 %v2944, 1.5
        %v2977 = vmul.f32 %v2945, 1.5
        %v2978 = vmul.f32 %v2946, 1.5
        %v2979 = vmul.f32 %v2947, 1.5
        %v2980 = vmul.f32 %v2948, 1.5
        %v2981 = vmul.f32 %v2949, %v1989
        %v2982 = vmul.f32 %v2950, %v1990
        %v2983 = vmul.f32 %v2951, %v1991
        %v2984 = vmul.f32 %v2952, %v1992
        %v2985 = vmul.f32 %v2953, %v1993
        %v2986 = vmul.f32 %v2954, %v1994
        %v2987 = vmul.f32 %v2955, %v1995
        %v2988 = vmul.f32 %v2956, %v1996
        %v2989 = vmul.f32 %v2957, %v1997
        %v2990 = vmul.f32 %v2958, %v1998
        %v2991 = vmul.f32 %v2959, %v1999
        %v2992 = vmul.f32 %v2960, %v2000
        %v2993 = vmul.f32 %v2961, %v2001
        %v2994 = vmul.f32 %v2962, %v2002
        %v2995 = vmul.f32 %v2963, %v2003
        %v2996 = vmul.f32 %v2964, %v2004
        %v2997 = vmul.f32 %v2965, %v2005
        %v2998 = vmul.f32 %v2966, %v2006
        %v2999 = vmul.f32 %v2967, %v2007
        %v3000 = vmul.f32 %v2968, %v2008
        %v3001 = vmul.f32 %v2969, %v2009
        %v3002 = vmul.f32 %v2970, %v2010
        %v3003 = vmul.f32 %v2971, %v2011
        %v3004 = vmul.f32 %v2972, %v2012
        %v3005 = vmul.f32 %v2973, %v2013
        %v3006 = vmul.f32 %v2974, %v2014
        %v3007 = vmul.f32 %v2975, %v2015
        %v3008 = vmul.f32 %v2976, %v2016
        %v3009 = vmul.f32 %v2977, %v2017
        %v3010 = vmul.f32 %v2978, %v2018
        %v3011 = vmul.f32 %v2979, %v2019
        %v3012 = vmul.f32 %v2980, %v2020
        %v3013 = vadd.f32 %v2885, %v2981
        %v3014 = vadd.f32 %v2886, %v2982
        %v3015 = vadd.f32 %v2887, %v2983
        %v3016 = vadd.f32 %v2888, %v2984
        %v3017 = vadd.f32 %v2889, %v2985
        %v3018 = vadd.f32 %v2890, %v2986
        %v3019 = vadd.f32 %v2891, %v2987
        %v3020 = vadd.f32 %v2892, %v2988
        %v3021 = vadd.f32 %v2893, %v2989
        %v3022 = vadd.f32 %v2894, %v2990
        %v3023 = vadd.f32 %v2895, %v2991
        %v3024 = vadd.f32 %v2896, %v2992
        %v3025 = vadd.f32 %v2897, %v2993
        %v3026 = vadd.f32 %v2898, %v2994
        %v3027 = vadd.f32 %v2899, %v2995
        %v3028 = vadd.f32 %v2900, %v2996
        %v3029 = vadd.f32 %v2901, %v2997
        %v3030 = vadd.f32 %v2902, %v2998
        %v3031 = vadd.f32 %v2903, %v2999
        %v3032 = vadd.f32 %v2904, %v3000
        %v3033 = vadd.f32 %v2905, %v3001
        %v3034 = vadd.f32 %v2906, %v3002
        %v3035 = vadd.f32 %v2907, %v3003
        %v3036 = vadd.f32 %v2908, %v3004
        %v3037 = vadd.f32 %v2909, %v3005
        %v3038 = vadd.f32 %v2910, %v3006
        %v3039 = vadd.f32 %v2911, %v3007
        %v3040 = vadd.f32 %v2912, %v3008
        %v3041 = vadd.f32 %v2913, %v3009
        %v3042 = vadd.f32 %v2914, %v3010
        %v3043 = vadd.f32 %v2915, %v3011
        %v3044 = vadd.f32 %v2916, %v3012
        %v3045 = vsub.f32 %v1319, -1.6666666
        %v3046 = vsub.f32 %v1324, -1.6666666
        %v3047 = vsub.f32 %v1329, -1.6666666
        %v3048 = vsub.f32 %v1334, -1.6666666
        %v3049 = vsub.f32 %v1339, -1.6666666
        %v3050 = vsub.f32 %v1344, -1.6666666
        %v3051 = vsub.f32 %v1349, -1.6666666
        %v3052 = vsub.f32 %v1354, -1.6666666
        %v3053 = vsub.f32 %v1359, -1.6666666
        %v3054 = vsub.f32 %v1364, -1.6666666
        %v3055 = vsub.f32 %v1369, -1.6666666
        %v3056 = vsub.f32 %v1374, -1.6666666
        %v3057 = vsub.f32 %v1379, -1.6666666
        %v3058 = vsub.f32 %v1384, -1.6666666
        %v3059 = vsub.f32 %v1389, -1.6666666
        %v3060 = vsub.f32 %v1394, -1.6666666
        %v3061 = vsub.f32 %v1399, -1.6666666
        %v3062 = vsub.f32 %v1404, -1.6666666
        %v3063 = vsub.f32 %v1409, -1.6666666
        %v3064 = vsub.f32 %v1414, -1.6666666
        %v3065 = vsub.f32 %v1419, -1.6666666
        %v3066 = vsub.f32 %v1424, -1.6666666
        %v3067 = vsub.f32 %v1429, -1.6666666
        %v3068 = vsub.f32 %v1434, -1.6666666
        %v3069 = vsub.f32 %v1439, -1.6666666
        %v3070 = vsub.f32 %v1444, -1.6666666
        %v3071 = vsub.f32 %v1449, -1.6666666
        %v3072 = vsub.f32 %v1454, -1.6666666
        %v3073 = vsub.f32 %v1459, -1.6666666
        %v3074 = vsub.f32 %v1464, -1.6666666
        %v3075 = vsub.f32 %v1469, -1.6666666
        %v3076 = vsub.f32 %v1474, -1.6666666
        %v3077 = vmul.f32 %v3045, 1.5
        %v3078 = vmul.f32 %v3046, 1.5
        %v3079 = vmul.f32 %v3047, 1.5
        %v3080 = vmul.f32 %v3048, 1.5
        %v3081 = vmul.f32 %v3049, 1.5
        %v3082 = vmul.f32 %v3050, 1.5
        %v3083 = vmul.f32 %v3051, 1.5
        %v3084 = vmul.f32 %v3052, 1.5
        %v3085 = vmul.f32 %v3053, 1.5
        %v3086 = vmul.f32 %v3054, 1.5
        %v3087 = vmul.f32 %v3055, 1.5
        %v3088 = vmul.f32 %v3056, 1.5
        %v3089 = vmul.f32 %v3057, 1.5
        %v3090 = vmul.f32 %v3058, 1.5
        %v3091 = vmul.f32 %v3059, 1.5
        %v3092 = vmul.f32 %v3060, 1.5
        %v3093 = vmul.f32 %v3061, 1.5
        %v3094 = vmul.f32 %v3062, 1.5
        %v3095 = vmul.f32 %v3063, 1.5
        %v3096 = vmul.f32 %v3064, 1.5
        %v3097 = vmul.f32 %v3065, 1.5
        %v3098 = vmul.f32 %v3066, 1.5
        %v3099 = vmul.f32 %v3067, 1.5
        %v3100 = vmul.f32 %v3068, 1.5
        %v3101 = vmul.f32 %v3069, 1.5
        %v3102 = vmul.f32 %v3070, 1.5
        %v3103 = vmul.f32 %v3071, 1.5
        %v3104 = vmul.f32 %v3072, 1.5
        %v3105 = vmul.f32 %v3073, 1.5
        %v3106 = vmul.f32 %v3074, 1.5
        %v3107 = vmul.f32 %v3075, 1.5
        %v3108 = vmul.f32 %v3076, 1.5
        %v3109 = vmul.f32 %v3077, %v1989
        %v3110 = vmul.f32 %v3078, %v1990
        %v3111 = vmul.f32 %v3079, %v1991
        %v3112 = vmul.f32 %v3080, %v1992
        %v3113 = vmul.f32 %v3081, %v1993
        %v3114 = vmul.f32 %v3082, %v1994
        %v3115 = vmul.f32 %v3083, %v1995
        %v3116 = vmul.f32 %v3084, %v1996
        %v3117 = vmul.f32 %v3085, %v1997
        %v3118 = vmul.f32 %v3086, %v1998
        %v3119 = vmul.f32 %v3087, %v1999
        %v3120 = vmul.f32 %v3088, %v2000
        %v3121 = vmul.f32 %v3089, %v2001
        %v3122 = vmul.f32 %v3090, %v2002
        %v3123 = vmul.f32 %v3091, %v2003
        %v3124 = vmul.f32 %v3092, %v2004
        %v3125 = vmul.f32 %v3093, %v2005
        %v3126 = vmul.f32 %v3094, %v2006
        %v3127 = vmul.f32 %v3095, %v2007
        %v3128 = vmul.f32 %v3096, %v2008
        %v3129 = vmul.f32 %v3097, %v2009
        %v3130 = vmul.f32 %v3098, %v2010
        %v3131 = vmul.f32 %v3099, %v2011
        %v3132 = vmul.f32 %v3100, %v2012
        %v3133 = vmul.f32 %v3101, %v2013
        %v3134 = vmul.f32 %v3102, %v2014
        %v3135 = vmul.f32 %v3103, %v2015
        %v3136 = vmul.f32 %v3104, %v2016
        %v3137 = vmul.f32 %v3105, %v2017
        %v3138 = vmul.f32 %v3106, %v2018
        %v3139 = vmul.f32 %v3107, %v2019
        %v3140 = vmul.f32 %v3108, %v2020
        %v3141 = vsub.f32 -0.33333334, %v1319
        %v3142 = vsub.f32 -0.33333334, %v1324
        %v3143 = vsub.f32 -0.33333334, %v1329
        %v3144 = vsub.f32 -0.33333334, %v1334
        %v3145 = vsub.f32 -0.33333334, %v1339
        %v3146 = vsub.f32 -0.33333334, %v1344
        %v3147 = vsub.f32 -0.33333334, %v1349
        %v3148 = vsub.f32 -0.33333334, %v1354
        %v3149 = vsub.f32 -0.33333334, %v1359
        %v3150 = vsub.f32 -0.33333334, %v1364
        %v3151 = vsub.f32 -0.33333334, %v1369
        %v3152 = vsub.f32 -0.33333334, %v1374
        %v3153 = vsub.f32 -0.33333334, %v1379
        %v3154 = vsub.f32 -0.33333334, %v1384
        %v3155 = vsub.f32 -0.33333334, %v1389
        %v3156 = vsub.f32 -0.33333334, %v1394
        %v3157 = vsub.f32 -0.33333334, %v1399
        %v3158 = vsub.f32 -0.33333334, %v1404
        %v3159 = vsub.f32 -0.33333334, %v1409
        %v3160 = vsub.f32 -0.33333334, %v1414
        %v3161 = vsub.f32 -0.33333334, %v1419
        %v3162 = vsub.f32 -0.33333334, %v1424
        %v3163 = vsub.f32 -0.33333334, %v1429
        %v3164 = vsub.f32 -0.33333334, %v1434
        %v3165 = vsub.f32 -0.33333334, %v1439
        %v3166 = vsub.f32 -0.33333334, %v1444
        %v3167 = vsub.f32 -0.33333334, %v1449
        %v3168 = vsub.f32 -0.33333334, %v1454
        %v3169 = vsub.f32 -0.33333334, %v1459
        %v3170 = vsub.f32 -0.33333334, %v1464
        %v3171 = vsub.f32 -0.33333334, %v1469
        %v3172 = vsub.f32 -0.33333334, %v1474
        %v3173 = vmul.f32 %v3141, 1.5
        %v3174 = vmul.f32 %v3142, 1.5
        %v3175 = vmul.f32 %v3143, 1.5
        %v3176 = vmul.f32 %v3144, 1.5
        %v3177 = vmul.f32 %v3145, 1.5
        %v3178 = vmul.f32 %v3146, 1.5
        %v3179 = vmul.f32 %v3147, 1.5
        %v3180 = vmul.f32 %v3148, 1.5
        %v3181 = vmul.f32 %v3149, 1.5
        %v3182 = vmul.f32 %v3150, 1.5
        %v3183 = vmul.f32 %v3151, 1.5
        %v3184 = vmul.f32 %v3152, 1.5
        %v3185 = vmul.f32 %v3153, 1.5
        %v3186 = vmul.f32 %v3154, 1.5
        %v3187 = vmul.f32 %v3155, 1.5
        %v3188 = vmul.f32 %v3156, 1.5
        %v3189 = vmul.f32 %v3157, 1.5
        %v3190 = vmul.f32 %v3158, 1.5
        %v3191 = vmul.f32 %v3159, 1.5
        %v3192 = vmul.f32 %v3160, 1.5
        %v3193 = vmul.f32 %v3161, 1.5
        %v3194 = vmul.f32 %v3162, 1.5
        %v3195 = vmul.f32 %v3163, 1.5
        %v3196 = vmul.f32 %v3164, 1.5
        %v3197 = vmul.f32 %v3165, 1.5
        %v3198 = vmul.f32 %v3166, 1.5
        %v3199 = vmul.f32 %v3167, 1.5
        %v3200 = vmul.f32 %v3168, 1.5
        %v3201 = vmul.f32 %v3169, 1.5
        %v3202 = vmul.f32 %v3170, 1.5
        %v3203 = vmul.f32 %v3171, 1.5
        %v3204 = vmul.f32 %v3172, 1.5
        %v3205 = vmul.f32 %v3173, %v2149
        %v3206 = vmul.f32 %v3174, %v2150
        %v3207 = vmul.f32 %v3175, %v2151
        %v3208 = vmul.f32 %v3176, %v2152
        %v3209 = vmul.f32 %v3177, %v2153
        %v3210 = vmul.f32 %v3178, %v2154
        %v3211 = vmul.f32 %v3179, %v2155
        %v3212 = vmul.f32 %v3180, %v2156
        %v3213 = vmul.f32 %v3181, %v2157
        %v3214 = vmul.f32 %v3182, %v2158
        %v3215 = vmul.f32 %v3183, %v2159
        %v3216 = vmul.f32 %v3184, %v2160
        %v3217 = vmul.f32 %v3185, %v2161
        %v3218 = vmul.f32 %v3186, %v2162
        %v3219 = vmul.f32 %v3187, %v2163
        %v3220 = vmul.f32 %v3188, %v2164
        %v3221 = vmul.f32 %v3189, %v2165
        %v3222 = vmul.f32 %v3190, %v2166
        %v3223 = vmul.f32 %v3191, %v2167
        %v3224 = vmul.f32 %v3192, %v2168
        %v3225 = vmul.f32 %v3193, %v2169
        %v3226 = vmul.f32 %v3194, %v2170
        %v3227 = vmul.f32 %v3195, %v2171
        %v3228 = vmul.f32 %v3196, %v2172
        %v3229 = vmul.f32 %v3197, %v2173
        %v3230 = vmul.f32 %v3198, %v2174
        %v3231 = vmul.f32 %v3199, %v2175
        %v3232 = vmul.f32 %v3200, %v2176
        %v3233 = vmul.f32 %v3201, %v2177
        %v3234 = vmul.f32 %v3202, %v2178
        %v3235 = vmul.f32 %v3203, %v2179
        %v3236 = vmul.f32 %v3204, %v2180
        %v3237 = vadd.f32 %v3109, %v3205
        %v3238 = vadd.f32 %v3110, %v3206
        %v3239 = vadd.f32 %v3111, %v3207
        %v3240 = vadd.f32 %v3112, %v3208
        %v3241 = vadd.f32 %v3113, %v3209
        %v3242 = vadd.f32 %v3114, %v3210
        %v3243 = vadd.f32 %v3115, %v3211
        %v3244 = vadd.f32 %v3116, %v3212
        %v3245 = vadd.f32 %v3117, %v3213
        %v3246 = vadd.f32 %v3118, %v3214
        %v3247 = vadd.f32 %v3119, %v3215
        %v3248 = vadd.f32 %v3120, %v3216
        %v3249 = vadd.f32 %v3121, %v3217
        %v3250 = vadd.f32 %v3122, %v3218
        %v3251 = vadd.f32 %v3123, %v3219
        %v3252 = vadd.f32 %v3124, %v3220
        %v3253 = vadd.f32 %v3125, %v3221
        %v3254 = vadd.f32 %v3126, %v3222
        %v3255 = vadd.f32 %v3127, %v3223
        %v3256 = vadd.f32 %v3128, %v3224
        %v3257 = vadd.f32 %v3129, %v3225
        %v3258 = vadd.f32 %v3130, %v3226
        %v3259 = vadd.f32 %v3131, %v3227
        %v3260 = vadd.f32 %v3132, %v3228
        %v3261 = vadd.f32 %v3133, %v3229
        %v3262 = vadd.f32 %v3134, %v3230
        %v3263 = vadd.f32 %v3135, %v3231
        %v3264 = vadd.f32 %v3136, %v3232
        %v3265 = vadd.f32 %v3137, %v3233
        %v3266 = vadd.f32 %v3138, %v3234
        %v3267 = vadd.f32 %v3139, %v3235
        %v3268 = vadd.f32 %v3140, %v3236
        %v3269 = vsub.f32 %v1319, -1.0
        %v3270 = vsub.f32 %v1324, -1.0
        %v3271 = vsub.f32 %v1329, -1.0
        %v3272 = vsub.f32 %v1334, -1.0
        %v3273 = vsub.f32 %v1339, -1.0
        %v3274 = vsub.f32 %v1344, -1.0
        %v3275 = vsub.f32 %v1349, -1.0
        %v3276 = vsub.f32 %v1354, -1.0
        %v3277 = vsub.f32 %v1359, -1.0
        %v3278 = vsub.f32 %v1364, -1.0
        %v3279 = vsub.f32 %v1369, -1.0
        %v3280 = vsub.f32 %v1374, -1.0
        %v3281 = vsub.f32 %v1379, -1.0
        %v3282 = vsub.f32 %v1384, -1.0
        %v3283 = vsub.f32 %v1389, -1.0
        %v3284 = vsub.f32 %v1394, -1.0
        %v3285 = vsub.f32 %v1399, -1.0
        %v3286 = vsub.f32 %v1404, -1.0
        %v3287 = vsub.f32 %v1409, -1.0
        %v3288 = vsub.f32 %v1414, -1.0
        %v3289 = vsub.f32 %v1419, -1.0
        %v3290 = vsub.f32 %v1424, -1.0
        %v3291 = vsub.f32 %v1429, -1.0
        %v3292 = vsub.f32 %v1434, -1.0
        %v3293 = vsub.f32 %v1439, -1.0
        %v3294 = vsub.f32 %v1444, -1.0
        %v3295 = vsub.f32 %v1449, -1.0
        %v3296 = vsub.f32 %v1454, -1.0
        %v3297 = vsub.f32 %v1459, -1.0
        %v3298 = vsub.f32 %v1464, -1.0
        %v3299 = vsub.f32 %v1469, -1.0
        %v3300 = vsub.f32 %v1474, -1.0
        %v3301 = vmul.f32 %v3269, 1.5
        %v3302 = vmul.f32 %v3270, 1.5
        %v3303 = vmul.f32 %v3271, 1.5
        %v3304 = vmul.f32 %v3272, 1.5
        %v3305 = vmul.f32 %v3273, 1.5
        %v3306 = vmul.f32 %v3274, 1.5
        %v3307 = vmul.f32 %v3275, 1.5
        %v3308 = vmul.f32 %v3276, 1.5
        %v3309 = vmul.f32 %v3277, 1.5
        %v3310 = vmul.f32 %v3278, 1.5
        %v3311 = vmul.f32 %v3279, 1.5
        %v3312 = vmul.f32 %v3280, 1.5
        %v3313 = vmul.f32 %v3281, 1.5
        %v3314 = vmul.f32 %v3282, 1.5
        %v3315 = vmul.f32 %v3283, 1.5
        %v3316 = vmul.f32 %v3284, 1.5
        %v3317 = vmul.f32 %v3285, 1.5
        %v3318 = vmul.f32 %v3286, 1.5
        %v3319 = vmul.f32 %v3287, 1.5
        %v3320 = vmul.f32 %v3288, 1.5
        %v3321 = vmul.f32 %v3289, 1.5
        %v3322 = vmul.f32 %v3290, 1.5
        %v3323 = vmul.f32 %v3291, 1.5
        %v3324 = vmul.f32 %v3292, 1.5
        %v3325 = vmul.f32 %v3293, 1.5
        %v3326 = vmul.f32 %v3294, 1.5
        %v3327 = vmul.f32 %v3295, 1.5
        %v3328 = vmul.f32 %v3296, 1.5
        %v3329 = vmul.f32 %v3297, 1.5
        %v3330 = vmul.f32 %v3298, 1.5
        %v3331 = vmul.f32 %v3299, 1.5
        %v3332 = vmul.f32 %v3300, 1.5
        %v3333 = vmul.f32 %v3301, %v2149
        %v3334 = vmul.f32 %v3302, %v2150
        %v3335 = vmul.f32 %v3303, %v2151
        %v3336 = vmul.f32 %v3304, %v2152
        %v3337 = vmul.f32 %v3305, %v2153
        %v3338 = vmul.f32 %v3306, %v2154
        %v3339 = vmul.f32 %v3307, %v2155
        %v3340 = vmul.f32 %v3308, %v2156
        %v3341 = vmul.f32 %v3309, %v2157
        %v3342 = vmul.f32 %v3310, %v2158
        %v3343 = vmul.f32 %v3311, %v2159
        %v3344 = vmul.f32 %v3312, %v2160
        %v3345 = vmul.f32 %v3313, %v2161
        %v3346 = vmul.f32 %v3314, %v2162
        %v3347 = vmul.f32 %v3315, %v2163
        %v3348 = vmul.f32 %v3316, %v2164
        %v3349 = vmul.f32 %v3317, %v2165
        %v3350 = vmul.f32 %v3318, %v2166
        %v3351 = vmul.f32 %v3319, %v2167
        %v3352 = vmul.f32 %v3320, %v2168
        %v3353 = vmul.f32 %v3321, %v2169
        %v3354 = vmul.f32 %v3322, %v2170
        %v3355 = vmul.f32 %v3323, %v2171
        %v3356 = vmul.f32 %v3324, %v2172
        %v3357 = vmul.f32 %v3325, %v2173
        %v3358 = vmul.f32 %v3326, %v2174
        %v3359 = vmul.f32 %v3327, %v2175
        %v3360 = vmul.f32 %v3328, %v2176
        %v3361 = vmul.f32 %v3329, %v2177
        %v3362 = vmul.f32 %v3330, %v2178
        %v3363 = vmul.f32 %v3331, %v2179
        %v3364 = vmul.f32 %v3332, %v2180
        %v3365 = vsub.f32 0.33333334, %v1319
        %v3366 = vsub.f32 0.33333334, %v1324
        %v3367 = vsub.f32 0.33333334, %v1329
        %v3368 = vsub.f32 0.33333334, %v1334
        %v3369 = vsub.f32 0.33333334, %v1339
        %v3370 = vsub.f32 0.33333334, %v1344
        %v3371 = vsub.f32 0.33333334, %v1349
        %v3372 = vsub.f32 0.33333334, %v1354
        %v3373 = vsub.f32 0.33333334, %v1359
        %v3374 = vsub.f32 0.33333334, %v1364
        %v3375 = vsub.f32 0.33333334, %v1369
        %v3376 = vsub.f32 0.33333334, %v1374
        %v3377 = vsub.f32 0.33333334, %v1379
        %v3378 = vsub.f32 0.33333334, %v1384
        %v3379 = vsub.f32 0.33333334, %v1389
        %v3380 = vsub.f32 0.33333334, %v1394
        %v3381 = vsub.f32 0.33333334, %v1399
        %v3382 = vsub.f32 0.33333334, %v1404
        %v3383 = vsub.f32 0.33333334, %v1409
        %v3384 = vsub.f32 0.33333334, %v1414
        %v3385 = vsub.f32 0.33333334, %v1419
        %v3386 = vsub.f32 0.33333334, %v1424
        %v3387 = vsub.f32 0.33333334, %v1429
        %v3388 = vsub.f32 0.33333334, %v1434
        %v3389 = vsub.f32 0.33333334, %v1439
        %v3390 = vsub.f32 0.33333334, %v1444
        %v3391 = vsub.f32 0.33333334, %v1449
        %v3392 = vsub.f32 0.33333334, %v1454
        %v3393 = vsub.f32 0.33333334, %v1459
        %v3394 = vsub.f32 0.33333334, %v1464
        %v3395 = vsub.f32 0.33333334, %v1469
        %v3396 = vsub.f32 0.33333334, %v1474
        %v3397 = vmul.f32 %v3365, 1.5
        %v3398 = vmul.f32 %v3366, 1.5
        %v3399 = vmul.f32 %v3367, 1.5
        %v3400 = vmul.f32 %v3368, 1.5
        %v3401 = vmul.f32 %v3369, 1.5
        %v3402 = vmul.f32 %v3370, 1.5
        %v3403 = vmul.f32 %v3371, 1.5
        %v3404 = vmul.f32 %v3372, 1.5
        %v3405 = vmul.f32 %v3373, 1.5
        %v3406 = vmul.f32 %v3374, 1.5
        %v3407 = vmul.f32 %v3375, 1.5
        %v3408 = vmul.f32 %v3376, 1.5
        %v3409 = vmul.f32 %v3377, 1.5
        %v3410 = vmul.f32 %v3378, 1.5
        %v3411 = vmul.f32 %v3379, 1.5
        %v3412 = vmul.f32 %v3380, 1.5
        %v3413 = vmul.f32 %v3381, 1.5
        %v3414 = vmul.f32 %v3382, 1.5
        %v3415 = vmul.f32 %v3383, 1.5
        %v3416 = vmul.f32 %v3384, 1.5
        %v3417 = vmul.f32 %v3385, 1.5
        %v3418 = vmul.f32 %v3386, 1.5
        %v3419 = vmul.f32 %v3387, 1.5
        %v3420 = vmul.f32 %v3388, 1.5
        %v3421 = vmul.f32 %v3389, 1.5
        %v3422 = vmul.f32 %v3390, 1.5
        %v3423 = vmul.f32 %v3391, 1.5
        %v3424 = vmul.f32 %v3392, 1.5
        %v3425 = vmul.f32 %v3393, 1.5
        %v3426 = vmul.f32 %v3394, 1.5
        %v3427 = vmul.f32 %v3395, 1.5
        %v3428 = vmul.f32 %v3396, 1.5
        %v3429 = vmul.f32 %v3397, %v2309
        %v3430 = vmul.f32 %v3398, %v2310
        %v3431 = vmul.f32 %v3399, %v2311
        %v3432 = vmul.f32 %v3400, %v2312
        %v3433 = vmul.f32 %v3401, %v2313
        %v3434 = vmul.f32 %v3402, %v2314
        %v3435 = vmul.f32 %v3403, %v2315
        %v3436 = vmul.f32 %v3404, %v2316
        %v3437 = vmul.f32 %v3405, %v2317
        %v3438 = vmul.f32 %v3406, %v2318
        %v3439 = vmul.f32 %v3407, %v2319
        %v3440 = vmul.f32 %v3408, %v2320
        %v3441 = vmul.f32 %v3409, %v2321
        %v3442 = vmul.f32 %v3410, %v2322
        %v3443 = vmul.f32 %v3411, %v2323
        %v3444 = vmul.f32 %v3412, %v2324
        %v3445 = vmul.f32 %v3413, %v2325
        %v3446 = vmul.f32 %v3414, %v2326
        %v3447 = vmul.f32 %v3415, %v2327
        %v3448 = vmul.f32 %v3416, %v2328
        %v3449 = vmul.f32 %v3417, %v2329
        %v3450 = vmul.f32 %v3418, %v2330
        %v3451 = vmul.f32 %v3419, %v2331
        %v3452 = vmul.f32 %v3420, %v2332
        %v3453 = vmul.f32 %v3421, %v2333
        %v3454 = vmul.f32 %v3422, %v2334
        %v3455 = vmul.f32 %v3423, %v2335
        %v3456 = vmul.f32 %v3424, %v2336
        %v3457 = vmul.f32 %v3425, %v2337
        %v3458 = vmul.f32 %v3426, %v2338
        %v3459 = vmul.f32 %v3427, %v2339
        %v3460 = vmul.f32 %v3428, %v2340
        %v3461 = vadd.f32 %v3333, %v3429
        %v3462 = vadd.f32 %v3334, %v3430
        %v3463 = vadd.f32 %v3335, %v3431
        %v3464 = vadd.f32 %v3336, %v3432
        %v3465 = vadd.f32 %v3337, %v3433
        %v3466 = vadd.f32 %v3338, %v3434
        %v3467 = vadd.f32 %v3339, %v3435
        %v3468 = vadd.f32 %v3340, %v3436
        %v3469 = vadd.f32 %v3341, %v3437
        %v3470 = vadd.f32 %v3342, %v3438
        %v3471 = vadd.f32 %v3343, %v3439
        %v3472 = vadd.f32 %v3344, %v3440
        %v3473 = vadd.f32 %v3345, %v3441
        %v3474 = vadd.f32 %v3346, %v3442
        %v3475 = vadd.f32 %v3347, %v3443
        %v3476 = vadd.f32 %v3348, %v3444
        %v3477 = vadd.f32 %v3349, %v3445
        %v3478 = vadd.f32 %v3350, %v3446
        %v3479 = vadd.f32 %v3351, %v3447
        %v3480 = vadd.f32 %v3352, %v3448
        %v3481 = vadd.f32 %v3353, %v3449
        %v3482 = vadd.f32 %v3354, %v3450
        %v3483 = vadd.f32 %v3355, %v3451
        %v3484 = vadd.f32 %v3356, %v3452
        %v3485 = vadd.f32 %v3357, %v3453
        %v3486 = vadd.f32 %v3358, %v3454
        %v3487 = vadd.f32 %v3359, %v3455
        %v3488 = vadd.f32 %v3360, %v3456
        %v3489 = vadd.f32 %v3361, %v3457
        %v3490 = vadd.f32 %v3362, %v3458
        %v3491 = vadd.f32 %v3363, %v3459
        %v3492 = vadd.f32 %v3364, %v3460
        %v3493 = vsub.f32 %v1319, -0.33333334
        %v3494 = vsub.f32 %v1324, -0.33333334
        %v3495 = vsub.f32 %v1329, -0.33333334
        %v3496 = vsub.f32 %v1334, -0.33333334
        %v3497 = vsub.f32 %v1339, -0.33333334
        %v3498 = vsub.f32 %v1344, -0.33333334
        %v3499 = vsub.f32 %v1349, -0.33333334
        %v3500 = vsub.f32 %v1354, -0.33333334
        %v3501 = vsub.f32 %v1359, -0.33333334
        %v3502 = vsub.f32 %v1364, -0.33333334
        %v3503 = vsub.f32 %v1369, -0.33333334
        %v3504 = vsub.f32 %v1374, -0.33333334
        %v3505 = vsub.f32 %v1379, -0.33333334
        %v3506 = vsub.f32 %v1384, -0.33333334
        %v3507 = vsub.f32 %v1389, -0.33333334
        %v3508 = vsub.f32 %v1394, -0.33333334
        %v3509 = vsub.f32 %v1399, -0.33333334
        %v3510 = vsub.f32 %v1404, -0.33333334
        %v3511 = vsub.f32 %v1409, -0.33333334
        %v3512 = vsub.f32 %v1414, -0.33333334
        %v3513 = vsub.f32 %v1419, -0.33333334
        %v3514 = vsub.f32 %v1424, -0.33333334
        %v3515 = vsub.f32 %v1429, -0.33333334
        %v3516 = vsub.f32 %v1434, -0.33333334
        %v3517 = vsub.f32 %v1439, -0.33333334
        %v3518 = vsub.f32 %v1444, -0.33333334
        %v3519 = vsub.f32 %v1449, -0.33333334
        %v3520 = vsub.f32 %v1454, -0.33333334
        %v3521 = vsub.f32 %v1459, -0.33333334
        %v3522 = vsub.f32 %v1464, -0.33333334
        %v3523 = vsub.f32 %v1469, -0.33333334
        %v3524 = vsub.f32 %v1474, -0.33333334
        %v3525 = vmul.f32 %v3493, 1.5
        %v3526 = vmul.f32 %v3494, 1.5
        %v3527 = vmul.f32 %v3495, 1.5
        %v3528 = vmul.f32 %v3496, 1.5
        %v3529 = vmul.f32 %v3497, 1.5
        %v3530 = vmul.f32 %v3498, 1.5
        %v3531 = vmul.f32 %v3499, 1.5
        %v3532 = vmul.f32 %v3500, 1.5
        %v3533 = vmul.f32 %v3501, 1.5
        %v3534 = vmul.f32 %v3502, 1.5
        %v3535 = vmul.f32 %v3503, 1.5
        %v3536 = vmul.f32 %v3504, 1.5
        %v3537 = vmul.f32 %v3505, 1.5
        %v3538 = vmul.f32 %v3506, 1.5
        %v3539 = vmul.f32 %v3507, 1.5
        %v3540 = vmul.f32 %v3508, 1.5
        %v3541 = vmul.f32 %v3509, 1.5
        %v3542 = vmul.f32 %v3510, 1.5
        %v3543 = vmul.f32 %v3511, 1.5
        %v3544 = vmul.f32 %v3512, 1.5
        %v3545 = vmul.f32 %v3513, 1.5
        %v3546 = vmul.f32 %v3514, 1.5
        %v3547 = vmul.f32 %v3515, 1.5
        %v3548 = vmul.f32 %v3516, 1.5
        %v3549 = vmul.f32 %v3517, 1.5
        %v3550 = vmul.f32 %v3518, 1.5
        %v3551 = vmul.f32 %v3519, 1.5
        %v3552 = vmul.f32 %v3520, 1.5
        %v3553 = vmul.f32 %v3521, 1.5
        %v3554 = vmul.f32 %v3522, 1.5
        %v3555 = vmul.f32 %v3523, 1.5
        %v3556 = vmul.f32 %v3524, 1.5
        %v3557 = vmul.f32 %v3525, %v2309
        %v3558 = vmul.f32 %v3526, %v2310
        %v3559 = vmul.f32 %v3527, %v2311
        %v3560 = vmul.f32 %v3528, %v2312
        %v3561 = vmul.f32 %v3529, %v2313
        %v3562 = vmul.f32 %v3530, %v2314
        %v3563 = vmul.f32 %v3531, %v2315
        %v3564 = vmul.f32 %v3532, %v2316
        %v3565 = vmul.f32 %v3533, %v2317
        %v3566 = vmul.f32 %v3534, %v2318
        %v3567 = vmul.f32 %v3535, %v2319
        %v3568 = vmul.f32 %v3536, %v2320
        %v3569 = vmul.f32 %v3537, %v2321
        %v3570 = vmul.f32 %v3538, %v2322
        %v3571 = vmul.f32 %v3539, %v2323
        %v3572 = vmul.f32 %v3540, %v2324
        %v3573 = vmul.f32 %v3541, %v2325
        %v3574 = vmul.f32 %v3542, %v2326
        %v3575 = vmul.f32 %v3543, %v2327
        %v3576 = vmul.f32 %v3544, %v2328
        %v3577 = vmul.f32 %v3545, %v2329
        %v3578 = vmul.f32 %v3546, %v2330
        %v3579 = vmul.f32 %v3547, %v2331
        %v3580 = vmul.f32 %v3548, %v2332
        %v3581 = vmul.f32 %v3549, %v2333
        %v3582 = vmul.f32 %v3550, %v2334
        %v3583 = vmul.f32 %v3551, %v2335
        %v3584 = vmul.f32 %v3552, %v2336
        %v3585 = vmul.f32 %v3553, %v2337
        %v3586 = vmul.f32 %v3554, %v2338
        %v3587 = vmul.f32 %v3555, %v2339
        %v3588 = vmul.f32 %v3556, %v2340
        %v3589 = vsub.f32 1.0, %v1319
        %v3590 = vsub.f32 1.0, %v1324
        %v3591 = vsub.f32 1.0, %v1329
        %v3592 = vsub.f32 1.0, %v1334
        %v3593 = vsub.f32 1.0, %v1339
        %v3594 = vsub.f32 1.0, %v1344
        %v3595 = vsub.f32 1.0, %v1349
        %v3596 = vsub.f32 1.0, %v1354
        %v3597 = vsub.f32 1.0, %v1359
        %v3598 = vsub.f32 1.0, %v1364
        %v3599 = vsub.f32 1.0, %v1369
        %v3600 = vsub.f32 1.0, %v1374
        %v3601 = vsub.f32 1.0, %v1379
        %v3602 = vsub.f32 1.0, %v1384
        %v3603 = vsub.f32 1.0, %v1389
        %v3604 = vsub.f32 1.0, %v1394
        %v3605 = vsub.f32 1.0, %v1399
        %v3606 = vsub.f32 1.0, %v1404
        %v3607 = vsub.f32 1.0, %v1409
        %v3608 = vsub.f32 1.0, %v1414
        %v3609 = vsub.f32 1.0, %v1419
        %v3610 = vsub.f32 1.0, %v1424
        %v3611 = vsub.f32 1.0, %v1429
        %v3612 = vsub.f32 1.0, %v1434
        %v3613 = vsub.f32 1.0, %v1439
        %v3614 = vsub.f32 1.0, %v1444
        %v3615 = vsub.f32 1.0, %v1449
        %v3616 = vsub.f32 1.0, %v1454
        %v3617 = vsub.f32 1.0, %v1459
        %v3618 = vsub.f32 1.0, %v1464
        %v3619 = vsub.f32 1.0, %v1469
        %v3620 = vsub.f32 1.0, %v1474
        %v3621 = vmul.f32 %v3589, 1.5
        %v3622 = vmul.f32 %v3590, 1.5
        %v3623 = vmul.f32 %v3591, 1.5
        %v3624 = vmul.f32 %v3592, 1.5
        %v3625 = vmul.f32 %v3593, 1.5
        %v3626 = vmul.f32 %v3594, 1.5
        %v3627 = vmul.f32 %v3595, 1.5
        %v3628 = vmul.f32 %v3596, 1.5
        %v3629 = vmul.f32 %v3597, 1.5
        %v3630 = vmul.f32 %v3598, 1.5
        %v3631 = vmul.f32 %v3599, 1.5
        %v3632 = vmul.f32 %v3600, 1.5
        %v3633 = vmul.f32 %v3601, 1.5
        %v3634 = vmul.f32 %v3602, 1.5
        %v3635 = vmul.f32 %v3603, 1.5
        %v3636 = vmul.f32 %v3604, 1.5
        %v3637 = vmul.f32 %v3605, 1.5
        %v3638 = vmul.f32 %v3606, 1.5
        %v3639 = vmul.f32 %v3607, 1.5
        %v3640 = vmul.f32 %v3608, 1.5
        %v3641 = vmul.f32 %v3609, 1.5
        %v3642 = vmul.f32 %v3610, 1.5
        %v3643 = vmul.f32 %v3611, 1.5
        %v3644 = vmul.f32 %v3612, 1.5
        %v3645 = vmul.f32 %v3613, 1.5
        %v3646 = vmul.f32 %v3614, 1.5
        %v3647 = vmul.f32 %v3615, 1.5
        %v3648 = vmul.f32 %v3616, 1.5
        %v3649 = vmul.f32 %v3617, 1.5
        %v3650 = vmul.f32 %v3618, 1.5
        %v3651 = vmul.f32 %v3619, 1.5
        %v3652 = vmul.f32 %v3620, 1.5
        %v3653 = vmul.f32 %v3621, %v2469
        %v3654 = vmul.f32 %v3622, %v2470
        %v3655 = vmul.f32 %v3623, %v2471
        %v3656 = vmul.f32 %v3624, %v2472
        %v3657 = vmul.f32 %v3625, %v2473
        %v3658 = vmul.f32 %v3626, %v2474
        %v3659 = vmul.f32 %v3627, %v2475
        %v3660 = vmul.f32 %v3628, %v2476
        %v3661 = vmul.f32 %v3629, %v2477
        %v3662 = vmul.f32 %v3630, %v2478
        %v3663 = vmul.f32 %v3631, %v2479
        %v3664 = vmul.f32 %v3632, %v2480
        %v3665 = vmul.f32 %v3633, %v2481
        %v3666 = vmul.f32 %v3634, %v2482
        %v3667 = vmul.f32 %v3635, %v2483
        %v3668 = vmul.f32 %v3636, %v2484
        %v3669 = vmul.f32 %v3637, %v2485
        %v3670 = vmul.f32 %v3638, %v2486
        %v3671 = vmul.f32 %v3639, %v2487
        %v3672 = vmul.f32 %v3640, %v2488
        %v3673 = vmul.f32 %v3641, %v2489
        %v3674 = vmul.f32 %v3642, %v2490
        %v3675 = vmul.f32 %v3643, %v2491
        %v3676 = vmul.f32 %v3644, %v2492
        %v3677 = vmul.f32 %v3645, %v2493
        %v3678 = vmul.f32 %v3646, %v2494
        %v3679 = vmul.f32 %v3647, %v2495
        %v3680 = vmul.f32 %v3648, %v2496
        %v3681 = vmul.f32 %v3649, %v2497
        %v3682 = vmul.f32 %v3650, %v2498
        %v3683 = vmul.f32 %v3651, %v2499
        %v3684 = vmul.f32 %v3652, %v2500
        %v3685 = vadd.f32 %v3557, %v3653
        %v3686 = vadd.f32 %v3558, %v3654
        %v3687 = vadd.f32 %v3559, %v3655
        %v3688 = vadd.f32 %v3560, %v3656
        %v3689 = vadd.f32 %v3561, %v3657
        %v3690 = vadd.f32 %v3562, %v3658
        %v3691 = vadd.f32 %v3563, %v3659
        %v3692 = vadd.f32 %v3564, %v3660
        %v3693 = vadd.f32 %v3565, %v3661
        %v3694 = vadd.f32 %v3566, %v3662
        %v3695 = vadd.f32 %v3567, %v3663
        %v3696 = vadd.f32 %v3568, %v3664
        %v3697 = vadd.f32 %v3569, %v3665
        %v3698 = vadd.f32 %v3570, %v3666
        %v3699 = vadd.f32 %v3571, %v3667
        %v3700 = vadd.f32 %v3572, %v3668
        %v3701 = vadd.f32 %v3573, %v3669
        %v3702 = vadd.f32 %v3574, %v3670
        %v3703 = vadd.f32 %v3575, %v3671
        %v3704 = vadd.f32 %v3576, %v3672
        %v3705 = vadd.f32 %v3577, %v3673
        %v3706 = vadd.f32 %v3578, %v3674
        %v3707 = vadd.f32 %v3579, %v3675
        %v3708 = vadd.f32 %v3580, %v3676
        %v3709 = vadd.f32 %v3581, %v3677
        %v3710 = vadd.f32 %v3582, %v3678
        %v3711 = vadd.f32 %v3583, %v3679
        %v3712 = vadd.f32 %v3584, %v3680
        %v3713 = vadd.f32 %v3585, %v3681
        %v3714 = vadd.f32 %v3586, %v3682
        %v3715 = vadd.f32 %v3587, %v3683
        %v3716 = vadd.f32 %v3588, %v3684
        %v3717 = vsub.f32 %v1319, 0.33333334
        %v3718 = vsub.f32 %v1324, 0.33333334
        %v3719 = vsub.f32 %v1329, 0.33333334
        %v3720 = vsub.f32 %v1334, 0.33333334
        %v3721 = vsub.f32 %v1339, 0.33333334
        %v3722 = vsub.f32 %v1344, 0.33333334
        %v3723 = vsub.f32 %v1349, 0.33333334
        %v3724 = vsub.f32 %v1354, 0.33333334
        %v3725 = vsub.f32 %v1359, 0.33333334
        %v3726 = vsub.f32 %v1364, 0.33333334
        %v3727 = vsub.f32 %v1369, 0.33333334
        %v3728 = vsub.f32 %v1374, 0.33333334
        %v3729 = vsub.f32 %v1379, 0.33333334
        %v3730 = vsub.f32 %v1384, 0.33333334
        %v3731 = vsub.f32 %v1389, 0.33333334
        %v3732 = vsub.f32 %v1394, 0.33333334
        %v3733 = vsub.f32 %v1399, 0.33333334
        %v3734 = vsub.f32 %v1404, 0.33333334
        %v3735 = vsub.f32 %v1409, 0.33333334
        %v3736 = vsub.f32 %v1414, 0.33333334
        %v3737 = vsub.f32 %v1419, 0.33333334
        %v3738 = vsub.f32 %v1424, 0.33333334
        %v3739 = vsub.f32 %v1429, 0.33333334
        %v3740 = vsub.f32 %v1434, 0.33333334
        %v3741 = vsub.f32 %v1439, 0.33333334
        %v3742 = vsub.f32 %v1444, 0.33333334
        %v3743 = vsub.f32 %v1449, 0.33333334
        %v3744 = vsub.f32 %v1454, 0.33333334
        %v3745 = vsub.f32 %v1459, 0.33333334
        %v3746 = vsub.f32 %v1464, 0.33333334
        %v3747 = vsub.f32 %v1469, 0.33333334
        %v3748 = vsub.f32 %v1474, 0.33333334
        %v3749 = vmul.f32 %v3717, 1.5
        %v3750 = vmul.f32 %v3718, 1.5
        %v3751 = vmul.f32 %v3719, 1.5
        %v3752 = vmul.f32 %v3720, 1.5
        %v3753 = vmul.f32 %v3721, 1.5
        %v3754 = vmul.f32 %v3722, 1.5
        %v3755 = vmul.f32 %v3723, 1.5
        %v3756 = vmul.f32 %v3724, 1.5
        %v3757 = vmul.f32 %v3725, 1.5
        %v3758 = vmul.f32 %v3726, 1.5
        %v3759 = vmul.f32 %v3727, 1.5
        %v3760 = vmul.f32 %v3728, 1.5
        %v3761 = vmul.f32 %v3729, 1.5
        %v3762 = vmul.f32 %v3730, 1.5
        %v3763 = vmul.f32 %v3731, 1.5
        %v3764 = vmul.f32 %v3732, 1.5
        %v3765 = vmul.f32 %v3733, 1.5
        %v3766 = vmul.f32 %v3734, 1.5
        %v3767 = vmul.f32 %v3735, 1.5
        %v3768 = vmul.f32 %v3736, 1.5
        %v3769 = vmul.f32 %v3737, 1.5
        %v3770 = vmul.f32 %v3738, 1.5
        %v3771 = vmul.f32 %v3739, 1.5
        %v3772 = vmul.f32 %v3740, 1.5
        %v3773 = vmul.f32 %v3741, 1.5
        %v3774 = vmul.f32 %v3742, 1.5
        %v3775 = vmul.f32 %v3743, 1.5
        %v3776 = vmul.f32 %v3744, 1.5
        %v3777 = vmul.f32 %v3745, 1.5
        %v3778 = vmul.f32 %v3746, 1.5
        %v3779 = vmul.f32 %v3747, 1.5
        %v3780 = vmul.f32 %v3748, 1.5
        %v3781 = vmul.f32 %v3749, %v2469
        %v3782 = vmul.f32 %v3750, %v2470
        %v3783 = vmul.f32 %v3751, %v2471
        %v3784 = vmul.f32 %v3752, %v2472
        %v3785 = vmul.f32 %v3753, %v2473
        %v3786 = vmul.f32 %v3754, %v2474
        %v3787 = vmul.f32 %v3755, %v2475
        %v3788 = vmul.f32 %v3756, %v2476
        %v3789 = vmul.f32 %v3757, %v2477
        %v3790 = vmul.f32 %v3758, %v2478
        %v3791 = vmul.f32 %v3759, %v2479
        %v3792 = vmul.f32 %v3760, %v2480
        %v3793 = vmul.f32 %v3761, %v2481
        %v3794 = vmul.f32 %v3762, %v2482
        %v3795 = vmul.f32 %v3763, %v2483
        %v3796 = vmul.f32 %v3764, %v2484
        %v3797 = vmul.f32 %v3765, %v2485
        %v3798 = vmul.f32 %v3766, %v2486
        %v3799 = vmul.f32 %v3767, %v2487
        %v3800 = vmul.f32 %v3768, %v2488
        %v3801 = vmul.f32 %v3769, %v2489
        %v3802 = vmul.f32 %v3770, %v2490
        %v3803 = vmul.f32 %v3771, %v2491
        %v3804 = vmul.f32 %v3772, %v2492
        %v3805 = vmul.f32 %v3773, %v2493
        %v3806 = vmul.f32 %v3774, %v2494
        %v3807 = vmul.f32 %v3775, %v2495
        %v3808 = vmul.f32 %v3776, %v2496
        %v3809 = vmul.f32 %v3777, %v2497
        %v3810 = vmul.f32 %v3778, %v2498
        %v3811 = vmul.f32 %v3779, %v2499
        %v3812 = vmul.f32 %v3780, %v2500
        %v3813 = vsub.f32 1.6666666, %v1319
        %v3814 = vsub.f32 1.6666666, %v1324
        %v3815 = vsub.f32 1.6666666, %v1329
        %v3816 = vsub.f32 1.6666666, %v1334
        %v3817 = vsub.f32 1.6666666, %v1339
        %v3818 = vsub.f32 1.6666666, %v1344
        %v3819 = vsub.f32 1.6666666, %v1349
        %v3820 = vsub.f32 1.6666666, %v1354
        %v3821 = vsub.f32 1.6666666, %v1359
        %v3822 = vsub.f32 1.6666666, %v1364
        %v3823 = vsub.f32 1.6666666, %v1369
        %v3824 = vsub.f32 1.6666666, %v1374
        %v3825 = vsub.f32 1.6666666, %v1379
        %v3826 = vsub.f32 1.6666666, %v1384
        %v3827 = vsub.f32 1.6666666, %v1389
        %v3828 = vsub.f32 1.6666666, %v1394
        %v3829 = vsub.f32 1.6666666, %v1399
        %v3830 = vsub.f32 1.6666666, %v1404
        %v3831 = vsub.f32 1.6666666, %v1409
        %v3832 = vsub.f32 1.6666666, %v1414
        %v3833 = vsub.f32 1.6666666, %v1419
        %v3834 = vsub.f32 1.6666666, %v1424
        %v3835 = vsub.f32 1.6666666, %v1429
        %v3836 = vsub.f32 1.6666666, %v1434
        %v3837 = vsub.f32 1.6666666, %v1439
        %v3838 = vsub.f32 1.6666666, %v1444
        %v3839 = vsub.f32 1.6666666, %v1449
        %v3840 = vsub.f32 1.6666666, %v1454
        %v3841 = vsub.f32 1.6666666, %v1459
        %v3842 = vsub.f32 1.6666666, %v1464
        %v3843 = vsub.f32 1.6666666, %v1469
        %v3844 = vsub.f32 1.6666666, %v1474
        %v3845 = vmul.f32 %v3813, 1.5
        %v3846 = vmul.f32 %v3814, 1.5
        %v3847 = vmul.f32 %v3815, 1.5
        %v3848 = vmul.f32 %v3816, 1.5
        %v3849 = vmul.f32 %v3817, 1.5
        %v3850 = vmul.f32 %v3818, 1.5
        %v3851 = vmul.f32 %v3819, 1.5
        %v3852 = vmul.f32 %v3820, 1.5
        %v3853 = vmul.f32 %v3821, 1.5
        %v3854 = vmul.f32 %v3822, 1.5
        %v3855 = vmul.f32 %v3823, 1.5
        %v3856 = vmul.f32 %v3824, 1.5
        %v3857 = vmul.f32 %v3825, 1.5
        %v3858 = vmul.f32 %v3826, 1.5
        %v3859 = vmul.f32 %v3827, 1.5
        %v3860 = vmul.f32 %v3828, 1.5
        %v3861 = vmul.f32 %v3829, 1.5
        %v3862 = vmul.f32 %v3830, 1.5
        %v3863 = vmul.f32 %v3831, 1.5
        %v3864 = vmul.f32 %v3832, 1.5
        %v3865 = vmul.f32 %v3833, 1.5
        %v3866 = vmul.f32 %v3834, 1.5
        %v3867 = vmul.f32 %v3835, 1.5
        %v3868 = vmul.f32 %v3836, 1.5
        %v3869 = vmul.f32 %v3837, 1.5
        %v3870 = vmul.f32 %v3838, 1.5
        %v3871 = vmul.f32 %v3839, 1.5
        %v3872 = vmul.f32 %v3840, 1.5
        %v3873 = vmul.f32 %v3841, 1.5
        %v3874 = vmul.f32 %v3842, 1.5
        %v3875 = vmul.f32 %v3843, 1.5
        %v3876 = vmul.f32 %v3844, 1.5
        %v3877 = vmul.f32 %v3845, %v2629
        %v3878 = vmul.f32 %v3846, %v2630
        %v3879 = vmul.f32 %v3847, %v2631
        %v3880 = vmul.f32 %v3848, %v2632
        %v3881 = vmul.f32 %v3849, %v2633
        %v3882 = vmul.f32 %v3850, %v2634
        %v3883 = vmul.f32 %v3851, %v2635
        %v3884 = vmul.f32 %v3852, %v2636
        %v3885 = vmul.f32 %v3853, %v2637
        %v3886 = vmul.f32 %v3854, %v2638
        %v3887 = vmul.f32 %v3855, %v2639
        %v3888 = vmul.f32 %v3856, %v2640
        %v3889 = vmul.f32 %v3857, %v2641
        %v3890 = vmul.f32 %v3858, %v2642
        %v3891 = vmul.f32 %v3859, %v2643
        %v3892 = vmul.f32 %v3860, %v2644
        %v3893 = vmul.f32 %v3861, %v2645
        %v3894 = vmul.f32 %v3862, %v2646
        %v3895 = vmul.f32 %v3863, %v2647
        %v3896 = vmul.f32 %v3864, %v2648
        %v3897 = vmul.f32 %v3865, %v2649
        %v3898 = vmul.f32 %v3866, %v2650
        %v3899 = vmul.f32 %v3867, %v2651
        %v3900 = vmul.f32 %v3868, %v2652
        %v3901 = vmul.f32 %v3869, %v2653
        %v3902 = vmul.f32 %v3870, %v2654
        %v3903 = vmul.f32 %v3871, %v2655
        %v3904 = vmul.f32 %v3872, %v2656
        %v3905 = vmul.f32 %v3873, %v2657
        %v3906 = vmul.f32 %v3874, %v2658
        %v3907 = vmul.f32 %v3875, %v2659
        %v3908 = vmul.f32 %v3876, %v2660
        %v3909 = vadd.f32 %v3781, %v3877
        %v3910 = vadd.f32 %v3782, %v3878
        %v3911 = vadd.f32 %v3783, %v3879
        %v3912 = vadd.f32 %v3784, %v3880
        %v3913 = vadd.f32 %v3785, %v3881
        %v3914 = vadd.f32 %v3786, %v3882
        %v3915 = vadd.f32 %v3787, %v3883
        %v3916 = vadd.f32 %v3788, %v3884
        %v3917 = vadd.f32 %v3789, %v3885
        %v3918 = vadd.f32 %v3790, %v3886
        %v3919 = vadd.f32 %v3791, %v3887
        %v3920 = vadd.f32 %v3792, %v3888
        %v3921 = vadd.f32 %v3793, %v3889
        %v3922 = vadd.f32 %v3794, %v3890
        %v3923 = vadd.f32 %v3795, %v3891
        %v3924 = vadd.f32 %v3796, %v3892
        %v3925 = vadd.f32 %v3797, %v3893
        %v3926 = vadd.f32 %v3798, %v3894
        %v3927 = vadd.f32 %v3799, %v3895
        %v3928 = vadd.f32 %v3800, %v3896
        %v3929 = vadd.f32 %v3801, %v3897
        %v3930 = vadd.f32 %v3802, %v3898
        %v3931 = vadd.f32 %v3803, %v3899
        %v3932 = vadd.f32 %v3804, %v3900
        %v3933 = vadd.f32 %v3805, %v3901
        %v3934 = vadd.f32 %v3806, %v3902
        %v3935 = vadd.f32 %v3807, %v3903
        %v3936 = vadd.f32 %v3808, %v3904
        %v3937 = vadd.f32 %v3809, %v3905
        %v3938 = vadd.f32 %v3810, %v3906
        %v3939 = vadd.f32 %v3811, %v3907
        %v3940 = vadd.f32 %v3812, %v3908
        %v3941 = vsub.f32 %v1319, 1.0
        %v3942 = vsub.f32 %v1324, 1.0
        %v3943 = vsub.f32 %v1329, 1.0
        %v3944 = vsub.f32 %v1334, 1.0
        %v3945 = vsub.f32 %v1339, 1.0
        %v3946 = vsub.f32 %v1344, 1.0
        %v3947 = vsub.f32 %v1349, 1.0
        %v3948 = vsub.f32 %v1354, 1.0
        %v3949 = vsub.f32 %v1359, 1.0
        %v3950 = vsub.f32 %v1364, 1.0
        %v3951 = vsub.f32 %v1369, 1.0
        %v3952 = vsub.f32 %v1374, 1.0
        %v3953 = vsub.f32 %v1379, 1.0
        %v3954 = vsub.f32 %v1384, 1.0
        %v3955 = vsub.f32 %v1389, 1.0
        %v3956 = vsub.f32 %v1394, 1.0
        %v3957 = vsub.f32 %v1399, 1.0
        %v3958 = vsub.f32 %v1404, 1.0
        %v3959 = vsub.f32 %v1409, 1.0
        %v3960 = vsub.f32 %v1414, 1.0
        %v3961 = vsub.f32 %v1419, 1.0
        %v3962 = vsub.f32 %v1424, 1.0
        %v3963 = vsub.f32 %v1429, 1.0
        %v3964 = vsub.f32 %v1434, 1.0
        %v3965 = vsub.f32 %v1439, 1.0
        %v3966 = vsub.f32 %v1444, 1.0
        %v3967 = vsub.f32 %v1449, 1.0
        %v3968 = vsub.f32 %v1454, 1.0
        %v3969 = vsub.f32 %v1459, 1.0
        %v3970 = vsub.f32 %v1464, 1.0
        %v3971 = vsub.f32 %v1469, 1.0
        %v3972 = vsub.f32 %v1474, 1.0
        %v3973 = vmul.f32 %v3941, 1.5
        %v3974 = vmul.f32 %v3942, 1.5
        %v3975 = vmul.f32 %v3943, 1.5
        %v3976 = vmul.f32 %v3944, 1.5
        %v3977 = vmul.f32 %v3945, 1.5
        %v3978 = vmul.f32 %v3946, 1.5
        %v3979 = vmul.f32 %v3947, 1.5
        %v3980 = vmul.f32 %v3948, 1.5
        %v3981 = vmul.f32 %v3949, 1.5
        %v3982 = vmul.f32 %v3950, 1.5
        %v3983 = vmul.f32 %v3951, 1.5
        %v3984 = vmul.f32 %v3952, 1.5
        %v3985 = vmul.f32 %v3953, 1.5
        %v3986 = vmul.f32 %v3954, 1.5
        %v3987 = vmul.f32 %v3955, 1.5
        %v3988 = vmul.f32 %v3956, 1.5
        %v3989 = vmul.f32 %v3957, 1.5
        %v3990 = vmul.f32 %v3958, 1.5
        %v3991 = vmul.f32 %v3959, 1.5
        %v3992 = vmul.f32 %v3960, 1.5
        %v3993 = vmul.f32 %v3961, 1.5
        %v3994 = vmul.f32 %v3962, 1.5
        %v3995 = vmul.f32 %v3963, 1.5
        %v3996 = vmul.f32 %v3964, 1.5
        %v3997 = vmul.f32 %v3965, 1.5
        %v3998 = vmul.f32 %v3966, 1.5
        %v3999 = vmul.f32 %v3967, 1.5
        %v4000 = vmul.f32 %v3968, 1.5
        %v4001 = vmul.f32 %v3969, 1.5
        %v4002 = vmul.f32 %v3970, 1.5
        %v4003 = vmul.f32 %v3971, 1.5
        %v4004 = vmul.f32 %v3972, 1.5
        %v4005 = vmul.f32 %v3973, %v2629
        %v4006 = vmul.f32 %v3974, %v2630
        %v4007 = vmul.f32 %v3975, %v2631
        %v4008 = vmul.f32 %v3976, %v2632
        %v4009 = vmul.f32 %v3977, %v2633
        %v4010 = vmul.f32 %v3978, %v2634
        %v4011 = vmul.f32 %v3979, %v2635
        %v4012 = vmul.f32 %v3980, %v2636
        %v4013 = vmul.f32 %v3981, %v2637
        %v4014 = vmul.f32 %v3982, %v2638
        %v4015 = vmul.f32 %v3983, %v2639
        %v4016 = vmul.f32 %v3984, %v2640
        %v4017 = vmul.f32 %v3985, %v2641
        %v4018 = vmul.f32 %v3986, %v2642
        %v4019 = vmul.f32 %v3987, %v2643
        %v4020 = vmul.f32 %v3988, %v2644
        %v4021 = vmul.f32 %v3989, %v2645
        %v4022 = vmul.f32 %v3990, %v2646
        %v4023 = vmul.f32 %v3991, %v2647
        %v4024 = vmul.f32 %v3992, %v2648
        %v4025 = vmul.f32 %v3993, %v2649
        %v4026 = vmul.f32 %v3994, %v2650
        %v4027 = vmul.f32 %v3995, %v2651
        %v4028 = vmul.f32 %v3996, %v2652
        %v4029 = vmul.f32 %v3997, %v2653
        %v4030 = vmul.f32 %v3998, %v2654
        %v4031 = vmul.f32 %v3999, %v2655
        %v4032 = vmul.f32 %v4000, %v2656
        %v4033 = vmul.f32 %v4001, %v2657
        %v4034 = vmul.f32 %v4002, %v2658
        %v4035 = vmul.f32 %v4003, %v2659
        %v4036 = vmul.f32 %v4004, %v2660
        %v4037 = vsub.f32 2.3333333, %v1319
        %v4038 = vsub.f32 2.3333333, %v1324
        %v4039 = vsub.f32 2.3333333, %v1329
        %v4040 = vsub.f32 2.3333333, %v1334
        %v4041 = vsub.f32 2.3333333, %v1339
        %v4042 = vsub.f32 2.3333333, %v1344
        %v4043 = vsub.f32 2.3333333, %v1349
        %v4044 = vsub.f32 2.3333333, %v1354
        %v4045 = vsub.f32 2.3333333, %v1359
        %v4046 = vsub.f32 2.3333333, %v1364
        %v4047 = vsub.f32 2.3333333, %v1369
        %v4048 = vsub.f32 2.3333333, %v1374
        %v4049 = vsub.f32 2.3333333, %v1379
        %v4050 = vsub.f32 2.3333333, %v1384
        %v4051 = vsub.f32 2.3333333, %v1389
        %v4052 = vsub.f32 2.3333333, %v1394
        %v4053 = vsub.f32 2.3333333, %v1399
        %v4054 = vsub.f32 2.3333333, %v1404
        %v4055 = vsub.f32 2.3333333, %v1409
        %v4056 = vsub.f32 2.3333333, %v1414
        %v4057 = vsub.f32 2.3333333, %v1419
        %v4058 = vsub.f32 2.3333333, %v1424
        %v4059 = vsub.f32 2.3333333, %v1429
        %v4060 = vsub.f32 2.3333333, %v1434
        %v4061 = vsub.f32 2.3333333, %v1439
        %v4062 = vsub.f32 2.3333333, %v1444
        %v4063 = vsub.f32 2.3333333, %v1449
        %v4064 = vsub.f32 2.3333333, %v1454
        %v4065 = vsub.f32 2.3333333, %v1459
        %v4066 = vsub.f32 2.3333333, %v1464
        %v4067 = vsub.f32 2.3333333, %v1469
        %v4068 = vsub.f32 2.3333333, %v1474
        %v4069 = vmul.f32 %v4037, 1.5
        %v4070 = vmul.f32 %v4038, 1.5
        %v4071 = vmul.f32 %v4039, 1.5
        %v4072 = vmul.f32 %v4040, 1.5
        %v4073 = vmul.f32 %v4041, 1.5
        %v4074 = vmul.f32 %v4042, 1.5
        %v4075 = vmul.f32 %v4043, 1.5
        %v4076 = vmul.f32 %v4044, 1.5
        %v4077 = vmul.f32 %v4045, 1.5
        %v4078 = vmul.f32 %v4046, 1.5
        %v4079 = vmul.f32 %v4047, 1.5
        %v4080 = vmul.f32 %v4048, 1.5
        %v4081 = vmul.f32 %v4049, 1.5
        %v4082 = vmul.f32 %v4050, 1.5
        %v4083 = vmul.f32 %v4051, 1.5
        %v4084 = vmul.f32 %v4052, 1.5
        %v4085 = vmul.f32 %v4053, 1.5
        %v4086 = vmul.f32 %v4054, 1.5
        %v4087 = vmul.f32 %v4055, 1.5
        %v4088 = vmul.f32 %v4056, 1.5
        %v4089 = vmul.f32 %v4057, 1.5
        %v4090 = vmul.f32 %v4058, 1.5
        %v4091 = vmul.f32 %v4059, 1.5
        %v4092 = vmul.f32 %v4060, 1.5
        %v4093 = vmul.f32 %v4061, 1.5
        %v4094 = vmul.f32 %v4062, 1.5
        %v4095 = vmul.f32 %v4063, 1.5
        %v4096 = vmul.f32 %v4064, 1.5
        %v4097 = vmul.f32 %v4065, 1.5
        %v4098 = vmul.f32 %v4066, 1.5
        %v4099 = vmul.f32 %v4067, 1.5
        %v4100 = vmul.f32 %v4068, 1.5
        %v4101 = vmul.f32 %v4069, %v2789
        %v4102 = vmul.f32 %v4070, %v2790
        %v4103 = vmul.f32 %v4071, %v2791
        %v4104 = vmul.f32 %v4072, %v2792
        %v4105 = vmul.f32 %v4073, %v2793
        %v4106 = vmul.f32 %v4074, %v2794
        %v4107 = vmul.f32 %v4075, %v2795
        %v4108 = vmul.f32 %v4076, %v2796
        %v4109 = vmul.f32 %v4077, %v2797
        %v4110 = vmul.f32 %v4078, %v2798
        %v4111 = vmul.f32 %v4079, %v2799
        %v4112 = vmul.f32 %v4080, %v2800
        %v4113 = vmul.f32 %v4081, %v2801
        %v4114 = vmul.f32 %v4082, %v2802
        %v4115 = vmul.f32 %v4083, %v2803
        %v4116 = vmul.f32 %v4084, %v2804
        %v4117 = vmul.f32 %v4085, %v2805
        %v4118 = vmul.f32 %v4086, %v2806
        %v4119 = vmul.f32 %v4087, %v2807
        %v4120 = vmul.f32 %v4088, %v2808
        %v4121 = vmul.f32 %v4089, %v2809
        %v4122 = vmul.f32 %v4090, %v2810
        %v4123 = vmul.f32 %v4091, %v2811
        %v4124 = vmul.f32 %v4092, %v2812
        %v4125 = vmul.f32 %v4093, %v2813
        %v4126 = vmul.f32 %v4094, %v2814
        %v4127 = vmul.f32 %v4095, %v2815
        %v4128 = vmul.f32 %v4096, %v2816
        %v4129 = vmul.f32 %v4097, %v2817
        %v4130 = vmul.f32 %v4098, %v2818
        %v4131 = vmul.f32 %v4099, %v2819
        %v4132 = vmul.f32 %v4100, %v2820
        %v4133 = vadd.f32 %v4005, %v4101
        %v4134 = vadd.f32 %v4006, %v4102
        %v4135 = vadd.f32 %v4007, %v4103
        %v4136 = vadd.f32 %v4008, %v4104
        %v4137 = vadd.f32 %v4009, %v4105
        %v4138 = vadd.f32 %v4010, %v4106
        %v4139 = vadd.f32 %v4011, %v4107
        %v4140 = vadd.f32 %v4012, %v4108
        %v4141 = vadd.f32 %v4013, %v4109
        %v4142 = vadd.f32 %v4014, %v4110
        %v4143 = vadd.f32 %v4015, %v4111
        %v4144 = vadd.f32 %v4016, %v4112
        %v4145 = vadd.f32 %v4017, %v4113
        %v4146 = vadd.f32 %v4018, %v4114
        %v4147 = vadd.f32 %v4019, %v4115
        %v4148 = vadd.f32 %v4020, %v4116
        %v4149 = vadd.f32 %v4021, %v4117
        %v4150 = vadd.f32 %v4022, %v4118
        %v4151 = vadd.f32 %v4023, %v4119
        %v4152 = vadd.f32 %v4024, %v4120
        %v4153 = vadd.f32 %v4025, %v4121
        %v4154 = vadd.f32 %v4026, %v4122
        %v4155 = vadd.f32 %v4027, %v4123
        %v4156 = vadd.f32 %v4028, %v4124
        %v4157 = vadd.f32 %v4029, %v4125
        %v4158 = vadd.f32 %v4030, %v4126
        %v4159 = vadd.f32 %v4031, %v4127
        %v4160 = vadd.f32 %v4032, %v4128
        %v4161 = vadd.f32 %v4033, %v4129
        %v4162 = vadd.f32 %v4034, %v4130
        %v4163 = vadd.f32 %v4035, %v4131
        %v4164 = vadd.f32 %v4036, %v4132
        %v4165 = vmul.f32 %v2821, 0.75
        %v4166 = vmul.f32 %v2822, 0.75
        %v4167 = vmul.f32 %v2823, 0.75
        %v4168 = vmul.f32 %v2824, 0.75
        %v4169 = vmul.f32 %v2825, 0.75
        %v4170 = vmul.f32 %v2826, 0.75
        %v4171 = vmul.f32 %v2827, 0.75
        %v4172 = vmul.f32 %v2828, 0.75
        %v4173 = vmul.f32 %v2829, 0.75
        %v4174 = vmul.f32 %v2830, 0.75
        %v4175 = vmul.f32 %v2831, 0.75
        %v4176 = vmul.f32 %v2832, 0.75
        %v4177 = vmul.f32 %v2833, 0.75
        %v4178 = vmul.f32 %v2834, 0.75
        %v4179 = vmul.f32 %v2835, 0.75
        %v4180 = vmul.f32 %v2836, 0.75
        %v4181 = vmul.f32 %v2837, 0.75
        %v4182 = vmul.f32 %v2838, 0.75
        %v4183 = vmul.f32 %v2839, 0.75
        %v4184 = vmul.f32 %v2840, 0.75
        %v4185 = vmul.f32 %v2841, 0.75
        %v4186 = vmul.f32 %v2842, 0.75
        %v4187 = vmul.f32 %v2843, 0.75
        %v4188 = vmul.f32 %v2844, 0.75
        %v4189 = vmul.f32 %v2845, 0.75
        %v4190 = vmul.f32 %v2846, 0.75
        %v4191 = vmul.f32 %v2847, 0.75
        %v4192 = vmul.f32 %v2848, 0.75
        %v4193 = vmul.f32 %v2849, 0.75
        %v4194 = vmul.f32 %v2850, 0.75
        %v4195 = vmul.f32 %v2851, 0.75
        %v4196 = vmul.f32 %v2852, 0.75
        %v4197 = vmul.f32 %v4165, %v3013
        %v4198 = vmul.f32 %v4166, %v3014
        %v4199 = vmul.f32 %v4167, %v3015
        %v4200 = vmul.f32 %v4168, %v3016
        %v4201 = vmul.f32 %v4169, %v3017
        %v4202 = vmul.f32 %v4170, %v3018
        %v4203 = vmul.f32 %v4171, %v3019
        %v4204 = vmul.f32 %v4172, %v3020
        %v4205 = vmul.f32 %v4173, %v3021
        %v4206 = vmul.f32 %v4174, %v3022
        %v4207 = vmul.f32 %v4175, %v3023
        %v4208 = vmul.f32 %v4176, %v3024
        %v4209 = vmul.f32 %v4177, %v3025
        %v4210 = vmul.f32 %v4178, %v3026
        %v4211 = vmul.f32 %v4179, %v3027
        %v4212 = vmul.f32 %v4180, %v3028
        %v4213 = vmul.f32 %v4181, %v3029
        %v4214 = vmul.f32 %v4182, %v3030
        %v4215 = vmul.f32 %v4183, %v3031
        %v4216 = vmul.f32 %v4184, %v3032
        %v4217 = vmul.f32 %v4185, %v3033
        %v4218 = vmul.f32 %v4186, %v3034
        %v4219 = vmul.f32 %v4187, %v3035
        %v4220 = vmul.f32 %v4188, %v3036
        %v4221 = vmul.f32 %v4189, %v3037
        %v4222 = vmul.f32 %v4190, %v3038
        %v4223 = vmul.f32 %v4191, %v3039
        %v4224 = vmul.f32 %v4192, %v3040
        %v4225 = vmul.f32 %v4193, %v3041
        %v4226 = vmul.f32 %v4194, %v3042
        %v4227 = vmul.f32 %v4195, %v3043
        %v4228 = vmul.f32 %v4196, %v3044
        %v4229 = vmul.f32 %v3141, 0.75
        %v4230 = vmul.f32 %v3142, 0.75
        %v4231 = vmul.f32 %v3143, 0.75
        %v4232 = vmul.f32 %v3144, 0.75
        %v4233 = vmul.f32 %v3145, 0.75
        %v4234 = vmul.f32 %v3146, 0.75
        %v4235 = vmul.f32 %v3147, 0.75
        %v4236 = vmul.f32 %v3148, 0.75
        %v4237 = vmul.f32 %v3149, 0.75
        %v4238 = vmul.f32 %v3150, 0.75
        %v4239 = vmul.f32 %v3151, 0.75
        %v4240 = vmul.f32 %v3152, 0.75
        %v4241 = vmul.f32 %v3153, 0.75
        %v4242 = vmul.f32 %v3154, 0.75
        %v4243 = vmul.f32 %v3155, 0.75
        %v4244 = vmul.f32 %v3156, 0.75
        %v4245 = vmul.f32 %v3157, 0.75
        %v4246 = vmul.f32 %v3158, 0.75
        %v4247 = vmul.f32 %v3159, 0.75
        %v4248 = vmul.f32 %v3160, 0.75
        %v4249 = vmul.f32 %v3161, 0.75
        %v4250 = vmul.f32 %v3162, 0.75
        %v4251 = vmul.f32 %v3163, 0.75
        %v4252 = vmul.f32 %v3164, 0.75
        %v4253 = vmul.f32 %v3165, 0.75
        %v4254 = vmul.f32 %v3166, 0.75
        %v4255 = vmul.f32 %v3167, 0.75
        %v4256 = vmul.f32 %v3168, 0.75
        %v4257 = vmul.f32 %v3169, 0.75
        %v4258 = vmul.f32 %v3170, 0.75
        %v4259 = vmul.f32 %v3171, 0.75
        %v4260 = vmul.f32 %v3172, 0.75
        %v4261 = vmul.f32 %v4229, %v3237
        %v4262 = vmul.f32 %v4230, %v3238
        %v4263 = vmul.f32 %v4231, %v3239
        %v4264 = vmul.f32 %v4232, %v3240
        %v4265 = vmul.f32 %v4233, %v3241
        %v4266 = vmul.f32 %v4234, %v3242
        %v4267 = vmul.f32 %v4235, %v3243
        %v4268 = vmul.f32 %v4236, %v3244
        %v4269 = vmul.f32 %v4237, %v3245
        %v4270 = vmul.f32 %v4238, %v3246
        %v4271 = vmul.f32 %v4239, %v3247
        %v4272 = vmul.f32 %v4240, %v3248
        %v4273 = vmul.f32 %v4241, %v3249
        %v4274 = vmul.f32 %v4242, %v3250
        %v4275 = vmul.f32 %v4243, %v3251
        %v4276 = vmul.f32 %v4244, %v3252
        %v4277 = vmul.f32 %v4245, %v3253
        %v4278 = vmul.f32 %v4246, %v3254
        %v4279 = vmul.f32 %v4247, %v3255
        %v4280 = vmul.f32 %v4248, %v3256
        %v4281 = vmul.f32 %v4249, %v3257
        %v4282 = vmul.f32 %v4250, %v3258
        %v4283 = vmul.f32 %v4251, %v3259
        %v4284 = vmul.f32 %v4252, %v3260
        %v4285 = vmul.f32 %v4253, %v3261
        %v4286 = vmul.f32 %v4254, %v3262
        %v4287 = vmul.f32 %v4255, %v3263
        %v4288 = vmul.f32 %v4256, %v3264
        %v4289 = vmul.f32 %v4257, %v3265
        %v4290 = vmul.f32 %v4258, %v3266
        %v4291 = vmul.f32 %v4259, %v3267
        %v4292 = vmul.f32 %v4260, %v3268
        %v4293 = vadd.f32 %v4197, %v4261
        %v4294 = vadd.f32 %v4198, %v4262
        %v4295 = vadd.f32 %v4199, %v4263
        %v4296 = vadd.f32 %v4200, %v4264
        %v4297 = vadd.f32 %v4201, %v4265
        %v4298 = vadd.f32 %v4202, %v4266
        %v4299 = vadd.f32 %v4203, %v4267
        %v4300 = vadd.f32 %v4204, %v4268
        %v4301 = vadd.f32 %v4205, %v4269
        %v4302 = vadd.f32 %v4206, %v4270
        %v4303 = vadd.f32 %v4207, %v4271
        %v4304 = vadd.f32 %v4208, %v4272
        %v4305 = vadd.f32 %v4209, %v4273
        %v4306 = vadd.f32 %v4210, %v4274
        %v4307 = vadd.f32 %v4211, %v4275
        %v4308 = vadd.f32 %v4212, %v4276
        %v4309 = vadd.f32 %v4213, %v4277
        %v4310 = vadd.f32 %v4214, %v4278
        %v4311 = vadd.f32 %v4215, %v4279
        %v4312 = vadd.f32 %v4216, %v4280
        %v4313 = vadd.f32 %v4217, %v4281
        %v4314 = vadd.f32 %v4218, %v4282
        %v4315 = vadd.f32 %v4219, %v4283
        %v4316 = vadd.f32 %v4220, %v4284
        %v4317 = vadd.f32 %v4221, %v4285
        %v4318 = vadd.f32 %v4222, %v4286
        %v4319 = vadd.f32 %v4223, %v4287
        %v4320 = vadd.f32 %v4224, %v4288
        %v4321 = vadd.f32 %v4225, %v4289
        %v4322 = vadd.f32 %v4226, %v4290
        %v4323 = vadd.f32 %v4227, %v4291
        %v4324 = vadd.f32 %v4228, %v4292
        %v4325 = vmul.f32 %v3045, 0.75
        %v4326 = vmul.f32 %v3046, 0.75
        %v4327 = vmul.f32 %v3047, 0.75
        %v4328 = vmul.f32 %v3048, 0.75
        %v4329 = vmul.f32 %v3049, 0.75
        %v4330 = vmul.f32 %v3050, 0.75
        %v4331 = vmul.f32 %v3051, 0.75
        %v4332 = vmul.f32 %v3052, 0.75
        %v4333 = vmul.f32 %v3053, 0.75
        %v4334 = vmul.f32 %v3054, 0.75
        %v4335 = vmul.f32 %v3055, 0.75
        %v4336 = vmul.f32 %v3056, 0.75
        %v4337 = vmul.f32 %v3057, 0.75
        %v4338 = vmul.f32 %v3058, 0.75
        %v4339 = vmul.f32 %v3059, 0.75
        %v4340 = vmul.f32 %v3060, 0.75
        %v4341 = vmul.f32 %v3061, 0.75
        %v4342 = vmul.f32 %v3062, 0.75
        %v4343 = vmul.f32 %v3063, 0.75
        %v4344 = vmul.f32 %v3064, 0.75
        %v4345 = vmul.f32 %v3065, 0.75
        %v4346 = vmul.f32 %v3066, 0.75
        %v4347 = vmul.f32 %v3067, 0.75
        %v4348 = vmul.f32 %v3068, 0.75
        %v4349 = vmul.f32 %v3069, 0.75
        %v4350 = vmul.f32 %v3070, 0.75
        %v4351 = vmul.f32 %v3071, 0.75
        %v4352 = vmul.f32 %v3072, 0.75
        %v4353 = vmul.f32 %v3073, 0.75
        %v4354 = vmul.f32 %v3074, 0.75
        %v4355 = vmul.f32 %v3075, 0.75
        %v4356 = vmul.f32 %v3076, 0.75
        %v4357 = vmul.f32 %v4325, %v3237
        %v4358 = vmul.f32 %v4326, %v3238
        %v4359 = vmul.f32 %v4327, %v3239
        %v4360 = vmul.f32 %v4328, %v3240
        %v4361 = vmul.f32 %v4329, %v3241
        %v4362 = vmul.f32 %v4330, %v3242
        %v4363 = vmul.f32 %v4331, %v3243
        %v4364 = vmul.f32 %v4332, %v3244
        %v4365 = vmul.f32 %v4333, %v3245
        %v4366 = vmul.f32 %v4334, %v3246
        %v4367 = vmul.f32 %v4335, %v3247
        %v4368 = vmul.f32 %v4336, %v3248
        %v4369 = vmul.f32 %v4337, %v3249
        %v4370 = vmul.f32 %v4338, %v3250
        %v4371 = vmul.f32 %v4339, %v3251
        %v4372 = vmul.f32 %v4340, %v3252
        %v4373 = vmul.f32 %v4341, %v3253
        %v4374 = vmul.f32 %v4342, %v3254
        %v4375 = vmul.f32 %v4343, %v3255
        %v4376 = vmul.f32 %v4344, %v3256
        %v4377 = vmul.f32 %v4345, %v3257
        %v4378 = vmul.f32 %v4346, %v3258
        %v4379 = vmul.f32 %v4347, %v3259
        %v4380 = vmul.f32 %v4348, %v3260
        %v4381 = vmul.f32 %v4349, %v3261
        %v4382 = vmul.f32 %v4350, %v3262
        %v4383 = vmul.f32 %v4351, %v3263
        %v4384 = vmul.f32 %v4352, %v3264
        %v4385 = vmul.f32 %v4353, %v3265
        %v4386 = vmul.f32 %v4354, %v3266
        %v4387 = vmul.f32 %v4355, %v3267
        %v4388 = vmul.f32 %v4356, %v3268
        %v4389 = vmul.f32 %v3365, 0.75
        %v4390 = vmul.f32 %v3366, 0.75
        %v4391 = vmul.f32 %v3367, 0.75
        %v4392 = vmul.f32 %v3368, 0.75
        %v4393 = vmul.f32 %v3369, 0.75
        %v4394 = vmul.f32 %v3370, 0.75
        %v4395 = vmul.f32 %v3371, 0.75
        %v4396 = vmul.f32 %v3372, 0.75
        %v4397 = vmul.f32 %v3373, 0.75
        %v4398 = vmul.f32 %v3374, 0.75
        %v4399 = vmul.f32 %v3375, 0.75
        %v4400 = vmul.f32 %v3376, 0.75
        %v4401 = vmul.f32 %v3377, 0.75
        %v4402 = vmul.f32 %v3378, 0.75
        %v4403 = vmul.f32 %v3379, 0.75
        %v4404 = vmul.f32 %v3380, 0.75
        %v4405 = vmul.f32 %v3381, 0.75
        %v4406 = vmul.f32 %v3382, 0.75
        %v4407 = vmul.f32 %v3383, 0.75
        %v4408 = vmul.f32 %v3384, 0.75
        %v4409 = vmul.f32 %v3385, 0.75
        %v4410 = vmul.f32 %v3386, 0.75
        %v4411 = vmul.f32 %v3387, 0.75
        %v4412 = vmul.f32 %v3388, 0.75
        %v4413 = vmul.f32 %v3389, 0.75
        %v4414 = vmul.f32 %v3390, 0.75
        %v4415 = vmul.f32 %v3391, 0.75
        %v4416 = vmul.f32 %v3392, 0.75
        %v4417 = vmul.f32 %v3393, 0.75
        %v4418 = vmul.f32 %v3394, 0.75
        %v4419 = vmul.f32 %v3395, 0.75
        %v4420 = vmul.f32 %v3396, 0.75
        %v4421 = vmul.f32 %v4389, %v3461
        %v4422 = vmul.f32 %v4390, %v3462
        %v4423 = vmul.f32 %v4391, %v3463
        %v4424 = vmul.f32 %v4392, %v3464
        %v4425 = vmul.f32 %v4393, %v3465
        %v4426 = vmul.f32 %v4394, %v3466
        %v4427 = vmul.f32 %v4395, %v3467
        %v4428 = vmul.f32 %v4396, %v3468
        %v4429 = vmul.f32 %v4397, %v3469
        %v4430 = vmul.f32 %v4398, %v3470
        %v4431 = vmul.f32 %v4399, %v3471
        %v4432 = vmul.f32 %v4400, %v3472
        %v4433 = vmul.f32 %v4401, %v3473
        %v4434 = vmul.f32 %v4402, %v3474
        %v4435 = vmul.f32 %v4403, %v3475
        %v4436 = vmul.f32 %v4404, %v3476
        %v4437 = vmul.f32 %v4405, %v3477
        %v4438 = vmul.f32 %v4406, %v3478
        %v4439 = vmul.f32 %v4407, %v3479
        %v4440 = vmul.f32 %v4408, %v3480
        %v4441 = vmul.f32 %v4409, %v3481
        %v4442 = vmul.f32 %v4410, %v3482
        %v4443 = vmul.f32 %v4411, %v3483
        %v4444 = vmul.f32 %v4412, %v3484
        %v4445 = vmul.f32 %v4413, %v3485
        %v4446 = vmul.f32 %v4414, %v3486
        %v4447 = vmul.f32 %v4415, %v3487
        %v4448 = vmul.f32 %v4416, %v3488
        %v4449 = vmul.f32 %v4417, %v3489
        %v4450 = vmul.f32 %v4418, %v3490
        %v4451 = vmul.f32 %v4419, %v3491
        %v4452 = vmul.f32 %v4420, %v3492
        %v4453 = vadd.f32 %v4357, %v4421
        %v4454 = vadd.f32 %v4358, %v4422
        %v4455 = vadd.f32 %v4359, %v4423
        %v4456 = vadd.f32 %v4360, %v4424
        %v4457 = vadd.f32 %v4361, %v4425
        %v4458 = vadd.f32 %v4362, %v4426
        %v4459 = vadd.f32 %v4363, %v4427
        %v4460 = vadd.f32 %v4364, %v4428
        %v4461 = vadd.f32 %v4365, %v4429
        %v4462 = vadd.f32 %v4366, %v4430
        %v4463 = vadd.f32 %v4367, %v4431
        %v4464 = vadd.f32 %v4368, %v4432
        %v4465 = vadd.f32 %v4369, %v4433
        %v4466 = vadd.f32 %v4370, %v4434
        %v4467 = vadd.f32 %v4371, %v4435
        %v4468 = vadd.f32 %v4372, %v4436
        %v4469 = vadd.f32 %v4373, %v4437
        %v4470 = vadd.f32 %v4374, %v4438
        %v4471 = vadd.f32 %v4375, %v4439
        %v4472 = vadd.f32 %v4376, %v4440
        %v4473 = vadd.f32 %v4377, %v4441
        %v4474 = vadd.f32 %v4378, %v4442
        %v4475 = vadd.f32 %v4379, %v4443
        %v4476 = vadd.f32 %v4380, %v4444
        %v4477 = vadd.f32 %v4381, %v4445
        %v4478 = vadd.f32 %v4382, %v4446
        %v4479 = vadd.f32 %v4383, %v4447
        %v4480 = vadd.f32 %v4384, %v4448
        %v4481 = vadd.f32 %v4385, %v4449
        %v4482 = vadd.f32 %v4386, %v4450
        %v4483 = vadd.f32 %v4387, %v4451
        %v4484 = vadd.f32 %v4388, %v4452
        %v4485 = vmul.f32 %v3269, 0.75
        %v4486 = vmul.f32 %v3270, 0.75
        %v4487 = vmul.f32 %v3271, 0.75
        %v4488 = vmul.f32 %v3272, 0.75
        %v4489 = vmul.f32 %v3273, 0.75
        %v4490 = vmul.f32 %v3274, 0.75
        %v4491 = vmul.f32 %v3275, 0.75
        %v4492 = vmul.f32 %v3276, 0.75
        %v4493 = vmul.f32 %v3277, 0.75
        %v4494 = vmul.f32 %v3278, 0.75
        %v4495 = vmul.f32 %v3279, 0.75
        %v4496 = vmul.f32 %v3280, 0.75
        %v4497 = vmul.f32 %v3281, 0.75
        %v4498 = vmul.f32 %v3282, 0.75
        %v4499 = vmul.f32 %v3283, 0.75
        %v4500 = vmul.f32 %v3284, 0.75
        %v4501 = vmul.f32 %v3285, 0.75
        %v4502 = vmul.f32 %v3286, 0.75
        %v4503 = vmul.f32 %v3287, 0.75
        %v4504 = vmul.f32 %v3288, 0.75
        %v4505 = vmul.f32 %v3289, 0.75
        %v4506 = vmul.f32 %v3290, 0.75
        %v4507 = vmul.f32 %v3291, 0.75
        %v4508 = vmul.f32 %v3292, 0.75
        %v4509 = vmul.f32 %v3293, 0.75
        %v4510 = vmul.f32 %v3294, 0.75
        %v4511 = vmul.f32 %v3295, 0.75
        %v4512 = vmul.f32 %v3296, 0.75
        %v4513 = vmul.f32 %v3297, 0.75
        %v4514 = vmul.f32 %v3298, 0.75
        %v4515 = vmul.f32 %v3299, 0.75
        %v4516 = vmul.f32 %v3300, 0.75
        %v4517 = vmul.f32 %v4485, %v3461
        %v4518 = vmul.f32 %v4486, %v3462
        %v4519 = vmul.f32 %v4487, %v3463
        %v4520 = vmul.f32 %v4488, %v3464
        %v4521 = vmul.f32 %v4489, %v3465
        %v4522 = vmul.f32 %v4490, %v3466
        %v4523 = vmul.f32 %v4491, %v3467
        %v4524 = vmul.f32 %v4492, %v3468
        %v4525 = vmul.f32 %v4493, %v3469
        %v4526 = vmul.f32 %v4494, %v3470
        %v4527 = vmul.f32 %v4495, %v3471
        %v4528 = vmul.f32 %v4496, %v3472
        %v4529 = vmul.f32 %v4497, %v3473
        %v4530 = vmul.f32 %v4498, %v3474
        %v4531 = vmul.f32 %v4499, %v3475
        %v4532 = vmul.f32 %v4500, %v3476
        %v4533 = vmul.f32 %v4501, %v3477
        %v4534 = vmul.f32 %v4502, %v3478
        %v4535 = vmul.f32 %v4503, %v3479
        %v4536 = vmul.f32 %v4504, %v3480
        %v4537 = vmul.f32 %v4505, %v3481
        %v4538 = vmul.f32 %v4506, %v3482
        %v4539 = vmul.f32 %v4507, %v3483
        %v4540 = vmul.f32 %v4508, %v3484
        %v4541 = vmul.f32 %v4509, %v3485
        %v4542 = vmul.f32 %v4510, %v3486
        %v4543 = vmul.f32 %v4511, %v3487
        %v4544 = vmul.f32 %v4512, %v3488
        %v4545 = vmul.f32 %v4513, %v3489
        %v4546 = vmul.f32 %v4514, %v3490
        %v4547 = vmul.f32 %v4515, %v3491
        %v4548 = vmul.f32 %v4516, %v3492
        %v4549 = vmul.f32 %v3589, 0.75
        %v4550 = vmul.f32 %v3590, 0.75
        %v4551 = vmul.f32 %v3591, 0.75
        %v4552 = vmul.f32 %v3592, 0.75
        %v4553 = vmul.f32 %v3593, 0.75
        %v4554 = vmul.f32 %v3594, 0.75
        %v4555 = vmul.f32 %v3595, 0.75
        %v4556 = vmul.f32 %v3596, 0.75
        %v4557 = vmul.f32 %v3597, 0.75
        %v4558 = vmul.f32 %v3598, 0.75
        %v4559 = vmul.f32 %v3599, 0.75
        %v4560 = vmul.f32 %v3600, 0.75
        %v4561 = vmul.f32 %v3601, 0.75
        %v4562 = vmul.f32 %v3602, 0.75
        %v4563 = vmul.f32 %v3603, 0.75
        %v4564 = vmul.f32 %v3604, 0.75
        %v4565 = vmul.f32 %v3605, 0.75
        %v4566 = vmul.f32 %v3606, 0.75
        %v4567 = vmul.f32 %v3607, 0.75
        %v4568 = vmul.f32 %v3608, 0.75
        %v4569 = vmul.f32 %v3609, 0.75
        %v4570 = vmul.f32 %v3610, 0.75
        %v4571 = vmul.f32 %v3611, 0.75
        %v4572 = vmul.f32 %v3612, 0.75
        %v4573 = vmul.f32 %v3613, 0.75
        %v4574 = vmul.f32 %v3614, 0.75
        %v4575 = vmul.f32 %v3615, 0.75
        %v4576 = vmul.f32 %v3616, 0.75
        %v4577 = vmul.f32 %v3617, 0.75
        %v4578 = vmul.f32 %v3618, 0.75
        %v4579 = vmul.f32 %v3619, 0.75
        %v4580 = vmul.f32 %v3620, 0.75
        %v4581 = vmul.f32 %v4549, %v3685
        %v4582 = vmul.f32 %v4550, %v3686
        %v4583 = vmul.f32 %v4551, %v3687
        %v4584 = vmul.f32 %v4552, %v3688
        %v4585 = vmul.f32 %v4553, %v3689
        %v4586 = vmul.f32 %v4554, %v3690
        %v4587 = vmul.f32 %v4555, %v3691
        %v4588 = vmul.f32 %v4556, %v3692
        %v4589 = vmul.f32 %v4557, %v3693
        %v4590 = vmul.f32 %v4558, %v3694
        %v4591 = vmul.f32 %v4559, %v3695
        %v4592 = vmul.f32 %v4560, %v3696
        %v4593 = vmul.f32 %v4561, %v3697
        %v4594 = vmul.f32 %v4562, %v3698
        %v4595 = vmul.f32 %v4563, %v3699
        %v4596 = vmul.f32 %v4564, %v3700
        %v4597 = vmul.f32 %v4565, %v3701
        %v4598 = vmul.f32 %v4566, %v3702
        %v4599 = vmul.f32 %v4567, %v3703
        %v4600 = vmul.f32 %v4568, %v3704
        %v4601 = vmul.f32 %v4569, %v3705
        %v4602 = vmul.f32 %v4570, %v3706
        %v4603 = vmul.f32 %v4571, %v3707
        %v4604 = vmul.f32 %v4572, %v3708
        %v4605 = vmul.f32 %v4573, %v3709
        %v4606 = vmul.f32 %v4574, %v3710
        %v4607 = vmul.f32 %v4575, %v3711
        %v4608 = vmul.f32 %v4576, %v3712
        %v4609 = vmul.f32 %v4577, %v3713
        %v4610 = vmul.f32 %v4578, %v3714
        %v4611 = vmul.f32 %v4579, %v3715
        %v4612 = vmul.f32 %v4580, %v3716
        %v4613 = vadd.f32 %v4517, %v4581
        %v4614 = vadd.f32 %v4518, %v4582
        %v4615 = vadd.f32 %v4519, %v4583
        %v4616 = vadd.f32 %v4520, %v4584
        %v4617 = vadd.f32 %v4521, %v4585
        %v4618 = vadd.f32 %v4522, %v4586
        %v4619 = vadd.f32 %v4523, %v4587
        %v4620 = vadd.f32 %v4524, %v4588
        %v4621 = vadd.f32 %v4525, %v4589
        %v4622 = vadd.f32 %v4526, %v4590
        %v4623 = vadd.f32 %v4527, %v4591
        %v4624 = vadd.f32 %v4528, %v4592
        %v4625 = vadd.f32 %v4529, %v4593
        %v4626 = vadd.f32 %v4530, %v4594
        %v4627 = vadd.f32 %v4531, %v4595
        %v4628 = vadd.f32 %v4532, %v4596
        %v4629 = vadd.f32 %v4533, %v4597
        %v4630 = vadd.f32 %v4534, %v4598
        %v4631 = vadd.f32 %v4535, %v4599
        %v4632 = vadd.f32 %v4536, %v4600
        %v4633 = vadd.f32 %v4537, %v4601
        %v4634 = vadd.f32 %v4538, %v4602
        %v4635 = vadd.f32 %v4539, %v4603
        %v4636 = vadd.f32 %v4540, %v4604
        %v4637 = vadd.f32 %v4541, %v4605
        %v4638 = vadd.f32 %v4542, %v4606
        %v4639 = vadd.f32 %v4543, %v4607
        %v4640 = vadd.f32 %v4544, %v4608
        %v4641 = vadd.f32 %v4545, %v4609
        %v4642 = vadd.f32 %v4546, %v4610
        %v4643 = vadd.f32 %v4547, %v4611
        %v4644 = vadd.f32 %v4548, %v4612
        %v4645 = vmul.f32 %v3493, 0.75
        %v4646 = vmul.f32 %v3494, 0.75
        %v4647 = vmul.f32 %v3495, 0.75
        %v4648 = vmul.f32 %v3496, 0.75
        %v4649 = vmul.f32 %v3497, 0.75
        %v4650 = vmul.f32 %v3498, 0.75
        %v4651 = vmul.f32 %v3499, 0.75
        %v4652 = vmul.f32 %v3500, 0.75
        %v4653 = vmul.f32 %v3501, 0.75
        %v4654 = vmul.f32 %v3502, 0.75
        %v4655 = vmul.f32 %v3503, 0.75
        %v4656 = vmul.f32 %v3504, 0.75
        %v4657 = vmul.f32 %v3505, 0.75
        %v4658 = vmul.f32 %v3506, 0.75
        %v4659 = vmul.f32 %v3507, 0.75
        %v4660 = vmul.f32 %v3508, 0.75
        %v4661 = vmul.f32 %v3509, 0.75
        %v4662 = vmul.f32 %v3510, 0.75
        %v4663 = vmul.f32 %v3511, 0.75
        %v4664 = vmul.f32 %v3512, 0.75
        %v4665 = vmul.f32 %v3513, 0.75
        %v4666 = vmul.f32 %v3514, 0.75
        %v4667 = vmul.f32 %v3515, 0.75
        %v4668 = vmul.f32 %v3516, 0.75
        %v4669 = vmul.f32 %v3517, 0.75
        %v4670 = vmul.f32 %v3518, 0.75
        %v4671 = vmul.f32 %v3519, 0.75
        %v4672 = vmul.f32 %v3520, 0.75
        %v4673 = vmul.f32 %v3521, 0.75
        %v4674 = vmul.f32 %v3522, 0.75
        %v4675 = vmul.f32 %v3523, 0.75
        %v4676 = vmul.f32 %v3524, 0.75
        %v4677 = vmul.f32 %v4645, %v3685
        %v4678 = vmul.f32 %v4646, %v3686
        %v4679 = vmul.f32 %v4647, %v3687
        %v4680 = vmul.f32 %v4648, %v3688
        %v4681 = vmul.f32 %v4649, %v3689
        %v4682 = vmul.f32 %v4650, %v3690
        %v4683 = vmul.f32 %v4651, %v3691
        %v4684 = vmul.f32 %v4652, %v3692
        %v4685 = vmul.f32 %v4653, %v3693
        %v4686 = vmul.f32 %v4654, %v3694
        %v4687 = vmul.f32 %v4655, %v3695
        %v4688 = vmul.f32 %v4656, %v3696
        %v4689 = vmul.f32 %v4657, %v3697
        %v4690 = vmul.f32 %v4658, %v3698
        %v4691 = vmul.f32 %v4659, %v3699
        %v4692 = vmul.f32 %v4660, %v3700
        %v4693 = vmul.f32 %v4661, %v3701
        %v4694 = vmul.f32 %v4662, %v3702
        %v4695 = vmul.f32 %v4663, %v3703
        %v4696 = vmul.f32 %v4664, %v3704
        %v4697 = vmul.f32 %v4665, %v3705
        %v4698 = vmul.f32 %v4666, %v3706
        %v4699 = vmul.f32 %v4667, %v3707
        %v4700 = vmul.f32 %v4668, %v3708
        %v4701 = vmul.f32 %v4669, %v3709
        %v4702 = vmul.f32 %v4670, %v3710
        %v4703 = vmul.f32 %v4671, %v3711
        %v4704 = vmul.f32 %v4672, %v3712
        %v4705 = vmul.f32 %v4673, %v3713
        %v4706 = vmul.f32 %v4674, %v3714
        %v4707 = vmul.f32 %v4675, %v3715
        %v4708 = vmul.f32 %v4676, %v3716
        %v4709 = vmul.f32 %v3813, 0.75
        %v4710 = vmul.f32 %v3814, 0.75
        %v4711 = vmul.f32 %v3815, 0.75
        %v4712 = vmul.f32 %v3816, 0.75
        %v4713 = vmul.f32 %v3817, 0.75
        %v4714 = vmul.f32 %v3818, 0.75
        %v4715 = vmul.f32 %v3819, 0.75
        %v4716 = vmul.f32 %v3820, 0.75
        %v4717 = vmul.f32 %v3821, 0.75
        %v4718 = vmul.f32 %v3822, 0.75
        %v4719 = vmul.f32 %v3823, 0.75
        %v4720 = vmul.f32 %v3824, 0.75
        %v4721 = vmul.f32 %v3825, 0.75
        %v4722 = vmul.f32 %v3826, 0.75
        %v4723 = vmul.f32 %v3827, 0.75
        %v4724 = vmul.f32 %v3828, 0.75
        %v4725 = vmul.f32 %v3829, 0.75
        %v4726 = vmul.f32 %v3830, 0.75
        %v4727 = vmul.f32 %v3831, 0.75
        %v4728 = vmul.f32 %v3832, 0.75
        %v4729 = vmul.f32 %v3833, 0.75
        %v4730 = vmul.f32 %v3834, 0.75
        %v4731 = vmul.f32 %v3835, 0.75
        %v4732 = vmul.f32 %v3836, 0.75
        %v4733 = vmul.f32 %v3837, 0.75
        %v4734 = vmul.f32 %v3838, 0.75
        %v4735 = vmul.f32 %v3839, 0.75
        %v4736 = vmul.f32 %v3840, 0.75
        %v4737 = vmul.f32 %v3841, 0.75
        %v4738 = vmul.f32 %v3842, 0.75
        %v4739 = vmul.f32 %v3843, 0.75
        %v4740 = vmul.f32 %v3844, 0.75
        %v4741 = vmul.f32 %v4709, %v3909
        %v4742 = vmul.f32 %v4710, %v3910
        %v4743 = vmul.f32 %v4711, %v3911
        %v4744 = vmul.f32 %v4712, %v3912
        %v4745 = vmul.f32 %v4713, %v3913
        %v4746 = vmul.f32 %v4714, %v3914
        %v4747 = vmul.f32 %v4715, %v3915
        %v4748 = vmul.f32 %v4716, %v3916
        %v4749 = vmul.f32 %v4717, %v3917
        %v4750 = vmul.f32 %v4718, %v3918
        %v4751 = vmul.f32 %v4719, %v3919
        %v4752 = vmul.f32 %v4720, %v3920
        %v4753 = vmul.f32 %v4721, %v3921
        %v4754 = vmul.f32 %v4722, %v3922
        %v4755 = vmul.f32 %v4723, %v3923
        %v4756 = vmul.f32 %v4724, %v3924
        %v4757 = vmul.f32 %v4725, %v3925
        %v4758 = vmul.f32 %v4726, %v3926
        %v4759 = vmul.f32 %v4727, %v3927
        %v4760 = vmul.f32 %v4728, %v3928
        %v4761 = vmul.f32 %v4729, %v3929
        %v4762 = vmul.f32 %v4730, %v3930
        %v4763 = vmul.f32 %v4731, %v3931
        %v4764 = vmul.f32 %v4732, %v3932
        %v4765 = vmul.f32 %v4733, %v3933
        %v4766 = vmul.f32 %v4734, %v3934
        %v4767 = vmul.f32 %v4735, %v3935
        %v4768 = vmul.f32 %v4736, %v3936
        %v4769 = vmul.f32 %v4737, %v3937
        %v4770 = vmul.f32 %v4738, %v3938
        %v4771 = vmul.f32 %v4739, %v3939
        %v4772 = vmul.f32 %v4740, %v3940
        %v4773 = vadd.f32 %v4677, %v4741
        %v4774 = vadd.f32 %v4678, %v4742
        %v4775 = vadd.f32 %v4679, %v4743
        %v4776 = vadd.f32 %v4680, %v4744
        %v4777 = vadd.f32 %v4681, %v4745
        %v4778 = vadd.f32 %v4682, %v4746
        %v4779 = vadd.f32 %v4683, %v4747
        %v4780 = vadd.f32 %v4684, %v4748
        %v4781 = vadd.f32 %v4685, %v4749
        %v4782 = vadd.f32 %v4686, %v4750
        %v4783 = vadd.f32 %v4687, %v4751
        %v4784 = vadd.f32 %v4688, %v4752
        %v4785 = vadd.f32 %v4689, %v4753
        %v4786 = vadd.f32 %v4690, %v4754
        %v4787 = vadd.f32 %v4691, %v4755
        %v4788 = vadd.f32 %v4692, %v4756
        %v4789 = vadd.f32 %v4693, %v4757
        %v4790 = vadd.f32 %v4694, %v4758
        %v4791 = vadd.f32 %v4695, %v4759
        %v4792 = vadd.f32 %v4696, %v4760
        %v4793 = vadd.f32 %v4697, %v4761
        %v4794 = vadd.f32 %v4698, %v4762
        %v4795 = vadd.f32 %v4699, %v4763
        %v4796 = vadd.f32 %v4700, %v4764
        %v4797 = vadd.f32 %v4701, %v4765
        %v4798 = vadd.f32 %v4702, %v4766
        %v4799 = vadd.f32 %v4703, %v4767
        %v4800 = vadd.f32 %v4704, %v4768
        %v4801 = vadd.f32 %v4705, %v4769
        %v4802 = vadd.f32 %v4706, %v4770
        %v4803 = vadd.f32 %v4707, %v4771
        %v4804 = vadd.f32 %v4708, %v4772
        %v4805 = vmul.f32 %v3717, 0.75
        %v4806 = vmul.f32 %v3718, 0.75
        %v4807 = vmul.f32 %v3719, 0.75
        %v4808 = vmul.f32 %v3720, 0.75
        %v4809 = vmul.f32 %v3721, 0.75
        %v4810 = vmul.f32 %v3722, 0.75
        %v4811 = vmul.f32 %v3723, 0.75
        %v4812 = vmul.f32 %v3724, 0.75
        %v4813 = vmul.f32 %v3725, 0.75
        %v4814 = vmul.f32 %v3726, 0.75
        %v4815 = vmul.f32 %v3727, 0.75
        %v4816 = vmul.f32 %v3728, 0.75
        %v4817 = vmul.f32 %v3729, 0.75
        %v4818 = vmul.f32 %v3730, 0.75
        %v4819 = vmul.f32 %v3731, 0.75
        %v4820 = vmul.f32 %v3732, 0.75
        %v4821 = vmul.f32 %v3733, 0.75
        %v4822 = vmul.f32 %v3734, 0.75
        %v4823 = vmul.f32 %v3735, 0.75
        %v4824 = vmul.f32 %v3736, 0.75
        %v4825 = vmul.f32 %v3737, 0.75
        %v4826 = vmul.f32 %v3738, 0.75
        %v4827 = vmul.f32 %v3739, 0.75
        %v4828 = vmul.f32 %v3740, 0.75
        %v4829 = vmul.f32 %v3741, 0.75
        %v4830 = vmul.f32 %v3742, 0.75
        %v4831 = vmul.f32 %v3743, 0.75
        %v4832 = vmul.f32 %v3744, 0.75
        %v4833 = vmul.f32 %v3745, 0.75
        %v4834 = vmul.f32 %v3746, 0.75
        %v4835 = vmul.f32 %v3747, 0.75
        %v4836 = vmul.f32 %v3748, 0.75
        %v4837 = vmul.f32 %v4805, %v3909
        %v4838 = vmul.f32 %v4806, %v3910
        %v4839 = vmul.f32 %v4807, %v3911
        %v4840 = vmul.f32 %v4808, %v3912
        %v4841 = vmul.f32 %v4809, %v3913
        %v4842 = vmul.f32 %v4810, %v3914
        %v4843 = vmul.f32 %v4811, %v3915
        %v4844 = vmul.f32 %v4812, %v3916
        %v4845 = vmul.f32 %v4813, %v3917
        %v4846 = vmul.f32 %v4814, %v3918
        %v4847 = vmul.f32 %v4815, %v3919
        %v4848 = vmul.f32 %v4816, %v3920
        %v4849 = vmul.f32 %v4817, %v3921
        %v4850 = vmul.f32 %v4818, %v3922
        %v4851 = vmul.f32 %v4819, %v3923
        %v4852 = vmul.f32 %v4820, %v3924
        %v4853 = vmul.f32 %v4821, %v3925
        %v4854 = vmul.f32 %v4822, %v3926
        %v4855 = vmul.f32 %v4823, %v3927
        %v4856 = vmul.f32 %v4824, %v3928
        %v4857 = vmul.f32 %v4825, %v3929
        %v4858 = vmul.f32 %v4826, %v3930
        %v4859 = vmul.f32 %v4827, %v3931
        %v4860 = vmul.f32 %v4828, %v3932
        %v4861 = vmul.f32 %v4829, %v3933
        %v4862 = vmul.f32 %v4830, %v3934
        %v4863 = vmul.f32 %v4831, %v3935
        %v4864 = vmul.f32 %v4832, %v3936
        %v4865 = vmul.f32 %v4833, %v3937
        %v4866 = vmul.f32 %v4834, %v3938
        %v4867 = vmul.f32 %v4835, %v3939
        %v4868 = vmul.f32 %v4836, %v3940
        %v4869 = vmul.f32 %v4037, 0.75
        %v4870 = vmul.f32 %v4038, 0.75
        %v4871 = vmul.f32 %v4039, 0.75
        %v4872 = vmul.f32 %v4040, 0.75
        %v4873 = vmul.f32 %v4041, 0.75
        %v4874 = vmul.f32 %v4042, 0.75
        %v4875 = vmul.f32 %v4043, 0.75
        %v4876 = vmul.f32 %v4044, 0.75
        %v4877 = vmul.f32 %v4045, 0.75
        %v4878 = vmul.f32 %v4046, 0.75
        %v4879 = vmul.f32 %v4047, 0.75
        %v4880 = vmul.f32 %v4048, 0.75
        %v4881 = vmul.f32 %v4049, 0.75
        %v4882 = vmul.f32 %v4050, 0.75
        %v4883 = vmul.f32 %v4051, 0.75
        %v4884 = vmul.f32 %v4052, 0.75
        %v4885 = vmul.f32 %v4053, 0.75
        %v4886 = vmul.f32 %v4054, 0.75
        %v4887 = vmul.f32 %v4055, 0.75
        %v4888 = vmul.f32 %v4056, 0.75
        %v4889 = vmul.f32 %v4057, 0.75
        %v4890 = vmul.f32 %v4058, 0.75
        %v4891 = vmul.f32 %v4059, 0.75
        %v4892 = vmul.f32 %v4060, 0.75
        %v4893 = vmul.f32 %v4061, 0.75
        %v4894 = vmul.f32 %v4062, 0.75
        %v4895 = vmul.f32 %v4063, 0.75
        %v4896 = vmul.f32 %v4064, 0.75
        %v4897 = vmul.f32 %v4065, 0.75
        %v4898 = vmul.f32 %v4066, 0.75
        %v4899 = vmul.f32 %v4067, 0.75
        %v4900 = vmul.f32 %v4068, 0.75
        %v4901 = vmul.f32 %v4869, %v4133
        %v4902 = vmul.f32 %v4870, %v4134
        %v4903 = vmul.f32 %v4871, %v4135
        %v4904 = vmul.f32 %v4872, %v4136
        %v4905 = vmul.f32 %v4873, %v4137
        %v4906 = vmul.f32 %v4874, %v4138
        %v4907 = vmul.f32 %v4875, %v4139
        %v4908 = vmul.f32 %v4876, %v4140
        %v4909 = vmul.f32 %v4877, %v4141
        %v4910 = vmul.f32 %v4878, %v4142
        %v4911 = vmul.f32 %v4879, %v4143
        %v4912 = vmul.f32 %v4880, %v4144
        %v4913 = vmul.f32 %v4881, %v4145
        %v4914 = vmul.f32 %v4882, %v4146
        %v4915 = vmul.f32 %v4883, %v4147
        %v4916 = vmul.f32 %v4884, %v4148
        %v4917 = vmul.f32 %v4885, %v4149
        %v4918 = vmul.f32 %v4886, %v4150
        %v4919 = vmul.f32 %v4887, %v4151
        %v4920 = vmul.f32 %v4888, %v4152
        %v4921 = vmul.f32 %v4889, %v4153
        %v4922 = vmul.f32 %v4890, %v4154
        %v4923 = vmul.f32 %v4891, %v4155
        %v4924 = vmul.f32 %v4892, %v4156
        %v4925 = vmul.f32 %v4893, %v4157
        %v4926 = vmul.f32 %v4894, %v4158
        %v4927 = vmul.f32 %v4895, %v4159
        %v4928 = vmul.f32 %v4896, %v4160
        %v4929 = vmul.f32 %v4897, %v4161
        %v4930 = vmul.f32 %v4898, %v4162
        %v4931 = vmul.f32 %v4899, %v4163
        %v4932 = vmul.f32 %v4900, %v4164
        %v4933 = vadd.f32 %v4837, %v4901
        %v4934 = vadd.f32 %v4838, %v4902
        %v4935 = vadd.f32 %v4839, %v4903
        %v4936 = vadd.f32 %v4840, %v4904
        %v4937 = vadd.f32 %v4841, %v4905
        %v4938 = vadd.f32 %v4842, %v4906
        %v4939 = vadd.f32 %v4843, %v4907
        %v4940 = vadd.f32 %v4844, %v4908
        %v4941 = vadd.f32 %v4845, %v4909
        %v4942 = vadd.f32 %v4846, %v4910
        %v4943 = vadd.f32 %v4847, %v4911
        %v4944 = vadd.f32 %v4848, %v4912
        %v4945 = vadd.f32 %v4849, %v4913
        %v4946 = vadd.f32 %v4850, %v4914
        %v4947 = vadd.f32 %v4851, %v4915
        %v4948 = vadd.f32 %v4852, %v4916
        %v4949 = vadd.f32 %v4853, %v4917
        %v4950 = vadd.f32 %v4854, %v4918
        %v4951 = vadd.f32 %v4855, %v4919
        %v4952 = vadd.f32 %v4856, %v4920
        %v4953 = vadd.f32 %v4857, %v4921
        %v4954 = vadd.f32 %v4858, %v4922
        %v4955 = vadd.f32 %v4859, %v4923
        %v4956 = vadd.f32 %v4860, %v4924
        %v4957 = vadd.f32 %v4861, %v4925
        %v4958 = vadd.f32 %v4862, %v4926
        %v4959 = vadd.f32 %v4863, %v4927
        %v4960 = vadd.f32 %v4864, %v4928
        %v4961 = vadd.f32 %v4865, %v4929
        %v4962 = vadd.f32 %v4866, %v4930
        %v4963 = vadd.f32 %v4867, %v4931
        %v4964 = vadd.f32 %v4868, %v4932
        %v4965 = vld [vmem:[#allocation13] sm:$0xff]
        %v4966 = vld [vmem:[#allocation13 + $0x8] sm:$0xff]
        %v4967 = vld [vmem:[#allocation13 + $0x10] sm:$0xff]
        %v4968 = vld [vmem:[#allocation13 + $0x18] sm:$0xff]
        %v4969 = vld [vmem:[#allocation13 + $0x20] sm:$0xff]
        %v4970 = vld [vmem:[#allocation13 + $0x28] sm:$0xff]
        %v4971 = vld [vmem:[#allocation13 + $0x30] sm:$0xff]
        %v4972 = vld [vmem:[#allocation13 + $0x38] sm:$0xff]
        %v4973 = vld [vmem:[#allocation13 + $0x40] sm:$0xff]
        %v4974 = vld [vmem:[#allocation13 + $0x48] sm:$0xff]
        %v4975 = vld [vmem:[#allocation13 + $0x50] sm:$0xff]
        %v4976 = vld [vmem:[#allocation13 + $0x58] sm:$0xff]
        %v4977 = vld [vmem:[#allocation13 + $0x60] sm:$0xff]
        %v4978 = vld [vmem:[#allocation13 + $0x68] sm:$0xff]
        %v4979 = vld [vmem:[#allocation13 + $0x70] sm:$0xff]
        %v4980 = vld [vmem:[#allocation13 + $0x78] sm:$0xff]
        %v4981 = vld [vmem:[#allocation13 + $0x80] sm:$0xff]
        %v4982 = vld [vmem:[#allocation13 + $0x88] sm:$0xff]
        %v4983 = vld [vmem:[#allocation13 + $0x90] sm:$0xff]
        %v4984 = vld [vmem:[#allocation13 + $0x98] sm:$0xff]
        %v4985 = vld [vmem:[#allocation13 + $0xa0] sm:$0xff]
        %v4986 = vld [vmem:[#allocation13 + $0xa8] sm:$0xff]
        %v4987 = vld [vmem:[#allocation13 + $0xb0] sm:$0xff]
        %v4988 = vld [vmem:[#allocation13 + $0xb8] sm:$0xff]
        %v4989 = vld [vmem:[#allocation13 + $0xc0] sm:$0xff]
        %v4990 = vld [vmem:[#allocation13 + $0xc8] sm:$0xff]
        %v4991 = vld [vmem:[#allocation13 + $0xd0] sm:$0xff]
        %v4992 = vld [vmem:[#allocation13 + $0xd8] sm:$0xff]
        %v4993 = vld [vmem:[#allocation13 + $0xe0] sm:$0xff]
        %v4994 = vld [vmem:[#allocation13 + $0xe8] sm:$0xff]
        %v4995 = vld [vmem:[#allocation13 + $0xf0] sm:$0xff]
        %v4996 = vld [vmem:[#allocation13 + $0xf8] sm:$0xff]
        %v4997 = vld [vmem:[#allocation13 + $0x100] sm:$0xff]
        %v4998 = vld [vmem:[#allocation13 + $0x108] sm:$0xff]
        %v4999 = vld [vmem:[#allocation13 + $0x110] sm:$0xff]
        %v5000 = vld [vmem:[#allocation13 + $0x118] sm:$0xff]
        %v5001 = vld [vmem:[#allocation13 + $0x120] sm:$0xff]
        %v5002 = vld [vmem:[#allocation13 + $0x128] sm:$0xff]
        %v5003 = vld [vmem:[#allocation13 + $0x130] sm:$0xff]
        %v5004 = vld [vmem:[#allocation13 + $0x138] sm:$0xff]
        %v5005 = vld [vmem:[#allocation13 + $0x140] sm:$0xff]
        %v5006 = vld [vmem:[#allocation13 + $0x148] sm:$0xff]
        %v5007 = vld [vmem:[#allocation13 + $0x150] sm:$0xff]
        %v5008 = vld [vmem:[#allocation13 + $0x158] sm:$0xff]
        %v5009 = vld [vmem:[#allocation13 + $0x160] sm:$0xff]
        %v5010 = vld [vmem:[#allocation13 + $0x168] sm:$0xff]
        %v5011 = vld [vmem:[#allocation13 + $0x170] sm:$0xff]
        %v5012 = vld [vmem:[#allocation13 + $0x178] sm:$0xff]
        %v5013 = vld [vmem:[#allocation13 + $0x180] sm:$0xff]
        %v5014 = vld [vmem:[#allocation13 + $0x188] sm:$0xff]
        %v5015 = vld [vmem:[#allocation13 + $0x190] sm:$0xff]
        %v5016 = vld [vmem:[#allocation13 + $0x198] sm:$0xff]
        %v5017 = vld [vmem:[#allocation13 + $0x1a0] sm:$0xff]
        %v5018 = vld [vmem:[#allocation13 + $0x1a8] sm:$0xff]
        %v5019 = vld [vmem:[#allocation13 + $0x1b0] sm:$0xff]
        %v5020 = vld [vmem:[#allocation13 + $0x1b8] sm:$0xff]
        %v5021 = vld [vmem:[#allocation13 + $0x1c0] sm:$0xff]
        %v5022 = vld [vmem:[#allocation13 + $0x1c8] sm:$0xff]
        %v5023 = vld [vmem:[#allocation13 + $0x1d0] sm:$0xff]
        %v5024 = vld [vmem:[#allocation13 + $0x1d8] sm:$0xff]
        %v5025 = vld [vmem:[#allocation13 + $0x1e0] sm:$0xff]
        %v5026 = vld [vmem:[#allocation13 + $0x1e8] sm:$0xff]
        %v5027 = vld [vmem:[#allocation13 + $0x1f0] sm:$0xff]
        %v5028 = vld [vmem:[#allocation13 + $0x1f8] sm:$0xff]
        %v5029 = vld [vmem:[#allocation13 + $0x200] sm:$0xff]
        %v5030 = vld [vmem:[#allocation13 + $0x208] sm:$0xff]
        %v5031 = vld [vmem:[#allocation13 + $0x210] sm:$0xff]
        %v5032 = vld [vmem:[#allocation13 + $0x218] sm:$0xff]
        %v5033 = vld [vmem:[#allocation13 + $0x220] sm:$0xff]
        %v5034 = vld [vmem:[#allocation13 + $0x228] sm:$0xff]
        %v5035 = vld [vmem:[#allocation13 + $0x230] sm:$0xff]
        %v5036 = vld [vmem:[#allocation13 + $0x238] sm:$0xff]
        %v5037 = vld [vmem:[#allocation13 + $0x240] sm:$0xff]
        %v5038 = vld [vmem:[#allocation13 + $0x248] sm:$0xff]
        %v5039 = vld [vmem:[#allocation13 + $0x250] sm:$0xff]
        %v5040 = vld [vmem:[#allocation13 + $0x258] sm:$0xff]
        %v5041 = vld [vmem:[#allocation13 + $0x260] sm:$0xff]
        %v5042 = vld [vmem:[#allocation13 + $0x268] sm:$0xff]
        %v5043 = vld [vmem:[#allocation13 + $0x270] sm:$0xff]
        %v5044 = vld [vmem:[#allocation13 + $0x278] sm:$0xff]
        %v5045 = vld [vmem:[#allocation13 + $0x280] sm:$0xff]
        %v5046 = vld [vmem:[#allocation13 + $0x288] sm:$0xff]
        %v5047 = vld [vmem:[#allocation13 + $0x290] sm:$0xff]
        %v5048 = vld [vmem:[#allocation13 + $0x298] sm:$0xff]
        %v5049 = vld [vmem:[#allocation13 + $0x2a0] sm:$0xff]
        %v5050 = vld [vmem:[#allocation13 + $0x2a8] sm:$0xff]
        %v5051 = vld [vmem:[#allocation13 + $0x2b0] sm:$0xff]
        %v5052 = vld [vmem:[#allocation13 + $0x2b8] sm:$0xff]
        %v5053 = vld [vmem:[#allocation13 + $0x2c0] sm:$0xff]
        %v5054 = vld [vmem:[#allocation13 + $0x2c8] sm:$0xff]
        %v5055 = vld [vmem:[#allocation13 + $0x2d0] sm:$0xff]
        %v5056 = vld [vmem:[#allocation13 + $0x2d8] sm:$0xff]
        %v5057 = vld [vmem:[#allocation13 + $0x2e0] sm:$0xff]
        %v5058 = vld [vmem:[#allocation13 + $0x2e8] sm:$0xff]
        %v5059 = vld [vmem:[#allocation13 + $0x2f0] sm:$0xff]
        %v5060 = vld [vmem:[#allocation13 + $0x2f8] sm:$0xff]
        %5061 = vmatprep.subr.mxu0 0.0
        %5062 = vmatpush1.msra.mxu0 %v4965
        %5063 = vmatprep.subr.mxu0 0.0
        %5064 = vmatpush1.msra.mxu0 %v4966
        %5065 = vmatprep.subr.mxu0 0.0
        %5066 = vmatpush1.msra.mxu0 %v4967
        %5067 = vmatprep.subr.mxu0 0.0
        %5068 = vmatpush1.msra.mxu0 %v4968
        %5069 = vmatprep.subr.mxu0 0.0
        %5070 = vmatpush1.msra.mxu0 %v4969
        %5071 = vmatprep.subr.mxu0 0.0
        %5072 = vmatpush1.msra.mxu0 %v4970
        %5073 = vmatprep.subr.mxu0 0.0
        %5074 = vmatpush1.msra.mxu0 %v4971
        %5075 = vmatprep.subr.mxu0 0.0
        %5076 = vmatpush1.msra.mxu0 %v4972
        %5077 = vmatprep.subr.mxu0 0.0
        %5078 = vmatpush1.msra.mxu0 %v4973
        %5079 = vmatprep.subr.mxu0 0.0
        %5080 = vmatpush1.msra.mxu0 %v4974
        %5081 = vmatprep.subr.mxu0 0.0
        %5082 = vmatpush1.msra.mxu0 %v4975
        %5083 = vmatprep.subr.mxu0 0.0
        %5084 = vmatpush1.msra.mxu0 %v4976
        %5085 = vmatprep.subr.mxu0 0.0
        %5086 = vmatpush1.msra.mxu0 %v4977
        %5087 = vmatprep.subr.mxu0 0.0
        %5088 = vmatpush1.msra.mxu0 %v4978
        %5089 = vmatprep.subr.mxu0 0.0
        %5090 = vmatpush1.msra.mxu0 %v4979
        %5091 = vmatprep.subr.mxu0 0.0
        %5092 = vmatpush1.msra.mxu0 %v4980
        %5093 = vmatprep.subr.mxu0 0.0
        %5094 = vmatpush1.msra.mxu0 %v4981
        %5095 = vmatprep.subr.mxu0 0.0
        %5096 = vmatpush1.msra.mxu0 %v4982
        %5097 = vmatprep.subr.mxu0 0.0
        %5098 = vmatpush1.msra.mxu0 %v4983
        %5099 = vmatprep.subr.mxu0 0.0
        %5100 = vmatpush1.msra.mxu0 %v4984
        %5101 = vmatprep.subr.mxu0 0.0
        %5102 = vmatpush1.msra.mxu0 %v4985
        %5103 = vmatprep.subr.mxu0 0.0
        %5104 = vmatpush1.msra.mxu0 %v4986
        %5105 = vmatprep.subr.mxu0 0.0
        %5106 = vmatpush1.msra.mxu0 %v4987
        %5107 = vmatprep.subr.mxu0 0.0
        %5108 = vmatpush1.msra.mxu0 %v4988
        %5109 = vmatprep.subr.mxu0 0.0
        %5110 = vmatpush1.msra.mxu0 %v4989
        %5111 = vmatprep.subr.mxu0 0.0
        %5112 = vmatpush1.msra.mxu0 %v4990
        %5113 = vmatprep.subr.mxu0 0.0
        %5114 = vmatpush1.msra.mxu0 %v4991
        %5115 = vmatprep.subr.mxu0 0.0
        %5116 = vmatpush1.msra.mxu0 %v4992
        %5117 = vmatprep.subr.mxu0 0.0
        %5118 = vmatpush1.msra.mxu0 %v4993
        %5119 = vmatprep.subr.mxu0 0.0
        %5120 = vmatpush1.msra.mxu0 %v4994
        %5121 = vmatprep.subr.mxu0 0.0
        %5122 = vmatpush1.msra.mxu0 %v4995
        %5123 = vmatprep.subr.mxu0 0.0
        %5124 = vmatpush1.msra.mxu0 %v4996
        %5125 = vmatprep.mubr.f32.mxu0 %v4293
        %5126 = vmatmul.mubr.f32.gmra.mrb[0].mxu0 %v1669
        %v5127 = vpop.f32.mrb[0].mxu0
        %v5128 = vadd.f32 0.0, %v5127
        %v5129 = vpop.f32.mrb[0].mxu0
        %5130 = vmatprep.mubr.f32.mxu0 %v4294
        %5131 = vmatmul.mubr.f32.gmra.mrb[0].mxu0 %v1670
        %v5132 = vpop.f32.mrb[0].mxu0
        %v5133 = vadd.f32 0.0, %v5132
        %v5134 = vpop.f32.mrb[0].mxu0
        %5135 = vmatprep.mubr.f32.mxu0 %v4295
        %5136 = vmatmul.mubr.f32.gmra.mrb[0].mxu0 %v1671
        %v5137 = vpop.f32.mrb[0].mxu0
        %v5138 = vadd.f32 0.0, %v5137
        %v5139 = vpop.f32.mrb[0].mxu0
        %5140 = vmatprep.mubr.f32.mxu0 %v4296
        %5141 = vmatmul.mubr.f32.gmra.mrb[0].mxu0 %v1672
        %v5142 = vpop.f32.mrb[0].mxu0
        %v5143 = vadd.f32 0.0, %v5142
        %v5144 = vpop.f32.mrb[0].mxu0
        %5145 = vmatprep.mubr.f32.mxu0 %v4297
        %5146 = vmatmul.mubr.f32.gmra.mrb[0].mxu0 %v1673
        %v5147 = vpop.f32.mrb[0].mxu0
        %v5148 = vadd.f32 0.0, %v5147
        %v5149 = vpop.f32.mrb[0].mxu0
        %5150 = vmatprep.mubr.f32.mxu0 %v4298
        %5151 = vmatmul.mubr.f32.gmra.mrb[0].mxu0 %v1674
        %v5152 = vpop.f32.mrb[0].mxu0
        %v5153 = vadd.f32 0.0, %v5152
        %v5154 = vpop.f32.mrb[0].mxu0
        %5155 = vmatprep.mubr.f32.mxu0 %v4299
        %5156 = vmatmul.mubr.f32.gmra.mrb[0].mxu0 %v1675
        %v5157 = vpop.f32.mrb[0].mxu0
        %v5158 = vadd.f32 0.0, %v5157
        %v5159 = vpop.f32.mrb[0].mxu0
        %5160 = vmatprep.mubr.f32.mxu0 %v4300
        %5161 = vmatmul.mubr.f32.gmra.mrb[0].mxu0 %v1676
        %v5162 = vpop.f32.mrb[0].mxu0
        %v5163 = vadd.f32 0.0, %v5162
        %v5164 = vpop.f32.mrb[0].mxu0
        %5165 = vmatprep.mubr.f32.mxu0 %v4301
        %5166 = vmatmul.mubr.f32.gmra.mrb[0].mxu0 %v1677
        %v5167 = vpop.f32.mrb[0].mxu0
        %v5168 = vadd.f32 0.0, %v5167
        %v5169 = vpop.f32.mrb[0].mxu0
        %5170 = vmatprep.mubr.f32.mxu0 %v4302
        %5171 = vmatmul.mubr.f32.gmra.mrb[0].mxu0 %v1678
        %v5172 = vpop.f32.mrb[0].mxu0
        %v5173 = vadd.f32 0.0, %v5172
        %v5174 = vpop.f32.mrb[0].mxu0
        %5175 = vmatprep.mubr.f32.mxu0 %v4303
        %5176 = vmatmul.mubr.f32.gmra.mrb[0].mxu0 %v1679
        %v5177 = vpop.f32.mrb[0].mxu0
        %v5178 = vadd.f32 0.0, %v5177
        %v5179 = vpop.f32.mrb[0].mxu0
        %5180 = vmatprep.mubr.f32.mxu0 %v4304
        %5181 = vmatmul.mubr.f32.gmra.mrb[0].mxu0 %v1680
        %v5182 = vpop.f32.mrb[0].mxu0
        %v5183 = vadd.f32 0.0, %v5182
        %v5184 = vpop.f32.mrb[0].mxu0
        %5185 = vmatprep.mubr.f32.mxu0 %v4305
        %5186 = vmatmul.mubr.f32.gmra.mrb[0].mxu0 %v1681
        %v5187 = vpop.f32.mrb[0].mxu0
        %v5188 = vadd.f32 0.0, %v5187
        %v5189 = vpop.f32.mrb[0].mxu0
        %5190 = vmatprep.mubr.f32.mxu0 %v4306
        %5191 = vmatmul.mubr.f32.gmra.mrb[0].mxu0 %v1682
        %v5192 = vpop.f32.mrb[0].mxu0
        %v5193 = vadd.f32 0.0, %v5192
        %v5194 = vpop.f32.mrb[0].mxu0
        %5195 = vmatprep.mubr.f32.mxu0 %v4307
        %5196 = vmatmul.mubr.f32.gmra.mrb[0].mxu0 %v1683
        %v5197 = vpop.f32.mrb[0].mxu0
        %v5198 = vadd.f32 0.0, %v5197
        %v5199 = vpop.f32.mrb[0].mxu0
        %5200 = vmatprep.mubr.f32.mxu0 %v4308
        %5201 = vmatmul.mubr.f32.gmra.mrb[0].mxu0 %v1684
        %v5202 = vpop.f32.mrb[0].mxu0
        %v5203 = vadd.f32 0.0, %v5202
        %v5204 = vpop.f32.mrb[0].mxu0
        %5205 = vmatprep.mubr.f32.mxu0 %v4309
        %5206 = vmatmul.mubr.f32.gmra.mrb[0].mxu0 %v1685
        %v5207 = vpop.f32.mrb[0].mxu0
        %v5208 = vadd.f32 0.0, %v5207
        %v5209 = vpop.f32.mrb[0].mxu0
        %5210 = vmatprep.mubr.f32.mxu0 %v4310
        %5211 = vmatmul.mubr.f32.gmra.mrb[0].mxu0 %v1686
        %v5212 = vpop.f32.mrb[0].mxu0
        %v5213 = vadd.f32 0.0, %v5212
        %v5214 = vpop.f32.mrb[0].mxu0
        %5215 = vmatprep.mubr.f32.mxu0 %v4311
        %5216 = vmatmul.mubr.f32.gmra.mrb[0].mxu0 %v1687
        %v5217 = vpop.f32.mrb[0].mxu0
        %v5218 = vadd.f32 0.0, %v5217
        %v5219 = vpop.f32.mrb[0].mxu0
        %5220 = vmatprep.mubr.f32.mxu0 %v4312
        %5221 = vmatmul.mubr.f32.gmra.mrb[0].mxu0 %v1688
        %v5222 = vpop.f32.mrb[0].mxu0
        %v5223 = vadd.f32 0.0, %v5222
        %v5224 = vpop.f32.mrb[0].mxu0
        %5225 = vmatprep.mubr.f32.mxu0 %v4313
        %5226 = vmatmul.mubr.f32.gmra.mrb[0].mxu0 %v1689
        %v5227 = vpop.f32.mrb[0].mxu0
        %v5228 = vadd.f32 0.0, %v5227
        %v5229 = vpop.f32.mrb[0].mxu0
        %5230 = vmatprep.mubr.f32.mxu0 %v4314
        %5231 = vmatmul.mubr.f32.gmra.mrb[0].mxu0 %v1690
        %v5232 = vpop.f32.mrb[0].mxu0
        %v5233 = vadd.f32 0.0, %v5232
        %v5234 = vpop.f32.mrb[0].mxu0
        %5235 = vmatprep.mubr.f32.mxu0 %v4315
        %5236 = vmatmul.mubr.f32.gmra.mrb[0].mxu0 %v1691
        %v5237 = vpop.f32.mrb[0].mxu0
        %v5238 = vadd.f32 0.0, %v5237
        %v5239 = vpop.f32.mrb[0].mxu0
        %5240 = vmatprep.mubr.f32.mxu0 %v4316
        %5241 = vmatmul.mubr.f32.gmra.mrb[0].mxu0 %v1692
        %v5242 = vpop.f32.mrb[0].mxu0
        %v5243 = vadd.f32 0.0, %v5242
        %v5244 = vpop.f32.mrb[0].mxu0
        %5245 = vmatprep.mubr.f32.mxu0 %v4317
        %5246 = vmatmul.mubr.f32.gmra.mrb[0].mxu0 %v1693
        %v5247 = vpop.f32.mrb[0].mxu0
        %v5248 = vadd.f32 0.0, %v5247
        %v5249 = vpop.f32.mrb[0].mxu0
        %5250 = vmatprep.mubr.f32.mxu0 %v4318
        %5251 = vmatmul.mubr.f32.gmra.mrb[0].mxu0 %v1694
        %v5252 = vpop.f32.mrb[0].mxu0
        %v5253 = vadd.f32 0.0, %v5252
        %v5254 = vpop.f32.mrb[0].mxu0
        %5255 = vmatprep.mubr.f32.mxu0 %v4319
        %5256 = vmatmul.mubr.f32.gmra.mrb[0].mxu0 %v1695
        %v5257 = vpop.f32.mrb[0].mxu0
        %v5258 = vadd.f32 0.0, %v5257
        %v5259 = vpop.f32.mrb[0].mxu0
        %5260 = vmatprep.mubr.f32.mxu0 %v4320
        %5261 = vmatmul.mubr.f32.gmra.mrb[0].mxu0 %v1696
        %v5262 = vpop.f32.mrb[0].mxu0
        %v5263 = vadd.f32 0.0, %v5262
        %v5264 = vpop.f32.mrb[0].mxu0
        %5265 = vmatprep.mubr.f32.mxu0 %v4321
        %5266 = vmatmul.mubr.f32.gmra.mrb[0].mxu0 %v1697
        %v5267 = vpop.f32.mrb[0].mxu0
        %v5268 = vadd.f32 0.0, %v5267
        %v5269 = vpop.f32.mrb[0].mxu0
        %5270 = vmatprep.mubr.f32.mxu0 %v4322
        %5271 = vmatmul.mubr.f32.gmra.mrb[0].mxu0 %v1698
        %v5272 = vpop.f32.mrb[0].mxu0
        %v5273 = vadd.f32 0.0, %v5272
        %v5274 = vpop.f32.mrb[0].mxu0
        %5275 = vmatprep.mubr.f32.mxu0 %v4323
        %5276 = vmatmul.mubr.f32.gmra.mrb[0].mxu0 %v1699
        %v5277 = vpop.f32.mrb[0].mxu0
        %v5278 = vadd.f32 0.0, %v5277
        %v5279 = vpop.f32.mrb[0].mxu0
        %5280 = vmatprep.mubr.f32.mxu0 %v4324
        %5281 = vmatmul.mubr.f32.gmra.mrb[0].mxu0 %v1700
        %v5282 = vpop.f32.mrb[0].mxu0
        %v5283 = vadd.f32 0.0, %v5282
        %v5284 = vpop.f32.mrb[0].mxu0
        %5285 = vdwg.mxu0
        %5286 = vmatprep.subr.mxu0 0.0
        %5287 = vmatpush1.msra.mxu0 %v4997
        %5288 = vmatprep.subr.mxu0 0.0
        %5289 = vmatpush1.msra.mxu0 %v4998
        %5290 = vmatprep.subr.mxu0 0.0
        %5291 = vmatpush1.msra.mxu0 %v4999
        %5292 = vmatprep.subr.mxu0 0.0
        %5293 = vmatpush1.msra.mxu0 %v5000
        %5294 = vmatprep.subr.mxu0 0.0
        %5295 = vmatpush1.msra.mxu0 %v5001
        %5296 = vmatprep.subr.mxu0 0.0
        %5297 = vmatpush1.msra.mxu0 %v5002
        %5298 = vmatprep.subr.mxu0 0.0
        %5299 = vmatpush1.msra.mxu0 %v5003
        %5300 = vmatprep.subr.mxu0 0.0
        %5301 = vmatpush1.msra.mxu0 %v5004
        %5302 = vmatprep.subr.mxu0 0.0
        %5303 = vmatpush1.msra.mxu0 %v5005
        %5304 = vmatprep.subr.mxu0 0.0
        %5305 = vmatpush1.msra.mxu0 %v5006
        %5306 = vmatprep.subr.mxu0 0.0
        %5307 = vmatpush1.msra.mxu0 %v5007
        %5308 = vmatprep.subr.mxu0 0.0
        %5309 = vmatpush1.msra.mxu0 %v5008
        %5310 = vmatprep.subr.mxu0 0.0
        %5311 = vmatpush1.msra.mxu0 %v5009
        %5312 = vmatprep.subr.mxu0 0.0
        %5313 = vmatpush1.msra.mxu0 %v5010
        %5314 = vmatprep.subr.mxu0 0.0
        %5315 = vmatpush1.msra.mxu0 %v5011
        %5316 = vmatprep.subr.mxu0 0.0
        %5317 = vmatpush1.msra.mxu0 %v5012
        %5318 = vmatprep.subr.mxu0 0.0
        %5319 = vmatpush1.msra.mxu0 %v5013
        %5320 = vmatprep.subr.mxu0 0.0
        %5321 = vmatpush1.msra.mxu0 %v5014
        %5322 = vmatprep.subr.mxu0 0.0
        %5323 = vmatpush1.msra.mxu0 %v5015
        %5324 = vmatprep.subr.mxu0 0.0
        %5325 = vmatpush1.msra.mxu0 %v5016
        %5326 = vmatprep.subr.mxu0 0.0
        %5327 = vmatpush1.msra.mxu0 %v5017
        %5328 = vmatprep.subr.mxu0 0.0
        %5329 = vmatpush1.msra.mxu0 %v5018
        %5330 = vmatprep.subr.mxu0 0.0
        %5331 = vmatpush1.msra.mxu0 %v5019
        %5332 = vmatprep.subr.mxu0 0.0
        %5333 = vmatpush1.msra.mxu0 %v5020
        %5334 = vmatprep.subr.mxu0 0.0
        %5335 = vmatpush1.msra.mxu0 %v5021
        %5336 = vmatprep.subr.mxu0 0.0
        %5337 = vmatpush1.msra.mxu0 %v5022
        %5338 = vmatprep.subr.mxu0 0.0
        %5339 = vmatpush1.msra.mxu0 %v5023
        %5340 = vmatprep.subr.mxu0 0.0
        %5341 = vmatpush1.msra.mxu0 %v5024
        %5342 = vmatprep.subr.mxu0 0.0
        %5343 = vmatpush1.msra.mxu0 %v5025
        %5344 = vmatprep.subr.mxu0 0.0
        %5345 = vmatpush1.msra.mxu0 %v5026
        %5346 = vmatprep.subr.mxu0 0.0
        %5347 = vmatpush1.msra.mxu0 %v5027
        %5348 = vmatprep.subr.mxu0 0.0
        %5349 = vmatpush1.msra.mxu0 %v5028
        %5350 = vmatprep.mubr.f32.mxu0 %v4613
        %5351 = vmatmul.mubr.f32.gmra.mrb[0].mxu0 %v4453
        %v5352 = vpop.f32.mrb[0].mxu0
        %v5353 = vadd.f32 %v5128, %v5352
        %v5354 = vpop.f32.mrb[0].mxu0
        %5355 = vmatprep.mubr.f32.mxu0 %v4614
        %5356 = vmatmul.mubr.f32.gmra.mrb[0].mxu0 %v4454
        %v5357 = vpop.f32.mrb[0].mxu0
        %v5358 = vadd.f32 %v5133, %v5357
        %v5359 = vpop.f32.mrb[0].mxu0
        %5360 = vmatprep.mubr.f32.mxu0 %v4615
        %5361 = vmatmul.mubr.f32.gmra.mrb[0].mxu0 %v4455
        %v5362 = vpop.f32.mrb[0].mxu0
        %v5363 = vadd.f32 %v5138, %v5362
        %v5364 = vpop.f32.mrb[0].mxu0
        %5365 = vmatprep.mubr.f32.mxu0 %v4616
        %5366 = vmatmul.mubr.f32.gmra.mrb[0].mxu0 %v4456
        %v5367 = vpop.f32.mrb[0].mxu0
        %v5368 = vadd.f32 %v5143, %v5367
        %v5369 = vpop.f32.mrb[0].mxu0
        %5370 = vmatprep.mubr.f32.mxu0 %v4617
        %5371 = vmatmul.mubr.f32.gmra.mrb[0].mxu0 %v4457
        %v5372 = vpop.f32.mrb[0].mxu0
        %v5373 = vadd.f32 %v5148, %v5372
        %v5374 = vpop.f32.mrb[0].mxu0
        %5375 = vmatprep.mubr.f32.mxu0 %v4618
        %5376 = vmatmul.mubr.f32.gmra.mrb[0].mxu0 %v4458
        %v5377 = vpop.f32.mrb[0].mxu0
        %v5378 = vadd.f32 %v5153, %v5377
        %v5379 = vpop.f32.mrb[0].mxu0
        %5380 = vmatprep.mubr.f32.mxu0 %v4619
        %5381 = vmatmul.mubr.f32.gmra.mrb[0].mxu0 %v4459
        %v5382 = vpop.f32.mrb[0].mxu0
        %v5383 = vadd.f32 %v5158, %v5382
        %v5384 = vpop.f32.mrb[0].mxu0
        %5385 = vmatprep.mubr.f32.mxu0 %v4620
        %5386 = vmatmul.mubr.f32.gmra.mrb[0].mxu0 %v4460
        %v5387 = vpop.f32.mrb[0].mxu0
        %v5388 = vadd.f32 %v5163, %v5387
        %v5389 = vpop.f32.mrb[0].mxu0
        %5390 = vmatprep.mubr.f32.mxu0 %v4621
        %5391 = vmatmul.mubr.f32.gmra.mrb[0].mxu0 %v4461
        %v5392 = vpop.f32.mrb[0].mxu0
        %v5393 = vadd.f32 %v5168, %v5392
        %v5394 = vpop.f32.mrb[0].mxu0
        %5395 = vmatprep.mubr.f32.mxu0 %v4622
        %5396 = vmatmul.mubr.f32.gmra.mrb[0].mxu0 %v4462
        %v5397 = vpop.f32.mrb[0].mxu0
        %v5398 = vadd.f32 %v5173, %v5397
        %v5399 = vpop.f32.mrb[0].mxu0
        %5400 = vmatprep.mubr.f32.mxu0 %v4623
        %5401 = vmatmul.mubr.f32.gmra.mrb[0].mxu0 %v4463
        %v5402 = vpop.f32.mrb[0].mxu0
        %v5403 = vadd.f32 %v5178, %v5402
        %v5404 = vpop.f32.mrb[0].mxu0
        %5405 = vmatprep.mubr.f32.mxu0 %v4624
        %5406 = vmatmul.mubr.f32.gmra.mrb[0].mxu0 %v4464
        %v5407 = vpop.f32.mrb[0].mxu0
        %v5408 = vadd.f32 %v5183, %v5407
        %v5409 = vpop.f32.mrb[0].mxu0
        %5410 = vmatprep.mubr.f32.mxu0 %v4625
        %5411 = vmatmul.mubr.f32.gmra.mrb[0].mxu0 %v4465
        %v5412 = vpop.f32.mrb[0].mxu0
        %v5413 = vadd.f32 %v5188, %v5412
        %v5414 = vpop.f32.mrb[0].mxu0
        %5415 = vmatprep.mubr.f32.mxu0 %v4626
        %5416 = vmatmul.mubr.f32.gmra.mrb[0].mxu0 %v4466
        %v5417 = vpop.f32.mrb[0].mxu0
        %v5418 = vadd.f32 %v5193, %v5417
        %v5419 = vpop.f32.mrb[0].mxu0
        %5420 = vmatprep.mubr.f32.mxu0 %v4627
        %5421 = vmatmul.mubr.f32.gmra.mrb[0].mxu0 %v4467
        %v5422 = vpop.f32.mrb[0].mxu0
        %v5423 = vadd.f32 %v5198, %v5422
        %v5424 = vpop.f32.mrb[0].mxu0
        %5425 = vmatprep.mubr.f32.mxu0 %v4628
        %5426 = vmatmul.mubr.f32.gmra.mrb[0].mxu0 %v4468
        %v5427 = vpop.f32.mrb[0].mxu0
        %v5428 = vadd.f32 %v5203, %v5427
        %v5429 = vpop.f32.mrb[0].mxu0
        %5430 = vmatprep.mubr.f32.mxu0 %v4629
        %5431 = vmatmul.mubr.f32.gmra.mrb[0].mxu0 %v4469
        %v5432 = vpop.f32.mrb[0].mxu0
        %v5433 = vadd.f32 %v5208, %v5432
        %v5434 = vpop.f32.mrb[0].mxu0
        %5435 = vmatprep.mubr.f32.mxu0 %v4630
        %5436 = vmatmul.mubr.f32.gmra.mrb[0].mxu0 %v4470
        %v5437 = vpop.f32.mrb[0].mxu0
        %v5438 = vadd.f32 %v5213, %v5437
        %v5439 = vpop.f32.mrb[0].mxu0
        %5440 = vmatprep.mubr.f32.mxu0 %v4631
        %5441 = vmatmul.mubr.f32.gmra.mrb[0].mxu0 %v4471
        %v5442 = vpop.f32.mrb[0].mxu0
        %v5443 = vadd.f32 %v5218, %v5442
        %v5444 = vpop.f32.mrb[0].mxu0
        %5445 = vmatprep.mubr.f32.mxu0 %v4632
        %5446 = vmatmul.mubr.f32.gmra.mrb[0].mxu0 %v4472
        %v5447 = vpop.f32.mrb[0].mxu0
        %v5448 = vadd.f32 %v5223, %v5447
        %v5449 = vpop.f32.mrb[0].mxu0
        %5450 = vmatprep.mubr.f32.mxu0 %v4633
        %5451 = vmatmul.mubr.f32.gmra.mrb[0].mxu0 %v4473
        %v5452 = vpop.f32.mrb[0].mxu0
        %v5453 = vadd.f32 %v5228, %v5452
        %v5454 = vpop.f32.mrb[0].mxu0
        %5455 = vmatprep.mubr.f32.mxu0 %v4634
        %5456 = vmatmul.mubr.f32.gmra.mrb[0].mxu0 %v4474
        %v5457 = vpop.f32.mrb[0].mxu0
        %v5458 = vadd.f32 %v5233, %v5457
        %v5459 = vpop.f32.mrb[0].mxu0
        %5460 = vmatprep.mubr.f32.mxu0 %v4635
        %5461 = vmatmul.mubr.f32.gmra.mrb[0].mxu0 %v4475
        %v5462 = vpop.f32.mrb[0].mxu0
        %v5463 = vadd.f32 %v5238, %v5462
        %v5464 = vpop.f32.mrb[0].mxu0
        %5465 = vmatprep.mubr.f32.mxu0 %v4636
        %5466 = vmatmul.mubr.f32.gmra.mrb[0].mxu0 %v4476
        %v5467 = vpop.f32.mrb[0].mxu0
        %v5468 = vadd.f32 %v5243, %v5467
        %v5469 = vpop.f32.mrb[0].mxu0
        %5470 = vmatprep.mubr.f32.mxu0 %v4637
        %5471 = vmatmul.mubr.f32.gmra.mrb[0].mxu0 %v4477
        %v5472 = vpop.f32.mrb[0].mxu0
        %v5473 = vadd.f32 %v5248, %v5472
        %v5474 = vpop.f32.mrb[0].mxu0
        %5475 = vmatprep.mubr.f32.mxu0 %v4638
        %5476 = vmatmul.mubr.f32.gmra.mrb[0].mxu0 %v4478
        %v5477 = vpop.f32.mrb[0].mxu0
        %v5478 = vadd.f32 %v5253, %v5477
        %v5479 = vpop.f32.mrb[0].mxu0
        %5480 = vmatprep.mubr.f32.mxu0 %v4639
        %5481 = vmatmul.mubr.f32.gmra.mrb[0].mxu0 %v4479
        %v5482 = vpop.f32.mrb[0].mxu0
        %v5483 = vadd.f32 %v5258, %v5482
        %v5484 = vpop.f32.mrb[0].mxu0
        %5485 = vmatprep.mubr.f32.mxu0 %v4640
        %5486 = vmatmul.mubr.f32.gmra.mrb[0].mxu0 %v4480
        %v5487 = vpop.f32.mrb[0].mxu0
        %v5488 = vadd.f32 %v5263, %v5487
        %v5489 = vpop.f32.mrb[0].mxu0
        %5490 = vmatprep.mubr.f32.mxu0 %v4641
        %5491 = vmatmul.mubr.f32.gmra.mrb[0].mxu0 %v4481
        %v5492 = vpop.f32.mrb[0].mxu0
        %v5493 = vadd.f32 %v5268, %v5492
        %v5494 = vpop.f32.mrb[0].mxu0
        %5495 = vmatprep.mubr.f32.mxu0 %v4642
        %5496 = vmatmul.mubr.f32.gmra.mrb[0].mxu0 %v4482
        %v5497 = vpop.f32.mrb[0].mxu0
        %v5498 = vadd.f32 %v5273, %v5497
        %v5499 = vpop.f32.mrb[0].mxu0
        %5500 = vmatprep.mubr.f32.mxu0 %v4643
        %5501 = vmatmul.mubr.f32.gmra.mrb[0].mxu0 %v4483
        %v5502 = vpop.f32.mrb[0].mxu0
        %v5503 = vadd.f32 %v5278, %v5502
        %v5504 = vpop.f32.mrb[0].mxu0
        %5505 = vmatprep.mubr.f32.mxu0 %v4644
        %5506 = vmatmul.mubr.f32.gmra.mrb[0].mxu0 %v4484
        %v5507 = vpop.f32.mrb[0].mxu0
        %v5508 = vadd.f32 %v5283, %v5507
        %v5509 = vpop.f32.mrb[0].mxu0
        %5510 = vdwg.mxu0
        %5511 = vmatprep.subr.mxu0 0.0
        %5512 = vmatpush1.msra.mxu0 %v5029
        %5513 = vmatprep.subr.mxu0 0.0
        %5514 = vmatpush1.msra.mxu0 %v5030
        %5515 = vmatprep.subr.mxu0 0.0
        %5516 = vmatpush1.msra.mxu0 %v5031
        %5517 = vmatprep.subr.mxu0 0.0
        %5518 = vmatpush1.msra.mxu0 %v5032
        %5519 = vmatprep.subr.mxu0 0.0
        %5520 = vmatpush1.msra.mxu0 %v5033
        %5521 = vmatprep.subr.mxu0 0.0
        %5522 = vmatpush1.msra.mxu0 %v5034
        %5523 = vmatprep.subr.mxu0 0.0
        %5524 = vmatpush1.msra.mxu0 %v5035
        %5525 = vmatprep.subr.mxu0 0.0
        %5526 = vmatpush1.msra.mxu0 %v5036
        %5527 = vmatprep.subr.mxu0 0.0
        %5528 = vmatpush1.msra.mxu0 %v5037
        %5529 = vmatprep.subr.mxu0 0.0
        %5530 = vmatpush1.msra.mxu0 %v5038
        %5531 = vmatprep.subr.mxu0 0.0
        %5532 = vmatpush1.msra.mxu0 %v5039
        %5533 = vmatprep.subr.mxu0 0.0
        %5534 = vmatpush1.msra.mxu0 %v5040
        %5535 = vmatprep.subr.mxu0 0.0
        %5536 = vmatpush1.msra.mxu0 %v5041
        %5537 = vmatprep.subr.mxu0 0.0
        %5538 = vmatpush1.msra.mxu0 %v5042
        %5539 = vmatprep.subr.mxu0 0.0
        %5540 = vmatpush1.msra.mxu0 %v5043
        %5541 = vmatprep.subr.mxu0 0.0
        %5542 = vmatpush1.msra.mxu0 %v5044
        %5543 = vmatprep.subr.mxu0 0.0
        %5544 = vmatpush1.msra.mxu0 %v5045
        %5545 = vmatprep.subr.mxu0 0.0
        %5546 = vmatpush1.msra.mxu0 %v5046
        %5547 = vmatprep.subr.mxu0 0.0
        %5548 = vmatpush1.msra.mxu0 %v5047
        %5549 = vmatprep.subr.mxu0 0.0
        %5550 = vmatpush1.msra.mxu0 %v5048
        %5551 = vmatprep.subr.mxu0 0.0
        %5552 = vmatpush1.msra.mxu0 %v5049
        %5553 = vmatprep.subr.mxu0 0.0
        %5554 = vmatpush1.msra.mxu0 %v5050
        %5555 = vmatprep.subr.mxu0 0.0
        %5556 = vmatpush1.msra.mxu0 %v5051
        %5557 = vmatprep.subr.mxu0 0.0
        %5558 = vmatpush1.msra.mxu0 %v5052
        %5559 = vmatprep.subr.mxu0 0.0
        %5560 = vmatpush1.msra.mxu0 %v5053
        %5561 = vmatprep.subr.mxu0 0.0
        %5562 = vmatpush1.msra.mxu0 %v5054
        %5563 = vmatprep.subr.mxu0 0.0
        %5564 = vmatpush1.msra.mxu0 %v5055
        %5565 = vmatprep.subr.mxu0 0.0
        %5566 = vmatpush1.msra.mxu0 %v5056
        %5567 = vmatprep.subr.mxu0 0.0
        %5568 = vmatpush1.msra.mxu0 %v5057
        %5569 = vmatprep.subr.mxu0 0.0
        %5570 = vmatpush1.msra.mxu0 %v5058
        %5571 = vmatprep.subr.mxu0 0.0
        %5572 = vmatpush1.msra.mxu0 %v5059
        %5573 = vmatprep.subr.mxu0 0.0
        %5574 = vmatpush1.msra.mxu0 %v5060
        %5575 = vmatprep.mubr.f32.mxu0 %v4933
        %5576 = vmatmul.mubr.f32.gmra.mrb[0].mxu0 %v4773
        %v5577 = vpop.f32.mrb[0].mxu0
        %v5578 = vadd.f32 %v5353, %v5577
        %v5579 = vpop.f32.mrb[0].mxu0
        %5580 = vmatprep.mubr.f32.mxu0 %v4934
        %5581 = vmatmul.mubr.f32.gmra.mrb[0].mxu0 %v4774
        %v5582 = vpop.f32.mrb[0].mxu0
        %v5583 = vadd.f32 %v5358, %v5582
        %v5584 = vpop.f32.mrb[0].mxu0
        %5585 = vmatprep.mubr.f32.mxu0 %v4935
        %5586 = vmatmul.mubr.f32.gmra.mrb[0].mxu0 %v4775
        %v5587 = vpop.f32.mrb[0].mxu0
        %v5588 = vadd.f32 %v5363, %v5587
        %v5589 = vpop.f32.mrb[0].mxu0
        %5590 = vmatprep.mubr.f32.mxu0 %v4936
        %5591 = vmatmul.mubr.f32.gmra.mrb[0].mxu0 %v4776
        %v5592 = vpop.f32.mrb[0].mxu0
        %v5593 = vadd.f32 %v5368, %v5592
        %v5594 = vpop.f32.mrb[0].mxu0
        %5595 = vmatprep.mubr.f32.mxu0 %v4937
        %5596 = vmatmul.mubr.f32.gmra.mrb[0].mxu0 %v4777
        %v5597 = vpop.f32.mrb[0].mxu0
        %v5598 = vadd.f32 %v5373, %v5597
        %v5599 = vpop.f32.mrb[0].mxu0
        %5600 = vmatprep.mubr.f32.mxu0 %v4938
        %5601 = vmatmul.mubr.f32.gmra.mrb[0].mxu0 %v4778
        %v5602 = vpop.f32.mrb[0].mxu0
        %v5603 = vadd.f32 %v5378, %v5602
        %v5604 = vpop.f32.mrb[0].mxu0
        %5605 = vmatprep.mubr.f32.mxu0 %v4939
        %5606 = vmatmul.mubr.f32.gmra.mrb[0].mxu0 %v4779
        %v5607 = vpop.f32.mrb[0].mxu0
        %v5608 = vadd.f32 %v5383, %v5607
        %v5609 = vpop.f32.mrb[0].mxu0
        %5610 = vmatprep.mubr.f32.mxu0 %v4940
        %5611 = vmatmul.mubr.f32.gmra.mrb[0].mxu0 %v4780
        %v5612 = vpop.f32.mrb[0].mxu0
        %v5613 = vadd.f32 %v5388, %v5612
        %v5614 = vpop.f32.mrb[0].mxu0
        %5615 = vmatprep.mubr.f32.mxu0 %v4941
        %5616 = vmatmul.mubr.f32.gmra.mrb[0].mxu0 %v4781
        %v5617 = vpop.f32.mrb[0].mxu0
        %v5618 = vadd.f32 %v5393, %v5617
        %v5619 = vpop.f32.mrb[0].mxu0
        %5620 = vmatprep.mubr.f32.mxu0 %v4942
        %5621 = vmatmul.mubr.f32.gmra.mrb[0].mxu0 %v4782
        %v5622 = vpop.f32.mrb[0].mxu0
        %v5623 = vadd.f32 %v5398, %v5622
        %v5624 = vpop.f32.mrb[0].mxu0
        %5625 = vmatprep.mubr.f32.mxu0 %v4943
        %5626 = vmatmul.mubr.f32.gmra.mrb[0].mxu0 %v4783
        %v5627 = vpop.f32.mrb[0].mxu0
        %v5628 = vadd.f32 %v5403, %v5627
        %v5629 = vpop.f32.mrb[0].mxu0
        %5630 = vmatprep.mubr.f32.mxu0 %v4944
        %5631 = vmatmul.mubr.f32.gmra.mrb[0].mxu0 %v4784
        %v5632 = vpop.f32.mrb[0].mxu0
        %v5633 = vadd.f32 %v5408, %v5632
        %v5634 = vpop.f32.mrb[0].mxu0
        %5635 = vmatprep.mubr.f32.mxu0 %v4945
        %5636 = vmatmul.mubr.f32.gmra.mrb[0].mxu0 %v4785
        %v5637 = vpop.f32.mrb[0].mxu0
        %v5638 = vadd.f32 %v5413, %v5637
        %v5639 = vpop.f32.mrb[0].mxu0
        %5640 = vmatprep.mubr.f32.mxu0 %v4946
        %5641 = vmatmul.mubr.f32.gmra.mrb[0].mxu0 %v4786
        %v5642 = vpop.f32.mrb[0].mxu0
        %v5643 = vadd.f32 %v5418, %v5642
        %v5644 = vpop.f32.mrb[0].mxu0
        %5645 = vmatprep.mubr.f32.mxu0 %v4947
        %5646 = vmatmul.mubr.f32.gmra.mrb[0].mxu0 %v4787
        %v5647 = vpop.f32.mrb[0].mxu0
        %v5648 = vadd.f32 %v5423, %v5647
        %v5649 = vpop.f32.mrb[0].mxu0
        %5650 = vmatprep.mubr.f32.mxu0 %v4948
        %5651 = vmatmul.mubr.f32.gmra.mrb[0].mxu0 %v4788
        %v5652 = vpop.f32.mrb[0].mxu0
        %v5653 = vadd.f32 %v5428, %v5652
        %v5654 = vpop.f32.mrb[0].mxu0
        %5655 = vmatprep.mubr.f32.mxu0 %v4949
        %5656 = vmatmul.mubr.f32.gmra.mrb[0].mxu0 %v4789
        %v5657 = vpop.f32.mrb[0].mxu0
        %v5658 = vadd.f32 %v5433, %v5657
        %v5659 = vpop.f32.mrb[0].mxu0
        %5660 = vmatprep.mubr.f32.mxu0 %v4950
        %5661 = vmatmul.mubr.f32.gmra.mrb[0].mxu0 %v4790
        %v5662 = vpop.f32.mrb[0].mxu0
        %v5663 = vadd.f32 %v5438, %v5662
        %v5664 = vpop.f32.mrb[0].mxu0
        %5665 = vmatprep.mubr.f32.mxu0 %v4951
        %5666 = vmatmul.mubr.f32.gmra.mrb[0].mxu0 %v4791
        %v5667 = vpop.f32.mrb[0].mxu0
        %v5668 = vadd.f32 %v5443, %v5667
        %v5669 = vpop.f32.mrb[0].mxu0
        %5670 = vmatprep.mubr.f32.mxu0 %v4952
        %5671 = vmatmul.mubr.f32.gmra.mrb[0].mxu0 %v4792
        %v5672 = vpop.f32.mrb[0].mxu0
        %v5673 = vadd.f32 %v5448, %v5672
        %v5674 = vpop.f32.mrb[0].mxu0
        %5675 = vmatprep.mubr.f32.mxu0 %v4953
        %5676 = vmatmul.mubr.f32.gmra.mrb[0].mxu0 %v4793
        %v5677 = vpop.f32.mrb[0].mxu0
        %v5678 = vadd.f32 %v5453, %v5677
        %v5679 = vpop.f32.mrb[0].mxu0
        %5680 = vmatprep.mubr.f32.mxu0 %v4954
        %5681 = vmatmul.mubr.f32.gmra.mrb[0].mxu0 %v4794
        %v5682 = vpop.f32.mrb[0].mxu0
        %v5683 = vadd.f32 %v5458, %v5682
        %v5684 = vpop.f32.mrb[0].mxu0
        %5685 = vmatprep.mubr.f32.mxu0 %v4955
        %5686 = vmatmul.mubr.f32.gmra.mrb[0].mxu0 %v4795
        %v5687 = vpop.f32.mrb[0].mxu0
        %v5688 = vadd.f32 %v5463, %v5687
        %v5689 = vpop.f32.mrb[0].mxu0
        %5690 = vmatprep.mubr.f32.mxu0 %v4956
        %5691 = vmatmul.mubr.f32.gmra.mrb[0].mxu0 %v4796
        %v5692 = vpop.f32.mrb[0].mxu0
        %v5693 = vadd.f32 %v5468, %v5692
        %v5694 = vpop.f32.mrb[0].mxu0
        %5695 = vmatprep.mubr.f32.mxu0 %v4957
        %5696 = vmatmul.mubr.f32.gmra.mrb[0].mxu0 %v4797
        %v5697 = vpop.f32.mrb[0].mxu0
        %v5698 = vadd.f32 %v5473, %v5697
        %v5699 = vpop.f32.mrb[0].mxu0
        %5700 = vmatprep.mubr.f32.mxu0 %v4958
        %5701 = vmatmul.mubr.f32.gmra.mrb[0].mxu0 %v4798
        %v5702 = vpop.f32.mrb[0].mxu0
        %v5703 = vadd.f32 %v5478, %v5702
        %v5704 = vpop.f32.mrb[0].mxu0
        %5705 = vmatprep.mubr.f32.mxu0 %v4959
        %5706 = vmatmul.mubr.f32.gmra.mrb[0].mxu0 %v4799
        %v5707 = vpop.f32.mrb[0].mxu0
        %v5708 = vadd.f32 %v5483, %v5707
        %v5709 = vpop.f32.mrb[0].mxu0
        %5710 = vmatprep.mubr.f32.mxu0 %v4960
        %5711 = vmatmul.mubr.f32.gmra.mrb[0].mxu0 %v4800
        %v5712 = vpop.f32.mrb[0].mxu0
        %v5713 = vadd.f32 %v5488, %v5712
        %v5714 = vpop.f32.mrb[0].mxu0
        %5715 = vmatprep.mubr.f32.mxu0 %v4961
        %5716 = vmatmul.mubr.f32.gmra.mrb[0].mxu0 %v4801
        %v5717 = vpop.f32.mrb[0].mxu0
        %v5718 = vadd.f32 %v5493, %v5717
        %v5719 = vpop.f32.mrb[0].mxu0
        %5720 = vmatprep.mubr.f32.mxu0 %v4962
        %5721 = vmatmul.mubr.f32.gmra.mrb[0].mxu0 %v4802
        %v5722 = vpop.f32.mrb[0].mxu0
        %v5723 = vadd.f32 %v5498, %v5722
        %v5724 = vpop.f32.mrb[0].mxu0
        %5725 = vmatprep.mubr.f32.mxu0 %v4963
        %5726 = vmatmul.mubr.f32.gmra.mrb[0].mxu0 %v4803
        %v5727 = vpop.f32.mrb[0].mxu0
        %v5728 = vadd.f32 %v5503, %v5727
        %v5729 = vpop.f32.mrb[0].mxu0
        %5730 = vmatprep.mubr.f32.mxu0 %v4964
        %5731 = vmatmul.mubr.f32.gmra.mrb[0].mxu0 %v4804
        %v5732 = vpop.f32.mrb[0].mxu0
        %v5733 = vadd.f32 %v5508, %v5732
        %v5734 = vpop.f32.mrb[0].mxu0
        %5735 = vdwg.mxu0
        %vm5736 = vcmp.gt.f32.partialorder %v514, 0.0
        %vm5737 = vcmp.gt.f32.partialorder %v515, 0.0
        %vm5738 = vcmp.gt.f32.partialorder %v516, 0.0
        %vm5739 = vcmp.gt.f32.partialorder %v517, 0.0
        %vm5740 = vcmp.gt.f32.partialorder %v518, 0.0
        %vm5741 = vcmp.gt.f32.partialorder %v519, 0.0
        %vm5742 = vcmp.gt.f32.partialorder %v520, 0.0
        %vm5743 = vcmp.gt.f32.partialorder %v521, 0.0
        %vm5744 = vcmp.gt.f32.partialorder %v522, 0.0
        %vm5745 = vcmp.gt.f32.partialorder %v523, 0.0
        %vm5746 = vcmp.gt.f32.partialorder %v524, 0.0
        %vm5747 = vcmp.gt.f32.partialorder %v525, 0.0
        %vm5748 = vcmp.gt.f32.partialorder %v526, 0.0
        %vm5749 = vcmp.gt.f32.partialorder %v527, 0.0
        %vm5750 = vcmp.gt.f32.partialorder %v528, 0.0
        %vm5751 = vcmp.gt.f32.partialorder %v529, 0.0
        %vm5752 = vcmp.gt.f32.partialorder %v530, 0.0
        %vm5753 = vcmp.gt.f32.partialorder %v531, 0.0
        %vm5754 = vcmp.gt.f32.partialorder %v532, 0.0
        %vm5755 = vcmp.gt.f32.partialorder %v533, 0.0
        %vm5756 = vcmp.gt.f32.partialorder %v534, 0.0
        %vm5757 = vcmp.gt.f32.partialorder %v535, 0.0
        %vm5758 = vcmp.gt.f32.partialorder %v536, 0.0
        %vm5759 = vcmp.gt.f32.partialorder %v537, 0.0
        %vm5760 = vcmp.gt.f32.partialorder %v538, 0.0
        %vm5761 = vcmp.gt.f32.partialorder %v539, 0.0
        %vm5762 = vcmp.gt.f32.partialorder %v540, 0.0
        %vm5763 = vcmp.gt.f32.partialorder %v541, 0.0
        %vm5764 = vcmp.gt.f32.partialorder %v542, 0.0
        %vm5765 = vcmp.gt.f32.partialorder %v543, 0.0
        %vm5766 = vcmp.gt.f32.partialorder %v544, 0.0
        %vm5767 = vcmp.gt.f32.partialorder %v545, 0.0
        %v5768 = vsel %vm5736, 1, 0
        %v5769 = vsel %vm5737, 1, 0
        %v5770 = vsel %vm5738, 1, 0
        %v5771 = vsel %vm5739, 1, 0
        %v5772 = vsel %vm5740, 1, 0
        %v5773 = vsel %vm5741, 1, 0
        %v5774 = vsel %vm5742, 1, 0
        %v5775 = vsel %vm5743, 1, 0
        %v5776 = vsel %vm5744, 1, 0
        %v5777 = vsel %vm5745, 1, 0
        %v5778 = vsel %vm5746, 1, 0
        %v5779 = vsel %vm5747, 1, 0
        %v5780 = vsel %vm5748, 1, 0
        %v5781 = vsel %vm5749, 1, 0
        %v5782 = vsel %vm5750, 1, 0
        %v5783 = vsel %vm5751, 1, 0
        %v5784 = vsel %vm5752, 1, 0
        %v5785 = vsel %vm5753, 1, 0
        %v5786 = vsel %vm5754, 1, 0
        %v5787 = vsel %vm5755, 1, 0
        %v5788 = vsel %vm5756, 1, 0
        %v5789 = vsel %vm5757, 1, 0
        %v5790 = vsel %vm5758, 1, 0
        %v5791 = vsel %vm5759, 1, 0
        %v5792 = vsel %vm5760, 1, 0
        %v5793 = vsel %vm5761, 1, 0
        %v5794 = vsel %vm5762, 1, 0
        %v5795 = vsel %vm5763, 1, 0
        %v5796 = vsel %vm5764, 1, 0
        %v5797 = vsel %vm5765, 1, 0
        %v5798 = vsel %vm5766, 1, 0
        %v5799 = vsel %vm5767, 1, 0
        %5800 = vset.pattern.permute.xlu0 0
        %5801 = vperm.xlu0 %5800, %v5768
        %v5802 = vpop.permute.xlu0 %5801
        %5803 = vset.pattern.permute.xlu0 0
        %5804 = vperm.xlu0 %5803, %v5769
        %v5805 = vpop.permute.xlu0 %5804
        %5806 = vset.pattern.permute.xlu0 0
        %5807 = vperm.xlu0 %5806, %v5770
        %v5808 = vpop.permute.xlu0 %5807
        %5809 = vset.pattern.permute.xlu0 0
        %5810 = vperm.xlu0 %5809, %v5771
        %v5811 = vpop.permute.xlu0 %5810
        %5812 = vset.pattern.permute.xlu0 0
        %5813 = vperm.xlu0 %5812, %v5772
        %v5814 = vpop.permute.xlu0 %5813
        %5815 = vset.pattern.permute.xlu0 0
        %5816 = vperm.xlu0 %5815, %v5773
        %v5817 = vpop.permute.xlu0 %5816
        %5818 = vset.pattern.permute.xlu0 0
        %5819 = vperm.xlu0 %5818, %v5774
        %v5820 = vpop.permute.xlu0 %5819
        %5821 = vset.pattern.permute.xlu0 0
        %5822 = vperm.xlu0 %5821, %v5775
        %v5823 = vpop.permute.xlu0 %5822
        %5824 = vset.pattern.permute.xlu0 0
        %5825 = vperm.xlu0 %5824, %v5776
        %v5826 = vpop.permute.xlu0 %5825
        %5827 = vset.pattern.permute.xlu0 0
        %5828 = vperm.xlu0 %5827, %v5777
        %v5829 = vpop.permute.xlu0 %5828
        %5830 = vset.pattern.permute.xlu0 0
        %5831 = vperm.xlu0 %5830, %v5778
        %v5832 = vpop.permute.xlu0 %5831
        %5833 = vset.pattern.permute.xlu0 0
        %5834 = vperm.xlu0 %5833, %v5779
        %v5835 = vpop.permute.xlu0 %5834
        %5836 = vset.pattern.permute.xlu0 0
        %5837 = vperm.xlu0 %5836, %v5780
        %v5838 = vpop.permute.xlu0 %5837
        %5839 = vset.pattern.permute.xlu0 0
        %5840 = vperm.xlu0 %5839, %v5781
        %v5841 = vpop.permute.xlu0 %5840
        %5842 = vset.pattern.permute.xlu0 0
        %5843 = vperm.xlu0 %5842, %v5782
        %v5844 = vpop.permute.xlu0 %5843
        %5845 = vset.pattern.permute.xlu0 0
        %5846 = vperm.xlu0 %5845, %v5783
        %v5847 = vpop.permute.xlu0 %5846
        %5848 = vset.pattern.permute.xlu0 0
        %5849 = vperm.xlu0 %5848, %v5784
        %v5850 = vpop.permute.xlu0 %5849
        %5851 = vset.pattern.permute.xlu0 0
        %5852 = vperm.xlu0 %5851, %v5785
        %v5853 = vpop.permute.xlu0 %5852
        %5854 = vset.pattern.permute.xlu0 0
        %5855 = vperm.xlu0 %5854, %v5786
        %v5856 = vpop.permute.xlu0 %5855
        %5857 = vset.pattern.permute.xlu0 0
        %5858 = vperm.xlu0 %5857, %v5787
        %v5859 = vpop.permute.xlu0 %5858
        %5860 = vset.pattern.permute.xlu0 0
        %5861 = vperm.xlu0 %5860, %v5788
        %v5862 = vpop.permute.xlu0 %5861
        %5863 = vset.pattern.permute.xlu0 0
        %5864 = vperm.xlu0 %5863, %v5789
        %v5865 = vpop.permute.xlu0 %5864
        %5866 = vset.pattern.permute.xlu0 0
        %5867 = vperm.xlu0 %5866, %v5790
        %v5868 = vpop.permute.xlu0 %5867
        %5869 = vset.pattern.permute.xlu0 0
        %5870 = vperm.xlu0 %5869, %v5791
        %v5871 = vpop.permute.xlu0 %5870
        %5872 = vset.pattern.permute.xlu0 0
        %5873 = vperm.xlu0 %5872, %v5792
        %v5874 = vpop.permute.xlu0 %5873
        %5875 = vset.pattern.permute.xlu0 0
        %5876 = vperm.xlu0 %5875, %v5793
        %v5877 = vpop.permute.xlu0 %5876
        %5878 = vset.pattern.permute.xlu0 0
        %5879 = vperm.xlu0 %5878, %v5794
        %v5880 = vpop.permute.xlu0 %5879
        %5881 = vset.pattern.permute.xlu0 0
        %5882 = vperm.xlu0 %5881, %v5795
        %v5883 = vpop.permute.xlu0 %5882
        %5884 = vset.pattern.permute.xlu0 0
        %5885 = vperm.xlu0 %5884, %v5796
        %v5886 = vpop.permute.xlu0 %5885
        %5887 = vset.pattern.permute.xlu0 0
        %5888 = vperm.xlu0 %5887, %v5797
        %v5889 = vpop.permute.xlu0 %5888
        %5890 = vset.pattern.permute.xlu0 0
        %5891 = vperm.xlu0 %5890, %v5798
        %v5892 = vpop.permute.xlu0 %5891
        %5893 = vset.pattern.permute.xlu0 0
        %5894 = vperm.xlu0 %5893, %v5799
        %v5895 = vpop.permute.xlu0 %5894
        %vm5896 = vcmp.eq.s32.totalorder %v5802, 1
        %vm5897 = vcmp.eq.s32.totalorder %v5805, 1
        %vm5898 = vcmp.eq.s32.totalorder %v5808, 1
        %vm5899 = vcmp.eq.s32.totalorder %v5811, 1
        %vm5900 = vcmp.eq.s32.totalorder %v5814, 1
        %vm5901 = vcmp.eq.s32.totalorder %v5817, 1
        %vm5902 = vcmp.eq.s32.totalorder %v5820, 1
        %vm5903 = vcmp.eq.s32.totalorder %v5823, 1
        %vm5904 = vcmp.eq.s32.totalorder %v5826, 1
        %vm5905 = vcmp.eq.s32.totalorder %v5829, 1
        %vm5906 = vcmp.eq.s32.totalorder %v5832, 1
        %vm5907 = vcmp.eq.s32.totalorder %v5835, 1
        %vm5908 = vcmp.eq.s32.totalorder %v5838, 1
        %vm5909 = vcmp.eq.s32.totalorder %v5841, 1
        %vm5910 = vcmp.eq.s32.totalorder %v5844, 1
        %vm5911 = vcmp.eq.s32.totalorder %v5847, 1
        %vm5912 = vcmp.eq.s32.totalorder %v5850, 1
        %vm5913 = vcmp.eq.s32.totalorder %v5853, 1
        %vm5914 = vcmp.eq.s32.totalorder %v5856, 1
        %vm5915 = vcmp.eq.s32.totalorder %v5859, 1
        %vm5916 = vcmp.eq.s32.totalorder %v5862, 1
        %vm5917 = vcmp.eq.s32.totalorder %v5865, 1
        %vm5918 = vcmp.eq.s32.totalorder %v5868, 1
        %vm5919 = vcmp.eq.s32.totalorder %v5871, 1
        %vm5920 = vcmp.eq.s32.totalorder %v5874, 1
        %vm5921 = vcmp.eq.s32.totalorder %v5877, 1
        %vm5922 = vcmp.eq.s32.totalorder %v5880, 1
        %vm5923 = vcmp.eq.s32.totalorder %v5883, 1
        %vm5924 = vcmp.eq.s32.totalorder %v5886, 1
        %vm5925 = vcmp.eq.s32.totalorder %v5889, 1
        %vm5926 = vcmp.eq.s32.totalorder %v5892, 1
        %vm5927 = vcmp.eq.s32.totalorder %v5895, 1
        %v5928 = vsel %vm5896, %v5578, %v482
        %v5929 = vsel %vm5897, %v5583, %v483
        %v5930 = vsel %vm5898, %v5588, %v484
        %v5931 = vsel %vm5899, %v5593, %v485
        %v5932 = vsel %vm5900, %v5598, %v486
        %v5933 = vsel %vm5901, %v5603, %v487
        %v5934 = vsel %vm5902, %v5608, %v488
        %v5935 = vsel %vm5903, %v5613, %v489
        %v5936 = vsel %vm5904, %v5618, %v490
        %v5937 = vsel %vm5905, %v5623, %v491
        %v5938 = vsel %vm5906, %v5628, %v492
        %v5939 = vsel %vm5907, %v5633, %v493
        %v5940 = vsel %vm5908, %v5638, %v494
        %v5941 = vsel %vm5909, %v5643, %v495
        %v5942 = vsel %vm5910, %v5648, %v496
        %v5943 = vsel %vm5911, %v5653, %v497
        %v5944 = vsel %vm5912, %v5658, %v498
        %v5945 = vsel %vm5913, %v5663, %v499
        %v5946 = vsel %vm5914, %v5668, %v500
        %v5947 = vsel %vm5915, %v5673, %v501
        %v5948 = vsel %vm5916, %v5678, %v502
        %v5949 = vsel %vm5917, %v5683, %v503
        %v5950 = vsel %vm5918, %v5688, %v504
        %v5951 = vsel %vm5919, %v5693, %v505
        %v5952 = vsel %vm5920, %v5698, %v506
        %v5953 = vsel %vm5921, %v5703, %v507
        %v5954 = vsel %vm5922, %v5708, %v508
        %v5955 = vsel %vm5923, %v5713, %v509
        %v5956 = vsel %vm5924, %v5718, %v510
        %v5957 = vsel %vm5925, %v5723, %v511
        %v5958 = vsel %vm5926, %v5728, %v512
        %v5959 = vsel %vm5927, %v5733, %v513
        %5960 = vst [vmem:[%s472] sm:$0xff] %v5928
        %5961 = vst [vmem:[%s472 + $0x8] sm:$0xff] %v5929
        %5962 = vst [vmem:[%s472 + $0x10] sm:$0xff] %v5930
        %5963 = vst [vmem:[%s472 + $0x18] sm:$0xff] %v5931
        %5964 = vst [vmem:[%s472 + $0x20] sm:$0xff] %v5932
        %5965 = vst [vmem:[%s472 + $0x28] sm:$0xff] %v5933
        %5966 = vst [vmem:[%s472 + $0x30] sm:$0xff] %v5934
        %5967 = vst [vmem:[%s472 + $0x38] sm:$0xff] %v5935
        %5968 = vst [vmem:[%s472 + $0x40] sm:$0xff] %v5936
        %5969 = vst [vmem:[%s472 + $0x48] sm:$0xff] %v5937
        %5970 = vst [vmem:[%s472 + $0x50] sm:$0xff] %v5938
        %5971 = vst [vmem:[%s472 + $0x58] sm:$0xff] %v5939
        %5972 = vst [vmem:[%s472 + $0x60] sm:$0xff] %v5940
        %5973 = vst [vmem:[%s472 + $0x68] sm:$0xff] %v5941
        %5974 = vst [vmem:[%s472 + $0x70] sm:$0xff] %v5942
        %5975 = vst [vmem:[%s472 + $0x78] sm:$0xff] %v5943
        %5976 = vst [vmem:[%s472 + $0x80] sm:$0xff] %v5944
        %5977 = vst [vmem:[%s472 + $0x88] sm:$0xff] %v5945
        %5978 = vst [vmem:[%s472 + $0x90] sm:$0xff] %v5946
        %5979 = vst [vmem:[%s472 + $0x98] sm:$0xff] %v5947
        %5980 = vst [vmem:[%s472 + $0xa0] sm:$0xff] %v5948
        %5981 = vst [vmem:[%s472 + $0xa8] sm:$0xff] %v5949
        %5982 = vst [vmem:[%s472 + $0xb0] sm:$0xff] %v5950
        %5983 = vst [vmem:[%s472 + $0xb8] sm:$0xff] %v5951
        %5984 = vst [vmem:[%s472 + $0xc0] sm:$0xff] %v5952
        %5985 = vst [vmem:[%s472 + $0xc8] sm:$0xff] %v5953
        %5986 = vst [vmem:[%s472 + $0xd0] sm:$0xff] %v5954
        %5987 = vst [vmem:[%s472 + $0xd8] sm:$0xff] %v5955
        %5988 = vst [vmem:[%s472 + $0xe0] sm:$0xff] %v5956
        %5989 = vst [vmem:[%s472 + $0xe8] sm:$0xff] %v5957
        %5990 = vst [vmem:[%s472 + $0xf0] sm:$0xff] %v5958
        %5991 = vst [vmem:[%s472 + $0xf8] sm:$0xff] %v5959
        %s5992 = sand.u32 %s221, 1
        %s5993 = scalar_lea.sflag [#allocation4], %s5992
        %s5994 = sand.u32 %s221, 1
        %s5995 = smul.addr %s5994, 256
        %s5996 = scalar_lea.vmem [#allocation14], %s5995
        // Predicated region
        $region81: #{tpu_custom_call.1} parent=51 // pred_check
          %p5997 = pneg %p231
        $region82: #{tpu_custom_call.1} parent=51 // pred_check_branch
          %5999 = sbr.rel (%p5997) target = $region84
        $region83: #{tpu_custom_call.1} parent=51 // pred_region
          %s6000 = smul.u32 32, %s30
          %s6002 = ssub.s32 4096, 4096
          %6003 = vsyncadd %s5993, %s6002
          %s6004 = smul.addr %s6000, 128
          %s6005 = scalar_lea.hbm %s8, %s6004
          %s6006 = sshll.u32 %s5996, 4
          %s6007 = int_to_ptr.vmem [resolvable:$true] %s6006
          %6012 = dma.vmem_to_hbm [thread:$0]  %s6007, 4096, %s6005, %s5993, 128, 128, 8
        $region84: #{tpu_custom_call.1} parent=51 // pred_fallthru
          _
      $region52: #{tpu_custom_call.1} parent=5 // pred_fallthru
        _
      %p6013 = scmp.le.s32.totalorder 2, %s25
      // Predicated region
      $region85: #{tpu_custom_call.1} parent=5 // pred_check
        %p6014 = pneg %p6013
      $region86: #{tpu_custom_call.1} parent=5 // pred_check_branch
        %6016 = sbr.rel (%p6014) target = $region88
      $region87: #{tpu_custom_call.1} parent=5 // pred_region
        %s6017 = ssub.s32 %s25, 2
        // Predicated region
        $region89: #{tpu_custom_call.1} parent=87 // pred_check
          %p6018 = pneg %p237
        $region90: #{tpu_custom_call.1} parent=87 // pred_check_branch
          %6020 = sbr.rel (%p6018) target = $region92
        $region91: #{tpu_custom_call.1} parent=87 // pred_region
          %s6021 = sand.u32 %s222, 1
          %s6022 = scalar_lea.sflag [#allocation4], %s6021
          %s6023 = sand.u32 %s222, 1
          %s6024 = smul.addr %s6023, 256
          %s6025 = scalar_lea.vmem [#allocation14], %s6024
          %6026 = dma.done %s6022, 4096
        $region92: #{tpu_custom_call.1} parent=87 // pred_fallthru
          _
      $region88: #{tpu_custom_call.1} parent=5 // pred_fallthru
        _
    $region6: #{tpu_custom_call.1} parent=1 // loop_footer
      %s29 = sadd.s32 1, %s25
    $region7: #{tpu_custom_call.1} parent=1 // loop_footer_branch
      %24 = sbr.rel target = $region3
    $region8: #{tpu_custom_call.1} parent=1 // loop_exit
      _
    %6027 = vsyncpa [#allocation3], 1
    %s6028 = scalar_lea.sflag [#allocation3], 1
    %6029 = vsyncpa %s6028, 1
    %6030 = vsyncpa [#allocation6], 1
    %s6031 = scalar_lea.sflag [#allocation6], 1
    %6032 = vsyncpa %s6031, 1
    %6033 = vsyncpa [#allocation9], 1
    %6034 = vsyncpa [#allocation12], 1
    %6035 = vsyncpa [#allocation4], 1
    %s6036 = scalar_lea.sflag [#allocation4], 1
    %6037 = vsyncpa %s6036, 1

</llo_original>
